<compile_context>
chip_gen: v6e
topology: v6e:2x2x1
jax: 0.10.0
libtpu: 0.0.40
codegen_flags: <defaults>
</compile_context>

<pallas_src>
import functools
import math

import jax
import jax.numpy as jnp
from jax.experimental import pallas as pl
from jax.experimental.pallas import tpu as pltpu


# --------------------------------------------------------------------------
# Kernel 1: head-group Q/K/V projection + softmax(Q K^T) V
# --------------------------------------------------------------------------
def _attention_kernel(xq_ref, xkv_ref, wq_ref, bq_ref, wkv_ref, bkv_ref,
                      ctx_ref, *rest, head_dim, heads_per_step, compute_dtype,
                      need_weights, approx_recip):
    if need_weights:
        attnw_ref, k_scr, v_scr = rest
    else:
        k_scr, v_scr = rest

    qt = pl.program_id(2)
    d = head_dim
    hp = heads_per_step

    # Fused K/V projection: computed once per (batch, head-group), reused
    # across all query tiles (qt is the trailing "arbitrary" axis).
    @pl.when(qt == 0)
    def _():
        kv = jnp.dot(xkv_ref[0].astype(compute_dtype), wkv_ref[0],
                     preferred_element_type=jnp.float32) + bkv_ref[0]  # (S, 2*hp*d)
        k_scr[...] = kv[:, :hp * d].astype(k_scr.dtype)
        v_scr[...] = kv[:, hp * d:].astype(v_scr.dtype)

    # Q projection for this tile, all hp heads at once (scaling folded into
    # wq/bq in the wrapper).  N = hp*d fills the 256-wide MXU when d == 128.
    q_all = jnp.dot(xq_ref[0].astype(compute_dtype), wq_ref[0],
                    preferred_element_type=jnp.float32) + bq_ref[0]     # (tq, hp*d)
    q_all = q_all.astype(compute_dtype)

    k_all = k_scr[...]
    v_all = v_scr[...]

    ctx_parts = []
    for i in range(hp):                 # static unroll over heads in the group
        lo, hi = i * d, (i + 1) * d
        # scores = q_i @ k_i^T, contracting head_dim; dot_general consumes the
        # transposed operand directly (no materialized transpose).
        s = jax.lax.dot_general(q_all[:, lo:hi], k_all[:, lo:hi],
                                (((1,), (1,)), ((), ())),
                                preferred_element_type=jnp.float32)     # (tq, S)
        # softmax in float32 (matches F.softmax(..., dtype=torch.float32)).
        m = jnp.max(s, axis=-1, keepdims=True)
        e = jnp.exp(s - m)
        denom = jnp.sum(e, axis=-1, keepdims=True)
        p = e * pl.reciprocal(denom, approx=approx_recip)
        if need_weights:
            attnw_ref[i, 0] = p.astype(attnw_ref.dtype)
        ctx_parts.append(jnp.dot(p.astype(compute_dtype), v_all[:, lo:hi],
                                 preferred_element_type=jnp.float32))   # (tq, d)

    # Context written in the module's concatenated-head (B, T, E) layout.
    ctx_ref[0] = jnp.concatenate(ctx_parts, axis=-1).astype(ctx_ref.dtype)


# --------------------------------------------------------------------------
# Kernel 2: output projection, W_o kept resident (single full-K matmul/tile)
# --------------------------------------------------------------------------
def _out_proj_kernel(ctx_ref, wo_ref, bo_ref, out_ref, *, compute_dtype):
    out = jnp.dot(ctx_ref[0].astype(compute_dtype), wo_ref[...],
                  preferred_element_type=jnp.float32) + bo_ref[...]
    out_ref[0] = out.astype(out_ref.dtype)


def _pick_tile(n, target):
    """Largest divisor of n that is <= target AND a multiple of 8 (sublane
    alignment).  Falls back to n itself (full-extent blocks are always legal)."""
    if n <= target:
        return n
    for t in range(min(target, n), 7, -1):
        if n % t == 0 and t % 8 == 0:
            return t
    return n


def _heads_per_step(num_heads, head_dim):
    """Heads processed per grid step: hp must divide num_heads and hp*head_dim
    must be lane-aligned (128) for the concatenated-head ctx writeback; prefer
    the smallest hp with hp*head_dim >= 256 (fills the v6e/v7x MXU)."""
    candidates = [hp for hp in range(1, num_heads + 1)
                  if num_heads % hp == 0 and (hp * head_dim) % 128 == 0]
    if not candidates:
        return None
    for hp in candidates:
        if hp * head_dim >= 256:
            return hp
    return candidates[-1]


def multihead_attention(query, key, value, params, *, num_heads,
                        q_tile=256, need_weights=True,
                        compute_dtype=jnp.bfloat16, weights_dtype=None):
    """Forward pass of torchscale MultiheadAttention (self-attention config)."""
    # The fused K/V projection requires key is value (true for the reproduced
    # self-attention config).  Guard instead of silently mis-projecting V.
    if value is not key:
        raise NotImplementedError(
            "fused K/V projection path assumes key is value (self-attention); "
            "pass the same array for key and value")
    # TODO(synk): incremental_state / key_padding_mask / attn_mask / rel_pos /
    # xpos / inner_attn_ln(subln) / dropout>0 are disabled in this config.

    bsz, tgt_len, embed_dim = query.shape
    _, src_len, _ = key.shape
    E, H = embed_dim, num_heads
    d = E // H
    scaling = d ** (-0.5)

    hp = _heads_per_step(H, d)
    if hp is None:
        # TODO(synk): head dims that cannot be lane-aligned by head grouping.
        raise NotImplementedError("head grouping cannot be lane (128) aligned")
    G = H // hp

    if weights_dtype is None:
        # The (H,B,T,S) weights writeback is the dominant HBM stream; emit it
        # in the (narrow) compute dtype by default.
        weights_dtype = compute_dtype

    wq, bq = params["q"]
    wk, bk = params["k"]
    wv, bv = params["v"]
    wo, bo = params["o"]

    # nn.Linear does y = x @ W.T + b.  Pre-transpose + regroup per head-group
    # so the kernel contracts on full, lane-aligned blocks:
    #   wq_g : (G, E, hp*d)    (scaling folded in)
    #   wkv_g: (G, E, 2*hp*d)  (K and V fused per head-group)
    #   wo_t : (E, E)          (kept resident in kernel 2)
    wq_g = (wq.T.reshape(E, G, hp * d).transpose(1, 0, 2) * scaling).astype(compute_dtype)
    bq_g = (bq.reshape(G, 1, hp * d) * scaling).astype(jnp.float32)
    wkv_g = jnp.concatenate([wk.T.reshape(E, G, hp * d),
                             wv.T.reshape(E, G, hp * d)],
                            axis=-1).transpose(1, 0, 2).astype(compute_dtype)
    bkv_g = jnp.concatenate([bk.reshape(G, 1, hp * d),
                             bv.reshape(G, 1, hp * d)], axis=-1).astype(jnp.float32)
    wo_t = wo.T.astype(compute_dtype)
    bo_r = bo.reshape(1, E).astype(jnp.float32)

    tq = _pick_tile(tgt_len, q_tile)
    nq = tgt_len // tq
    approx_recip = jnp.dtype(compute_dtype) != jnp.dtype(jnp.float32)
    vmem_limit = 48 * 1024 * 1024   # leave headroom on v7x (64 MiB physical)

    # ---------------- Kernel 1: attention per (batch, head-group, q-tile) ----
    kernel1 = functools.partial(
        _attention_kernel, head_dim=d, heads_per_step=hp,
        compute_dtype=compute_dtype, need_weights=need_weights,
        approx_recip=approx_recip)

    out_shapes = [jax.ShapeDtypeStruct((bsz, tgt_len, E), compute_dtype)]
    out_specs = [pl.BlockSpec((1, tq, hp * d), lambda b, g, t: (b, t, g))]
    if need_weights:
        # Written directly in the module's final (num_heads, bsz, T, S) layout.
        out_shapes.append(
            jax.ShapeDtypeStruct((H, bsz, tgt_len, src_len), weights_dtype))
        out_specs.append(
            pl.BlockSpec((hp, 1, tq, src_len), lambda b, g, t: (g, b, t, 0)))

    def run_attention(kv_pipeline_mode):
        kv_kwargs = {} if kv_pipeline_mode is None else {
            "pipeline_mode": kv_pipeline_mode}
        in_specs = [
            pl.BlockSpec((1, tq, E), lambda b, g, t: (b, t, 0)),          # query tile
            # key/value slab: block index constant along (g, t) -> resident per
            # batch; single-buffer it (second pipeline buffer would be dead VMEM).
            pl.BlockSpec((1, src_len, E), lambda b, g, t: (b, 0, 0), **kv_kwargs),
            pl.BlockSpec((1, E, hp * d), lambda b, g, t: (g, 0, 0)),      # W_q group
            pl.BlockSpec((1, 1, hp * d), lambda b, g, t: (g, 0, 0)),      # b_q group
            pl.BlockSpec((1, E, 2 * hp * d), lambda b, g, t: (g, 0, 0)),  # W_kv group
            pl.BlockSpec((1, 1, 2 * hp * d), lambda b, g, t: (g, 0, 0)),  # b_kv group
        ]
        return pl.pallas_call(
            kernel1,
            out_shape=tuple(out_shapes),
            grid_spec=pltpu.PrefetchScalarGridSpec(
                num_scalar_prefetch=0,
                grid=(bsz, G, nq),
                in_specs=in_specs,
                out_specs=tuple(out_specs),
                scratch_shapes=[pltpu.VMEM((src_len, hp * d), compute_dtype),
                                pltpu.VMEM((src_len, hp * d), compute_dtype)]),
            compiler_params=pltpu.CompilerParams(
                dimension_semantics=("parallel", "parallel", "arbitrary"),
                vmem_limit_bytes=vmem_limit),
        )(query, key, wq_g, bq_g, wkv_g, bkv_g)

    try:
        res = run_attention(pl.Buffered(1))
    except Exception:
        # Fallback for jax versions without BlockSpec pipeline_mode support:
        # default (double-buffered) pipelining of the K/V slab.
        res = run_attention(None)

    if need_weights:
        ctx, attn_weights = res
    else:
        (ctx,) = res
        attn_weights = None

    # ---------------- Kernel 2: out projection, W_o resident -----------------
    kernel2 = functools.partial(_out_proj_kernel, compute_dtype=compute_dtype)
    out = pl.pallas_call(
        kernel2,
        out_shape=jax.ShapeDtypeStruct((bsz, tgt_len, E), query.dtype),
        grid_spec=pltpu.PrefetchScalarGridSpec(
            num_scalar_prefetch=0,
            grid=(bsz, nq),
            in_specs=[
                pl.BlockSpec((1, tq, E), lambda b, t: (b, t, 0)),
                pl.BlockSpec((E, E), lambda b, t: (0, 0)),    # W_o resident
                pl.BlockSpec((1, E), lambda b, t: (0, 0)),
            ],
            out_specs=pl.BlockSpec((1, tq, E), lambda b, t: (b, t, 0))),
        compiler_params=pltpu.CompilerParams(
            dimension_semantics=("parallel", "parallel"),
            vmem_limit_bytes=vmem_limit),
    )(ctx, wo_t, bo_r)

    return out, attn_weights


# --------------------------------------------------------------------------
# Pure-JAX reference replicating the PyTorch forward (HIGHEST precision).
# --------------------------------------------------------------------------
def _reference(query, key, value, params, *, num_heads):
    bsz, tgt_len, embed_dim = query.shape
    src_len = key.shape[1]
    head_dim = embed_dim // num_heads
    scaling = head_dim ** (-0.5)
    hi = jax.lax.Precision.HIGHEST

    def lin(x, w, b):
        return jnp.dot(x, w.T, precision=hi) + b

    q = lin(query, *params["q"]) * scaling
    k = lin(key, *params["k"])
    v = lin(value, *params["v"])

    q = q.reshape(bsz, tgt_len, num_heads, head_dim).transpose(0, 2, 1, 3)
    k = k.reshape(bsz, src_len, num_heads, head_dim).transpose(0, 2, 1, 3)
    v = v.reshape(bsz, src_len, num_heads, head_dim).transpose(0, 2, 1, 3)

    scores = jnp.einsum("bhtd,bhsd->bhts", q, k, precision=hi)
    w = jax.nn.softmax(scores.astype(jnp.float32), axis=-1).astype(scores.dtype)
    attn = jnp.einsum("bhts,bhsd->bhtd", w, v, precision=hi)
    attn = attn.transpose(0, 2, 1, 3).reshape(bsz, tgt_len, embed_dim)
    out = lin(attn, *params["o"])
    return out, jnp.transpose(w, (1, 0, 2, 3))


if __name__ == "__main__":
    bsz, seq, embed_dim, num_heads = 2, 256, 256, 2   # head_dim = 128 (lane aligned)

    key0 = jax.random.PRNGKey(0)
    ks = jax.random.split(key0, 8)

    def xavier(k, shape, gain=1.0):
        fan_out, fan_in = shape
        bound = gain * (6.0 / (fan_in + fan_out)) ** 0.5
        return jax.random.uniform(k, shape, jnp.float32, -bound, bound)

    g = 1.0 / math.sqrt(2.0)
    params = {
        "q": (xavier(ks[0], (embed_dim, embed_dim), g),
              jax.random.normal(ks[1], (embed_dim,)) * 0.02),
        "k": (xavier(ks[2], (embed_dim, embed_dim), g),
              jax.random.normal(ks[3], (embed_dim,)) * 0.02),
        "v": (xavier(ks[4], (embed_dim, embed_dim), g),
              jax.random.normal(ks[5], (embed_dim,)) * 0.02),
        "o": (xavier(ks[6], (embed_dim, embed_dim), 1.0),
              jnp.zeros((embed_dim,), jnp.float32)),
    }

    # self-attention: key is value is query (same array -> fused KV path)
    query = jax.random.normal(ks[7], (bsz, seq, embed_dim), jnp.float32)

    ref_out, ref_w = _reference(query, query, query, params, num_heads=num_heads)

    # 1) float32 MXU path: check against the pure-JAX reference.
    out_f32, w_f32 = multihead_attention(query, query, query, params,
                                         num_heads=num_heads, q_tile=128,
                                         compute_dtype=jnp.float32)
    out_f32 = jax.block_until_ready(out_f32)
    w_f32 = jax.block_until_ready(w_f32)
    assert out_f32.shape == (bsz, seq, embed_dim)
    assert w_f32.shape == (num_heads, bsz, seq, seq)
    assert jnp.allclose(out_f32, ref_out, atol=1e-2, rtol=1e-2), \
        float(jnp.max(jnp.abs(out_f32 - ref_out)))
    assert jnp.allclose(w_f32, ref_w, atol=1e-2, rtol=1e-2)

    # 2) bfloat16 MXU fast path (default compute dtype): loose check.
    out_bf16, w_bf16 = multihead_attention(query, query, query, params,
                                           num_heads=num_heads, q_tile=128)
    out_bf16 = jax.block_until_ready(out_bf16)
    w_bf16 = jax.block_until_ready(w_bf16)
    assert jnp.allclose(out_bf16.astype(jnp.float32), ref_out, atol=6e-2, rtol=6e-2)
    assert jnp.allclose(w_bf16.astype(jnp.float32), ref_w, atol=6e-2, rtol=6e-2)

    # 3) need_weights=False path (skips the attention-weights HBM writeback).
    out_nw, w_nw = multihead_attention(query, query, query, params,
                                       num_heads=num_heads, q_tile=128,
                                       compute_dtype=jnp.float32,
                                       need_weights=False)
    out_nw = jax.block_until_ready(out_nw)
    assert w_nw is None
    assert jnp.allclose(out_nw, out_f32, atol=1e-4, rtol=1e-4)

    print("KERNEL_OK")
</pallas_src>

<mosaic_0001>
module attributes {stable_mosaic.version = 11 : i64} {
  func.func @_attention_kernel(%arg0: i32, %arg1: i32, %arg2: i32, %arg3: memref<1x128x256xf32, #tpu.memory_space<vmem>>, %arg4: memref<1x256x256xf32, #tpu.memory_space<vmem>>, %arg5: memref<1x256x256xf32, #tpu.memory_space<vmem>>, %arg6: memref<1x1x256xf32, #tpu.memory_space<vmem>>, %arg7: memref<1x256x512xf32, #tpu.memory_space<vmem>>, %arg8: memref<1x1x512xf32, #tpu.memory_space<vmem>>, %arg9: memref<1x128x256xf32, #tpu.memory_space<vmem>>, %arg10: memref<2x1x128x256xf32, #tpu.memory_space<vmem>>, %arg11: memref<256x256xf32, #tpu.memory_space<vmem>>, %arg12: memref<256x256xf32, #tpu.memory_space<vmem>>) attributes {dimension_semantics = [#tpu.dimension_semantics<parallel>, #tpu.dimension_semantics<parallel>, #tpu.dimension_semantics<arbitrary>], iteration_bounds = array<i64: 2, 1, 2>, scalar_prefetch = 0 : i64, scratch_operands = 2 : i64, tpu.core_type = #tpu.core_type<tc>, window_params = [{transform_indices = @transform_0, window_bounds = array<i64: 1, 128, 256>}, {pipeline_mode = #tpu.pipeline_mode<synchronous>, transform_indices = @transform_1, window_bounds = array<i64: 1, 256, 256>}, {transform_indices = @transform_2, window_bounds = array<i64: 1, 256, 256>}, {transform_indices = @transform_3, window_bounds = array<i64: 1, 1, 256>}, {transform_indices = @transform_4, window_bounds = array<i64: 1, 256, 512>}, {transform_indices = @transform_5, window_bounds = array<i64: 1, 1, 512>}, {transform_indices = @transform_6, window_bounds = array<i64: 1, 128, 256>}, {transform_indices = @transform_7, window_bounds = array<i64: 2, 1, 128, 256>}]} {
    %c0_i32 = arith.constant 0 : i32
    %0 = arith.cmpi eq, %arg2, %c0_i32 : i32
    %1 = arith.extui %0 : i1 to i32
    %c0_i32_0 = arith.constant 0 : i32
    %2 = arith.cmpi ne, %1, %c0_i32_0 : i32
    scf.if %2 {
      %c0_31 = arith.constant 0 : index
      %c0_32 = arith.constant 0 : index
      %c0_33 = arith.constant 0 : index
      %54 = vector.load %arg4[%c0_31, %c0_32, %c0_33] : memref<1x256x256xf32, #tpu.memory_space<vmem>>, vector<1x256x256xf32>
      %55 = vector.shape_cast %54 : vector<1x256x256xf32> to vector<256x256xf32>
      %c0_34 = arith.constant 0 : index
      %c0_35 = arith.constant 0 : index
      %c0_36 = arith.constant 0 : index
      %56 = vector.load %arg7[%c0_34, %c0_35, %c0_36] : memref<1x256x512xf32, #tpu.memory_space<vmem>>, vector<1x256x512xf32>
      %57 = vector.shape_cast %56 : vector<1x256x512xf32> to vector<256x512xf32>
      %cst_37 = arith.constant dense<0.000000e+00> : vector<256x512xf32>
      %58 = tpu.matmul %55, %57, %cst_37 {dimension_numbers = #tpu.dot_dimension_numbers<[1], [0], [0], [1], [0, 0, 1, 1], [], []>} : vector<256x256xf32>, vector<256x512xf32>, vector<256x512xf32> -> vector<256x512xf32>
      %c0_38 = arith.constant 0 : index
      %c0_39 = arith.constant 0 : index
      %c0_40 = arith.constant 0 : index
      %59 = vector.load %arg8[%c0_38, %c0_39, %c0_40] : memref<1x1x512xf32, #tpu.memory_space<vmem>>, vector<1x1x512xf32>
      %60 = vector.shape_cast %59 : vector<1x1x512xf32> to vector<1x512xf32>
      %61 = vector.broadcast %60 : vector<1x512xf32> to vector<256x512xf32>
      %62 = arith.addf %58, %61 : vector<256x512xf32>
      %63 = vector.extract_strided_slice %62 {offsets = [0, 0], sizes = [256, 256], strides = [1, 1]} : vector<256x512xf32> to vector<256x256xf32>
      %c0_41 = arith.constant 0 : index
      %c0_42 = arith.constant 0 : index
      %64 = vector.load %arg11[%c0_41, %c0_42] : memref<256x256xf32, #tpu.memory_space<vmem>>, vector<256x256xf32>
      tpu.vector_store %arg11[%c0_41, %c0_42], %63 {strides = array<i32>} : memref<256x256xf32, #tpu.memory_space<vmem>>, vector<256x256xf32>,
      %65 = vector.extract_strided_slice %62 {offsets = [0, 256], sizes = [256, 256], strides = [1, 1]} : vector<256x512xf32> to vector<256x256xf32>
      %c0_43 = arith.constant 0 : index
      %c0_44 = arith.constant 0 : index
      %66 = vector.load %arg12[%c0_43, %c0_44] : memref<256x256xf32, #tpu.memory_space<vmem>>, vector<256x256xf32>
      tpu.vector_store %arg12[%c0_43, %c0_44], %65 {strides = array<i32>} : memref<256x256xf32, #tpu.memory_space<vmem>>, vector<256x256xf32>,
    } else {
    }
    %c0 = arith.constant 0 : index
    %c0_1 = arith.constant 0 : index
    %c0_2 = arith.constant 0 : index
    %3 = vector.load %arg3[%c0, %c0_1, %c0_2] : memref<1x128x256xf32, #tpu.memory_space<vmem>>, vector<1x128x256xf32>
    %4 = vector.shape_cast %3 : vector<1x128x256xf32> to vector<128x256xf32>
    %c0_3 = arith.constant 0 : index
    %c0_4 = arith.constant 0 : index
    %c0_5 = arith.constant 0 : index
    %5 = vector.load %arg5[%c0_3, %c0_4, %c0_5] : memref<1x256x256xf32, #tpu.memory_space<vmem>>, vector<1x256x256xf32>
    %6 = vector.shape_cast %5 : vector<1x256x256xf32> to vector<256x256xf32>
    %cst = arith.constant dense<0.000000e+00> : vector<128x256xf32>
    %7 = tpu.matmul %4, %6, %cst {dimension_numbers = #tpu.dot_dimension_numbers<[1], [0], [0], [1], [0, 0, 1, 1], [], []>} : vector<128x256xf32>, vector<256x256xf32>, vector<128x256xf32> -> vector<128x256xf32>
    %c0_6 = arith.constant 0 : index
    %c0_7 = arith.constant 0 : index
    %c0_8 = arith.constant 0 : index
    %8 = vector.load %arg6[%c0_6, %c0_7, %c0_8] : memref<1x1x256xf32, #tpu.memory_space<vmem>>, vector<1x1x256xf32>
    %9 = vector.shape_cast %8 : vector<1x1x256xf32> to vector<1x256xf32>
    %10 = vector.broadcast %9 : vector<1x256xf32> to vector<128x256xf32>
    %11 = arith.addf %7, %10 : vector<128x256xf32>
    %c0_9 = arith.constant 0 : index
    %c0_10 = arith.constant 0 : index
    %12 = vector.load %arg11[%c0_9, %c0_10] : memref<256x256xf32, #tpu.memory_space<vmem>>, vector<256x256xf32>
    %c0_11 = arith.constant 0 : index
    %c0_12 = arith.constant 0 : index
    %13 = vector.load %arg12[%c0_11, %c0_12] : memref<256x256xf32, #tpu.memory_space<vmem>>, vector<256x256xf32>
    %14 = vector.extract_strided_slice %11 {offsets = [0, 0], sizes = [128, 128], strides = [1, 1]} : vector<128x256xf32> to vector<128x128xf32>
    %15 = vector.extract_strided_slice %12 {offsets = [0, 0], sizes = [256, 128], strides = [1, 1]} : vector<256x256xf32> to vector<256x128xf32>
    %cst_13 = arith.constant dense<0.000000e+00> : vector<128x256xf32>
    %16 = tpu.matmul %14, %15, %cst_13 {dimension_numbers = #tpu.dot_dimension_numbers<[1], [1], [0], [0], [0, 0, 1, 0], [], []>} : vector<128x128xf32>, vector<256x128xf32>, vector<128x256xf32> -> vector<128x256xf32>
    %cst_14 = arith.constant dense<0xFF800000> : vector<128xf32>
    %17 = vector.multi_reduction <maximumf>, %16, %cst_14 [1] : vector<128x256xf32> to vector<128xf32>
    %18 = vector.shape_cast %17 : vector<128xf32> to vector<128x1xf32>
    %19 = vector.broadcast %18 : vector<128x1xf32> to vector<128x256xf32>
    %20 = arith.subf %16, %19 : vector<128x256xf32>
    %21 = math.exp %20 : vector<128x256xf32>
    %cst_15 = arith.constant dense<0.000000e+00> : vector<128xf32>
    %22 = vector.multi_reduction <add>, %21, %cst_15 [1] : vector<128x256xf32> to vector<128xf32>
    %23 = vector.shape_cast %22 : vector<128xf32> to vector<128x1xf32>
    %24 = tpu.reciprocal %23 : vector<128x1xf32> -> vector<128x1xf32>
    %25 = vector.broadcast %24 : vector<128x1xf32> to vector<128x256xf32>
    %26 = arith.mulf %21, %25 : vector<128x256xf32>
    %c0_16 = arith.constant 0 : index
    %c0_17 = arith.constant 0 : index
    %c0_18 = arith.constant 0 : index
    %c0_19 = arith.constant 0 : index
    %27 = vector.load %arg10[%c0_16, %c0_17, %c0_18, %c0_19] : memref<2x1x128x256xf32, #tpu.memory_space<vmem>>, vector<1x1x128x256xf32>
    %28 = vector.shape_cast %27 : vector<1x1x128x256xf32> to vector<128x256xf32>
    %29 = vector.shape_cast %26 : vector<128x256xf32> to vector<1x1x128x256xf32>
    tpu.vector_store %arg10[%c0_16, %c0_17, %c0_18, %c0_19], %29 {strides = array<i32>} : memref<2x1x128x256xf32, #tpu.memory_space<vmem>>, vector<1x1x128x256xf32>,
    %30 = vector.extract_strided_slice %13 {offsets = [0, 0], sizes = [256, 128], strides = [1, 1]} : vector<256x256xf32> to vector<256x128xf32>
    %cst_20 = arith.constant dense<0.000000e+00> : vector<128x128xf32>
    %31 = tpu.matmul %26, %30, %cst_20 {dimension_numbers = #tpu.dot_dimension_numbers<[1], [0], [0], [1], [0, 0, 1, 1], [], []>} : vector<128x256xf32>, vector<256x128xf32>, vector<128x128xf32> -> vector<128x128xf32>
    %32 = vector.extract_strided_slice %11 {offsets = [0, 128], sizes = [128, 128], strides = [1, 1]} : vector<128x256xf32> to vector<128x128xf32>
    %33 = vector.extract_strided_slice %12 {offsets = [0, 128], sizes = [256, 128], strides = [1, 1]} : vector<256x256xf32> to vector<256x128xf32>
    %cst_21 = arith.constant dense<0.000000e+00> : vector<128x256xf32>
    %34 = tpu.matmul %32, %33, %cst_21 {dimension_numbers = #tpu.dot_dimension_numbers<[1], [1], [0], [0], [0, 0, 1, 0], [], []>} : vector<128x128xf32>, vector<256x128xf32>, vector<128x256xf32> -> vector<128x256xf32>
    %cst_22 = arith.constant dense<0xFF800000> : vector<128xf32>
    %35 = vector.multi_reduction <maximumf>, %34, %cst_22 [1] : vector<128x256xf32> to vector<128xf32>
    %36 = vector.shape_cast %35 : vector<128xf32> to vector<128x1xf32>
    %37 = vector.broadcast %36 : vector<128x1xf32> to vector<128x256xf32>
    %38 = arith.subf %34, %37 : vector<128x256xf32>
    %39 = math.exp %38 : vector<128x256xf32>
    %cst_23 = arith.constant dense<0.000000e+00> : vector<128xf32>
    %40 = vector.multi_reduction <add>, %39, %cst_23 [1] : vector<128x256xf32> to vector<128xf32>
    %41 = vector.shape_cast %40 : vector<128xf32> to vector<128x1xf32>
    %42 = tpu.reciprocal %41 : vector<128x1xf32> -> vector<128x1xf32>
    %43 = vector.broadcast %42 : vector<128x1xf32> to vector<128x256xf32>
    %44 = arith.mulf %39, %43 : vector<128x256xf32>
    %c1 = arith.constant 1 : index
    %c0_24 = arith.constant 0 : index
    %c0_25 = arith.constant 0 : index
    %c0_26 = arith.constant 0 : index
    %45 = vector.load %arg10[%c1, %c0_24, %c0_25, %c0_26] : memref<2x1x128x256xf32, #tpu.memory_space<vmem>>, vector<1x1x128x256xf32>
    %46 = vector.shape_cast %45 : vector<1x1x128x256xf32> to vector<128x256xf32>
    %47 = vector.shape_cast %44 : vector<128x256xf32> to vector<1x1x128x256xf32>
    tpu.vector_store %arg10[%c1, %c0_24, %c0_25, %c0_26], %47 {strides = array<i32>} : memref<2x1x128x256xf32, #tpu.memory_space<vmem>>, vector<1x1x128x256xf32>,
    %48 = vector.extract_strided_slice %13 {offsets = [0, 128], sizes = [256, 128], strides = [1, 1]} : vector<256x256xf32> to vector<256x128xf32>
    %cst_27 = arith.constant dense<0.000000e+00> : vector<128x128xf32>
    %49 = tpu.matmul %44, %48, %cst_27 {dimension_numbers = #tpu.dot_dimension_numbers<[1], [0], [0], [1], [0, 0, 1, 1], [], []>} : vector<128x256xf32>, vector<256x128xf32>, vector<128x128xf32> -> vector<128x128xf32>
    %50 = tpu.concatenate %31, %49 in 1 : vector<128x128xf32>, vector<128x128xf32> -> vector<128x256xf32>
    %c0_28 = arith.constant 0 : index
    %c0_29 = arith.constant 0 : index
    %c0_30 = arith.constant 0 : index
    %51 = vector.load %arg9[%c0_28, %c0_29, %c0_30] : memref<1x128x256xf32, #tpu.memory_space<vmem>>, vector<1x128x256xf32>
    %52 = vector.shape_cast %51 : vector<1x128x256xf32> to vector<128x256xf32>
    %53 = vector.shape_cast %50 : vector<128x256xf32> to vector<1x128x256xf32>
    tpu.vector_store %arg9[%c0_28, %c0_29, %c0_30], %53 {strides = array<i32>} : memref<1x128x256xf32, #tpu.memory_space<vmem>>, vector<1x128x256xf32>,
    return
  }
  func.func @transform_0(%arg0: i32, %arg1: i32, %arg2: i32) -> (i32, i32, i32) {
    %c0_i32 = arith.constant 0 : i32
    %c0_i32_0 = arith.constant 0 : i32
    return %arg0, %arg2, %c0_i32 : i32, i32, i32
  }
  func.func @transform_1(%arg0: i32, %arg1: i32, %arg2: i32) -> (i32, i32, i32) {
    %c0_i32 = arith.constant 0 : i32
    %c0_i32_0 = arith.constant 0 : i32
    %c0_i32_1 = arith.constant 0 : i32
    return %arg0, %c0_i32, %c0_i32_0 : i32, i32, i32
  }
  func.func @transform_2(%arg0: i32, %arg1: i32, %arg2: i32) -> (i32, i32, i32) {
    %c0_i32 = arith.constant 0 : i32
    %c0_i32_0 = arith.constant 0 : i32
    %c0_i32_1 = arith.constant 0 : i32
    return %arg1, %c0_i32, %c0_i32_0 : i32, i32, i32
  }
  func.func @transform_3(%arg0: i32, %arg1: i32, %arg2: i32) -> (i32, i32, i32) {
    %c0_i32 = arith.constant 0 : i32
    %c0_i32_0 = arith.constant 0 : i32
    %c0_i32_1 = arith.constant 0 : i32
    return %arg1, %c0_i32, %c0_i32_0 : i32, i32, i32
  }
  func.func @transform_4(%arg0: i32, %arg1: i32, %arg2: i32) -> (i32, i32, i32) {
    %c0_i32 = arith.constant 0 : i32
    %c0_i32_0 = arith.constant 0 : i32
    %c0_i32_1 = arith.constant 0 : i32
    return %arg1, %c0_i32, %c0_i32_0 : i32, i32, i32
  }
  func.func @transform_5(%arg0: i32, %arg1: i32, %arg2: i32) -> (i32, i32, i32) {
    %c0_i32 = arith.constant 0 : i32
    %c0_i32_0 = arith.constant 0 : i32
    %c0_i32_1 = arith.constant 0 : i32
    return %arg1, %c0_i32, %c0_i32_0 : i32, i32, i32
  }
  func.func @transform_6(%arg0: i32, %arg1: i32, %arg2: i32) -> (i32, i32, i32) {
    %c0_i32 = arith.constant 0 : i32
    return %arg0, %arg2, %arg1 : i32, i32, i32
  }
  func.func @transform_7(%arg0: i32, %arg1: i32, %arg2: i32) -> (i32, i32, i32, i32) {
    %c0_i32 = arith.constant 0 : i32
    %c0_i32_0 = arith.constant 0 : i32
    return %arg1, %arg0, %arg2, %c0_i32 : i32, i32, i32, i32
  }
}

module attributes {stable_mosaic.version = 11 : i64} {
  func.func @_attention_kernel(%arg0: i32, %arg1: i32, %arg2: i32, %arg3: memref<1x128x256xf32, #tpu.memory_space<vmem>>, %arg4: memref<1x256x256xf32, #tpu.memory_space<vmem>>, %arg5: memref<1x256x256xf32, #tpu.memory_space<vmem>>, %arg6: memref<1x1x256xf32, #tpu.memory_space<vmem>>, %arg7: memref<1x256x512xf32, #tpu.memory_space<vmem>>, %arg8: memref<1x1x512xf32, #tpu.memory_space<vmem>>, %arg9: memref<1x128x256xf32, #tpu.memory_space<vmem>>, %arg10: memref<2x1x128x256xf32, #tpu.memory_space<vmem>>, %arg11: memref<256x256xf32, #tpu.memory_space<vmem>>, %arg12: memref<256x256xf32, #tpu.memory_space<vmem>>) attributes {dimension_semantics = [#tpu.dimension_semantics<parallel>, #tpu.dimension_semantics<parallel>, #tpu.dimension_semantics<arbitrary>], iteration_bounds = array<i64: 2, 1, 2>, scalar_prefetch = 0 : i64, scratch_operands = 2 : i64, tpu.core_type = #tpu.core_type<tc>, window_params = [{transform_indices = @transform_0, window_bounds = array<i64: 1, 128, 256>}, {transform_indices = @transform_1, window_bounds = array<i64: 1, 256, 256>}, {transform_indices = @transform_2, window_bounds = array<i64: 1, 256, 256>}, {transform_indices = @transform_3, window_bounds = array<i64: 1, 1, 256>}, {transform_indices = @transform_4, window_bounds = array<i64: 1, 256, 512>}, {transform_indices = @transform_5, window_bounds = array<i64: 1, 1, 512>}, {transform_indices = @transform_6, window_bounds = array<i64: 1, 128, 256>}, {transform_indices = @transform_7, window_bounds = array<i64: 2, 1, 128, 256>}]} {
    %c0_i32 = arith.constant 0 : i32
    %0 = arith.cmpi eq, %arg2, %c0_i32 : i32
    %1 = arith.extui %0 : i1 to i32
    %c0_i32_0 = arith.constant 0 : i32
    %2 = arith.cmpi ne, %1, %c0_i32_0 : i32
    scf.if %2 {
      %c0_31 = arith.constant 0 : index
      %c0_32 = arith.constant 0 : index
      %c0_33 = arith.constant 0 : index
      %54 = vector.load %arg4[%c0_31, %c0_32, %c0_33] : memref<1x256x256xf32, #tpu.memory_space<vmem>>, vector<1x256x256xf32>
      %55 = vector.shape_cast %54 : vector<1x256x256xf32> to vector<256x256xf32>
      %c0_34 = arith.constant 0 : index
      %c0_35 = arith.constant 0 : index
      %c0_36 = arith.constant 0 : index
      %56 = vector.load %arg7[%c0_34, %c0_35, %c0_36] : memref<1x256x512xf32, #tpu.memory_space<vmem>>, vector<1x256x512xf32>
      %57 = vector.shape_cast %56 : vector<1x256x512xf32> to vector<256x512xf32>
      %cst_37 = arith.constant dense<0.000000e+00> : vector<256x512xf32>
      %58 = tpu.matmul %55, %57, %cst_37 {dimension_numbers = #tpu.dot_dimension_numbers<[1], [0], [0], [1], [0, 0, 1, 1], [], []>} : vector<256x256xf32>, vector<256x512xf32>, vector<256x512xf32> -> vector<256x512xf32>
      %c0_38 = arith.constant 0 : index
      %c0_39 = arith.constant 0 : index
      %c0_40 = arith.constant 0 : index
      %59 = vector.load %arg8[%c0_38, %c0_39, %c0_40] : memref<1x1x512xf32, #tpu.memory_space<vmem>>, vector<1x1x512xf32>
      %60 = vector.shape_cast %59 : vector<1x1x512xf32> to vector<1x512xf32>
      %61 = vector.broadcast %60 : vector<1x512xf32> to vector<256x512xf32>
      %62 = arith.addf %58, %61 : vector<256x512xf32>
      %63 = vector.extract_strided_slice %62 {offsets = [0, 0], sizes = [256, 256], strides = [1, 1]} : vector<256x512xf32> to vector<256x256xf32>
      %c0_41 = arith.constant 0 : index
      %c0_42 = arith.constant 0 : index
      %64 = vector.load %arg11[%c0_41, %c0_42] : memref<256x256xf32, #tpu.memory_space<vmem>>, vector<256x256xf32>
      tpu.vector_store %arg11[%c0_41, %c0_42], %63 {strides = array<i32>} : memref<256x256xf32, #tpu.memory_space<vmem>>, vector<256x256xf32>,
      %65 = vector.extract_strided_slice %62 {offsets = [0, 256], sizes = [256, 256], strides = [1, 1]} : vector<256x512xf32> to vector<256x256xf32>
      %c0_43 = arith.constant 0 : index
      %c0_44 = arith.constant 0 : index
      %66 = vector.load %arg12[%c0_43, %c0_44] : memref<256x256xf32, #tpu.memory_space<vmem>>, vector<256x256xf32>
      tpu.vector_store %arg12[%c0_43, %c0_44], %65 {strides = array<i32>} : memref<256x256xf32, #tpu.memory_space<vmem>>, vector<256x256xf32>,
    } else {
    }
    %c0 = arith.constant 0 : index
    %c0_1 = arith.constant 0 : index
    %c0_2 = arith.constant 0 : index
    %3 = vector.load %arg3[%c0, %c0_1, %c0_2] : memref<1x128x256xf32, #tpu.memory_space<vmem>>, vector<1x128x256xf32>
    %4 = vector.shape_cast %3 : vector<1x128x256xf32> to vector<128x256xf32>
    %c0_3 = arith.constant 0 : index
    %c0_4 = arith.constant 0 : index
    %c0_5 = arith.constant 0 : index
    %5 = vector.load %arg5[%c0_3, %c0_4, %c0_5] : memref<1x256x256xf32, #tpu.memory_space<vmem>>, vector<1x256x256xf32>
    %6 = vector.shape_cast %5 : vector<1x256x256xf32> to vector<256x256xf32>
    %cst = arith.constant dense<0.000000e+00> : vector<128x256xf32>
    %7 = tpu.matmul %4, %6, %cst {dimension_numbers = #tpu.dot_dimension_numbers<[1], [0], [0], [1], [0, 0, 1, 1], [], []>} : vector<128x256xf32>, vector<256x256xf32>, vector<128x256xf32> -> vector<128x256xf32>
    %c0_6 = arith.constant 0 : index
    %c0_7 = arith.constant 0 : index
    %c0_8 = arith.constant 0 : index
    %8 = vector.load %arg6[%c0_6, %c0_7, %c0_8] : memref<1x1x256xf32, #tpu.memory_space<vmem>>, vector<1x1x256xf32>
    %9 = vector.shape_cast %8 : vector<1x1x256xf32> to vector<1x256xf32>
    %10 = vector.broadcast %9 : vector<1x256xf32> to vector<128x256xf32>
    %11 = arith.addf %7, %10 : vector<128x256xf32>
    %c0_9 = arith.constant 0 : index
    %c0_10 = arith.constant 0 : index
    %12 = vector.load %arg11[%c0_9, %c0_10] : memref<256x256xf32, #tpu.memory_space<vmem>>, vector<256x256xf32>
    %c0_11 = arith.constant 0 : index
    %c0_12 = arith.constant 0 : index
    %13 = vector.load %arg12[%c0_11, %c0_12] : memref<256x256xf32, #tpu.memory_space<vmem>>, vector<256x256xf32>
    %14 = vector.extract_strided_slice %11 {offsets = [0, 0], sizes = [128, 128], strides = [1, 1]} : vector<128x256xf32> to vector<128x128xf32>
    %15 = vector.extract_strided_slice %12 {offsets = [0, 0], sizes = [256, 128], strides = [1, 1]} : vector<256x256xf32> to vector<256x128xf32>
    %cst_13 = arith.constant dense<0.000000e+00> : vector<128x256xf32>
    %16 = tpu.matmul %14, %15, %cst_13 {dimension_numbers = #tpu.dot_dimension_numbers<[1], [1], [0], [0], [0, 0, 1, 0], [], []>} : vector<128x128xf32>, vector<256x128xf32>, vector<128x256xf32> -> vector<128x256xf32>
    %cst_14 = arith.constant dense<0xFF800000> : vector<128xf32>
    %17 = vector.multi_reduction <maximumf>, %16, %cst_14 [1] : vector<128x256xf32> to vector<128xf32>
    %18 = vector.shape_cast %17 : vector<128xf32> to vector<128x1xf32>
    %19 = vector.broadcast %18 : vector<128x1xf32> to vector<128x256xf32>
    %20 = arith.subf %16, %19 : vector<128x256xf32>
    %21 = math.exp %20 : vector<128x256xf32>
    %cst_15 = arith.constant dense<0.000000e+00> : vector<128xf32>
    %22 = vector.multi_reduction <add>, %21, %cst_15 [1] : vector<128x256xf32> to vector<128xf32>
    %23 = vector.shape_cast %22 : vector<128xf32> to vector<128x1xf32>
    %24 = tpu.reciprocal %23 : vector<128x1xf32> -> vector<128x1xf32>
    %25 = vector.broadcast %24 : vector<128x1xf32> to vector<128x256xf32>
    %26 = arith.mulf %21, %25 : vector<128x256xf32>
    %c0_16 = arith.constant 0 : index
    %c0_17 = arith.constant 0 : index
    %c0_18 = arith.constant 0 : index
    %c0_19 = arith.constant 0 : index
    %27 = vector.load %arg10[%c0_16, %c0_17, %c0_18, %c0_19] : memref<2x1x128x256xf32, #tpu.memory_space<vmem>>, vector<1x1x128x256xf32>
    %28 = vector.shape_cast %27 : vector<1x1x128x256xf32> to vector<128x256xf32>
    %29 = vector.shape_cast %26 : vector<128x256xf32> to vector<1x1x128x256xf32>
    tpu.vector_store %arg10[%c0_16, %c0_17, %c0_18, %c0_19], %29 {strides = array<i32>} : memref<2x1x128x256xf32, #tpu.memory_space<vmem>>, vector<1x1x128x256xf32>,
    %30 = vector.extract_strided_slice %13 {offsets = [0, 0], sizes = [256, 128], strides = [1, 1]} : vector<256x256xf32> to vector<256x128xf32>
    %cst_20 = arith.constant dense<0.000000e+00> : vector<128x128xf32>
    %31 = tpu.matmul %26, %30, %cst_20 {dimension_numbers = #tpu.dot_dimension_numbers<[1], [0], [0], [1], [0, 0, 1, 1], [], []>} : vector<128x256xf32>, vector<256x128xf32>, vector<128x128xf32> -> vector<128x128xf32>
    %32 = vector.extract_strided_slice %11 {offsets = [0, 128], sizes = [128, 128], strides = [1, 1]} : vector<128x256xf32> to vector<128x128xf32>
    %33 = vector.extract_strided_slice %12 {offsets = [0, 128], sizes = [256, 128], strides = [1, 1]} : vector<256x256xf32> to vector<256x128xf32>
    %cst_21 = arith.constant dense<0.000000e+00> : vector<128x256xf32>
    %34 = tpu.matmul %32, %33, %cst_21 {dimension_numbers = #tpu.dot_dimension_numbers<[1], [1], [0], [0], [0, 0, 1, 0], [], []>} : vector<128x128xf32>, vector<256x128xf32>, vector<128x256xf32> -> vector<128x256xf32>
    %cst_22 = arith.constant dense<0xFF800000> : vector<128xf32>
    %35 = vector.multi_reduction <maximumf>, %34, %cst_22 [1] : vector<128x256xf32> to vector<128xf32>
    %36 = vector.shape_cast %35 : vector<128xf32> to vector<128x1xf32>
    %37 = vector.broadcast %36 : vector<128x1xf32> to vector<128x256xf32>
    %38 = arith.subf %34, %37 : vector<128x256xf32>
    %39 = math.exp %38 : vector<128x256xf32>
    %cst_23 = arith.constant dense<0.000000e+00> : vector<128xf32>
    %40 = vector.multi_reduction <add>, %39, %cst_23 [1] : vector<128x256xf32> to vector<128xf32>
    %41 = vector.shape_cast %40 : vector<128xf32> to vector<128x1xf32>
    %42 = tpu.reciprocal %41 : vector<128x1xf32> -> vector<128x1xf32>
    %43 = vector.broadcast %42 : vector<128x1xf32> to vector<128x256xf32>
    %44 = arith.mulf %39, %43 : vector<128x256xf32>
    %c1 = arith.constant 1 : index
    %c0_24 = arith.constant 0 : index
    %c0_25 = arith.constant 0 : index
    %c0_26 = arith.constant 0 : index
    %45 = vector.load %arg10[%c1, %c0_24, %c0_25, %c0_26] : memref<2x1x128x256xf32, #tpu.memory_space<vmem>>, vector<1x1x128x256xf32>
    %46 = vector.shape_cast %45 : vector<1x1x128x256xf32> to vector<128x256xf32>
    %47 = vector.shape_cast %44 : vector<128x256xf32> to vector<1x1x128x256xf32>
    tpu.vector_store %arg10[%c1, %c0_24, %c0_25, %c0_26], %47 {strides = array<i32>} : memref<2x1x128x256xf32, #tpu.memory_space<vmem>>, vector<1x1x128x256xf32>,
    %48 = vector.extract_strided_slice %13 {offsets = [0, 128], sizes = [256, 128], strides = [1, 1]} : vector<256x256xf32> to vector<256x128xf32>
    %cst_27 = arith.constant dense<0.000000e+00> : vector<128x128xf32>
    %49 = tpu.matmul %44, %48, %cst_27 {dimension_numbers = #tpu.dot_dimension_numbers<[1], [0], [0], [1], [0, 0, 1, 1], [], []>} : vector<128x256xf32>, vector<256x128xf32>, vector<128x128xf32> -> vector<128x128xf32>
    %50 = tpu.concatenate %31, %49 in 1 : vector<128x128xf32>, vector<128x128xf32> -> vector<128x256xf32>
    %c0_28 = arith.constant 0 : index
    %c0_29 = arith.constant 0 : index
    %c0_30 = arith.constant 0 : index
    %51 = vector.load %arg9[%c0_28, %c0_29, %c0_30] : memref<1x128x256xf32, #tpu.memory_space<vmem>>, vector<1x128x256xf32>
    %52 = vector.shape_cast %51 : vector<1x128x256xf32> to vector<128x256xf32>
    %53 = vector.shape_cast %50 : vector<128x256xf32> to vector<1x128x256xf32>
    tpu.vector_store %arg9[%c0_28, %c0_29, %c0_30], %53 {strides = array<i32>} : memref<1x128x256xf32, #tpu.memory_space<vmem>>, vector<1x128x256xf32>,
    return
  }
  func.func @transform_0(%arg0: i32, %arg1: i32, %arg2: i32) -> (i32, i32, i32) {
    %c0_i32 = arith.constant 0 : i32
    %c0_i32_0 = arith.constant 0 : i32
    return %arg0, %arg2, %c0_i32 : i32, i32, i32
  }
  func.func @transform_1(%arg0: i32, %arg1: i32, %arg2: i32) -> (i32, i32, i32) {
    %c0_i32 = arith.constant 0 : i32
    %c0_i32_0 = arith.constant 0 : i32
    %c0_i32_1 = arith.constant 0 : i32
    return %arg0, %c0_i32, %c0_i32_0 : i32, i32, i32
  }
  func.func @transform_2(%arg0: i32, %arg1: i32, %arg2: i32) -> (i32, i32, i32) {
    %c0_i32 = arith.constant 0 : i32
    %c0_i32_0 = arith.constant 0 : i32
    %c0_i32_1 = arith.constant 0 : i32
    return %arg1, %c0_i32, %c0_i32_0 : i32, i32, i32
  }
  func.func @transform_3(%arg0: i32, %arg1: i32, %arg2: i32) -> (i32, i32, i32) {
    %c0_i32 = arith.constant 0 : i32
    %c0_i32_0 = arith.constant 0 : i32
    %c0_i32_1 = arith.constant 0 : i32
    return %arg1, %c0_i32, %c0_i32_0 : i32, i32, i32
  }
  func.func @transform_4(%arg0: i32, %arg1: i32, %arg2: i32) -> (i32, i32, i32) {
    %c0_i32 = arith.constant 0 : i32
    %c0_i32_0 = arith.constant 0 : i32
    %c0_i32_1 = arith.constant 0 : i32
    return %arg1, %c0_i32, %c0_i32_0 : i32, i32, i32
  }
  func.func @transform_5(%arg0: i32, %arg1: i32, %arg2: i32) -> (i32, i32, i32) {
    %c0_i32 = arith.constant 0 : i32
    %c0_i32_0 = arith.constant 0 : i32
    %c0_i32_1 = arith.constant 0 : i32
    return %arg1, %c0_i32, %c0_i32_0 : i32, i32, i32
  }
  func.func @transform_6(%arg0: i32, %arg1: i32, %arg2: i32) -> (i32, i32, i32) {
    %c0_i32 = arith.constant 0 : i32
    return %arg0, %arg2, %arg1 : i32, i32, i32
  }
  func.func @transform_7(%arg0: i32, %arg1: i32, %arg2: i32) -> (i32, i32, i32, i32) {
    %c0_i32 = arith.constant 0 : i32
    %c0_i32_0 = arith.constant 0 : i32
    return %arg1, %arg0, %arg2, %c0_i32 : i32, i32, i32, i32
  }
}

</mosaic_0001>

<llo_original>
// kernel: tpu_custom_call.1
$region0: #{tpu_custom_call.1}
  #allocation0 [shape = 'u32[]', space=smem, size = 0x4, offset = 0x4, fixed_abs, tag = 'smem constant byte address 0x4 - core index']
  #allocation1 [shape = 'u32[144,128]{1,0:T(1,128)}', space=vmem, size = 0x12000, scoped, tag = 'internal scratch']
  #allocation2 [shape = 'f32[256,256]{1,0:T(8,128)}', space=vmem, size = 0x40000, scoped, tag = 'scratch operand']
  #allocation3 [shape = 'f32[256,256]{1,0:T(8,128)}', space=vmem, size = 0x40000, scoped, tag = 'scratch operand']
  #allocation15 [shape = 's32[]', space=sflag, size = 0x4, offset = 0, fixed_abs, tag = 'sflag constant byte address 0x0 - dummy sync flag']
  %s0 = inlined_call_operand.hbm [shape: f32[2,256,256], index: 0, kind: input, shape index: {}]
  %s1 = inlined_call_operand.hbm [shape: f32[2,256,256], index: 1, kind: input, shape index: {}]
  %s2 = inlined_call_operand.hbm [shape: f32[1,256,256], index: 2, kind: input, shape index: {}]
  %s3 = inlined_call_operand.vmem [shape: f32[1,1,256], index: 3, kind: input, shape index: {}]
  %s4 = inlined_call_operand.hbm [shape: f32[1,256,512], index: 4, kind: input, shape index: {}]
  %s5 = inlined_call_operand.vmem [shape: f32[1,1,512], index: 5, kind: input, shape index: {}]
  %s6 = inlined_call_operand.hbm [shape: f32[2,256,256], index: 6, kind: output, shape index: {0}]
  %s7 = inlined_call_operand.hbm [shape: f32[2,2,256,256], index: 7, kind: output, shape index: {1}]
  %8 = xla_tuple %s6, %s7
  %s9 = sld [smem:[#allocation0]]
  $region85: #{tpu_custom_call.1} parent=0
    _
  %s11 = ssub.s32 1, %s9
  %s12 = scalar_select 0, %s11, %s9
  $region1: #{tpu_custom_call.1} parent=0
    #allocation4 [shape = 'u8[262144]{0}', space=vmem, size = 0x40000, scoped, tag = 'input window, operand 0']
    #allocation5 [shape = 's32[2]{0}', space=sflag, size = 0x8, scoped, tag = 'scoped memory for tpu_custom_call.1']
    #allocation6 [shape = 's32[2]{0}', space=sflag, size = 0x8, scoped, tag = 'scoped memory for tpu_custom_call.1']
    #allocation7 [shape = 'u8[262144]{0}', space=vmem, size = 0x40000, scoped, tag = 'input window, operand 1, single buffered']
    #allocation8 [shape = 's32[1]{0}', space=sflag, size = 0x4, scoped, tag = 'scoped memory for tpu_custom_call.1']
    #allocation9 [shape = 'u8[262144]{0}', space=vmem, size = 0x40000, scoped, tag = 'input window, operand 2, single buffered']
    #allocation10 [shape = 'u8[524288]{0}', space=vmem, size = 0x80000, scoped, tag = 'input window, operand 4, single buffered']
    #allocation11 [shape = 's32[1]{0}', space=sflag, size = 0x4, scoped, tag = 'scoped memory for tpu_custom_call.1']
    #allocation12 [shape = 'u8[262144]{0}', space=vmem, size = 0x40000, scoped, tag = 'output window, operand 0']
    #allocation13 [shape = 'u8[524288]{0}', space=vmem, size = 0x80000, scoped, tag = 'output window, operand 1']
    #allocation14 [shape = 's32[2]{0}', space=sflag, size = 0x8, scoped, tag = 'scoped memory for tpu_custom_call.1']
    %13 = vsyncpa [#allocation5], 0
    %s14 = scalar_lea.sflag [#allocation5], 1
    %15 = vsyncpa %s14, 0
    %16 = vsyncpa [#allocation8], 0
    %17 = vsyncpa [#allocation11], 0
    %18 = vsyncpa [#allocation6], 0
    %s19 = scalar_lea.sflag [#allocation6], 1
    %20 = vsyncpa %s19, 0
    %21 = vsyncpa [#allocation14], 0
    %s22 = scalar_lea.sflag [#allocation14], 1
    %23 = vsyncpa %s22, 0
    loop: start=0, step=1, limit=6
    $region2: #{tpu_custom_call.1} parent=1 // loop_pre_header
      _
    $region3: #{tpu_custom_call.1} parent=1 // loop_header
      %s25 = sphi 0, %s29
      %p26 = scmp.ge.s32.totalorder %s25, 6
      %s32 = sphi 0, %s51
      %s33 = sphi 0, %s47
      %s34 = sphi 0, %s43
      %s35 = sphi 0, %s32
      %s36 = sphi 0, %s33
      %s37 = sphi 0, %s34
      %s38 = sphi 0, %s35
      %s39 = sphi 0, %s36
      %s40 = sphi 0, %s37
      %s56 = sphi 0, %s58
      %s59 = sphi 0, %s56
      %s60 = sphi 0, %s59
      %s76 = sphi 0, %s60
      %s82 = sphi 0, %s84
      %s85 = sphi 0, %s82
      %s86 = sphi 0, %s85
      %s102 = sphi 0, %s86
      %s108 = sphi 0, %s110
      %s111 = sphi 0, %s108
      %s112 = sphi 0, %s111
      %s128 = sphi 0, %s112
      %s134 = sphi 0, %s136
      %s137 = sphi 0, %s134
      %s138 = sphi 0, %s137
      %s154 = sphi 0, %s138
      %s160 = sphi 0, %s162
      %s163 = sphi 0, %s160
      %s164 = sphi 0, %s163
      %s180 = sphi 0, %s164
      %s186 = sphi 0, %s188
      %s189 = sphi 0, %s186
      %s190 = sphi 0, %s189
      %s206 = sphi 0, %s190
      %s216 = sphi 0, %s218
      %s219 = sphi 0, %s216
      %s220 = sphi 0, %s219
      %s236 = sphi 0, %s220
      %s246 = sphi 0, %s248
      %s249 = sphi 0, %s246
      %s250 = sphi 0, %s249
      %s266 = sphi 0, %s250
    $region4: #{tpu_custom_call.1} parent=1 // loop_header_branch
      %28 = sbr.rel (%p26) target = $region8
    $region5: #{tpu_custom_call.1} parent=1 // loop_body
      %s30 = ssub.s32 %s25, 1
      %s31 = ssub.s32 %s25, 2
      %s41 = sadd.s32 1, %s34
      %p42 = scmp.ge.s32.totalorder %s41, 2
      %s43 = scalar_select %p42, 0, %s41
      %s44 = sadd.s32 1, %s33
      %s45 = scalar_select %p42, %s44, %s33
      %p46 = scmp.ge.s32.totalorder %s45, 1
      %s47 = scalar_select %p46, 0, %s45
      %s48 = sadd.s32 1, %s32
      %s49 = scalar_select %p46, %s48, %s32
      %p50 = scmp.ge.s32.totalorder %s49, 2
      %s51 = scalar_select %p50, 0, %s49
      %s52 = ssub.s32 %s32, %s51
      %s53 = ssub.s32 %s34, %s43
      %s54 = sor.u32 %s52, %s53
      %p55 = scmp.eq.s32.totalorder %s54, 0
      %s57 = sadd.s32 %s56, 1
      %s58 = scalar_select %p55, %s56, %s57
      %p61 = pneg %p55
      %p62 = scmp.eq.s32.totalorder %s25, 3
      %p63 = por %p61, %p62
      %p64 = scmp.ne.s32.totalorder %s56, %s59
      %p65 = scmp.eq.s32.totalorder %s25, 0
      %p66 = por %p64, %p65
      %p67 = scmp.ne.s32.totalorder %s56, %s59
      %p68 = scmp.eq.s32.totalorder %s30, 3
      %p69 = por %p67, %p68
      %p70 = scmp.ne.s32.totalorder %s59, %s60
      %p71 = scmp.eq.s32.totalorder %s30, 0
      %p72 = por %p70, %p71
      %p73 = scmp.ne.s32.totalorder %s59, %s60
      %p74 = scmp.eq.s32.totalorder %s31, 3
      %p75 = por %p73, %p74
      %p77 = scmp.ne.s32.totalorder %s60, %s76
      %p78 = scmp.eq.s32.totalorder %s31, 0
      %p79 = por %p77, %p78
      %s80 = ssub.s32 %s32, %s51
      %p81 = scmp.eq.s32.totalorder %s80, 0
      %s83 = sadd.s32 %s82, 1
      %s84 = scalar_select %p81, %s82, %s83
      %p87 = pneg %p81
      %p88 = scmp.eq.s32.totalorder %s25, 3
      %p89 = por %p87, %p88
      %p90 = scmp.ne.s32.totalorder %s82, %s85
      %p91 = scmp.eq.s32.totalorder %s25, 0
      %p92 = por %p90, %p91
      %p93 = scmp.ne.s32.totalorder %s82, %s85
      %p94 = scmp.eq.s32.totalorder %s30, 3
      %p95 = por %p93, %p94
      %p96 = scmp.ne.s32.totalorder %s85, %s86
      %p97 = scmp.eq.s32.totalorder %s30, 0
      %p98 = por %p96, %p97
      %p99 = scmp.ne.s32.totalorder %s85, %s86
      %p100 = scmp.eq.s32.totalorder %s31, 3
      %p101 = por %p99, %p100
      %p103 = scmp.ne.s32.totalorder %s86, %s102
      %p104 = scmp.eq.s32.totalorder %s31, 0
      %p105 = por %p103, %p104
      %s106 = ssub.s32 %s33, %s47
      %p107 = scmp.eq.s32.totalorder %s106, 0
      %s109 = sadd.s32 %s108, 1
      %s110 = scalar_select %p107, %s108, %s109
      %p113 = pneg %p107
      %p114 = scmp.eq.s32.totalorder %s25, 3
      %p115 = por %p113, %p114
      %p116 = scmp.ne.s32.totalorder %s108, %s111
      %p117 = scmp.eq.s32.totalorder %s25, 0
      %p118 = por %p116, %p117
      %p119 = scmp.ne.s32.totalorder %s108, %s111
      %p120 = scmp.eq.s32.totalorder %s30, 3
      %p121 = por %p119, %p120
      %p122 = scmp.ne.s32.totalorder %s111, %s112
      %p123 = scmp.eq.s32.totalorder %s30, 0
      %p124 = por %p122, %p123
      %p125 = scmp.ne.s32.totalorder %s111, %s112
      %p126 = scmp.eq.s32.totalorder %s31, 3
      %p127 = por %p125, %p126
      %p129 = scmp.ne.s32.totalorder %s112, %s128
      %p130 = scmp.eq.s32.totalorder %s31, 0
      %p131 = por %p129, %p130
      %s132 = ssub.s32 %s33, %s47
      %p133 = scmp.eq.s32.totalorder %s132, 0
      %s135 = sadd.s32 %s134, 1
      %s136 = scalar_select %p133, %s134, %s135
      %p139 = pneg %p133
      %p140 = scmp.eq.s32.totalorder %s25, 3
      %p141 = por %p139, %p140
      %p142 = scmp.ne.s32.totalorder %s134, %s137
      %p143 = scmp.eq.s32.totalorder %s25, 0
      %p144 = por %p142, %p143
      %p145 = scmp.ne.s32.totalorder %s134, %s137
      %p146 = scmp.eq.s32.totalorder %s30, 3
      %p147 = por %p145, %p146
      %p148 = scmp.ne.s32.totalorder %s137, %s138
      %p149 = scmp.eq.s32.totalorder %s30, 0
      %p150 = por %p148, %p149
      %p151 = scmp.ne.s32.totalorder %s137, %s138
      %p152 = scmp.eq.s32.totalorder %s31, 3
      %p153 = por %p151, %p152
      %p155 = scmp.ne.s32.totalorder %s138, %s154
      %p156 = scmp.eq.s32.totalorder %s31, 0
      %p157 = por %p155, %p156
      %s158 = ssub.s32 %s33, %s47
      %p159 = scmp.eq.s32.totalorder %s158, 0
      %s161 = sadd.s32 %s160, 1
      %s162 = scalar_select %p159, %s160, %s161
      %p165 = pneg %p159
      %p166 = scmp.eq.s32.totalorder %s25, 3
      %p167 = por %p165, %p166
      %p168 = scmp.ne.s32.totalorder %s160, %s163
      %p169 = scmp.eq.s32.totalorder %s25, 0
      %p170 = por %p168, %p169
      %p171 = scmp.ne.s32.totalorder %s160, %s163
      %p172 = scmp.eq.s32.totalorder %s30, 3
      %p173 = por %p171, %p172
      %p174 = scmp.ne.s32.totalorder %s163, %s164
      %p175 = scmp.eq.s32.totalorder %s30, 0
      %p176 = por %p174, %p175
      %p177 = scmp.ne.s32.totalorder %s163, %s164
      %p178 = scmp.eq.s32.totalorder %s31, 3
      %p179 = por %p177, %p178
      %p181 = scmp.ne.s32.totalorder %s164, %s180
      %p182 = scmp.eq.s32.totalorder %s31, 0
      %p183 = por %p181, %p182
      %s184 = ssub.s32 %s33, %s47
      %p185 = scmp.eq.s32.totalorder %s184, 0
      %s187 = sadd.s32 %s186, 1
      %s188 = scalar_select %p185, %s186, %s187
      %p191 = pneg %p185
      %p192 = scmp.eq.s32.totalorder %s25, 3
      %p193 = por %p191, %p192
      %p194 = scmp.ne.s32.totalorder %s186, %s189
      %p195 = scmp.eq.s32.totalorder %s25, 0
      %p196 = por %p194, %p195
      %p197 = scmp.ne.s32.totalorder %s186, %s189
      %p198 = scmp.eq.s32.totalorder %s30, 3
      %p199 = por %p197, %p198
      %p200 = scmp.ne.s32.totalorder %s189, %s190
      %p201 = scmp.eq.s32.totalorder %s30, 0
      %p202 = por %p200, %p201
      %p203 = scmp.ne.s32.totalorder %s189, %s190
      %p204 = scmp.eq.s32.totalorder %s31, 3
      %p205 = por %p203, %p204
      %p207 = scmp.ne.s32.totalorder %s190, %s206
      %p208 = scmp.eq.s32.totalorder %s31, 0
      %p209 = por %p207, %p208
      %s210 = ssub.s32 %s32, %s51
      %s211 = ssub.s32 %s34, %s43
      %s212 = sor.u32 %s210, %s211
      %s213 = ssub.s32 %s33, %s47
      %s214 = sor.u32 %s212, %s213
      %p215 = scmp.eq.s32.totalorder %s214, 0
      %s217 = sadd.s32 %s216, 1
      %s218 = scalar_select %p215, %s216, %s217
      %p221 = pneg %p215
      %p222 = scmp.eq.s32.totalorder %s25, 3
      %p223 = por %p221, %p222
      %p224 = scmp.ne.s32.totalorder %s216, %s219
      %p225 = scmp.eq.s32.totalorder %s25, 0
      %p226 = por %p224, %p225
      %p227 = scmp.ne.s32.totalorder %s216, %s219
      %p228 = scmp.eq.s32.totalorder %s30, 3
      %p229 = por %p227, %p228
      %p230 = scmp.ne.s32.totalorder %s219, %s220
      %p231 = scmp.eq.s32.totalorder %s30, 0
      %p232 = por %p230, %p231
      %p233 = scmp.ne.s32.totalorder %s219, %s220
      %p234 = scmp.eq.s32.totalorder %s31, 3
      %p235 = por %p233, %p234
      %p237 = scmp.ne.s32.totalorder %s220, %s236
      %p238 = scmp.eq.s32.totalorder %s31, 0
      %p239 = por %p237, %p238
      %s240 = ssub.s32 %s33, %s47
      %s241 = ssub.s32 %s32, %s51
      %s242 = sor.u32 %s240, %s241
      %s243 = ssub.s32 %s34, %s43
      %s244 = sor.u32 %s242, %s243
      %p245 = scmp.eq.s32.totalorder %s244, 0
      %s247 = sadd.s32 %s246, 1
      %s248 = scalar_select %p245, %s246, %s247
      %p251 = pneg %p245
      %p252 = scmp.eq.s32.totalorder %s25, 3
      %p253 = por %p251, %p252
      %p254 = scmp.ne.s32.totalorder %s246, %s249
      %p255 = scmp.eq.s32.totalorder %s25, 0
      %p256 = por %p254, %p255
      %p257 = scmp.ne.s32.totalorder %s246, %s249
      %p258 = scmp.eq.s32.totalorder %s30, 3
      %p259 = por %p257, %p258
      %p260 = scmp.ne.s32.totalorder %s249, %s250
      %p261 = scmp.eq.s32.totalorder %s30, 0
      %p262 = por %p260, %p261
      %p263 = scmp.ne.s32.totalorder %s249, %s250
      %p264 = scmp.eq.s32.totalorder %s31, 3
      %p265 = por %p263, %p264
      %p267 = scmp.ne.s32.totalorder %s250, %s266
      %p268 = scmp.eq.s32.totalorder %s31, 0
      %p269 = por %p267, %p268
      %p270 = scmp.le.s32.totalorder 1, %s25
      %p271 = scmp.lt.s32.totalorder %s25, 5
      %p272 = pnand %p270, %p271
      %p273 = pneg %p272
      // Predicated region
      $region9: #{tpu_custom_call.1} parent=5 // pred_check
        _
      $region10: #{tpu_custom_call.1} parent=5 // pred_check_branch
        %275 = sbr.rel (%p272) target = $region12
      $region11: #{tpu_custom_call.1} parent=5 // pred_region
        %s276 = ssub.s32 %s25, 1
        // Predicated region
        $region13: #{tpu_custom_call.1} parent=11 // pred_check
          %p277 = pneg %p98
        $region14: #{tpu_custom_call.1} parent=11 // pred_check_branch
          %279 = sbr.rel (%p277) target = $region16
        $region15: #{tpu_custom_call.1} parent=11 // pred_region
          %s281 = ssub.s32 8192, 8192
          %282 = vsyncadd [#allocation8], %s281
          %s283 = smul.addr %s35, 64
          %s284 = smul.addr %s283, 128
          %s285 = scalar_lea.hbm %s1, %s284
          %s286 = sshll.u32 [#allocation7], 4
          %s287 = int_to_ptr.vmem [resolvable:$true] %s286
          %292 = dma.hbm_to_vmem [thread:$0]  %s285, 8192, %s287, [#allocation8], 256, 256, 16
        $region16: #{tpu_custom_call.1} parent=11 // pred_fallthru
          _
        // Predicated region
        $region17: #{tpu_custom_call.1} parent=11 // pred_check
          %p293 = pneg %p124
        $region18: #{tpu_custom_call.1} parent=11 // pred_check_branch
          %295 = sbr.rel (%p293) target = $region20
        $region19: #{tpu_custom_call.1} parent=11 // pred_region
          %s297 = ssub.s32 8192, 8192
          %298 = vsyncadd [#allocation8], %s297
          %s299 = smul.addr %s36, 64
          %s300 = smul.addr %s299, 128
          %s301 = scalar_lea.hbm %s2, %s300
          %s302 = sshll.u32 [#allocation9], 4
          %s303 = int_to_ptr.vmem [resolvable:$true] %s302
          %308 = dma.hbm_to_vmem [thread:$0]  %s301, 8192, %s303, [#allocation8], 256, 256, 16
        $region20: #{tpu_custom_call.1} parent=11 // pred_fallthru
          _
        // Predicated region
        $region21: #{tpu_custom_call.1} parent=11 // pred_check
          %p309 = pneg %p150
        $region22: #{tpu_custom_call.1} parent=11 // pred_check_branch
          %311 = sbr.rel (%p309) target = $region24
        $region23: #{tpu_custom_call.1} parent=11 // pred_region
          %p312 = scmp.lt.s32.totalorder %s36, 0
          %s313 = scalar_select %p312, %s36, 0
          %s314 = smul.addr %s313, 2
          %s315 = scalar_lea.vmem %s3, %s314
        $region24: #{tpu_custom_call.1} parent=11 // pred_fallthru
          _
        // Predicated region
        $region25: #{tpu_custom_call.1} parent=11 // pred_check
          %p316 = pneg %p176
        $region26: #{tpu_custom_call.1} parent=11 // pred_check_branch
          %318 = sbr.rel (%p316) target = $region28
        $region27: #{tpu_custom_call.1} parent=11 // pred_region
          %s320 = ssub.s32 16384, 16384
          %321 = vsyncadd [#allocation11], %s320
          %s322 = smul.addr %s36, 128
          %s323 = smul.addr %s322, 128
          %s324 = scalar_lea.hbm %s4, %s323
          %s325 = sshll.u32 [#allocation10], 4
          %s326 = int_to_ptr.vmem [resolvable:$true] %s325
          %331 = dma.hbm_to_vmem [thread:$0]  %s324, 16384, %s326, [#allocation11], 512, 512, 32
        $region28: #{tpu_custom_call.1} parent=11 // pred_fallthru
          _
        // Predicated region
        $region29: #{tpu_custom_call.1} parent=11 // pred_check
          %p332 = pneg %p202
        $region30: #{tpu_custom_call.1} parent=11 // pred_check_branch
          %334 = sbr.rel (%p332) target = $region32
        $region31: #{tpu_custom_call.1} parent=11 // pred_region
          %p335 = scmp.lt.s32.totalorder %s36, 0
          %s336 = scalar_select %p335, %s36, 0
          %s337 = smul.addr %s336, 4
          %s338 = scalar_lea.vmem %s5, %s337
        $region32: #{tpu_custom_call.1} parent=11 // pred_fallthru
          _
      $region12: #{tpu_custom_call.1} parent=5 // pred_fallthru
        _
      %p339 = scmp.lt.s32.totalorder %s25, 4
      // Predicated region
      $region33: #{tpu_custom_call.1} parent=5 // pred_check
        %p340 = pneg %p339
      $region34: #{tpu_custom_call.1} parent=5 // pred_check_branch
        %342 = sbr.rel (%p340) target = $region36
      $region35: #{tpu_custom_call.1} parent=5 // pred_region
        // Predicated region
        $region37: #{tpu_custom_call.1} parent=35 // pred_check
          %p343 = pneg %p66
        $region38: #{tpu_custom_call.1} parent=35 // pred_check_branch
          %345 = sbr.rel (%p343) target = $region40
        $region39: #{tpu_custom_call.1} parent=35 // pred_region
          %s346 = sand.u32 %s56, 1
          %s347 = scalar_lea.sflag [#allocation5], %s346
          %s348 = sand.u32 %s56, 1
          %s349 = smul.addr %s348, 256
          %s350 = scalar_lea.vmem [#allocation4], %s349
          %s351 = smul.u32 16, %s34
          %s353 = ssub.s32 4096, 4096
          %354 = vsyncadd %s347, %s353
          %s355 = smul.addr %s351, 2
          %s356 = smul.addr %s32, 64
          %s357 = sadd.s32 %s355, %s356
          %s358 = smul.addr %s357, 128
          %s359 = scalar_lea.hbm %s0, %s358
          %s360 = sshll.u32 %s350, 4
          %s361 = int_to_ptr.vmem [resolvable:$true] %s360
          %366 = dma.hbm_to_vmem [thread:$0]  %s359, 4096, %s361, %s347, 256, 256, 16
        $region40: #{tpu_custom_call.1} parent=35 // pred_fallthru
          _
      $region36: #{tpu_custom_call.1} parent=5 // pred_fallthru
        _
      %p367 = scmp.le.s32.totalorder 1, %s25
      %p368 = scmp.lt.s32.totalorder %s25, 5
      %p369 = pnand %p367, %p368
      %p370 = pneg %p369
      // Predicated region
      $region41: #{tpu_custom_call.1} parent=5 // pred_check
        _
      $region42: #{tpu_custom_call.1} parent=5 // pred_check_branch
        %372 = sbr.rel (%p369) target = $region44
      $region43: #{tpu_custom_call.1} parent=5 // pred_region
        %s373 = ssub.s32 %s25, 1
        %s374 = sand.u32 %s59, 1
        %s375 = scalar_lea.sflag [#allocation5], %s374
        %s376 = sand.u32 %s59, 1
        %s377 = smul.addr %s376, 256
        %s378 = scalar_lea.vmem [#allocation4], %s377
        // Predicated region
        $region45: #{tpu_custom_call.1} parent=43 // pred_check
          %p379 = pneg %p72
        $region46: #{tpu_custom_call.1} parent=43 // pred_check_branch
          %381 = sbr.rel (%p379) target = $region48
        $region47: #{tpu_custom_call.1} parent=43 // pred_region
          %382 = dma.done %s375, 4096
        $region48: #{tpu_custom_call.1} parent=43 // pred_fallthru
          _
        // Predicated region
        $region49: #{tpu_custom_call.1} parent=43 // pred_check
          %p383 = pneg %p98
        $region50: #{tpu_custom_call.1} parent=43 // pred_check_branch
          %385 = sbr.rel (%p383) target = $region52
        $region51: #{tpu_custom_call.1} parent=43 // pred_region
          %386 = dma.done [#allocation8], 8192
        $region52: #{tpu_custom_call.1} parent=43 // pred_fallthru
          _
        // Predicated region
        $region53: #{tpu_custom_call.1} parent=43 // pred_check
          %p387 = pneg %p124
        $region54: #{tpu_custom_call.1} parent=43 // pred_check_branch
          %389 = sbr.rel (%p387) target = $region56
        $region55: #{tpu_custom_call.1} parent=43 // pred_region
          %390 = dma.done [#allocation8], 8192
        $region56: #{tpu_custom_call.1} parent=43 // pred_fallthru
          _
        // Predicated region
        $region57: #{tpu_custom_call.1} parent=43 // pred_check
          %p391 = pneg %p176
        $region58: #{tpu_custom_call.1} parent=43 // pred_check_branch
          %393 = sbr.rel (%p391) target = $region60
        $region59: #{tpu_custom_call.1} parent=43 // pred_region
          %394 = dma.done [#allocation11], 16384
        $region60: #{tpu_custom_call.1} parent=43 // pred_fallthru
          _
        %s395 = sand.u32 %s59, 1
        %s396 = scalar_lea.sflag [#allocation5], %s395
        %s397 = sand.u32 %s59, 1
        %s398 = smul.addr %s397, 256
        %s399 = scalar_lea.vmem [#allocation4], %s398
        %p400 = pneg %p72
        %p401 = pneg %p69
        %p402 = pneg %p98
        %p403 = pneg %p95
        %p404 = pneg %p124
        %p405 = pneg %p121
        %p406 = scmp.lt.s32.totalorder %s36, 0
        %s407 = scalar_select %p406, %s36, 0
        %s408 = smul.addr %s407, 2
        %s409 = scalar_lea.vmem %s3, %s408
        %p410 = pneg %p150
        %p411 = pneg %p147
        %p412 = pneg %p176
        %p413 = pneg %p173
        %p414 = scmp.lt.s32.totalorder %s36, 0
        %s415 = scalar_select %p414, %s36, 0
        %s416 = smul.addr %s415, 4
        %s417 = scalar_lea.vmem %s5, %s416
        %p418 = pneg %p202
        %p419 = pneg %p199
        %p420 = pneg %p232
        %p421 = pneg %p229
        %s422 = sand.u32 %s219, 1
        %s423 = scalar_lea.sflag [#allocation6], %s422
        %s424 = sand.u32 %s219, 1
        %s425 = smul.addr %s424, 256
        %s426 = scalar_lea.vmem [#allocation12], %s425
        %p427 = pneg %p262
        %p428 = pneg %p259
        %s429 = sand.u32 %s249, 1
        %s430 = scalar_lea.sflag [#allocation14], %s429
        %s431 = sand.u32 %s249, 1
        %s432 = smul.addr %s431, 512
        %s433 = scalar_lea.vmem [#allocation13], %s432
        %s434 = smul.u32 16, %s37
        %p435 = scmp.lt.s32.totalorder %s36, 0
        %s436 = scalar_select %p435, %s36, 0
        %s437 = smul.addr %s436, 2
        %s438 = scalar_lea.vmem %s3, %s437
        %p439 = scmp.lt.s32.totalorder %s36, 0
        %s440 = scalar_select %p439, %s36, 0
        %s441 = smul.addr %s440, 4
        %s442 = scalar_lea.vmem %s5, %s441
        %s443 = smul.u32 16, %s37
        %s444 = smul.u32 2, %s36
        %s445 = smul.u32 2, %s36
        %s446 = smul.u32 16, %s37
        %p447 = scmp.eq.s32.totalorder %s37, 0
        // Predicated region
        $region61: #{tpu_custom_call.1} parent=43 // pred_check
          %p448 = pneg %p447
        $region62: #{tpu_custom_call.1} parent=43 // pred_check_branch
          %450 = sbr.rel (%p448) target = $region64
        $region63: #{tpu_custom_call.1} parent=43 // pred_region
          %v451 = vld [vmem:[#allocation7] sm:$0xff]
          %v452 = vld [vmem:[#allocation7 + $0x8] sm:$0xff]
          %v453 = vld [vmem:[#allocation7 + $0x10] sm:$0xff]
          %v454 = vld [vmem:[#allocation7 + $0x18] sm:$0xff]
          %v455 = vld [vmem:[#allocation7 + $0x20] sm:$0xff]
          %v456 = vld [vmem:[#allocation7 + $0x28] sm:$0xff]
          %v457 = vld [vmem:[#allocation7 + $0x30] sm:$0xff]
          %v458 = vld [vmem:[#allocation7 + $0x38] sm:$0xff]
          %v459 = vld [vmem:[#allocation7 + $0x40] sm:$0xff]
          %v460 = vld [vmem:[#allocation7 + $0x48] sm:$0xff]
          %v461 = vld [vmem:[#allocation7 + $0x50] sm:$0xff]
          %v462 = vld [vmem:[#allocation7 + $0x58] sm:$0xff]
          %v463 = vld [vmem:[#allocation7 + $0x60] sm:$0xff]
          %v464 = vld [vmem:[#allocation7 + $0x68] sm:$0xff]
          %v465 = vld [vmem:[#allocation7 + $0x70] sm:$0xff]
          %v466 = vld [vmem:[#allocation7 + $0x78] sm:$0xff]
          %v467 = vld [vmem:[#allocation7 + $0x80] sm:$0xff]
          %v468 = vld [vmem:[#allocation7 + $0x88] sm:$0xff]
          %v469 = vld [vmem:[#allocation7 + $0x90] sm:$0xff]
          %v470 = vld [vmem:[#allocation7 + $0x98] sm:$0xff]
          %v471 = vld [vmem:[#allocation7 + $0xa0] sm:$0xff]
          %v472 = vld [vmem:[#allocation7 + $0xa8] sm:$0xff]
          %v473 = vld [vmem:[#allocation7 + $0xb0] sm:$0xff]
          %v474 = vld [vmem:[#allocation7 + $0xb8] sm:$0xff]
          %v475 = vld [vmem:[#allocation7 + $0xc0] sm:$0xff]
          %v476 = vld [vmem:[#allocation7 + $0xc8] sm:$0xff]
          %v477 = vld [vmem:[#allocation7 + $0xd0] sm:$0xff]
          %v478 = vld [vmem:[#allocation7 + $0xd8] sm:$0xff]
          %v479 = vld [vmem:[#allocation7 + $0xe0] sm:$0xff]
          %v480 = vld [vmem:[#allocation7 + $0xe8] sm:$0xff]
          %v481 = vld [vmem:[#allocation7 + $0xf0] sm:$0xff]
          %v482 = vld [vmem:[#allocation7 + $0xf8] sm:$0xff]
          %v483 = vld [vmem:[#allocation7 + $0x100] sm:$0xff]
          %v484 = vld [vmem:[#allocation7 + $0x108] sm:$0xff]
          %v485 = vld [vmem:[#allocation7 + $0x110] sm:$0xff]
          %v486 = vld [vmem:[#allocation7 + $0x118] sm:$0xff]
          %v487 = vld [vmem:[#allocation7 + $0x120] sm:$0xff]
          %v488 = vld [vmem:[#allocation7 + $0x128] sm:$0xff]
          %v489 = vld [vmem:[#allocation7 + $0x130] sm:$0xff]
          %v490 = vld [vmem:[#allocation7 + $0x138] sm:$0xff]
          %v491 = vld [vmem:[#allocation7 + $0x140] sm:$0xff]
          %v492 = vld [vmem:[#allocation7 + $0x148] sm:$0xff]
          %v493 = vld [vmem:[#allocation7 + $0x150] sm:$0xff]
          %v494 = vld [vmem:[#allocation7 + $0x158] sm:$0xff]
          %v495 = vld [vmem:[#allocation7 + $0x160] sm:$0xff]
          %v496 = vld [vmem:[#allocation7 + $0x168] sm:$0xff]
          %v497 = vld [vmem:[#allocation7 + $0x170] sm:$0xff]
          %v498 = vld [vmem:[#allocation7 + $0x178] sm:$0xff]
          %v499 = vld [vmem:[#allocation7 + $0x180] sm:$0xff]
          %v500 = vld [vmem:[#allocation7 + $0x188] sm:$0xff]
          %v501 = vld [vmem:[#allocation7 + $0x190] sm:$0xff]
          %v502 = vld [vmem:[#allocation7 + $0x198] sm:$0xff]
          %v503 = vld [vmem:[#allocation7 + $0x1a0] sm:$0xff]
          %v504 = vld [vmem:[#allocation7 + $0x1a8] sm:$0xff]
          %v505 = vld [vmem:[#allocation7 + $0x1b0] sm:$0xff]
          %v506 = vld [vmem:[#allocation7 + $0x1b8] sm:$0xff]
          %v507 = vld [vmem:[#allocation7 + $0x1c0] sm:$0xff]
          %v508 = vld [vmem:[#allocation7 + $0x1c8] sm:$0xff]
          %v509 = vld [vmem:[#allocation7 + $0x1d0] sm:$0xff]
          %v510 = vld [vmem:[#allocation7 + $0x1d8] sm:$0xff]
          %v511 = vld [vmem:[#allocation7 + $0x1e0] sm:$0xff]
          %v512 = vld [vmem:[#allocation7 + $0x1e8] sm:$0xff]
          %v513 = vld [vmem:[#allocation7 + $0x1f0] sm:$0xff]
          %v514 = vld [vmem:[#allocation7 + $0x1f8] sm:$0xff]
          %v515 = vld [vmem:[#allocation10] sm:$0xff]
          %v516 = vld [vmem:[#allocation10 + $0x8] sm:$0xff]
          %v517 = vld [vmem:[#allocation10 + $0x10] sm:$0xff]
          %v518 = vld [vmem:[#allocation10 + $0x18] sm:$0xff]
          %v519 = vld [vmem:[#allocation10 + $0x20] sm:$0xff]
          %v520 = vld [vmem:[#allocation10 + $0x28] sm:$0xff]
          %v521 = vld [vmem:[#allocation10 + $0x30] sm:$0xff]
          %v522 = vld [vmem:[#allocation10 + $0x38] sm:$0xff]
          %v523 = vld [vmem:[#allocation10 + $0x40] sm:$0xff]
          %v524 = vld [vmem:[#allocation10 + $0x48] sm:$0xff]
          %v525 = vld [vmem:[#allocation10 + $0x50] sm:$0xff]
          %v526 = vld [vmem:[#allocation10 + $0x58] sm:$0xff]
          %v527 = vld [vmem:[#allocation10 + $0x60] sm:$0xff]
          %v528 = vld [vmem:[#allocation10 + $0x68] sm:$0xff]
          %v529 = vld [vmem:[#allocation10 + $0x70] sm:$0xff]
          %v530 = vld [vmem:[#allocation10 + $0x78] sm:$0xff]
          %v531 = vld [vmem:[#allocation10 + $0x80] sm:$0xff]
          %v532 = vld [vmem:[#allocation10 + $0x88] sm:$0xff]
          %v533 = vld [vmem:[#allocation10 + $0x90] sm:$0xff]
          %v534 = vld [vmem:[#allocation10 + $0x98] sm:$0xff]
          %v535 = vld [vmem:[#allocation10 + $0xa0] sm:$0xff]
          %v536 = vld [vmem:[#allocation10 + $0xa8] sm:$0xff]
          %v537 = vld [vmem:[#allocation10 + $0xb0] sm:$0xff]
          %v538 = vld [vmem:[#allocation10 + $0xb8] sm:$0xff]
          %v539 = vld [vmem:[#allocation10 + $0xc0] sm:$0xff]
          %v540 = vld [vmem:[#allocation10 + $0xc8] sm:$0xff]
          %v541 = vld [vmem:[#allocation10 + $0xd0] sm:$0xff]
          %v542 = vld [vmem:[#allocation10 + $0xd8] sm:$0xff]
          %v543 = vld [vmem:[#allocation10 + $0xe0] sm:$0xff]
          %v544 = vld [vmem:[#allocation10 + $0xe8] sm:$0xff]
          %v545 = vld [vmem:[#allocation10 + $0xf0] sm:$0xff]
          %v546 = vld [vmem:[#allocation10 + $0xf8] sm:$0xff]
          %v547 = vld [vmem:[#allocation10 + $0x100] sm:$0xff]
          %v548 = vld [vmem:[#allocation10 + $0x108] sm:$0xff]
          %v549 = vld [vmem:[#allocation10 + $0x110] sm:$0xff]
          %v550 = vld [vmem:[#allocation10 + $0x118] sm:$0xff]
          %v551 = vld [vmem:[#allocation10 + $0x120] sm:$0xff]
          %v552 = vld [vmem:[#allocation10 + $0x128] sm:$0xff]
          %v553 = vld [vmem:[#allocation10 + $0x130] sm:$0xff]
          %v554 = vld [vmem:[#allocation10 + $0x138] sm:$0xff]
          %v555 = vld [vmem:[#allocation10 + $0x140] sm:$0xff]
          %v556 = vld [vmem:[#allocation10 + $0x148] sm:$0xff]
          %v557 = vld [vmem:[#allocation10 + $0x150] sm:$0xff]
          %v558 = vld [vmem:[#allocation10 + $0x158] sm:$0xff]
          %v559 = vld [vmem:[#allocation10 + $0x160] sm:$0xff]
          %v560 = vld [vmem:[#allocation10 + $0x168] sm:$0xff]
          %v561 = vld [vmem:[#allocation10 + $0x170] sm:$0xff]
          %v562 = vld [vmem:[#allocation10 + $0x178] sm:$0xff]
          %v563 = vld [vmem:[#allocation10 + $0x180] sm:$0xff]
          %v564 = vld [vmem:[#allocation10 + $0x188] sm:$0xff]
          %v565 = vld [vmem:[#allocation10 + $0x190] sm:$0xff]
          %v566 = vld [vmem:[#allocation10 + $0x198] sm:$0xff]
          %v567 = vld [vmem:[#allocation10 + $0x1a0] sm:$0xff]
          %v568 = vld [vmem:[#allocation10 + $0x1a8] sm:$0xff]
          %v569 = vld [vmem:[#allocation10 + $0x1b0] sm:$0xff]
          %v570 = vld [vmem:[#allocation10 + $0x1b8] sm:$0xff]
          %v571 = vld [vmem:[#allocation10 + $0x1c0] sm:$0xff]
          %v572 = vld [vmem:[#allocation10 + $0x1c8] sm:$0xff]
          %v573 = vld [vmem:[#allocation10 + $0x1d0] sm:$0xff]
          %v574 = vld [vmem:[#allocation10 + $0x1d8] sm:$0xff]
          %v575 = vld [vmem:[#allocation10 + $0x1e0] sm:$0xff]
          %v576 = vld [vmem:[#allocation10 + $0x1e8] sm:$0xff]
          %v577 = vld [vmem:[#allocation10 + $0x1f0] sm:$0xff]
          %v578 = vld [vmem:[#allocation10 + $0x1f8] sm:$0xff]
          %v579 = vld [vmem:[#allocation10 + $0x200] sm:$0xff]
          %v580 = vld [vmem:[#allocation10 + $0x208] sm:$0xff]
          %v581 = vld [vmem:[#allocation10 + $0x210] sm:$0xff]
          %v582 = vld [vmem:[#allocation10 + $0x218] sm:$0xff]
          %v583 = vld [vmem:[#allocation10 + $0x220] sm:$0xff]
          %v584 = vld [vmem:[#allocation10 + $0x228] sm:$0xff]
          %v585 = vld [vmem:[#allocation10 + $0x230] sm:$0xff]
          %v586 = vld [vmem:[#allocation10 + $0x238] sm:$0xff]
          %v587 = vld [vmem:[#allocation10 + $0x240] sm:$0xff]
          %v588 = vld [vmem:[#allocation10 + $0x248] sm:$0xff]
          %v589 = vld [vmem:[#allocation10 + $0x250] sm:$0xff]
          %v590 = vld [vmem:[#allocation10 + $0x258] sm:$0xff]
          %v591 = vld [vmem:[#allocation10 + $0x260] sm:$0xff]
          %v592 = vld [vmem:[#allocation10 + $0x268] sm:$0xff]
          %v593 = vld [vmem:[#allocation10 + $0x270] sm:$0xff]
          %v594 = vld [vmem:[#allocation10 + $0x278] sm:$0xff]
          %v595 = vld [vmem:[#allocation10 + $0x280] sm:$0xff]
          %v596 = vld [vmem:[#allocation10 + $0x288] sm:$0xff]
          %v597 = vld [vmem:[#allocation10 + $0x290] sm:$0xff]
          %v598 = vld [vmem:[#allocation10 + $0x298] sm:$0xff]
          %v599 = vld [vmem:[#allocation10 + $0x2a0] sm:$0xff]
          %v600 = vld [vmem:[#allocation10 + $0x2a8] sm:$0xff]
          %v601 = vld [vmem:[#allocation10 + $0x2b0] sm:$0xff]
          %v602 = vld [vmem:[#allocation10 + $0x2b8] sm:$0xff]
          %v603 = vld [vmem:[#allocation10 + $0x2c0] sm:$0xff]
          %v604 = vld [vmem:[#allocation10 + $0x2c8] sm:$0xff]
          %v605 = vld [vmem:[#allocation10 + $0x2d0] sm:$0xff]
          %v606 = vld [vmem:[#allocation10 + $0x2d8] sm:$0xff]
          %v607 = vld [vmem:[#allocation10 + $0x2e0] sm:$0xff]
          %v608 = vld [vmem:[#allocation10 + $0x2e8] sm:$0xff]
          %v609 = vld [vmem:[#allocation10 + $0x2f0] sm:$0xff]
          %v610 = vld [vmem:[#allocation10 + $0x2f8] sm:$0xff]
          %v611 = vld [vmem:[#allocation10 + $0x300] sm:$0xff]
          %v612 = vld [vmem:[#allocation10 + $0x308] sm:$0xff]
          %v613 = vld [vmem:[#allocation10 + $0x310] sm:$0xff]
          %v614 = vld [vmem:[#allocation10 + $0x318] sm:$0xff]
          %v615 = vld [vmem:[#allocation10 + $0x320] sm:$0xff]
          %v616 = vld [vmem:[#allocation10 + $0x328] sm:$0xff]
          %v617 = vld [vmem:[#allocation10 + $0x330] sm:$0xff]
          %v618 = vld [vmem:[#allocation10 + $0x338] sm:$0xff]
          %v619 = vld [vmem:[#allocation10 + $0x340] sm:$0xff]
          %v620 = vld [vmem:[#allocation10 + $0x348] sm:$0xff]
          %v621 = vld [vmem:[#allocation10 + $0x350] sm:$0xff]
          %v622 = vld [vmem:[#allocation10 + $0x358] sm:$0xff]
          %v623 = vld [vmem:[#allocation10 + $0x360] sm:$0xff]
          %v624 = vld [vmem:[#allocation10 + $0x368] sm:$0xff]
          %v625 = vld [vmem:[#allocation10 + $0x370] sm:$0xff]
          %v626 = vld [vmem:[#allocation10 + $0x378] sm:$0xff]
          %v627 = vld [vmem:[#allocation10 + $0x380] sm:$0xff]
          %v628 = vld [vmem:[#allocation10 + $0x388] sm:$0xff]
          %v629 = vld [vmem:[#allocation10 + $0x390] sm:$0xff]
          %v630 = vld [vmem:[#allocation10 + $0x398] sm:$0xff]
          %v631 = vld [vmem:[#allocation10 + $0x3a0] sm:$0xff]
          %v632 = vld [vmem:[#allocation10 + $0x3a8] sm:$0xff]
          %v633 = vld [vmem:[#allocation10 + $0x3b0] sm:$0xff]
          %v634 = vld [vmem:[#allocation10 + $0x3b8] sm:$0xff]
          %v635 = vld [vmem:[#allocation10 + $0x3c0] sm:$0xff]
          %v636 = vld [vmem:[#allocation10 + $0x3c8] sm:$0xff]
          %v637 = vld [vmem:[#allocation10 + $0x3d0] sm:$0xff]
          %v638 = vld [vmem:[#allocation10 + $0x3d8] sm:$0xff]
          %v639 = vld [vmem:[#allocation10 + $0x3e0] sm:$0xff]
          %v640 = vld [vmem:[#allocation10 + $0x3e8] sm:$0xff]
          %v641 = vld [vmem:[#allocation10 + $0x3f0] sm:$0xff]
          %v642 = vld [vmem:[#allocation10 + $0x3f8] sm:$0xff]
          %v643 = vld [vmem:[%s442] sm:$0xf]
          %v645 = vlaneseq
          %v646 = vshrl.u32 %v645, 7
          %v647 = vsub.s32 0, %v646
          %v648 = vrot.slane %v643, %v647
          %v649 = vlaneseq
          %v650 = vshrl.u32 %v649, 7
          %v651 = vsub.s32 1, %v650
          %v652 = vrot.slane %v643, %v651
          %v653 = vlaneseq
          %v654 = vshrl.u32 %v653, 7
          %v655 = vsub.s32 2, %v654
          %v656 = vrot.slane %v643, %v655
          %v657 = vlaneseq
          %v658 = vshrl.u32 %v657, 7
          %v659 = vsub.s32 3, %v658
          %v660 = vrot.slane %v643, %v659
          %665 = vmatprep.subr.mxu0 %v576
          %666 = vmatpush1.msra.mxu0 %v575
          %667 = vmatprep.subr.mxu0 %v572
          %668 = vmatpush1.msra.mxu0 %v571
          %669 = vmatprep.subr.mxu0 %v568
          %670 = vmatpush1.msra.mxu0 %v567
          %671 = vmatprep.subr.mxu0 %v564
          %672 = vmatpush1.msra.mxu0 %v563
          %673 = vmatprep.subr.mxu0 %v560
          %674 = vmatpush1.msra.mxu0 %v559
          %675 = vmatprep.subr.mxu0 %v556
          %676 = vmatpush1.msra.mxu0 %v555
          %677 = vmatprep.subr.mxu0 %v552
          %678 = vmatpush1.msra.mxu0 %v551
          %679 = vmatprep.subr.mxu0 %v548
          %680 = vmatpush1.msra.mxu0 %v547
          %681 = vmatprep.subr.mxu0 %v544
          %682 = vmatpush1.msra.mxu0 %v543
          %683 = vmatprep.subr.mxu0 %v540
          %684 = vmatpush1.msra.mxu0 %v539
          %685 = vmatprep.subr.mxu0 %v536
          %686 = vmatpush1.msra.mxu0 %v535
          %687 = vmatprep.subr.mxu0 %v532
          %688 = vmatpush1.msra.mxu0 %v531
          %689 = vmatprep.subr.mxu0 %v528
          %690 = vmatpush1.msra.mxu0 %v527
          %691 = vmatprep.subr.mxu0 %v524
          %692 = vmatpush1.msra.mxu0 %v523
          %693 = vmatprep.subr.mxu0 %v520
          %694 = vmatpush1.msra.mxu0 %v519
          %695 = vmatprep.subr.mxu0 %v516
          %696 = vmatpush1.msra.mxu0 %v515
          %697 = vmatprep.subr.mxu0 %v640
          %698 = vmatpush2.msra.mxu0 %v639
          %699 = vmatprep.subr.mxu0 %v636
          %700 = vmatpush2.msra.mxu0 %v635
          %701 = vmatprep.subr.mxu0 %v632
          %702 = vmatpush2.msra.mxu0 %v631
          %703 = vmatprep.subr.mxu0 %v628
          %704 = vmatpush2.msra.mxu0 %v627
          %705 = vmatprep.subr.mxu0 %v624
          %706 = vmatpush2.msra.mxu0 %v623
          %707 = vmatprep.subr.mxu0 %v620
          %708 = vmatpush2.msra.mxu0 %v619
          %709 = vmatprep.subr.mxu0 %v616
          %710 = vmatpush2.msra.mxu0 %v615
          %711 = vmatprep.subr.mxu0 %v612
          %712 = vmatpush2.msra.mxu0 %v611
          %713 = vmatprep.subr.mxu0 %v608
          %714 = vmatpush2.msra.mxu0 %v607
          %715 = vmatprep.subr.mxu0 %v604
          %716 = vmatpush2.msra.mxu0 %v603
          %717 = vmatprep.subr.mxu0 %v600
          %718 = vmatpush2.msra.mxu0 %v599
          %719 = vmatprep.subr.mxu0 %v596
          %720 = vmatpush2.msra.mxu0 %v595
          %721 = vmatprep.subr.mxu0 %v592
          %722 = vmatpush2.msra.mxu0 %v591
          %723 = vmatprep.subr.mxu0 %v588
          %724 = vmatpush2.msra.mxu0 %v587
          %725 = vmatprep.subr.mxu0 %v584
          %726 = vmatpush2.msra.mxu0 %v583
          %727 = vmatprep.subr.mxu0 %v580
          %728 = vmatpush2.msra.mxu0 %v579
          %729 = vmatprep.mubr.f32.mxu0 %v452
          %730 = vmatmul.mubr.f32.gmra.mxu0 %v451
          %v731 = vpop.f32.mrf.mxu0
          %v732 = vadd.f32 %v648, %v731
          %v733 = vpop.f32.mrf.mxu0
          %v734 = vadd.f32 %v652, %v733
          %735 = vmatprep.mubr.f32.mxu0 %v454
          %736 = vmatmul.mubr.f32.gmra.mxu0 %v453
          %v737 = vpop.f32.mrf.mxu0
          %v738 = vadd.f32 %v648, %v737
          %v739 = vpop.f32.mrf.mxu0
          %v740 = vadd.f32 %v652, %v739
          %741 = vmatprep.mubr.f32.mxu0 %v456
          %742 = vmatmul.mubr.f32.gmra.mxu0 %v455
          %v743 = vpop.f32.mrf.mxu0
          %v744 = vadd.f32 %v648, %v743
          %v745 = vpop.f32.mrf.mxu0
          %v746 = vadd.f32 %v652, %v745
          %747 = vmatprep.mubr.f32.mxu0 %v458
          %748 = vmatmul.mubr.f32.gmra.mxu0 %v457
          %v749 = vpop.f32.mrf.mxu0
          %v750 = vadd.f32 %v648, %v749
          %v751 = vpop.f32.mrf.mxu0
          %v752 = vadd.f32 %v652, %v751
          %753 = vmatprep.mubr.f32.mxu0 %v460
          %754 = vmatmul.mubr.f32.gmra.mxu0 %v459
          %v755 = vpop.f32.mrf.mxu0
          %v756 = vadd.f32 %v648, %v755
          %v757 = vpop.f32.mrf.mxu0
          %v758 = vadd.f32 %v652, %v757
          %759 = vmatprep.mubr.f32.mxu0 %v462
          %760 = vmatmul.mubr.f32.gmra.mxu0 %v461
          %v761 = vpop.f32.mrf.mxu0
          %v762 = vadd.f32 %v648, %v761
          %v763 = vpop.f32.mrf.mxu0
          %v764 = vadd.f32 %v652, %v763
          %765 = vmatprep.mubr.f32.mxu0 %v464
          %766 = vmatmul.mubr.f32.gmra.mxu0 %v463
          %v767 = vpop.f32.mrf.mxu0
          %v768 = vadd.f32 %v648, %v767
          %v769 = vpop.f32.mrf.mxu0
          %v770 = vadd.f32 %v652, %v769
          %771 = vmatprep.mubr.f32.mxu0 %v466
          %772 = vmatmul.mubr.f32.gmra.mxu0 %v465
          %v773 = vpop.f32.mrf.mxu0
          %v774 = vadd.f32 %v648, %v773
          %v775 = vpop.f32.mrf.mxu0
          %v776 = vadd.f32 %v652, %v775
          %777 = vmatprep.mubr.f32.mxu0 %v468
          %778 = vmatmul.mubr.f32.gmra.mxu0 %v467
          %v779 = vpop.f32.mrf.mxu0
          %v780 = vadd.f32 %v648, %v779
          %v781 = vpop.f32.mrf.mxu0
          %v782 = vadd.f32 %v652, %v781
          %783 = vmatprep.mubr.f32.mxu0 %v470
          %784 = vmatmul.mubr.f32.gmra.mxu0 %v469
          %v785 = vpop.f32.mrf.mxu0
          %v786 = vadd.f32 %v648, %v785
          %v787 = vpop.f32.mrf.mxu0
          %v788 = vadd.f32 %v652, %v787
          %789 = vmatprep.mubr.f32.mxu0 %v472
          %790 = vmatmul.mubr.f32.gmra.mxu0 %v471
          %v791 = vpop.f32.mrf.mxu0
          %v792 = vadd.f32 %v648, %v791
          %v793 = vpop.f32.mrf.mxu0
          %v794 = vadd.f32 %v652, %v793
          %795 = vmatprep.mubr.f32.mxu0 %v474
          %796 = vmatmul.mubr.f32.gmra.mxu0 %v473
          %v797 = vpop.f32.mrf.mxu0
          %v798 = vadd.f32 %v648, %v797
          %v799 = vpop.f32.mrf.mxu0
          %v800 = vadd.f32 %v652, %v799
          %801 = vmatprep.mubr.f32.mxu0 %v476
          %802 = vmatmul.mubr.f32.gmra.mxu0 %v475
          %v803 = vpop.f32.mrf.mxu0
          %v804 = vadd.f32 %v648, %v803
          %v805 = vpop.f32.mrf.mxu0
          %v806 = vadd.f32 %v652, %v805
          %807 = vmatprep.mubr.f32.mxu0 %v478
          %808 = vmatmul.mubr.f32.gmra.mxu0 %v477
          %v809 = vpop.f32.mrf.mxu0
          %v810 = vadd.f32 %v648, %v809
          %v811 = vpop.f32.mrf.mxu0
          %v812 = vadd.f32 %v652, %v811
          %813 = vmatprep.mubr.f32.mxu0 %v480
          %814 = vmatmul.mubr.f32.gmra.mxu0 %v479
          %v815 = vpop.f32.mrf.mxu0
          %v816 = vadd.f32 %v648, %v815
          %v817 = vpop.f32.mrf.mxu0
          %v818 = vadd.f32 %v652, %v817
          %819 = vmatprep.mubr.f32.mxu0 %v482
          %820 = vmatmul.mubr.f32.gmra.mxu0 %v481
          %v821 = vpop.f32.mrf.mxu0
          %v822 = vadd.f32 %v648, %v821
          %v823 = vpop.f32.mrf.mxu0
          %v824 = vadd.f32 %v652, %v823
          %825 = vmatprep.mubr.f32.mxu0 %v484
          %826 = vmatmul.mubr.f32.gmra.mxu0 %v483
          %v827 = vpop.f32.mrf.mxu0
          %v828 = vadd.f32 %v648, %v827
          %v829 = vpop.f32.mrf.mxu0
          %v830 = vadd.f32 %v652, %v829
          %831 = vmatprep.mubr.f32.mxu0 %v486
          %832 = vmatmul.mubr.f32.gmra.mxu0 %v485
          %v833 = vpop.f32.mrf.mxu0
          %v834 = vadd.f32 %v648, %v833
          %v835 = vpop.f32.mrf.mxu0
          %v836 = vadd.f32 %v652, %v835
          %837 = vmatprep.mubr.f32.mxu0 %v488
          %838 = vmatmul.mubr.f32.gmra.mxu0 %v487
          %v839 = vpop.f32.mrf.mxu0
          %v840 = vadd.f32 %v648, %v839
          %v841 = vpop.f32.mrf.mxu0
          %v842 = vadd.f32 %v652, %v841
          %843 = vmatprep.mubr.f32.mxu0 %v490
          %844 = vmatmul.mubr.f32.gmra.mxu0 %v489
          %v845 = vpop.f32.mrf.mxu0
          %v846 = vadd.f32 %v648, %v845
          %v847 = vpop.f32.mrf.mxu0
          %v848 = vadd.f32 %v652, %v847
          %849 = vmatprep.mubr.f32.mxu0 %v492
          %850 = vmatmul.mubr.f32.gmra.mxu0 %v491
          %v851 = vpop.f32.mrf.mxu0
          %v852 = vadd.f32 %v648, %v851
          %v853 = vpop.f32.mrf.mxu0
          %v854 = vadd.f32 %v652, %v853
          %855 = vmatprep.mubr.f32.mxu0 %v494
          %856 = vmatmul.mubr.f32.gmra.mxu0 %v493
          %v857 = vpop.f32.mrf.mxu0
          %v858 = vadd.f32 %v648, %v857
          %v859 = vpop.f32.mrf.mxu0
          %v860 = vadd.f32 %v652, %v859
          %861 = vmatprep.mubr.f32.mxu0 %v496
          %862 = vmatmul.mubr.f32.gmra.mxu0 %v495
          %v863 = vpop.f32.mrf.mxu0
          %v864 = vadd.f32 %v648, %v863
          %v865 = vpop.f32.mrf.mxu0
          %v866 = vadd.f32 %v652, %v865
          %867 = vmatprep.mubr.f32.mxu0 %v498
          %868 = vmatmul.mubr.f32.gmra.mxu0 %v497
          %v869 = vpop.f32.mrf.mxu0
          %v870 = vadd.f32 %v648, %v869
          %v871 = vpop.f32.mrf.mxu0
          %v872 = vadd.f32 %v652, %v871
          %873 = vmatprep.mubr.f32.mxu0 %v500
          %874 = vmatmul.mubr.f32.gmra.mxu0 %v499
          %v875 = vpop.f32.mrf.mxu0
          %v876 = vadd.f32 %v648, %v875
          %v877 = vpop.f32.mrf.mxu0
          %v878 = vadd.f32 %v652, %v877
          %879 = vmatprep.mubr.f32.mxu0 %v502
          %880 = vmatmul.mubr.f32.gmra.mxu0 %v501
          %v881 = vpop.f32.mrf.mxu0
          %v882 = vadd.f32 %v648, %v881
          %v883 = vpop.f32.mrf.mxu0
          %v884 = vadd.f32 %v652, %v883
          %885 = vmatprep.mubr.f32.mxu0 %v504
          %886 = vmatmul.mubr.f32.gmra.mxu0 %v503
          %v887 = vpop.f32.mrf.mxu0
          %v888 = vadd.f32 %v648, %v887
          %v889 = vpop.f32.mrf.mxu0
          %v890 = vadd.f32 %v652, %v889
          %891 = vmatprep.mubr.f32.mxu0 %v506
          %892 = vmatmul.mubr.f32.gmra.mxu0 %v505
          %v893 = vpop.f32.mrf.mxu0
          %v894 = vadd.f32 %v648, %v893
          %v895 = vpop.f32.mrf.mxu0
          %v896 = vadd.f32 %v652, %v895
          %897 = vmatprep.mubr.f32.mxu0 %v508
          %898 = vmatmul.mubr.f32.gmra.mxu0 %v507
          %v899 = vpop.f32.mrf.mxu0
          %v900 = vadd.f32 %v648, %v899
          %v901 = vpop.f32.mrf.mxu0
          %v902 = vadd.f32 %v652, %v901
          %903 = vmatprep.mubr.f32.mxu0 %v510
          %904 = vmatmul.mubr.f32.gmra.mxu0 %v509
          %v905 = vpop.f32.mrf.mxu0
          %v906 = vadd.f32 %v648, %v905
          %v907 = vpop.f32.mrf.mxu0
          %v908 = vadd.f32 %v652, %v907
          %909 = vmatprep.mubr.f32.mxu0 %v512
          %910 = vmatmul.mubr.f32.gmra.mxu0 %v511
          %v911 = vpop.f32.mrf.mxu0
          %v912 = vadd.f32 %v648, %v911
          %v913 = vpop.f32.mrf.mxu0
          %v914 = vadd.f32 %v652, %v913
          %915 = vmatprep.mubr.f32.mxu0 %v514
          %916 = vmatmul.mubr.f32.gmra.mxu0 %v513
          %v917 = vpop.f32.mrf.mxu0
          %v918 = vadd.f32 %v648, %v917
          %v919 = vpop.f32.mrf.mxu0
          %v920 = vadd.f32 %v652, %v919
          %921 = vdwg.mxu0
          %922 = vmatprep.subr.mxu0 %v578
          %923 = vmatpush1.msra.mxu0 %v577
          %924 = vmatprep.subr.mxu0 %v574
          %925 = vmatpush1.msra.mxu0 %v573
          %926 = vmatprep.subr.mxu0 %v570
          %927 = vmatpush1.msra.mxu0 %v569
          %928 = vmatprep.subr.mxu0 %v566
          %929 = vmatpush1.msra.mxu0 %v565
          %930 = vmatprep.subr.mxu0 %v562
          %931 = vmatpush1.msra.mxu0 %v561
          %932 = vmatprep.subr.mxu0 %v558
          %933 = vmatpush1.msra.mxu0 %v557
          %934 = vmatprep.subr.mxu0 %v554
          %935 = vmatpush1.msra.mxu0 %v553
          %936 = vmatprep.subr.mxu0 %v550
          %937 = vmatpush1.msra.mxu0 %v549
          %938 = vmatprep.subr.mxu0 %v546
          %939 = vmatpush1.msra.mxu0 %v545
          %940 = vmatprep.subr.mxu0 %v542
          %941 = vmatpush1.msra.mxu0 %v541
          %942 = vmatprep.subr.mxu0 %v538
          %943 = vmatpush1.msra.mxu0 %v537
          %944 = vmatprep.subr.mxu0 %v534
          %945 = vmatpush1.msra.mxu0 %v533
          %946 = vmatprep.subr.mxu0 %v530
          %947 = vmatpush1.msra.mxu0 %v529
          %948 = vmatprep.subr.mxu0 %v526
          %949 = vmatpush1.msra.mxu0 %v525
          %950 = vmatprep.subr.mxu0 %v522
          %951 = vmatpush1.msra.mxu0 %v521
          %952 = vmatprep.subr.mxu0 %v518
          %953 = vmatpush1.msra.mxu0 %v517
          %954 = vmatprep.subr.mxu0 %v642
          %955 = vmatpush2.msra.mxu0 %v641
          %956 = vmatprep.subr.mxu0 %v638
          %957 = vmatpush2.msra.mxu0 %v637
          %958 = vmatprep.subr.mxu0 %v634
          %959 = vmatpush2.msra.mxu0 %v633
          %960 = vmatprep.subr.mxu0 %v630
          %961 = vmatpush2.msra.mxu0 %v629
          %962 = vmatprep.subr.mxu0 %v626
          %963 = vmatpush2.msra.mxu0 %v625
          %964 = vmatprep.subr.mxu0 %v622
          %965 = vmatpush2.msra.mxu0 %v621
          %966 = vmatprep.subr.mxu0 %v618
          %967 = vmatpush2.msra.mxu0 %v617
          %968 = vmatprep.subr.mxu0 %v614
          %969 = vmatpush2.msra.mxu0 %v613
          %970 = vmatprep.subr.mxu0 %v610
          %971 = vmatpush2.msra.mxu0 %v609
          %972 = vmatprep.subr.mxu0 %v606
          %973 = vmatpush2.msra.mxu0 %v605
          %974 = vmatprep.subr.mxu0 %v602
          %975 = vmatpush2.msra.mxu0 %v601
          %976 = vmatprep.subr.mxu0 %v598
          %977 = vmatpush2.msra.mxu0 %v597
          %978 = vmatprep.subr.mxu0 %v594
          %979 = vmatpush2.msra.mxu0 %v593
          %980 = vmatprep.subr.mxu0 %v590
          %981 = vmatpush2.msra.mxu0 %v589
          %982 = vmatprep.subr.mxu0 %v586
          %983 = vmatpush2.msra.mxu0 %v585
          %984 = vmatprep.subr.mxu0 %v582
          %985 = vmatpush2.msra.mxu0 %v581
          %986 = vmatprep.mubr.f32.mxu0 %v452
          %987 = vmatmul.mubr.f32.gmra.mxu0 %v451
          %v988 = vpop.f32.mrf.mxu0
          %v989 = vadd.f32 %v656, %v988
          %v990 = vpop.f32.mrf.mxu0
          %v991 = vadd.f32 %v660, %v990
          %992 = vmatprep.mubr.f32.mxu0 %v454
          %993 = vmatmul.mubr.f32.gmra.mxu0 %v453
          %v994 = vpop.f32.mrf.mxu0
          %v995 = vadd.f32 %v656, %v994
          %v996 = vpop.f32.mrf.mxu0
          %v997 = vadd.f32 %v660, %v996
          %998 = vmatprep.mubr.f32.mxu0 %v456
          %999 = vmatmul.mubr.f32.gmra.mxu0 %v455
          %v1000 = vpop.f32.mrf.mxu0
          %v1001 = vadd.f32 %v656, %v1000
          %v1002 = vpop.f32.mrf.mxu0
          %v1003 = vadd.f32 %v660, %v1002
          %1004 = vmatprep.mubr.f32.mxu0 %v458
          %1005 = vmatmul.mubr.f32.gmra.mxu0 %v457
          %v1006 = vpop.f32.mrf.mxu0
          %v1007 = vadd.f32 %v656, %v1006
          %v1008 = vpop.f32.mrf.mxu0
          %v1009 = vadd.f32 %v660, %v1008
          %1010 = vmatprep.mubr.f32.mxu0 %v460
          %1011 = vmatmul.mubr.f32.gmra.mxu0 %v459
          %v1012 = vpop.f32.mrf.mxu0
          %v1013 = vadd.f32 %v656, %v1012
          %v1014 = vpop.f32.mrf.mxu0
          %v1015 = vadd.f32 %v660, %v1014
          %1016 = vmatprep.mubr.f32.mxu0 %v462
          %1017 = vmatmul.mubr.f32.gmra.mxu0 %v461
          %v1018 = vpop.f32.mrf.mxu0
          %v1019 = vadd.f32 %v656, %v1018
          %v1020 = vpop.f32.mrf.mxu0
          %v1021 = vadd.f32 %v660, %v1020
          %1022 = vmatprep.mubr.f32.mxu0 %v464
          %1023 = vmatmul.mubr.f32.gmra.mxu0 %v463
          %v1024 = vpop.f32.mrf.mxu0
          %v1025 = vadd.f32 %v656, %v1024
          %v1026 = vpop.f32.mrf.mxu0
          %v1027 = vadd.f32 %v660, %v1026
          %1028 = vmatprep.mubr.f32.mxu0 %v466
          %1029 = vmatmul.mubr.f32.gmra.mxu0 %v465
          %v1030 = vpop.f32.mrf.mxu0
          %v1031 = vadd.f32 %v656, %v1030
          %v1032 = vpop.f32.mrf.mxu0
          %v1033 = vadd.f32 %v660, %v1032
          %1034 = vmatprep.mubr.f32.mxu0 %v468
          %1035 = vmatmul.mubr.f32.gmra.mxu0 %v467
          %v1036 = vpop.f32.mrf.mxu0
          %v1037 = vadd.f32 %v656, %v1036
          %v1038 = vpop.f32.mrf.mxu0
          %v1039 = vadd.f32 %v660, %v1038
          %1040 = vmatprep.mubr.f32.mxu0 %v470
          %1041 = vmatmul.mubr.f32.gmra.mxu0 %v469
          %v1042 = vpop.f32.mrf.mxu0
          %v1043 = vadd.f32 %v656, %v1042
          %v1044 = vpop.f32.mrf.mxu0
          %v1045 = vadd.f32 %v660, %v1044
          %1046 = vmatprep.mubr.f32.mxu0 %v472
          %1047 = vmatmul.mubr.f32.gmra.mxu0 %v471
          %v1048 = vpop.f32.mrf.mxu0
          %v1049 = vadd.f32 %v656, %v1048
          %v1050 = vpop.f32.mrf.mxu0
          %v1051 = vadd.f32 %v660, %v1050
          %1052 = vmatprep.mubr.f32.mxu0 %v474
          %1053 = vmatmul.mubr.f32.gmra.mxu0 %v473
          %v1054 = vpop.f32.mrf.mxu0
          %v1055 = vadd.f32 %v656, %v1054
          %v1056 = vpop.f32.mrf.mxu0
          %v1057 = vadd.f32 %v660, %v1056
          %1058 = vmatprep.mubr.f32.mxu0 %v476
          %1059 = vmatmul.mubr.f32.gmra.mxu0 %v475
          %v1060 = vpop.f32.mrf.mxu0
          %v1061 = vadd.f32 %v656, %v1060
          %v1062 = vpop.f32.mrf.mxu0
          %v1063 = vadd.f32 %v660, %v1062
          %1064 = vmatprep.mubr.f32.mxu0 %v478
          %1065 = vmatmul.mubr.f32.gmra.mxu0 %v477
          %v1066 = vpop.f32.mrf.mxu0
          %v1067 = vadd.f32 %v656, %v1066
          %v1068 = vpop.f32.mrf.mxu0
          %v1069 = vadd.f32 %v660, %v1068
          %1070 = vmatprep.mubr.f32.mxu0 %v480
          %1071 = vmatmul.mubr.f32.gmra.mxu0 %v479
          %v1072 = vpop.f32.mrf.mxu0
          %v1073 = vadd.f32 %v656, %v1072
          %v1074 = vpop.f32.mrf.mxu0
          %v1075 = vadd.f32 %v660, %v1074
          %1076 = vmatprep.mubr.f32.mxu0 %v482
          %1077 = vmatmul.mubr.f32.gmra.mxu0 %v481
          %v1078 = vpop.f32.mrf.mxu0
          %v1079 = vadd.f32 %v656, %v1078
          %v1080 = vpop.f32.mrf.mxu0
          %v1081 = vadd.f32 %v660, %v1080
          %1082 = vmatprep.mubr.f32.mxu0 %v484
          %1083 = vmatmul.mubr.f32.gmra.mxu0 %v483
          %v1084 = vpop.f32.mrf.mxu0
          %v1085 = vadd.f32 %v656, %v1084
          %v1086 = vpop.f32.mrf.mxu0
          %v1087 = vadd.f32 %v660, %v1086
          %1088 = vmatprep.mubr.f32.mxu0 %v486
          %1089 = vmatmul.mubr.f32.gmra.mxu0 %v485
          %v1090 = vpop.f32.mrf.mxu0
          %v1091 = vadd.f32 %v656, %v1090
          %v1092 = vpop.f32.mrf.mxu0
          %v1093 = vadd.f32 %v660, %v1092
          %1094 = vmatprep.mubr.f32.mxu0 %v488
          %1095 = vmatmul.mubr.f32.gmra.mxu0 %v487
          %v1096 = vpop.f32.mrf.mxu0
          %v1097 = vadd.f32 %v656, %v1096
          %v1098 = vpop.f32.mrf.mxu0
          %v1099 = vadd.f32 %v660, %v1098
          %1100 = vmatprep.mubr.f32.mxu0 %v490
          %1101 = vmatmul.mubr.f32.gmra.mxu0 %v489
          %v1102 = vpop.f32.mrf.mxu0
          %v1103 = vadd.f32 %v656, %v1102
          %v1104 = vpop.f32.mrf.mxu0
          %v1105 = vadd.f32 %v660, %v1104
          %1106 = vmatprep.mubr.f32.mxu0 %v492
          %1107 = vmatmul.mubr.f32.gmra.mxu0 %v491
          %v1108 = vpop.f32.mrf.mxu0
          %v1109 = vadd.f32 %v656, %v1108
          %v1110 = vpop.f32.mrf.mxu0
          %v1111 = vadd.f32 %v660, %v1110
          %1112 = vmatprep.mubr.f32.mxu0 %v494
          %1113 = vmatmul.mubr.f32.gmra.mxu0 %v493
          %v1114 = vpop.f32.mrf.mxu0
          %v1115 = vadd.f32 %v656, %v1114
          %v1116 = vpop.f32.mrf.mxu0
          %v1117 = vadd.f32 %v660, %v1116
          %1118 = vmatprep.mubr.f32.mxu0 %v496
          %1119 = vmatmul.mubr.f32.gmra.mxu0 %v495
          %v1120 = vpop.f32.mrf.mxu0
          %v1121 = vadd.f32 %v656, %v1120
          %v1122 = vpop.f32.mrf.mxu0
          %v1123 = vadd.f32 %v660, %v1122
          %1124 = vmatprep.mubr.f32.mxu0 %v498
          %1125 = vmatmul.mubr.f32.gmra.mxu0 %v497
          %v1126 = vpop.f32.mrf.mxu0
          %v1127 = vadd.f32 %v656, %v1126
          %v1128 = vpop.f32.mrf.mxu0
          %v1129 = vadd.f32 %v660, %v1128
          %1130 = vmatprep.mubr.f32.mxu0 %v500
          %1131 = vmatmul.mubr.f32.gmra.mxu0 %v499
          %v1132 = vpop.f32.mrf.mxu0
          %v1133 = vadd.f32 %v656, %v1132
          %v1134 = vpop.f32.mrf.mxu0
          %v1135 = vadd.f32 %v660, %v1134
          %1136 = vmatprep.mubr.f32.mxu0 %v502
          %1137 = vmatmul.mubr.f32.gmra.mxu0 %v501
          %v1138 = vpop.f32.mrf.mxu0
          %v1139 = vadd.f32 %v656, %v1138
          %v1140 = vpop.f32.mrf.mxu0
          %v1141 = vadd.f32 %v660, %v1140
          %1142 = vmatprep.mubr.f32.mxu0 %v504
          %1143 = vmatmul.mubr.f32.gmra.mxu0 %v503
          %v1144 = vpop.f32.mrf.mxu0
          %v1145 = vadd.f32 %v656, %v1144
          %v1146 = vpop.f32.mrf.mxu0
          %v1147 = vadd.f32 %v660, %v1146
          %1148 = vmatprep.mubr.f32.mxu0 %v506
          %1149 = vmatmul.mubr.f32.gmra.mxu0 %v505
          %v1150 = vpop.f32.mrf.mxu0
          %v1151 = vadd.f32 %v656, %v1150
          %v1152 = vpop.f32.mrf.mxu0
          %v1153 = vadd.f32 %v660, %v1152
          %1154 = vmatprep.mubr.f32.mxu0 %v508
          %1155 = vmatmul.mubr.f32.gmra.mxu0 %v507
          %v1156 = vpop.f32.mrf.mxu0
          %v1157 = vadd.f32 %v656, %v1156
          %v1158 = vpop.f32.mrf.mxu0
          %v1159 = vadd.f32 %v660, %v1158
          %1160 = vmatprep.mubr.f32.mxu0 %v510
          %1161 = vmatmul.mubr.f32.gmra.mxu0 %v509
          %v1162 = vpop.f32.mrf.mxu0
          %v1163 = vadd.f32 %v656, %v1162
          %v1164 = vpop.f32.mrf.mxu0
          %v1165 = vadd.f32 %v660, %v1164
          %1166 = vmatprep.mubr.f32.mxu0 %v512
          %1167 = vmatmul.mubr.f32.gmra.mxu0 %v511
          %v1168 = vpop.f32.mrf.mxu0
          %v1169 = vadd.f32 %v656, %v1168
          %v1170 = vpop.f32.mrf.mxu0
          %v1171 = vadd.f32 %v660, %v1170
          %1172 = vmatprep.mubr.f32.mxu0 %v514
          %1173 = vmatmul.mubr.f32.gmra.mxu0 %v513
          %v1174 = vpop.f32.mrf.mxu0
          %v1175 = vadd.f32 %v656, %v1174
          %v1176 = vpop.f32.mrf.mxu0
          %v1177 = vadd.f32 %v660, %v1176
          %1178 = vdwg.mxu0
          %1179 = vst [vmem:[#allocation2] sm:$0xff] %v732
          %1180 = vst [vmem:[#allocation2 + $0x8] sm:$0xff] %v734
          %1181 = vst [vmem:[#allocation2 + $0x10] sm:$0xff] %v738
          %1182 = vst [vmem:[#allocation2 + $0x18] sm:$0xff] %v740
          %1183 = vst [vmem:[#allocation2 + $0x20] sm:$0xff] %v744
          %1184 = vst [vmem:[#allocation2 + $0x28] sm:$0xff] %v746
          %1185 = vst [vmem:[#allocation2 + $0x30] sm:$0xff] %v750
          %1186 = vst [vmem:[#allocation2 + $0x38] sm:$0xff] %v752
          %1187 = vst [vmem:[#allocation2 + $0x40] sm:$0xff] %v756
          %1188 = vst [vmem:[#allocation2 + $0x48] sm:$0xff] %v758
          %1189 = vst [vmem:[#allocation2 + $0x50] sm:$0xff] %v762
          %1190 = vst [vmem:[#allocation2 + $0x58] sm:$0xff] %v764
          %1191 = vst [vmem:[#allocation2 + $0x60] sm:$0xff] %v768
          %1192 = vst [vmem:[#allocation2 + $0x68] sm:$0xff] %v770
          %1193 = vst [vmem:[#allocation2 + $0x70] sm:$0xff] %v774
          %1194 = vst [vmem:[#allocation2 + $0x78] sm:$0xff] %v776
          %1195 = vst [vmem:[#allocation2 + $0x80] sm:$0xff] %v780
          %1196 = vst [vmem:[#allocation2 + $0x88] sm:$0xff] %v782
          %1197 = vst [vmem:[#allocation2 + $0x90] sm:$0xff] %v786
          %1198 = vst [vmem:[#allocation2 + $0x98] sm:$0xff] %v788
          %1199 = vst [vmem:[#allocation2 + $0xa0] sm:$0xff] %v792
          %1200 = vst [vmem:[#allocation2 + $0xa8] sm:$0xff] %v794
          %1201 = vst [vmem:[#allocation2 + $0xb0] sm:$0xff] %v798
          %1202 = vst [vmem:[#allocation2 + $0xb8] sm:$0xff] %v800
          %1203 = vst [vmem:[#allocation2 + $0xc0] sm:$0xff] %v804
          %1204 = vst [vmem:[#allocation2 + $0xc8] sm:$0xff] %v806
          %1205 = vst [vmem:[#allocation2 + $0xd0] sm:$0xff] %v810
          %1206 = vst [vmem:[#allocation2 + $0xd8] sm:$0xff] %v812
          %1207 = vst [vmem:[#allocation2 + $0xe0] sm:$0xff] %v816
          %1208 = vst [vmem:[#allocation2 + $0xe8] sm:$0xff] %v818
          %1209 = vst [vmem:[#allocation2 + $0xf0] sm:$0xff] %v822
          %1210 = vst [vmem:[#allocation2 + $0xf8] sm:$0xff] %v824
          %1211 = vst [vmem:[#allocation2 + $0x100] sm:$0xff] %v828
          %1212 = vst [vmem:[#allocation2 + $0x108] sm:$0xff] %v830
          %1213 = vst [vmem:[#allocation2 + $0x110] sm:$0xff] %v834
          %1214 = vst [vmem:[#allocation2 + $0x118] sm:$0xff] %v836
          %1215 = vst [vmem:[#allocation2 + $0x120] sm:$0xff] %v840
          %1216 = vst [vmem:[#allocation2 + $0x128] sm:$0xff] %v842
          %1217 = vst [vmem:[#allocation2 + $0x130] sm:$0xff] %v846
          %1218 = vst [vmem:[#allocation2 + $0x138] sm:$0xff] %v848
          %1219 = vst [vmem:[#allocation2 + $0x140] sm:$0xff] %v852
          %1220 = vst [vmem:[#allocation2 + $0x148] sm:$0xff] %v854
          %1221 = vst [vmem:[#allocation2 + $0x150] sm:$0xff] %v858
          %1222 = vst [vmem:[#allocation2 + $0x158] sm:$0xff] %v860
          %1223 = vst [vmem:[#allocation2 + $0x160] sm:$0xff] %v864
          %1224 = vst [vmem:[#allocation2 + $0x168] sm:$0xff] %v866
          %1225 = vst [vmem:[#allocation2 + $0x170] sm:$0xff] %v870
          %1226 = vst [vmem:[#allocation2 + $0x178] sm:$0xff] %v872
          %1227 = vst [vmem:[#allocation2 + $0x180] sm:$0xff] %v876
          %1228 = vst [vmem:[#allocation2 + $0x188] sm:$0xff] %v878
          %1229 = vst [vmem:[#allocation2 + $0x190] sm:$0xff] %v882
          %1230 = vst [vmem:[#allocation2 + $0x198] sm:$0xff] %v884
          %1231 = vst [vmem:[#allocation2 + $0x1a0] sm:$0xff] %v888
          %1232 = vst [vmem:[#allocation2 + $0x1a8] sm:$0xff] %v890
          %1233 = vst [vmem:[#allocation2 + $0x1b0] sm:$0xff] %v894
          %1234 = vst [vmem:[#allocation2 + $0x1b8] sm:$0xff] %v896
          %1235 = vst [vmem:[#allocation2 + $0x1c0] sm:$0xff] %v900
          %1236 = vst [vmem:[#allocation2 + $0x1c8] sm:$0xff] %v902
          %1237 = vst [vmem:[#allocation2 + $0x1d0] sm:$0xff] %v906
          %1238 = vst [vmem:[#allocation2 + $0x1d8] sm:$0xff] %v908
          %1239 = vst [vmem:[#allocation2 + $0x1e0] sm:$0xff] %v912
          %1240 = vst [vmem:[#allocation2 + $0x1e8] sm:$0xff] %v914
          %1241 = vst [vmem:[#allocation2 + $0x1f0] sm:$0xff] %v918
          %1242 = vst [vmem:[#allocation2 + $0x1f8] sm:$0xff] %v920
          %1243 = vst [vmem:[#allocation3] sm:$0xff] %v989
          %1244 = vst [vmem:[#allocation3 + $0x8] sm:$0xff] %v991
          %1245 = vst [vmem:[#allocation3 + $0x10] sm:$0xff] %v995
          %1246 = vst [vmem:[#allocation3 + $0x18] sm:$0xff] %v997
          %1247 = vst [vmem:[#allocation3 + $0x20] sm:$0xff] %v1001
          %1248 = vst [vmem:[#allocation3 + $0x28] sm:$0xff] %v1003
          %1249 = vst [vmem:[#allocation3 + $0x30] sm:$0xff] %v1007
          %1250 = vst [vmem:[#allocation3 + $0x38] sm:$0xff] %v1009
          %1251 = vst [vmem:[#allocation3 + $0x40] sm:$0xff] %v1013
          %1252 = vst [vmem:[#allocation3 + $0x48] sm:$0xff] %v1015
          %1253 = vst [vmem:[#allocation3 + $0x50] sm:$0xff] %v1019
          %1254 = vst [vmem:[#allocation3 + $0x58] sm:$0xff] %v1021
          %1255 = vst [vmem:[#allocation3 + $0x60] sm:$0xff] %v1025
          %1256 = vst [vmem:[#allocation3 + $0x68] sm:$0xff] %v1027
          %1257 = vst [vmem:[#allocation3 + $0x70] sm:$0xff] %v1031
          %1258 = vst [vmem:[#allocation3 + $0x78] sm:$0xff] %v1033
          %1259 = vst [vmem:[#allocation3 + $0x80] sm:$0xff] %v1037
          %1260 = vst [vmem:[#allocation3 + $0x88] sm:$0xff] %v1039
          %1261 = vst [vmem:[#allocation3 + $0x90] sm:$0xff] %v1043
          %1262 = vst [vmem:[#allocation3 + $0x98] sm:$0xff] %v1045
          %1263 = vst [vmem:[#allocation3 + $0xa0] sm:$0xff] %v1049
          %1264 = vst [vmem:[#allocation3 + $0xa8] sm:$0xff] %v1051
          %1265 = vst [vmem:[#allocation3 + $0xb0] sm:$0xff] %v1055
          %1266 = vst [vmem:[#allocation3 + $0xb8] sm:$0xff] %v1057
          %1267 = vst [vmem:[#allocation3 + $0xc0] sm:$0xff] %v1061
          %1268 = vst [vmem:[#allocation3 + $0xc8] sm:$0xff] %v1063
          %1269 = vst [vmem:[#allocation3 + $0xd0] sm:$0xff] %v1067
          %1270 = vst [vmem:[#allocation3 + $0xd8] sm:$0xff] %v1069
          %1271 = vst [vmem:[#allocation3 + $0xe0] sm:$0xff] %v1073
          %1272 = vst [vmem:[#allocation3 + $0xe8] sm:$0xff] %v1075
          %1273 = vst [vmem:[#allocation3 + $0xf0] sm:$0xff] %v1079
          %1274 = vst [vmem:[#allocation3 + $0xf8] sm:$0xff] %v1081
          %1275 = vst [vmem:[#allocation3 + $0x100] sm:$0xff] %v1085
          %1276 = vst [vmem:[#allocation3 + $0x108] sm:$0xff] %v1087
          %1277 = vst [vmem:[#allocation3 + $0x110] sm:$0xff] %v1091
          %1278 = vst [vmem:[#allocation3 + $0x118] sm:$0xff] %v1093
          %1279 = vst [vmem:[#allocation3 + $0x120] sm:$0xff] %v1097
          %1280 = vst [vmem:[#allocation3 + $0x128] sm:$0xff] %v1099
          %1281 = vst [vmem:[#allocation3 + $0x130] sm:$0xff] %v1103
          %1282 = vst [vmem:[#allocation3 + $0x138] sm:$0xff] %v1105
          %1283 = vst [vmem:[#allocation3 + $0x140] sm:$0xff] %v1109
          %1284 = vst [vmem:[#allocation3 + $0x148] sm:$0xff] %v1111
          %1285 = vst [vmem:[#allocation3 + $0x150] sm:$0xff] %v1115
          %1286 = vst [vmem:[#allocation3 + $0x158] sm:$0xff] %v1117
          %1287 = vst [vmem:[#allocation3 + $0x160] sm:$0xff] %v1121
          %1288 = vst [vmem:[#allocation3 + $0x168] sm:$0xff] %v1123
          %1289 = vst [vmem:[#allocation3 + $0x170] sm:$0xff] %v1127
          %1290 = vst [vmem:[#allocation3 + $0x178] sm:$0xff] %v1129
          %1291 = vst [vmem:[#allocation3 + $0x180] sm:$0xff] %v1133
          %1292 = vst [vmem:[#allocation3 + $0x188] sm:$0xff] %v1135
          %1293 = vst [vmem:[#allocation3 + $0x190] sm:$0xff] %v1139
          %1294 = vst [vmem:[#allocation3 + $0x198] sm:$0xff] %v1141
          %1295 = vst [vmem:[#allocation3 + $0x1a0] sm:$0xff] %v1145
          %1296 = vst [vmem:[#allocation3 + $0x1a8] sm:$0xff] %v1147
          %1297 = vst [vmem:[#allocation3 + $0x1b0] sm:$0xff] %v1151
          %1298 = vst [vmem:[#allocation3 + $0x1b8] sm:$0xff] %v1153
          %1299 = vst [vmem:[#allocation3 + $0x1c0] sm:$0xff] %v1157
          %1300 = vst [vmem:[#allocation3 + $0x1c8] sm:$0xff] %v1159
          %1301 = vst [vmem:[#allocation3 + $0x1d0] sm:$0xff] %v1163
          %1302 = vst [vmem:[#allocation3 + $0x1d8] sm:$0xff] %v1165
          %1303 = vst [vmem:[#allocation3 + $0x1e0] sm:$0xff] %v1169
          %1304 = vst [vmem:[#allocation3 + $0x1e8] sm:$0xff] %v1171
          %1305 = vst [vmem:[#allocation3 + $0x1f0] sm:$0xff] %v1175
          %1306 = vst [vmem:[#allocation3 + $0x1f8] sm:$0xff] %v1177
        $region64: #{tpu_custom_call.1} parent=43 // pred_fallthru
          _
        %v1307 = vld [vmem:[%s378] sm:$0xff]
        %v1308 = vld [vmem:[%s378 + $0x8] sm:$0xff]
        %v1309 = vld [vmem:[%s378 + $0x10] sm:$0xff]
        %v1310 = vld [vmem:[%s378 + $0x18] sm:$0xff]
        %v1311 = vld [vmem:[%s378 + $0x20] sm:$0xff]
        %v1312 = vld [vmem:[%s378 + $0x28] sm:$0xff]
        %v1313 = vld [vmem:[%s378 + $0x30] sm:$0xff]
        %v1314 = vld [vmem:[%s378 + $0x38] sm:$0xff]
        %v1315 = vld [vmem:[%s378 + $0x40] sm:$0xff]
        %v1316 = vld [vmem:[%s378 + $0x48] sm:$0xff]
        %v1317 = vld [vmem:[%s378 + $0x50] sm:$0xff]
        %v1318 = vld [vmem:[%s378 + $0x58] sm:$0xff]
        %v1319 = vld [vmem:[%s378 + $0x60] sm:$0xff]
        %v1320 = vld [vmem:[%s378 + $0x68] sm:$0xff]
        %v1321 = vld [vmem:[%s378 + $0x70] sm:$0xff]
        %v1322 = vld [vmem:[%s378 + $0x78] sm:$0xff]
        %v1323 = vld [vmem:[%s378 + $0x80] sm:$0xff]
        %v1324 = vld [vmem:[%s378 + $0x88] sm:$0xff]
        %v1325 = vld [vmem:[%s378 + $0x90] sm:$0xff]
        %v1326 = vld [vmem:[%s378 + $0x98] sm:$0xff]
        %v1327 = vld [vmem:[%s378 + $0xa0] sm:$0xff]
        %v1328 = vld [vmem:[%s378 + $0xa8] sm:$0xff]
        %v1329 = vld [vmem:[%s378 + $0xb0] sm:$0xff]
        %v1330 = vld [vmem:[%s378 + $0xb8] sm:$0xff]
        %v1331 = vld [vmem:[%s378 + $0xc0] sm:$0xff]
        %v1332 = vld [vmem:[%s378 + $0xc8] sm:$0xff]
        %v1333 = vld [vmem:[%s378 + $0xd0] sm:$0xff]
        %v1334 = vld [vmem:[%s378 + $0xd8] sm:$0xff]
        %v1335 = vld [vmem:[%s378 + $0xe0] sm:$0xff]
        %v1336 = vld [vmem:[%s378 + $0xe8] sm:$0xff]
        %v1337 = vld [vmem:[%s378 + $0xf0] sm:$0xff]
        %v1338 = vld [vmem:[%s378 + $0xf8] sm:$0xff]
        %v1339 = vld [vmem:[#allocation9] sm:$0xff]
        %v1340 = vld [vmem:[#allocation9 + $0x8] sm:$0xff]
        %v1341 = vld [vmem:[#allocation9 + $0x10] sm:$0xff]
        %v1342 = vld [vmem:[#allocation9 + $0x18] sm:$0xff]
        %v1343 = vld [vmem:[#allocation9 + $0x20] sm:$0xff]
        %v1344 = vld [vmem:[#allocation9 + $0x28] sm:$0xff]
        %v1345 = vld [vmem:[#allocation9 + $0x30] sm:$0xff]
        %v1346 = vld [vmem:[#allocation9 + $0x38] sm:$0xff]
        %v1347 = vld [vmem:[#allocation9 + $0x40] sm:$0xff]
        %v1348 = vld [vmem:[#allocation9 + $0x48] sm:$0xff]
        %v1349 = vld [vmem:[#allocation9 + $0x50] sm:$0xff]
        %v1350 = vld [vmem:[#allocation9 + $0x58] sm:$0xff]
        %v1351 = vld [vmem:[#allocation9 + $0x60] sm:$0xff]
        %v1352 = vld [vmem:[#allocation9 + $0x68] sm:$0xff]
        %v1353 = vld [vmem:[#allocation9 + $0x70] sm:$0xff]
        %v1354 = vld [vmem:[#allocation9 + $0x78] sm:$0xff]
        %v1355 = vld [vmem:[#allocation9 + $0x80] sm:$0xff]
        %v1356 = vld [vmem:[#allocation9 + $0x88] sm:$0xff]
        %v1357 = vld [vmem:[#allocation9 + $0x90] sm:$0xff]
        %v1358 = vld [vmem:[#allocation9 + $0x98] sm:$0xff]
        %v1359 = vld [vmem:[#allocation9 + $0xa0] sm:$0xff]
        %v1360 = vld [vmem:[#allocation9 + $0xa8] sm:$0xff]
        %v1361 = vld [vmem:[#allocation9 + $0xb0] sm:$0xff]
        %v1362 = vld [vmem:[#allocation9 + $0xb8] sm:$0xff]
        %v1363 = vld [vmem:[#allocation9 + $0xc0] sm:$0xff]
        %v1364 = vld [vmem:[#allocation9 + $0xc8] sm:$0xff]
        %v1365 = vld [vmem:[#allocation9 + $0xd0] sm:$0xff]
        %v1366 = vld [vmem:[#allocation9 + $0xd8] sm:$0xff]
        %v1367 = vld [vmem:[#allocation9 + $0xe0] sm:$0xff]
        %v1368 = vld [vmem:[#allocation9 + $0xe8] sm:$0xff]
        %v1369 = vld [vmem:[#allocation9 + $0xf0] sm:$0xff]
        %v1370 = vld [vmem:[#allocation9 + $0xf8] sm:$0xff]
        %v1371 = vld [vmem:[#allocation9 + $0x100] sm:$0xff]
        %v1372 = vld [vmem:[#allocation9 + $0x108] sm:$0xff]
        %v1373 = vld [vmem:[#allocation9 + $0x110] sm:$0xff]
        %v1374 = vld [vmem:[#allocation9 + $0x118] sm:$0xff]
        %v1375 = vld [vmem:[#allocation9 + $0x120] sm:$0xff]
        %v1376 = vld [vmem:[#allocation9 + $0x128] sm:$0xff]
        %v1377 = vld [vmem:[#allocation9 + $0x130] sm:$0xff]
        %v1378 = vld [vmem:[#allocation9 + $0x138] sm:$0xff]
        %v1379 = vld [vmem:[#allocation9 + $0x140] sm:$0xff]
        %v1380 = vld [vmem:[#allocation9 + $0x148] sm:$0xff]
        %v1381 = vld [vmem:[#allocation9 + $0x150] sm:$0xff]
        %v1382 = vld [vmem:[#allocation9 + $0x158] sm:$0xff]
        %v1383 = vld [vmem:[#allocation9 + $0x160] sm:$0xff]
        %v1384 = vld [vmem:[#allocation9 + $0x168] sm:$0xff]
        %v1385 = vld [vmem:[#allocation9 + $0x170] sm:$0xff]
        %v1386 = vld [vmem:[#allocation9 + $0x178] sm:$0xff]
        %v1387 = vld [vmem:[#allocation9 + $0x180] sm:$0xff]
        %v1388 = vld [vmem:[#allocation9 + $0x188] sm:$0xff]
        %v1389 = vld [vmem:[#allocation9 + $0x190] sm:$0xff]
        %v1390 = vld [vmem:[#allocation9 + $0x198] sm:$0xff]
        %v1391 = vld [vmem:[#allocation9 + $0x1a0] sm:$0xff]
        %v1392 = vld [vmem:[#allocation9 + $0x1a8] sm:$0xff]
        %v1393 = vld [vmem:[#allocation9 + $0x1b0] sm:$0xff]
        %v1394 = vld [vmem:[#allocation9 + $0x1b8] sm:$0xff]
        %v1395 = vld [vmem:[#allocation9 + $0x1c0] sm:$0xff]
        %v1396 = vld [vmem:[#allocation9 + $0x1c8] sm:$0xff]
        %v1397 = vld [vmem:[#allocation9 + $0x1d0] sm:$0xff]
        %v1398 = vld [vmem:[#allocation9 + $0x1d8] sm:$0xff]
        %v1399 = vld [vmem:[#allocation9 + $0x1e0] sm:$0xff]
        %v1400 = vld [vmem:[#allocation9 + $0x1e8] sm:$0xff]
        %v1401 = vld [vmem:[#allocation9 + $0x1f0] sm:$0xff]
        %v1402 = vld [vmem:[#allocation9 + $0x1f8] sm:$0xff]
        %v1403 = vld [vmem:[%s438] sm:$0x3]
        %v1405 = vlaneseq
        %v1406 = vshrl.u32 %v1405, 7
        %v1407 = vsub.s32 0, %v1406
        %v1408 = vrot.slane %v1403, %v1407
        %v1409 = vlaneseq
        %v1410 = vshrl.u32 %v1409, 7
        %v1411 = vsub.s32 1, %v1410
        %v1412 = vrot.slane %v1403, %v1411
        %1415 = vmatprep.subr.mxu0 %v1370
        %1416 = vmatpush1.msra.mxu0 %v1369
        %1417 = vmatprep.subr.mxu0 %v1368
        %1418 = vmatpush1.msra.mxu0 %v1367
        %1419 = vmatprep.subr.mxu0 %v1366
        %1420 = vmatpush1.msra.mxu0 %v1365
        %1421 = vmatprep.subr.mxu0 %v1364
        %1422 = vmatpush1.msra.mxu0 %v1363
        %1423 = vmatprep.subr.mxu0 %v1362
        %1424 = vmatpush1.msra.mxu0 %v1361
        %1425 = vmatprep.subr.mxu0 %v1360
        %1426 = vmatpush1.msra.mxu0 %v1359
        %1427 = vmatprep.subr.mxu0 %v1358
        %1428 = vmatpush1.msra.mxu0 %v1357
        %1429 = vmatprep.subr.mxu0 %v1356
        %1430 = vmatpush1.msra.mxu0 %v1355
        %1431 = vmatprep.subr.mxu0 %v1354
        %1432 = vmatpush1.msra.mxu0 %v1353
        %1433 = vmatprep.subr.mxu0 %v1352
        %1434 = vmatpush1.msra.mxu0 %v1351
        %1435 = vmatprep.subr.mxu0 %v1350
        %1436 = vmatpush1.msra.mxu0 %v1349
        %1437 = vmatprep.subr.mxu0 %v1348
        %1438 = vmatpush1.msra.mxu0 %v1347
        %1439 = vmatprep.subr.mxu0 %v1346
        %1440 = vmatpush1.msra.mxu0 %v1345
        %1441 = vmatprep.subr.mxu0 %v1344
        %1442 = vmatpush1.msra.mxu0 %v1343
        %1443 = vmatprep.subr.mxu0 %v1342
        %1444 = vmatpush1.msra.mxu0 %v1341
        %1445 = vmatprep.subr.mxu0 %v1340
        %1446 = vmatpush1.msra.mxu0 %v1339
        %1447 = vmatprep.subr.mxu0 %v1402
        %1448 = vmatpush2.msra.mxu0 %v1401
        %1449 = vmatprep.subr.mxu0 %v1400
        %1450 = vmatpush2.msra.mxu0 %v1399
        %1451 = vmatprep.subr.mxu0 %v1398
        %1452 = vmatpush2.msra.mxu0 %v1397
        %1453 = vmatprep.subr.mxu0 %v1396
        %1454 = vmatpush2.msra.mxu0 %v1395
        %1455 = vmatprep.subr.mxu0 %v1394
        %1456 = vmatpush2.msra.mxu0 %v1393
        %1457 = vmatprep.subr.mxu0 %v1392
        %1458 = vmatpush2.msra.mxu0 %v1391
        %1459 = vmatprep.subr.mxu0 %v1390
        %1460 = vmatpush2.msra.mxu0 %v1389
        %1461 = vmatprep.subr.mxu0 %v1388
        %1462 = vmatpush2.msra.mxu0 %v1387
        %1463 = vmatprep.subr.mxu0 %v1386
        %1464 = vmatpush2.msra.mxu0 %v1385
        %1465 = vmatprep.subr.mxu0 %v1384
        %1466 = vmatpush2.msra.mxu0 %v1383
        %1467 = vmatprep.subr.mxu0 %v1382
        %1468 = vmatpush2.msra.mxu0 %v1381
        %1469 = vmatprep.subr.mxu0 %v1380
        %1470 = vmatpush2.msra.mxu0 %v1379
        %1471 = vmatprep.subr.mxu0 %v1378
        %1472 = vmatpush2.msra.mxu0 %v1377
        %1473 = vmatprep.subr.mxu0 %v1376
        %1474 = vmatpush2.msra.mxu0 %v1375
        %1475 = vmatprep.subr.mxu0 %v1374
        %1476 = vmatpush2.msra.mxu0 %v1373
        %1477 = vmatprep.subr.mxu0 %v1372
        %1478 = vmatpush2.msra.mxu0 %v1371
        %1479 = vmatprep.mubr.f32.mxu0 %v1308
        %1480 = vmatmul.mubr.f32.gmra.mxu0 %v1307
        %v1481 = vpop.f32.mrf.mxu0
        %v1482 = vadd.f32 %v1408, %v1481
        %v1483 = vpop.f32.mrf.mxu0
        %v1484 = vadd.f32 %v1412, %v1483
        %1485 = vmatprep.mubr.f32.mxu0 %v1310
        %1486 = vmatmul.mubr.f32.gmra.mxu0 %v1309
        %v1487 = vpop.f32.mrf.mxu0
        %v1488 = vadd.f32 %v1408, %v1487
        %v1489 = vpop.f32.mrf.mxu0
        %v1490 = vadd.f32 %v1412, %v1489
        %1491 = vmatprep.mubr.f32.mxu0 %v1312
        %1492 = vmatmul.mubr.f32.gmra.mxu0 %v1311
        %v1493 = vpop.f32.mrf.mxu0
        %v1494 = vadd.f32 %v1408, %v1493
        %v1495 = vpop.f32.mrf.mxu0
        %v1496 = vadd.f32 %v1412, %v1495
        %1497 = vmatprep.mubr.f32.mxu0 %v1314
        %1498 = vmatmul.mubr.f32.gmra.mxu0 %v1313
        %v1499 = vpop.f32.mrf.mxu0
        %v1500 = vadd.f32 %v1408, %v1499
        %v1501 = vpop.f32.mrf.mxu0
        %v1502 = vadd.f32 %v1412, %v1501
        %1503 = vmatprep.mubr.f32.mxu0 %v1316
        %1504 = vmatmul.mubr.f32.gmra.mxu0 %v1315
        %v1505 = vpop.f32.mrf.mxu0
        %v1506 = vadd.f32 %v1408, %v1505
        %v1507 = vpop.f32.mrf.mxu0
        %v1508 = vadd.f32 %v1412, %v1507
        %1509 = vmatprep.mubr.f32.mxu0 %v1318
        %1510 = vmatmul.mubr.f32.gmra.mxu0 %v1317
        %v1511 = vpop.f32.mrf.mxu0
        %v1512 = vadd.f32 %v1408, %v1511
        %v1513 = vpop.f32.mrf.mxu0
        %v1514 = vadd.f32 %v1412, %v1513
        %1515 = vmatprep.mubr.f32.mxu0 %v1320
        %1516 = vmatmul.mubr.f32.gmra.mxu0 %v1319
        %v1517 = vpop.f32.mrf.mxu0
        %v1518 = vadd.f32 %v1408, %v1517
        %v1519 = vpop.f32.mrf.mxu0
        %v1520 = vadd.f32 %v1412, %v1519
        %1521 = vmatprep.mubr.f32.mxu0 %v1322
        %1522 = vmatmul.mubr.f32.gmra.mxu0 %v1321
        %v1523 = vpop.f32.mrf.mxu0
        %v1524 = vadd.f32 %v1408, %v1523
        %v1525 = vpop.f32.mrf.mxu0
        %v1526 = vadd.f32 %v1412, %v1525
        %1527 = vmatprep.mubr.f32.mxu0 %v1324
        %1528 = vmatmul.mubr.f32.gmra.mxu0 %v1323
        %v1529 = vpop.f32.mrf.mxu0
        %v1530 = vadd.f32 %v1408, %v1529
        %v1531 = vpop.f32.mrf.mxu0
        %v1532 = vadd.f32 %v1412, %v1531
        %1533 = vmatprep.mubr.f32.mxu0 %v1326
        %1534 = vmatmul.mubr.f32.gmra.mxu0 %v1325
        %v1535 = vpop.f32.mrf.mxu0
        %v1536 = vadd.f32 %v1408, %v1535
        %v1537 = vpop.f32.mrf.mxu0
        %v1538 = vadd.f32 %v1412, %v1537
        %1539 = vmatprep.mubr.f32.mxu0 %v1328
        %1540 = vmatmul.mubr.f32.gmra.mxu0 %v1327
        %v1541 = vpop.f32.mrf.mxu0
        %v1542 = vadd.f32 %v1408, %v1541
        %v1543 = vpop.f32.mrf.mxu0
        %v1544 = vadd.f32 %v1412, %v1543
        %1545 = vmatprep.mubr.f32.mxu0 %v1330
        %1546 = vmatmul.mubr.f32.gmra.mxu0 %v1329
        %v1547 = vpop.f32.mrf.mxu0
        %v1548 = vadd.f32 %v1408, %v1547
        %v1549 = vpop.f32.mrf.mxu0
        %v1550 = vadd.f32 %v1412, %v1549
        %1551 = vmatprep.mubr.f32.mxu0 %v1332
        %1552 = vmatmul.mubr.f32.gmra.mxu0 %v1331
        %v1553 = vpop.f32.mrf.mxu0
        %v1554 = vadd.f32 %v1408, %v1553
        %v1555 = vpop.f32.mrf.mxu0
        %v1556 = vadd.f32 %v1412, %v1555
        %1557 = vmatprep.mubr.f32.mxu0 %v1334
        %1558 = vmatmul.mubr.f32.gmra.mxu0 %v1333
        %v1559 = vpop.f32.mrf.mxu0
        %v1560 = vadd.f32 %v1408, %v1559
        %v1561 = vpop.f32.mrf.mxu0
        %v1562 = vadd.f32 %v1412, %v1561
        %1563 = vmatprep.mubr.f32.mxu0 %v1336
        %1564 = vmatmul.mubr.f32.gmra.mxu0 %v1335
        %v1565 = vpop.f32.mrf.mxu0
        %v1566 = vadd.f32 %v1408, %v1565
        %v1567 = vpop.f32.mrf.mxu0
        %v1568 = vadd.f32 %v1412, %v1567
        %1569 = vmatprep.mubr.f32.mxu0 %v1338
        %1570 = vmatmul.mubr.f32.gmra.mxu0 %v1337
        %v1571 = vpop.f32.mrf.mxu0
        %v1572 = vadd.f32 %v1408, %v1571
        %v1573 = vpop.f32.mrf.mxu0
        %v1574 = vadd.f32 %v1412, %v1573
        %1575 = vdwg.mxu0
        %v1576 = vld [vmem:[#allocation2] sm:$0xff]
        %v1577 = vld [vmem:[#allocation2 + $0x8] sm:$0xff]
        %v1578 = vld [vmem:[#allocation2 + $0x10] sm:$0xff]
        %v1579 = vld [vmem:[#allocation2 + $0x18] sm:$0xff]
        %v1580 = vld [vmem:[#allocation2 + $0x20] sm:$0xff]
        %v1581 = vld [vmem:[#allocation2 + $0x28] sm:$0xff]
        %v1582 = vld [vmem:[#allocation2 + $0x30] sm:$0xff]
        %v1583 = vld [vmem:[#allocation2 + $0x38] sm:$0xff]
        %v1584 = vld [vmem:[#allocation2 + $0x40] sm:$0xff]
        %v1585 = vld [vmem:[#allocation2 + $0x48] sm:$0xff]
        %v1586 = vld [vmem:[#allocation2 + $0x50] sm:$0xff]
        %v1587 = vld [vmem:[#allocation2 + $0x58] sm:$0xff]
        %v1588 = vld [vmem:[#allocation2 + $0x60] sm:$0xff]
        %v1589 = vld [vmem:[#allocation2 + $0x68] sm:$0xff]
        %v1590 = vld [vmem:[#allocation2 + $0x70] sm:$0xff]
        %v1591 = vld [vmem:[#allocation2 + $0x78] sm:$0xff]
        %v1592 = vld [vmem:[#allocation2 + $0x80] sm:$0xff]
        %v1593 = vld [vmem:[#allocation2 + $0x88] sm:$0xff]
        %v1594 = vld [vmem:[#allocation2 + $0x90] sm:$0xff]
        %v1595 = vld [vmem:[#allocation2 + $0x98] sm:$0xff]
        %v1596 = vld [vmem:[#allocation2 + $0xa0] sm:$0xff]
        %v1597 = vld [vmem:[#allocation2 + $0xa8] sm:$0xff]
        %v1598 = vld [vmem:[#allocation2 + $0xb0] sm:$0xff]
        %v1599 = vld [vmem:[#allocation2 + $0xb8] sm:$0xff]
        %v1600 = vld [vmem:[#allocation2 + $0xc0] sm:$0xff]
        %v1601 = vld [vmem:[#allocation2 + $0xc8] sm:$0xff]
        %v1602 = vld [vmem:[#allocation2 + $0xd0] sm:$0xff]
        %v1603 = vld [vmem:[#allocation2 + $0xd8] sm:$0xff]
        %v1604 = vld [vmem:[#allocation2 + $0xe0] sm:$0xff]
        %v1605 = vld [vmem:[#allocation2 + $0xe8] sm:$0xff]
        %v1606 = vld [vmem:[#allocation2 + $0xf0] sm:$0xff]
        %v1607 = vld [vmem:[#allocation2 + $0xf8] sm:$0xff]
        %v1608 = vld [vmem:[#allocation2 + $0x100] sm:$0xff]
        %v1609 = vld [vmem:[#allocation2 + $0x108] sm:$0xff]
        %v1610 = vld [vmem:[#allocation2 + $0x110] sm:$0xff]
        %v1611 = vld [vmem:[#allocation2 + $0x118] sm:$0xff]
        %v1612 = vld [vmem:[#allocation2 + $0x120] sm:$0xff]
        %v1613 = vld [vmem:[#allocation2 + $0x128] sm:$0xff]
        %v1614 = vld [vmem:[#allocation2 + $0x130] sm:$0xff]
        %v1615 = vld [vmem:[#allocation2 + $0x138] sm:$0xff]
        %v1616 = vld [vmem:[#allocation2 + $0x140] sm:$0xff]
        %v1617 = vld [vmem:[#allocation2 + $0x148] sm:$0xff]
        %v1618 = vld [vmem:[#allocation2 + $0x150] sm:$0xff]
        %v1619 = vld [vmem:[#allocation2 + $0x158] sm:$0xff]
        %v1620 = vld [vmem:[#allocation2 + $0x160] sm:$0xff]
        %v1621 = vld [vmem:[#allocation2 + $0x168] sm:$0xff]
        %v1622 = vld [vmem:[#allocation2 + $0x170] sm:$0xff]
        %v1623 = vld [vmem:[#allocation2 + $0x178] sm:$0xff]
        %v1624 = vld [vmem:[#allocation2 + $0x180] sm:$0xff]
        %v1625 = vld [vmem:[#allocation2 + $0x188] sm:$0xff]
        %v1626 = vld [vmem:[#allocation2 + $0x190] sm:$0xff]
        %v1627 = vld [vmem:[#allocation2 + $0x198] sm:$0xff]
        %v1628 = vld [vmem:[#allocation2 + $0x1a0] sm:$0xff]
        %v1629 = vld [vmem:[#allocation2 + $0x1a8] sm:$0xff]
        %v1630 = vld [vmem:[#allocation2 + $0x1b0] sm:$0xff]
        %v1631 = vld [vmem:[#allocation2 + $0x1b8] sm:$0xff]
        %v1632 = vld [vmem:[#allocation2 + $0x1c0] sm:$0xff]
        %v1633 = vld [vmem:[#allocation2 + $0x1c8] sm:$0xff]
        %v1634 = vld [vmem:[#allocation2 + $0x1d0] sm:$0xff]
        %v1635 = vld [vmem:[#allocation2 + $0x1d8] sm:$0xff]
        %v1636 = vld [vmem:[#allocation2 + $0x1e0] sm:$0xff]
        %v1637 = vld [vmem:[#allocation2 + $0x1e8] sm:$0xff]
        %v1638 = vld [vmem:[#allocation2 + $0x1f0] sm:$0xff]
        %v1639 = vld [vmem:[#allocation2 + $0x1f8] sm:$0xff]
        %v1640 = vld [vmem:[#allocation3] sm:$0xff]
        %v1641 = vld [vmem:[#allocation3 + $0x8] sm:$0xff]
        %v1642 = vld [vmem:[#allocation3 + $0x10] sm:$0xff]
        %v1643 = vld [vmem:[#allocation3 + $0x18] sm:$0xff]
        %v1644 = vld [vmem:[#allocation3 + $0x20] sm:$0xff]
        %v1645 = vld [vmem:[#allocation3 + $0x28] sm:$0xff]
        %v1646 = vld [vmem:[#allocation3 + $0x30] sm:$0xff]
        %v1647 = vld [vmem:[#allocation3 + $0x38] sm:$0xff]
        %v1648 = vld [vmem:[#allocation3 + $0x40] sm:$0xff]
        %v1649 = vld [vmem:[#allocation3 + $0x48] sm:$0xff]
        %v1650 = vld [vmem:[#allocation3 + $0x50] sm:$0xff]
        %v1651 = vld [vmem:[#allocation3 + $0x58] sm:$0xff]
        %v1652 = vld [vmem:[#allocation3 + $0x60] sm:$0xff]
        %v1653 = vld [vmem:[#allocation3 + $0x68] sm:$0xff]
        %v1654 = vld [vmem:[#allocation3 + $0x70] sm:$0xff]
        %v1655 = vld [vmem:[#allocation3 + $0x78] sm:$0xff]
        %v1656 = vld [vmem:[#allocation3 + $0x80] sm:$0xff]
        %v1657 = vld [vmem:[#allocation3 + $0x88] sm:$0xff]
        %v1658 = vld [vmem:[#allocation3 + $0x90] sm:$0xff]
        %v1659 = vld [vmem:[#allocation3 + $0x98] sm:$0xff]
        %v1660 = vld [vmem:[#allocation3 + $0xa0] sm:$0xff]
        %v1661 = vld [vmem:[#allocation3 + $0xa8] sm:$0xff]
        %v1662 = vld [vmem:[#allocation3 + $0xb0] sm:$0xff]
        %v1663 = vld [vmem:[#allocation3 + $0xb8] sm:$0xff]
        %v1664 = vld [vmem:[#allocation3 + $0xc0] sm:$0xff]
        %v1665 = vld [vmem:[#allocation3 + $0xc8] sm:$0xff]
        %v1666 = vld [vmem:[#allocation3 + $0xd0] sm:$0xff]
        %v1667 = vld [vmem:[#allocation3 + $0xd8] sm:$0xff]
        %v1668 = vld [vmem:[#allocation3 + $0xe0] sm:$0xff]
        %v1669 = vld [vmem:[#allocation3 + $0xe8] sm:$0xff]
        %v1670 = vld [vmem:[#allocation3 + $0xf0] sm:$0xff]
        %v1671 = vld [vmem:[#allocation3 + $0xf8] sm:$0xff]
        %v1672 = vld [vmem:[#allocation3 + $0x100] sm:$0xff]
        %v1673 = vld [vmem:[#allocation3 + $0x108] sm:$0xff]
        %v1674 = vld [vmem:[#allocation3 + $0x110] sm:$0xff]
        %v1675 = vld [vmem:[#allocation3 + $0x118] sm:$0xff]
        %v1676 = vld [vmem:[#allocation3 + $0x120] sm:$0xff]
        %v1677 = vld [vmem:[#allocation3 + $0x128] sm:$0xff]
        %v1678 = vld [vmem:[#allocation3 + $0x130] sm:$0xff]
        %v1679 = vld [vmem:[#allocation3 + $0x138] sm:$0xff]
        %v1680 = vld [vmem:[#allocation3 + $0x140] sm:$0xff]
        %v1681 = vld [vmem:[#allocation3 + $0x148] sm:$0xff]
        %v1682 = vld [vmem:[#allocation3 + $0x150] sm:$0xff]
        %v1683 = vld [vmem:[#allocation3 + $0x158] sm:$0xff]
        %v1684 = vld [vmem:[#allocation3 + $0x160] sm:$0xff]
        %v1685 = vld [vmem:[#allocation3 + $0x168] sm:$0xff]
        %v1686 = vld [vmem:[#allocation3 + $0x170] sm:$0xff]
        %v1687 = vld [vmem:[#allocation3 + $0x178] sm:$0xff]
        %v1688 = vld [vmem:[#allocation3 + $0x180] sm:$0xff]
        %v1689 = vld [vmem:[#allocation3 + $0x188] sm:$0xff]
        %v1690 = vld [vmem:[#allocation3 + $0x190] sm:$0xff]
        %v1691 = vld [vmem:[#allocation3 + $0x198] sm:$0xff]
        %v1692 = vld [vmem:[#allocation3 + $0x1a0] sm:$0xff]
        %v1693 = vld [vmem:[#allocation3 + $0x1a8] sm:$0xff]
        %v1694 = vld [vmem:[#allocation3 + $0x1b0] sm:$0xff]
        %v1695 = vld [vmem:[#allocation3 + $0x1b8] sm:$0xff]
        %v1696 = vld [vmem:[#allocation3 + $0x1c0] sm:$0xff]
        %v1697 = vld [vmem:[#allocation3 + $0x1c8] sm:$0xff]
        %v1698 = vld [vmem:[#allocation3 + $0x1d0] sm:$0xff]
        %v1699 = vld [vmem:[#allocation3 + $0x1d8] sm:$0xff]
        %v1700 = vld [vmem:[#allocation3 + $0x1e0] sm:$0xff]
        %v1701 = vld [vmem:[#allocation3 + $0x1e8] sm:$0xff]
        %v1702 = vld [vmem:[#allocation3 + $0x1f0] sm:$0xff]
        %v1703 = vld [vmem:[#allocation3 + $0x1f8] sm:$0xff]
        %1704 = vmatprep.subr.mxu0 0.0
        %1705 = vmatpush1.xpose.msra.mxu0 %v1606
        %1706 = vmatprep.subr.mxu0 0.0
        %1707 = vmatpush1.xpose.msra.mxu0 %v1604
        %1708 = vmatprep.subr.mxu0 0.0
        %1709 = vmatpush1.xpose.msra.mxu0 %v1602
        %1710 = vmatprep.subr.mxu0 0.0
        %1711 = vmatpush1.xpose.msra.mxu0 %v1600
        %1712 = vmatprep.subr.mxu0 0.0
        %1713 = vmatpush1.xpose.msra.mxu0 %v1598
        %1714 = vmatprep.subr.mxu0 0.0
        %1715 = vmatpush1.xpose.msra.mxu0 %v1596
        %1716 = vmatprep.subr.mxu0 0.0
        %1717 = vmatpush1.xpose.msra.mxu0 %v1594
        %1718 = vmatprep.subr.mxu0 0.0
        %1719 = vmatpush1.xpose.msra.mxu0 %v1592
        %1720 = vmatprep.subr.mxu0 0.0
        %1721 = vmatpush1.xpose.msra.mxu0 %v1590
        %1722 = vmatprep.subr.mxu0 0.0
        %1723 = vmatpush1.xpose.msra.mxu0 %v1588
        %1724 = vmatprep.subr.mxu0 0.0
        %1725 = vmatpush1.xpose.msra.mxu0 %v1586
        %1726 = vmatprep.subr.mxu0 0.0
        %1727 = vmatpush1.xpose.msra.mxu0 %v1584
        %1728 = vmatprep.subr.mxu0 0.0
        %1729 = vmatpush1.xpose.msra.mxu0 %v1582
        %1730 = vmatprep.subr.mxu0 0.0
        %1731 = vmatpush1.xpose.msra.mxu0 %v1580
        %1732 = vmatprep.subr.mxu0 0.0
        %1733 = vmatpush1.xpose.msra.mxu0 %v1578
        %1734 = vmatprep.subr.mxu0 0.0
        %1735 = vmatpush1.xpose.msra.mxu0 %v1576
        %1736 = vmatprep.subr.mxu0 0.0
        %1737 = vmatpush2.xpose.msra.mxu0 %v1638
        %1738 = vmatprep.subr.mxu0 0.0
        %1739 = vmatpush2.xpose.msra.mxu0 %v1636
        %1740 = vmatprep.subr.mxu0 0.0
        %1741 = vmatpush2.xpose.msra.mxu0 %v1634
        %1742 = vmatprep.subr.mxu0 0.0
        %1743 = vmatpush2.xpose.msra.mxu0 %v1632
        %1744 = vmatprep.subr.mxu0 0.0
        %1745 = vmatpush2.xpose.msra.mxu0 %v1630
        %1746 = vmatprep.subr.mxu0 0.0
        %1747 = vmatpush2.xpose.msra.mxu0 %v1628
        %1748 = vmatprep.subr.mxu0 0.0
        %1749 = vmatpush2.xpose.msra.mxu0 %v1626
        %1750 = vmatprep.subr.mxu0 0.0
        %1751 = vmatpush2.xpose.msra.mxu0 %v1624
        %1752 = vmatprep.subr.mxu0 0.0
        %1753 = vmatpush2.xpose.msra.mxu0 %v1622
        %1754 = vmatprep.subr.mxu0 0.0
        %1755 = vmatpush2.xpose.msra.mxu0 %v1620
        %1756 = vmatprep.subr.mxu0 0.0
        %1757 = vmatpush2.xpose.msra.mxu0 %v1618
        %1758 = vmatprep.subr.mxu0 0.0
        %1759 = vmatpush2.xpose.msra.mxu0 %v1616
        %1760 = vmatprep.subr.mxu0 0.0
        %1761 = vmatpush2.xpose.msra.mxu0 %v1614
        %1762 = vmatprep.subr.mxu0 0.0
        %1763 = vmatpush2.xpose.msra.mxu0 %v1612
        %1764 = vmatprep.subr.mxu0 0.0
        %1765 = vmatpush2.xpose.msra.mxu0 %v1610
        %1766 = vmatprep.subr.mxu0 0.0
        %1767 = vmatpush2.xpose.msra.mxu0 %v1608
        %1768 = vmatprep.mubr.f32.mxu0 0.0
        %1769 = vmatmul.mubr.f32.gmra.mxu0 %v1482
        %v1770 = vpop.f32.mrf.mxu0
        %v1771 = vadd.f32 0.0, %v1770
        %v1772 = vpop.f32.mrf.mxu0
        %v1773 = vadd.f32 0.0, %v1772
        %1774 = vmatprep.mubr.f32.mxu0 0.0
        %1775 = vmatmul.mubr.f32.gmra.mxu0 %v1488
        %v1776 = vpop.f32.mrf.mxu0
        %v1777 = vadd.f32 0.0, %v1776
        %v1778 = vpop.f32.mrf.mxu0
        %v1779 = vadd.f32 0.0, %v1778
        %1780 = vmatprep.mubr.f32.mxu0 0.0
        %1781 = vmatmul.mubr.f32.gmra.mxu0 %v1494
        %v1782 = vpop.f32.mrf.mxu0
        %v1783 = vadd.f32 0.0, %v1782
        %v1784 = vpop.f32.mrf.mxu0
        %v1785 = vadd.f32 0.0, %v1784
        %1786 = vmatprep.mubr.f32.mxu0 0.0
        %1787 = vmatmul.mubr.f32.gmra.mxu0 %v1500
        %v1788 = vpop.f32.mrf.mxu0
        %v1789 = vadd.f32 0.0, %v1788
        %v1790 = vpop.f32.mrf.mxu0
        %v1791 = vadd.f32 0.0, %v1790
        %1792 = vmatprep.mubr.f32.mxu0 0.0
        %1793 = vmatmul.mubr.f32.gmra.mxu0 %v1506
        %v1794 = vpop.f32.mrf.mxu0
        %v1795 = vadd.f32 0.0, %v1794
        %v1796 = vpop.f32.mrf.mxu0
        %v1797 = vadd.f32 0.0, %v1796
        %1798 = vmatprep.mubr.f32.mxu0 0.0
        %1799 = vmatmul.mubr.f32.gmra.mxu0 %v1512
        %v1800 = vpop.f32.mrf.mxu0
        %v1801 = vadd.f32 0.0, %v1800
        %v1802 = vpop.f32.mrf.mxu0
        %v1803 = vadd.f32 0.0, %v1802
        %1804 = vmatprep.mubr.f32.mxu0 0.0
        %1805 = vmatmul.mubr.f32.gmra.mxu0 %v1518
        %v1806 = vpop.f32.mrf.mxu0
        %v1807 = vadd.f32 0.0, %v1806
        %v1808 = vpop.f32.mrf.mxu0
        %v1809 = vadd.f32 0.0, %v1808
        %1810 = vmatprep.mubr.f32.mxu0 0.0
        %1811 = vmatmul.mubr.f32.gmra.mxu0 %v1524
        %v1812 = vpop.f32.mrf.mxu0
        %v1813 = vadd.f32 0.0, %v1812
        %v1814 = vpop.f32.mrf.mxu0
        %v1815 = vadd.f32 0.0, %v1814
        %1816 = vmatprep.mubr.f32.mxu0 0.0
        %1817 = vmatmul.mubr.f32.gmra.mxu0 %v1530
        %v1818 = vpop.f32.mrf.mxu0
        %v1819 = vadd.f32 0.0, %v1818
        %v1820 = vpop.f32.mrf.mxu0
        %v1821 = vadd.f32 0.0, %v1820
        %1822 = vmatprep.mubr.f32.mxu0 0.0
        %1823 = vmatmul.mubr.f32.gmra.mxu0 %v1536
        %v1824 = vpop.f32.mrf.mxu0
        %v1825 = vadd.f32 0.0, %v1824
        %v1826 = vpop.f32.mrf.mxu0
        %v1827 = vadd.f32 0.0, %v1826
        %1828 = vmatprep.mubr.f32.mxu0 0.0
        %1829 = vmatmul.mubr.f32.gmra.mxu0 %v1542
        %v1830 = vpop.f32.mrf.mxu0
        %v1831 = vadd.f32 0.0, %v1830
        %v1832 = vpop.f32.mrf.mxu0
        %v1833 = vadd.f32 0.0, %v1832
        %1834 = vmatprep.mubr.f32.mxu0 0.0
        %1835 = vmatmul.mubr.f32.gmra.mxu0 %v1548
        %v1836 = vpop.f32.mrf.mxu0
        %v1837 = vadd.f32 0.0, %v1836
        %v1838 = vpop.f32.mrf.mxu0
        %v1839 = vadd.f32 0.0, %v1838
        %1840 = vmatprep.mubr.f32.mxu0 0.0
        %1841 = vmatmul.mubr.f32.gmra.mxu0 %v1554
        %v1842 = vpop.f32.mrf.mxu0
        %v1843 = vadd.f32 0.0, %v1842
        %v1844 = vpop.f32.mrf.mxu0
        %v1845 = vadd.f32 0.0, %v1844
        %1846 = vmatprep.mubr.f32.mxu0 0.0
        %1847 = vmatmul.mubr.f32.gmra.mxu0 %v1560
        %v1848 = vpop.f32.mrf.mxu0
        %v1849 = vadd.f32 0.0, %v1848
        %v1850 = vpop.f32.mrf.mxu0
        %v1851 = vadd.f32 0.0, %v1850
        %1852 = vmatprep.mubr.f32.mxu0 0.0
        %1853 = vmatmul.mubr.f32.gmra.mxu0 %v1566
        %v1854 = vpop.f32.mrf.mxu0
        %v1855 = vadd.f32 0.0, %v1854
        %v1856 = vpop.f32.mrf.mxu0
        %v1857 = vadd.f32 0.0, %v1856
        %1858 = vmatprep.mubr.f32.mxu0 0.0
        %1859 = vmatmul.mubr.f32.gmra.mxu0 %v1572
        %v1860 = vpop.f32.mrf.mxu0
        %v1861 = vadd.f32 0.0, %v1860
        %v1862 = vpop.f32.mrf.mxu0
        %v1863 = vadd.f32 0.0, %v1862
        %1864 = vdwg.mxu0
        %v1865 = vmax.f32 %v1771, %v1773
        %1866 = vmax.xlane.f32.xlu0 %v1865
        %v1867 = vpop.xlane.xlu0 %1866
        %v1868 = vmax.f32 %v1777, %v1779
        %1869 = vmax.xlane.f32.xlu0 %v1868
        %v1870 = vpop.xlane.xlu0 %1869
        %v1871 = vmax.f32 %v1783, %v1785
        %1872 = vmax.xlane.f32.xlu0 %v1871
        %v1873 = vpop.xlane.xlu0 %1872
        %v1874 = vmax.f32 %v1789, %v1791
        %1875 = vmax.xlane.f32.xlu0 %v1874
        %v1876 = vpop.xlane.xlu0 %1875
        %v1877 = vmax.f32 %v1795, %v1797
        %1878 = vmax.xlane.f32.xlu0 %v1877
        %v1879 = vpop.xlane.xlu0 %1878
        %v1880 = vmax.f32 %v1801, %v1803
        %1881 = vmax.xlane.f32.xlu0 %v1880
        %v1882 = vpop.xlane.xlu0 %1881
        %v1883 = vmax.f32 %v1807, %v1809
        %1884 = vmax.xlane.f32.xlu0 %v1883
        %v1885 = vpop.xlane.xlu0 %1884
        %v1886 = vmax.f32 %v1813, %v1815
        %1887 = vmax.xlane.f32.xlu0 %v1886
        %v1888 = vpop.xlane.xlu0 %1887
        %v1889 = vmax.f32 %v1819, %v1821
        %1890 = vmax.xlane.f32.xlu0 %v1889
        %v1891 = vpop.xlane.xlu0 %1890
        %v1892 = vmax.f32 %v1825, %v1827
        %1893 = vmax.xlane.f32.xlu0 %v1892
        %v1894 = vpop.xlane.xlu0 %1893
        %v1895 = vmax.f32 %v1831, %v1833
        %1896 = vmax.xlane.f32.xlu0 %v1895
        %v1897 = vpop.xlane.xlu0 %1896
        %v1898 = vmax.f32 %v1837, %v1839
        %1899 = vmax.xlane.f32.xlu0 %v1898
        %v1900 = vpop.xlane.xlu0 %1899
        %v1901 = vmax.f32 %v1843, %v1845
        %1902 = vmax.xlane.f32.xlu0 %v1901
        %v1903 = vpop.xlane.xlu0 %1902
        %v1904 = vmax.f32 %v1849, %v1851
        %1905 = vmax.xlane.f32.xlu0 %v1904
        %v1906 = vpop.xlane.xlu0 %1905
        %v1907 = vmax.f32 %v1855, %v1857
        %1908 = vmax.xlane.f32.xlu0 %v1907
        %v1909 = vpop.xlane.xlu0 %1908
        %v1910 = vmax.f32 %v1861, %v1863
        %1911 = vmax.xlane.f32.xlu0 %v1910
        %v1912 = vpop.xlane.xlu0 %1911
        %v1913 = vsub.f32 %v1771, %v1867
        %v1914 = vsub.f32 %v1773, %v1867
        %v1915 = vsub.f32 %v1777, %v1870
        %v1916 = vsub.f32 %v1779, %v1870
        %v1917 = vsub.f32 %v1783, %v1873
        %v1918 = vsub.f32 %v1785, %v1873
        %v1919 = vsub.f32 %v1789, %v1876
        %v1920 = vsub.f32 %v1791, %v1876
        %v1921 = vsub.f32 %v1795, %v1879
        %v1922 = vsub.f32 %v1797, %v1879
        %v1923 = vsub.f32 %v1801, %v1882
        %v1924 = vsub.f32 %v1803, %v1882
        %v1925 = vsub.f32 %v1807, %v1885
        %v1926 = vsub.f32 %v1809, %v1885
        %v1927 = vsub.f32 %v1813, %v1888
        %v1928 = vsub.f32 %v1815, %v1888
        %v1929 = vsub.f32 %v1819, %v1891
        %v1930 = vsub.f32 %v1821, %v1891
        %v1931 = vsub.f32 %v1825, %v1894
        %v1932 = vsub.f32 %v1827, %v1894
        %v1933 = vsub.f32 %v1831, %v1897
        %v1934 = vsub.f32 %v1833, %v1897
        %v1935 = vsub.f32 %v1837, %v1900
        %v1936 = vsub.f32 %v1839, %v1900
        %v1937 = vsub.f32 %v1843, %v1903
        %v1938 = vsub.f32 %v1845, %v1903
        %v1939 = vsub.f32 %v1849, %v1906
        %v1940 = vsub.f32 %v1851, %v1906
        %v1941 = vsub.f32 %v1855, %v1909
        %v1942 = vsub.f32 %v1857, %v1909
        %v1943 = vsub.f32 %v1861, %v1912
        %v1944 = vsub.f32 %v1863, %v1912
        %v1945 = vmul.f32 %v1913, 1.442695
        %v1946 = vpow.pop %v1945
        %v1947 = vmul.f32 %v1914, 1.442695
        %v1948 = vpow.pop %v1947
        %v1949 = vmul.f32 %v1915, 1.442695
        %v1950 = vpow.pop %v1949
        %v1951 = vmul.f32 %v1916, 1.442695
        %v1952 = vpow.pop %v1951
        %v1953 = vmul.f32 %v1917, 1.442695
        %v1954 = vpow.pop %v1953
        %v1955 = vmul.f32 %v1918, 1.442695
        %v1956 = vpow.pop %v1955
        %v1957 = vmul.f32 %v1919, 1.442695
        %v1958 = vpow.pop %v1957
        %v1959 = vmul.f32 %v1920, 1.442695
        %v1960 = vpow.pop %v1959
        %v1961 = vmul.f32 %v1921, 1.442695
        %v1962 = vpow.pop %v1961
        %v1963 = vmul.f32 %v1922, 1.442695
        %v1964 = vpow.pop %v1963
        %v1965 = vmul.f32 %v1923, 1.442695
        %v1966 = vpow.pop %v1965
        %v1967 = vmul.f32 %v1924, 1.442695
        %v1968 = vpow.pop %v1967
        %v1969 = vmul.f32 %v1925, 1.442695
        %v1970 = vpow.pop %v1969
        %v1971 = vmul.f32 %v1926, 1.442695
        %v1972 = vpow.pop %v1971
        %v1973 = vmul.f32 %v1927, 1.442695
        %v1974 = vpow.pop %v1973
        %v1975 = vmul.f32 %v1928, 1.442695
        %v1976 = vpow.pop %v1975
        %v1977 = vmul.f32 %v1929, 1.442695
        %v1978 = vpow.pop %v1977
        %v1979 = vmul.f32 %v1930, 1.442695
        %v1980 = vpow.pop %v1979
        %v1981 = vmul.f32 %v1931, 1.442695
        %v1982 = vpow.pop %v1981
        %v1983 = vmul.f32 %v1932, 1.442695
        %v1984 = vpow.pop %v1983
        %v1985 = vmul.f32 %v1933, 1.442695
        %v1986 = vpow.pop %v1985
        %v1987 = vmul.f32 %v1934, 1.442695
        %v1988 = vpow.pop %v1987
        %v1989 = vmul.f32 %v1935, 1.442695
        %v1990 = vpow.pop %v1989
        %v1991 = vmul.f32 %v1936, 1.442695
        %v1992 = vpow.pop %v1991
        %v1993 = vmul.f32 %v1937, 1.442695
        %v1994 = vpow.pop %v1993
        %v1995 = vmul.f32 %v1938, 1.442695
        %v1996 = vpow.pop %v1995
        %v1997 = vmul.f32 %v1939, 1.442695
        %v1998 = vpow.pop %v1997
        %v1999 = vmul.f32 %v1940, 1.442695
        %v2000 = vpow.pop %v1999
        %v2001 = vmul.f32 %v1941, 1.442695
        %v2002 = vpow.pop %v2001
        %v2003 = vmul.f32 %v1942, 1.442695
        %v2004 = vpow.pop %v2003
        %v2005 = vmul.f32 %v1943, 1.442695
        %v2006 = vpow.pop %v2005
        %v2007 = vmul.f32 %v1944, 1.442695
        %v2008 = vpow.pop %v2007
        %v2009 = vadd.f32 %v1946, %v1948
        %2010 = vadd.xlane.f32.xlu0 %v2009
        %v2011 = vpop.xlane.xlu0 %2010
        %v2012 = vadd.f32 %v1950, %v1952
        %2013 = vadd.xlane.f32.xlu0 %v2012
        %v2014 = vpop.xlane.xlu0 %2013
        %v2015 = vadd.f32 %v1954, %v1956
        %2016 = vadd.xlane.f32.xlu0 %v2015
        %v2017 = vpop.xlane.xlu0 %2016
        %v2018 = vadd.f32 %v1958, %v1960
        %2019 = vadd.xlane.f32.xlu0 %v2018
        %v2020 = vpop.xlane.xlu0 %2019
        %v2021 = vadd.f32 %v1962, %v1964
        %2022 = vadd.xlane.f32.xlu0 %v2021
        %v2023 = vpop.xlane.xlu0 %2022
        %v2024 = vadd.f32 %v1966, %v1968
        %2025 = vadd.xlane.f32.xlu0 %v2024
        %v2026 = vpop.xlane.xlu0 %2025
        %v2027 = vadd.f32 %v1970, %v1972
        %2028 = vadd.xlane.f32.xlu0 %v2027
        %v2029 = vpop.xlane.xlu0 %2028
        %v2030 = vadd.f32 %v1974, %v1976
        %2031 = vadd.xlane.f32.xlu0 %v2030
        %v2032 = vpop.xlane.xlu0 %2031
        %v2033 = vadd.f32 %v1978, %v1980
        %2034 = vadd.xlane.f32.xlu0 %v2033
        %v2035 = vpop.xlane.xlu0 %2034
        %v2036 = vadd.f32 %v1982, %v1984
        %2037 = vadd.xlane.f32.xlu0 %v2036
        %v2038 = vpop.xlane.xlu0 %2037
        %v2039 = vadd.f32 %v1986, %v1988
        %2040 = vadd.xlane.f32.xlu0 %v2039
        %v2041 = vpop.xlane.xlu0 %2040
        %v2042 = vadd.f32 %v1990, %v1992
        %2043 = vadd.xlane.f32.xlu0 %v2042
        %v2044 = vpop.xlane.xlu0 %2043
        %v2045 = vadd.f32 %v1994, %v1996
        %2046 = vadd.xlane.f32.xlu0 %v2045
        %v2047 = vpop.xlane.xlu0 %2046
        %v2048 = vadd.f32 %v1998, %v2000
        %2049 = vadd.xlane.f32.xlu0 %v2048
        %v2050 = vpop.xlane.xlu0 %2049
        %v2051 = vadd.f32 %v2002, %v2004
        %2052 = vadd.xlane.f32.xlu0 %v2051
        %v2053 = vpop.xlane.xlu0 %2052
        %v2054 = vadd.f32 %v2006, %v2008
        %2055 = vadd.xlane.f32.xlu0 %v2054
        %v2056 = vpop.xlane.xlu0 %2055
        %v2057 = vrcp.pop %v2011
        %v2058 = vrcp.pop %v2014
        %v2059 = vrcp.pop %v2017
        %v2060 = vrcp.pop %v2020
        %v2061 = vrcp.pop %v2023
        %v2062 = vrcp.pop %v2026
        %v2063 = vrcp.pop %v2029
        %v2064 = vrcp.pop %v2032
        %v2065 = vrcp.pop %v2035
        %v2066 = vrcp.pop %v2038
        %v2067 = vrcp.pop %v2041
        %v2068 = vrcp.pop %v2044
        %v2069 = vrcp.pop %v2047
        %v2070 = vrcp.pop %v2050
        %v2071 = vrcp.pop %v2053
        %v2072 = vrcp.pop %v2056
        %v2073 = vmul.f32 %v1946, %v2057
        %v2074 = vmul.f32 %v1948, %v2057
        %v2075 = vmul.f32 %v1950, %v2058
        %v2076 = vmul.f32 %v1952, %v2058
        %v2077 = vmul.f32 %v1954, %v2059
        %v2078 = vmul.f32 %v1956, %v2059
        %v2079 = vmul.f32 %v1958, %v2060
        %v2080 = vmul.f32 %v1960, %v2060
        %v2081 = vmul.f32 %v1962, %v2061
        %v2082 = vmul.f32 %v1964, %v2061
        %v2083 = vmul.f32 %v1966, %v2062
        %v2084 = vmul.f32 %v1968, %v2062
        %v2085 = vmul.f32 %v1970, %v2063
        %v2086 = vmul.f32 %v1972, %v2063
        %v2087 = vmul.f32 %v1974, %v2064
        %v2088 = vmul.f32 %v1976, %v2064
        %v2089 = vmul.f32 %v1978, %v2065
        %v2090 = vmul.f32 %v1980, %v2065
        %v2091 = vmul.f32 %v1982, %v2066
        %v2092 = vmul.f32 %v1984, %v2066
        %v2093 = vmul.f32 %v1986, %v2067
        %v2094 = vmul.f32 %v1988, %v2067
        %v2095 = vmul.f32 %v1990, %v2068
        %v2096 = vmul.f32 %v1992, %v2068
        %v2097 = vmul.f32 %v1994, %v2069
        %v2098 = vmul.f32 %v1996, %v2069
        %v2099 = vmul.f32 %v1998, %v2070
        %v2100 = vmul.f32 %v2000, %v2070
        %v2101 = vmul.f32 %v2002, %v2071
        %v2102 = vmul.f32 %v2004, %v2071
        %v2103 = vmul.f32 %v2006, %v2072
        %v2104 = vmul.f32 %v2008, %v2072
        %2105 = vst [vmem:[%s433] sm:$0xff] %v2073
        %2106 = vst [vmem:[%s433 + $0x8] sm:$0xff] %v2074
        %2107 = vst [vmem:[%s433 + $0x10] sm:$0xff] %v2075
        %2108 = vst [vmem:[%s433 + $0x18] sm:$0xff] %v2076
        %2109 = vst [vmem:[%s433 + $0x20] sm:$0xff] %v2077
        %2110 = vst [vmem:[%s433 + $0x28] sm:$0xff] %v2078
        %2111 = vst [vmem:[%s433 + $0x30] sm:$0xff] %v2079
        %2112 = vst [vmem:[%s433 + $0x38] sm:$0xff] %v2080
        %2113 = vst [vmem:[%s433 + $0x40] sm:$0xff] %v2081
        %2114 = vst [vmem:[%s433 + $0x48] sm:$0xff] %v2082
        %2115 = vst [vmem:[%s433 + $0x50] sm:$0xff] %v2083
        %2116 = vst [vmem:[%s433 + $0x58] sm:$0xff] %v2084
        %2117 = vst [vmem:[%s433 + $0x60] sm:$0xff] %v2085
        %2118 = vst [vmem:[%s433 + $0x68] sm:$0xff] %v2086
        %2119 = vst [vmem:[%s433 + $0x70] sm:$0xff] %v2087
        %2120 = vst [vmem:[%s433 + $0x78] sm:$0xff] %v2088
        %2121 = vst [vmem:[%s433 + $0x80] sm:$0xff] %v2089
        %2122 = vst [vmem:[%s433 + $0x88] sm:$0xff] %v2090
        %2123 = vst [vmem:[%s433 + $0x90] sm:$0xff] %v2091
        %2124 = vst [vmem:[%s433 + $0x98] sm:$0xff] %v2092
        %2125 = vst [vmem:[%s433 + $0xa0] sm:$0xff] %v2093
        %2126 = vst [vmem:[%s433 + $0xa8] sm:$0xff] %v2094
        %2127 = vst [vmem:[%s433 + $0xb0] sm:$0xff] %v2095
        %2128 = vst [vmem:[%s433 + $0xb8] sm:$0xff] %v2096
        %2129 = vst [vmem:[%s433 + $0xc0] sm:$0xff] %v2097
        %2130 = vst [vmem:[%s433 + $0xc8] sm:$0xff] %v2098
        %2131 = vst [vmem:[%s433 + $0xd0] sm:$0xff] %v2099
        %2132 = vst [vmem:[%s433 + $0xd8] sm:$0xff] %v2100
        %2133 = vst [vmem:[%s433 + $0xe0] sm:$0xff] %v2101
        %2134 = vst [vmem:[%s433 + $0xe8] sm:$0xff] %v2102
        %2135 = vst [vmem:[%s433 + $0xf0] sm:$0xff] %v2103
        %2136 = vst [vmem:[%s433 + $0xf8] sm:$0xff] %v2104
        %2137 = vmatprep.subr.mxu0 0.0
        %2138 = vmatpush1.msra.mxu0 %v1670
        %2139 = vmatprep.subr.mxu0 0.0
        %2140 = vmatpush1.msra.mxu0 %v1668
        %2141 = vmatprep.subr.mxu0 0.0
        %2142 = vmatpush1.msra.mxu0 %v1666
        %2143 = vmatprep.subr.mxu0 0.0
        %2144 = vmatpush1.msra.mxu0 %v1664
        %2145 = vmatprep.subr.mxu0 0.0
        %2146 = vmatpush1.msra.mxu0 %v1662
        %2147 = vmatprep.subr.mxu0 0.0
        %2148 = vmatpush1.msra.mxu0 %v1660
        %2149 = vmatprep.subr.mxu0 0.0
        %2150 = vmatpush1.msra.mxu0 %v1658
        %2151 = vmatprep.subr.mxu0 0.0
        %2152 = vmatpush1.msra.mxu0 %v1656
        %2153 = vmatprep.subr.mxu0 0.0
        %2154 = vmatpush1.msra.mxu0 %v1654
        %2155 = vmatprep.subr.mxu0 0.0
        %2156 = vmatpush1.msra.mxu0 %v1652
        %2157 = vmatprep.subr.mxu0 0.0
        %2158 = vmatpush1.msra.mxu0 %v1650
        %2159 = vmatprep.subr.mxu0 0.0
        %2160 = vmatpush1.msra.mxu0 %v1648
        %2161 = vmatprep.subr.mxu0 0.0
        %2162 = vmatpush1.msra.mxu0 %v1646
        %2163 = vmatprep.subr.mxu0 0.0
        %2164 = vmatpush1.msra.mxu0 %v1644
        %2165 = vmatprep.subr.mxu0 0.0
        %2166 = vmatpush1.msra.mxu0 %v1642
        %2167 = vmatprep.subr.mxu0 0.0
        %2168 = vmatpush1.msra.mxu0 %v1640
        %2169 = vmatprep.subr.mxu0 0.0
        %2170 = vmatpush2.msra.mxu0 %v1702
        %2171 = vmatprep.subr.mxu0 0.0
        %2172 = vmatpush2.msra.mxu0 %v1700
        %2173 = vmatprep.subr.mxu0 0.0
        %2174 = vmatpush2.msra.mxu0 %v1698
        %2175 = vmatprep.subr.mxu0 0.0
        %2176 = vmatpush2.msra.mxu0 %v1696
        %2177 = vmatprep.subr.mxu0 0.0
        %2178 = vmatpush2.msra.mxu0 %v1694
        %2179 = vmatprep.subr.mxu0 0.0
        %2180 = vmatpush2.msra.mxu0 %v1692
        %2181 = vmatprep.subr.mxu0 0.0
        %2182 = vmatpush2.msra.mxu0 %v1690
        %2183 = vmatprep.subr.mxu0 0.0
        %2184 = vmatpush2.msra.mxu0 %v1688
        %2185 = vmatprep.subr.mxu0 0.0
        %2186 = vmatpush2.msra.mxu0 %v1686
        %2187 = vmatprep.subr.mxu0 0.0
        %2188 = vmatpush2.msra.mxu0 %v1684
        %2189 = vmatprep.subr.mxu0 0.0
        %2190 = vmatpush2.msra.mxu0 %v1682
        %2191 = vmatprep.subr.mxu0 0.0
        %2192 = vmatpush2.msra.mxu0 %v1680
        %2193 = vmatprep.subr.mxu0 0.0
        %2194 = vmatpush2.msra.mxu0 %v1678
        %2195 = vmatprep.subr.mxu0 0.0
        %2196 = vmatpush2.msra.mxu0 %v1676
        %2197 = vmatprep.subr.mxu0 0.0
        %2198 = vmatpush2.msra.mxu0 %v1674
        %2199 = vmatprep.subr.mxu0 0.0
        %2200 = vmatpush2.msra.mxu0 %v1672
        %2201 = vmatprep.mubr.f32.mxu0 %v2074
        %2202 = vmatmul.mubr.f32.gmra.mxu0 %v2073
        %v2203 = vpop.f32.mrf.mxu0
        %v2204 = vadd.f32 0.0, %v2203
        %v2205 = vpop.f32.mrf.mxu0
        %2206 = vmatprep.mubr.f32.mxu0 %v2076
        %2207 = vmatmul.mubr.f32.gmra.mxu0 %v2075
        %v2208 = vpop.f32.mrf.mxu0
        %v2209 = vadd.f32 0.0, %v2208
        %v2210 = vpop.f32.mrf.mxu0
        %2211 = vmatprep.mubr.f32.mxu0 %v2078
        %2212 = vmatmul.mubr.f32.gmra.mxu0 %v2077
        %v2213 = vpop.f32.mrf.mxu0
        %v2214 = vadd.f32 0.0, %v2213
        %v2215 = vpop.f32.mrf.mxu0
        %2216 = vmatprep.mubr.f32.mxu0 %v2080
        %2217 = vmatmul.mubr.f32.gmra.mxu0 %v2079
        %v2218 = vpop.f32.mrf.mxu0
        %v2219 = vadd.f32 0.0, %v2218
        %v2220 = vpop.f32.mrf.mxu0
        %2221 = vmatprep.mubr.f32.mxu0 %v2082
        %2222 = vmatmul.mubr.f32.gmra.mxu0 %v2081
        %v2223 = vpop.f32.mrf.mxu0
        %v2224 = vadd.f32 0.0, %v2223
        %v2225 = vpop.f32.mrf.mxu0
        %2226 = vmatprep.mubr.f32.mxu0 %v2084
        %2227 = vmatmul.mubr.f32.gmra.mxu0 %v2083
        %v2228 = vpop.f32.mrf.mxu0
        %v2229 = vadd.f32 0.0, %v2228
        %v2230 = vpop.f32.mrf.mxu0
        %2231 = vmatprep.mubr.f32.mxu0 %v2086
        %2232 = vmatmul.mubr.f32.gmra.mxu0 %v2085
        %v2233 = vpop.f32.mrf.mxu0
        %v2234 = vadd.f32 0.0, %v2233
        %v2235 = vpop.f32.mrf.mxu0
        %2236 = vmatprep.mubr.f32.mxu0 %v2088
        %2237 = vmatmul.mubr.f32.gmra.mxu0 %v2087
        %v2238 = vpop.f32.mrf.mxu0
        %v2239 = vadd.f32 0.0, %v2238
        %v2240 = vpop.f32.mrf.mxu0
        %2241 = vmatprep.mubr.f32.mxu0 %v2090
        %2242 = vmatmul.mubr.f32.gmra.mxu0 %v2089
        %v2243 = vpop.f32.mrf.mxu0
        %v2244 = vadd.f32 0.0, %v2243
        %v2245 = vpop.f32.mrf.mxu0
        %2246 = vmatprep.mubr.f32.mxu0 %v2092
        %2247 = vmatmul.mubr.f32.gmra.mxu0 %v2091
        %v2248 = vpop.f32.mrf.mxu0
        %v2249 = vadd.f32 0.0, %v2248
        %v2250 = vpop.f32.mrf.mxu0
        %2251 = vmatprep.mubr.f32.mxu0 %v2094
        %2252 = vmatmul.mubr.f32.gmra.mxu0 %v2093
        %v2253 = vpop.f32.mrf.mxu0
        %v2254 = vadd.f32 0.0, %v2253
        %v2255 = vpop.f32.mrf.mxu0
        %2256 = vmatprep.mubr.f32.mxu0 %v2096
        %2257 = vmatmul.mubr.f32.gmra.mxu0 %v2095
        %v2258 = vpop.f32.mrf.mxu0
        %v2259 = vadd.f32 0.0, %v2258
        %v2260 = vpop.f32.mrf.mxu0
        %2261 = vmatprep.mubr.f32.mxu0 %v2098
        %2262 = vmatmul.mubr.f32.gmra.mxu0 %v2097
        %v2263 = vpop.f32.mrf.mxu0
        %v2264 = vadd.f32 0.0, %v2263
        %v2265 = vpop.f32.mrf.mxu0
        %2266 = vmatprep.mubr.f32.mxu0 %v2100
        %2267 = vmatmul.mubr.f32.gmra.mxu0 %v2099
        %v2268 = vpop.f32.mrf.mxu0
        %v2269 = vadd.f32 0.0, %v2268
        %v2270 = vpop.f32.mrf.mxu0
        %2271 = vmatprep.mubr.f32.mxu0 %v2102
        %2272 = vmatmul.mubr.f32.gmra.mxu0 %v2101
        %v2273 = vpop.f32.mrf.mxu0
        %v2274 = vadd.f32 0.0, %v2273
        %v2275 = vpop.f32.mrf.mxu0
        %2276 = vmatprep.mubr.f32.mxu0 %v2104
        %2277 = vmatmul.mubr.f32.gmra.mxu0 %v2103
        %v2278 = vpop.f32.mrf.mxu0
        %v2279 = vadd.f32 0.0, %v2278
        %v2280 = vpop.f32.mrf.mxu0
        %2281 = vdwg.mxu0
        %2282 = vmatprep.subr.mxu0 0.0
        %2283 = vmatpush1.xpose.msra.mxu0 %v1607
        %2284 = vmatprep.subr.mxu0 0.0
        %2285 = vmatpush1.xpose.msra.mxu0 %v1605
        %2286 = vmatprep.subr.mxu0 0.0
        %2287 = vmatpush1.xpose.msra.mxu0 %v1603
        %2288 = vmatprep.subr.mxu0 0.0
        %2289 = vmatpush1.xpose.msra.mxu0 %v1601
        %2290 = vmatprep.subr.mxu0 0.0
        %2291 = vmatpush1.xpose.msra.mxu0 %v1599
        %2292 = vmatprep.subr.mxu0 0.0
        %2293 = vmatpush1.xpose.msra.mxu0 %v1597
        %2294 = vmatprep.subr.mxu0 0.0
        %2295 = vmatpush1.xpose.msra.mxu0 %v1595
        %2296 = vmatprep.subr.mxu0 0.0
        %2297 = vmatpush1.xpose.msra.mxu0 %v1593
        %2298 = vmatprep.subr.mxu0 0.0
        %2299 = vmatpush1.xpose.msra.mxu0 %v1591
        %2300 = vmatprep.subr.mxu0 0.0
        %2301 = vmatpush1.xpose.msra.mxu0 %v1589
        %2302 = vmatprep.subr.mxu0 0.0
        %2303 = vmatpush1.xpose.msra.mxu0 %v1587
        %2304 = vmatprep.subr.mxu0 0.0
        %2305 = vmatpush1.xpose.msra.mxu0 %v1585
        %2306 = vmatprep.subr.mxu0 0.0
        %2307 = vmatpush1.xpose.msra.mxu0 %v1583
        %2308 = vmatprep.subr.mxu0 0.0
        %2309 = vmatpush1.xpose.msra.mxu0 %v1581
        %2310 = vmatprep.subr.mxu0 0.0
        %2311 = vmatpush1.xpose.msra.mxu0 %v1579
        %2312 = vmatprep.subr.mxu0 0.0
        %2313 = vmatpush1.xpose.msra.mxu0 %v1577
        %2314 = vmatprep.subr.mxu0 0.0
        %2315 = vmatpush2.xpose.msra.mxu0 %v1639
        %2316 = vmatprep.subr.mxu0 0.0
        %2317 = vmatpush2.xpose.msra.mxu0 %v1637
        %2318 = vmatprep.subr.mxu0 0.0
        %2319 = vmatpush2.xpose.msra.mxu0 %v1635
        %2320 = vmatprep.subr.mxu0 0.0
        %2321 = vmatpush2.xpose.msra.mxu0 %v1633
        %2322 = vmatprep.subr.mxu0 0.0
        %2323 = vmatpush2.xpose.msra.mxu0 %v1631
        %2324 = vmatprep.subr.mxu0 0.0
        %2325 = vmatpush2.xpose.msra.mxu0 %v1629
        %2326 = vmatprep.subr.mxu0 0.0
        %2327 = vmatpush2.xpose.msra.mxu0 %v1627
        %2328 = vmatprep.subr.mxu0 0.0
        %2329 = vmatpush2.xpose.msra.mxu0 %v1625
        %2330 = vmatprep.subr.mxu0 0.0
        %2331 = vmatpush2.xpose.msra.mxu0 %v1623
        %2332 = vmatprep.subr.mxu0 0.0
        %2333 = vmatpush2.xpose.msra.mxu0 %v1621
        %2334 = vmatprep.subr.mxu0 0.0
        %2335 = vmatpush2.xpose.msra.mxu0 %v1619
        %2336 = vmatprep.subr.mxu0 0.0
        %2337 = vmatpush2.xpose.msra.mxu0 %v1617
        %2338 = vmatprep.subr.mxu0 0.0
        %2339 = vmatpush2.xpose.msra.mxu0 %v1615
        %2340 = vmatprep.subr.mxu0 0.0
        %2341 = vmatpush2.xpose.msra.mxu0 %v1613
        %2342 = vmatprep.subr.mxu0 0.0
        %2343 = vmatpush2.xpose.msra.mxu0 %v1611
        %2344 = vmatprep.subr.mxu0 0.0
        %2345 = vmatpush2.xpose.msra.mxu0 %v1609
        %2346 = vmatprep.mubr.f32.mxu0 0.0
        %2347 = vmatmul.mubr.f32.gmra.mxu0 %v1484
        %v2348 = vpop.f32.mrf.mxu0
        %v2349 = vadd.f32 0.0, %v2348
        %v2350 = vpop.f32.mrf.mxu0
        %v2351 = vadd.f32 0.0, %v2350
        %2352 = vmatprep.mubr.f32.mxu0 0.0
        %2353 = vmatmul.mubr.f32.gmra.mxu0 %v1490
        %v2354 = vpop.f32.mrf.mxu0
        %v2355 = vadd.f32 0.0, %v2354
        %v2356 = vpop.f32.mrf.mxu0
        %v2357 = vadd.f32 0.0, %v2356
        %2358 = vmatprep.mubr.f32.mxu0 0.0
        %2359 = vmatmul.mubr.f32.gmra.mxu0 %v1496
        %v2360 = vpop.f32.mrf.mxu0
        %v2361 = vadd.f32 0.0, %v2360
        %v2362 = vpop.f32.mrf.mxu0
        %v2363 = vadd.f32 0.0, %v2362
        %2364 = vmatprep.mubr.f32.mxu0 0.0
        %2365 = vmatmul.mubr.f32.gmra.mxu0 %v1502
        %v2366 = vpop.f32.mrf.mxu0
        %v2367 = vadd.f32 0.0, %v2366
        %v2368 = vpop.f32.mrf.mxu0
        %v2369 = vadd.f32 0.0, %v2368
        %2370 = vmatprep.mubr.f32.mxu0 0.0
        %2371 = vmatmul.mubr.f32.gmra.mxu0 %v1508
        %v2372 = vpop.f32.mrf.mxu0
        %v2373 = vadd.f32 0.0, %v2372
        %v2374 = vpop.f32.mrf.mxu0
        %v2375 = vadd.f32 0.0, %v2374
        %2376 = vmatprep.mubr.f32.mxu0 0.0
        %2377 = vmatmul.mubr.f32.gmra.mxu0 %v1514
        %v2378 = vpop.f32.mrf.mxu0
        %v2379 = vadd.f32 0.0, %v2378
        %v2380 = vpop.f32.mrf.mxu0
        %v2381 = vadd.f32 0.0, %v2380
        %2382 = vmatprep.mubr.f32.mxu0 0.0
        %2383 = vmatmul.mubr.f32.gmra.mxu0 %v1520
        %v2384 = vpop.f32.mrf.mxu0
        %v2385 = vadd.f32 0.0, %v2384
        %v2386 = vpop.f32.mrf.mxu0
        %v2387 = vadd.f32 0.0, %v2386
        %2388 = vmatprep.mubr.f32.mxu0 0.0
        %2389 = vmatmul.mubr.f32.gmra.mxu0 %v1526
        %v2390 = vpop.f32.mrf.mxu0
        %v2391 = vadd.f32 0.0, %v2390
        %v2392 = vpop.f32.mrf.mxu0
        %v2393 = vadd.f32 0.0, %v2392
        %2394 = vmatprep.mubr.f32.mxu0 0.0
        %2395 = vmatmul.mubr.f32.gmra.mxu0 %v1532
        %v2396 = vpop.f32.mrf.mxu0
        %v2397 = vadd.f32 0.0, %v2396
        %v2398 = vpop.f32.mrf.mxu0
        %v2399 = vadd.f32 0.0, %v2398
        %2400 = vmatprep.mubr.f32.mxu0 0.0
        %2401 = vmatmul.mubr.f32.gmra.mxu0 %v1538
        %v2402 = vpop.f32.mrf.mxu0
        %v2403 = vadd.f32 0.0, %v2402
        %v2404 = vpop.f32.mrf.mxu0
        %v2405 = vadd.f32 0.0, %v2404
        %2406 = vmatprep.mubr.f32.mxu0 0.0
        %2407 = vmatmul.mubr.f32.gmra.mxu0 %v1544
        %v2408 = vpop.f32.mrf.mxu0
        %v2409 = vadd.f32 0.0, %v2408
        %v2410 = vpop.f32.mrf.mxu0
        %v2411 = vadd.f32 0.0, %v2410
        %2412 = vmatprep.mubr.f32.mxu0 0.0
        %2413 = vmatmul.mubr.f32.gmra.mxu0 %v1550
        %v2414 = vpop.f32.mrf.mxu0
        %v2415 = vadd.f32 0.0, %v2414
        %v2416 = vpop.f32.mrf.mxu0
        %v2417 = vadd.f32 0.0, %v2416
        %2418 = vmatprep.mubr.f32.mxu0 0.0
        %2419 = vmatmul.mubr.f32.gmra.mxu0 %v1556
        %v2420 = vpop.f32.mrf.mxu0
        %v2421 = vadd.f32 0.0, %v2420
        %v2422 = vpop.f32.mrf.mxu0
        %v2423 = vadd.f32 0.0, %v2422
        %2424 = vmatprep.mubr.f32.mxu0 0.0
        %2425 = vmatmul.mubr.f32.gmra.mxu0 %v1562
        %v2426 = vpop.f32.mrf.mxu0
        %v2427 = vadd.f32 0.0, %v2426
        %v2428 = vpop.f32.mrf.mxu0
        %v2429 = vadd.f32 0.0, %v2428
        %2430 = vmatprep.mubr.f32.mxu0 0.0
        %2431 = vmatmul.mubr.f32.gmra.mxu0 %v1568
        %v2432 = vpop.f32.mrf.mxu0
        %v2433 = vadd.f32 0.0, %v2432
        %v2434 = vpop.f32.mrf.mxu0
        %v2435 = vadd.f32 0.0, %v2434
        %2436 = vmatprep.mubr.f32.mxu0 0.0
        %2437 = vmatmul.mubr.f32.gmra.mxu0 %v1574
        %v2438 = vpop.f32.mrf.mxu0
        %v2439 = vadd.f32 0.0, %v2438
        %v2440 = vpop.f32.mrf.mxu0
        %v2441 = vadd.f32 0.0, %v2440
        %2442 = vdwg.mxu0
        %v2443 = vmax.f32 %v2349, %v2351
        %2444 = vmax.xlane.f32.xlu0 %v2443
        %v2445 = vpop.xlane.xlu0 %2444
        %v2446 = vmax.f32 %v2355, %v2357
        %2447 = vmax.xlane.f32.xlu0 %v2446
        %v2448 = vpop.xlane.xlu0 %2447
        %v2449 = vmax.f32 %v2361, %v2363
        %2450 = vmax.xlane.f32.xlu0 %v2449
        %v2451 = vpop.xlane.xlu0 %2450
        %v2452 = vmax.f32 %v2367, %v2369
        %2453 = vmax.xlane.f32.xlu0 %v2452
        %v2454 = vpop.xlane.xlu0 %2453
        %v2455 = vmax.f32 %v2373, %v2375
        %2456 = vmax.xlane.f32.xlu0 %v2455
        %v2457 = vpop.xlane.xlu0 %2456
        %v2458 = vmax.f32 %v2379, %v2381
        %2459 = vmax.xlane.f32.xlu0 %v2458
        %v2460 = vpop.xlane.xlu0 %2459
        %v2461 = vmax.f32 %v2385, %v2387
        %2462 = vmax.xlane.f32.xlu0 %v2461
        %v2463 = vpop.xlane.xlu0 %2462
        %v2464 = vmax.f32 %v2391, %v2393
        %2465 = vmax.xlane.f32.xlu0 %v2464
        %v2466 = vpop.xlane.xlu0 %2465
        %v2467 = vmax.f32 %v2397, %v2399
        %2468 = vmax.xlane.f32.xlu0 %v2467
        %v2469 = vpop.xlane.xlu0 %2468
        %v2470 = vmax.f32 %v2403, %v2405
        %2471 = vmax.xlane.f32.xlu0 %v2470
        %v2472 = vpop.xlane.xlu0 %2471
        %v2473 = vmax.f32 %v2409, %v2411
        %2474 = vmax.xlane.f32.xlu0 %v2473
        %v2475 = vpop.xlane.xlu0 %2474
        %v2476 = vmax.f32 %v2415, %v2417
        %2477 = vmax.xlane.f32.xlu0 %v2476
        %v2478 = vpop.xlane.xlu0 %2477
        %v2479 = vmax.f32 %v2421, %v2423
        %2480 = vmax.xlane.f32.xlu0 %v2479
        %v2481 = vpop.xlane.xlu0 %2480
        %v2482 = vmax.f32 %v2427, %v2429
        %2483 = vmax.xlane.f32.xlu0 %v2482
        %v2484 = vpop.xlane.xlu0 %2483
        %v2485 = vmax.f32 %v2433, %v2435
        %2486 = vmax.xlane.f32.xlu0 %v2485
        %v2487 = vpop.xlane.xlu0 %2486
        %v2488 = vmax.f32 %v2439, %v2441
        %2489 = vmax.xlane.f32.xlu0 %v2488
        %v2490 = vpop.xlane.xlu0 %2489
        %v2491 = vsub.f32 %v2349, %v2445
        %v2492 = vsub.f32 %v2351, %v2445
        %v2493 = vsub.f32 %v2355, %v2448
        %v2494 = vsub.f32 %v2357, %v2448
        %v2495 = vsub.f32 %v2361, %v2451
        %v2496 = vsub.f32 %v2363, %v2451
        %v2497 = vsub.f32 %v2367, %v2454
        %v2498 = vsub.f32 %v2369, %v2454
        %v2499 = vsub.f32 %v2373, %v2457
        %v2500 = vsub.f32 %v2375, %v2457
        %v2501 = vsub.f32 %v2379, %v2460
        %v2502 = vsub.f32 %v2381, %v2460
        %v2503 = vsub.f32 %v2385, %v2463
        %v2504 = vsub.f32 %v2387, %v2463
        %v2505 = vsub.f32 %v2391, %v2466
        %v2506 = vsub.f32 %v2393, %v2466
        %v2507 = vsub.f32 %v2397, %v2469
        %v2508 = vsub.f32 %v2399, %v2469
        %v2509 = vsub.f32 %v2403, %v2472
        %v2510 = vsub.f32 %v2405, %v2472
        %v2511 = vsub.f32 %v2409, %v2475
        %v2512 = vsub.f32 %v2411, %v2475
        %v2513 = vsub.f32 %v2415, %v2478
        %v2514 = vsub.f32 %v2417, %v2478
        %v2515 = vsub.f32 %v2421, %v2481
        %v2516 = vsub.f32 %v2423, %v2481
        %v2517 = vsub.f32 %v2427, %v2484
        %v2518 = vsub.f32 %v2429, %v2484
        %v2519 = vsub.f32 %v2433, %v2487
        %v2520 = vsub.f32 %v2435, %v2487
        %v2521 = vsub.f32 %v2439, %v2490
        %v2522 = vsub.f32 %v2441, %v2490
        %v2523 = vmul.f32 %v2491, 1.442695
        %v2524 = vpow.pop %v2523
        %v2525 = vmul.f32 %v2492, 1.442695
        %v2526 = vpow.pop %v2525
        %v2527 = vmul.f32 %v2493, 1.442695
        %v2528 = vpow.pop %v2527
        %v2529 = vmul.f32 %v2494, 1.442695
        %v2530 = vpow.pop %v2529
        %v2531 = vmul.f32 %v2495, 1.442695
        %v2532 = vpow.pop %v2531
        %v2533 = vmul.f32 %v2496, 1.442695
        %v2534 = vpow.pop %v2533
        %v2535 = vmul.f32 %v2497, 1.442695
        %v2536 = vpow.pop %v2535
        %v2537 = vmul.f32 %v2498, 1.442695
        %v2538 = vpow.pop %v2537
        %v2539 = vmul.f32 %v2499, 1.442695
        %v2540 = vpow.pop %v2539
        %v2541 = vmul.f32 %v2500, 1.442695
        %v2542 = vpow.pop %v2541
        %v2543 = vmul.f32 %v2501, 1.442695
        %v2544 = vpow.pop %v2543
        %v2545 = vmul.f32 %v2502, 1.442695
        %v2546 = vpow.pop %v2545
        %v2547 = vmul.f32 %v2503, 1.442695
        %v2548 = vpow.pop %v2547
        %v2549 = vmul.f32 %v2504, 1.442695
        %v2550 = vpow.pop %v2549
        %v2551 = vmul.f32 %v2505, 1.442695
        %v2552 = vpow.pop %v2551
        %v2553 = vmul.f32 %v2506, 1.442695
        %v2554 = vpow.pop %v2553
        %v2555 = vmul.f32 %v2507, 1.442695
        %v2556 = vpow.pop %v2555
        %v2557 = vmul.f32 %v2508, 1.442695
        %v2558 = vpow.pop %v2557
        %v2559 = vmul.f32 %v2509, 1.442695
        %v2560 = vpow.pop %v2559
        %v2561 = vmul.f32 %v2510, 1.442695
        %v2562 = vpow.pop %v2561
        %v2563 = vmul.f32 %v2511, 1.442695
        %v2564 = vpow.pop %v2563
        %v2565 = vmul.f32 %v2512, 1.442695
        %v2566 = vpow.pop %v2565
        %v2567 = vmul.f32 %v2513, 1.442695
        %v2568 = vpow.pop %v2567
        %v2569 = vmul.f32 %v2514, 1.442695
        %v2570 = vpow.pop %v2569
        %v2571 = vmul.f32 %v2515, 1.442695
        %v2572 = vpow.pop %v2571
        %v2573 = vmul.f32 %v2516, 1.442695
        %v2574 = vpow.pop %v2573
        %v2575 = vmul.f32 %v2517, 1.442695
        %v2576 = vpow.pop %v2575
        %v2577 = vmul.f32 %v2518, 1.442695
        %v2578 = vpow.pop %v2577
        %v2579 = vmul.f32 %v2519, 1.442695
        %v2580 = vpow.pop %v2579
        %v2581 = vmul.f32 %v2520, 1.442695
        %v2582 = vpow.pop %v2581
        %v2583 = vmul.f32 %v2521, 1.442695
        %v2584 = vpow.pop %v2583
        %v2585 = vmul.f32 %v2522, 1.442695
        %v2586 = vpow.pop %v2585
        %v2587 = vadd.f32 %v2524, %v2526
        %2588 = vadd.xlane.f32.xlu0 %v2587
        %v2589 = vpop.xlane.xlu0 %2588
        %v2590 = vadd.f32 %v2528, %v2530
        %2591 = vadd.xlane.f32.xlu0 %v2590
        %v2592 = vpop.xlane.xlu0 %2591
        %v2593 = vadd.f32 %v2532, %v2534
        %2594 = vadd.xlane.f32.xlu0 %v2593
        %v2595 = vpop.xlane.xlu0 %2594
        %v2596 = vadd.f32 %v2536, %v2538
        %2597 = vadd.xlane.f32.xlu0 %v2596
        %v2598 = vpop.xlane.xlu0 %2597
        %v2599 = vadd.f32 %v2540, %v2542
        %2600 = vadd.xlane.f32.xlu0 %v2599
        %v2601 = vpop.xlane.xlu0 %2600
        %v2602 = vadd.f32 %v2544, %v2546
        %2603 = vadd.xlane.f32.xlu0 %v2602
        %v2604 = vpop.xlane.xlu0 %2603
        %v2605 = vadd.f32 %v2548, %v2550
        %2606 = vadd.xlane.f32.xlu0 %v2605
        %v2607 = vpop.xlane.xlu0 %2606
        %v2608 = vadd.f32 %v2552, %v2554
        %2609 = vadd.xlane.f32.xlu0 %v2608
        %v2610 = vpop.xlane.xlu0 %2609
        %v2611 = vadd.f32 %v2556, %v2558
        %2612 = vadd.xlane.f32.xlu0 %v2611
        %v2613 = vpop.xlane.xlu0 %2612
        %v2614 = vadd.f32 %v2560, %v2562
        %2615 = vadd.xlane.f32.xlu0 %v2614
        %v2616 = vpop.xlane.xlu0 %2615
        %v2617 = vadd.f32 %v2564, %v2566
        %2618 = vadd.xlane.f32.xlu0 %v2617
        %v2619 = vpop.xlane.xlu0 %2618
        %v2620 = vadd.f32 %v2568, %v2570
        %2621 = vadd.xlane.f32.xlu0 %v2620
        %v2622 = vpop.xlane.xlu0 %2621
        %v2623 = vadd.f32 %v2572, %v2574
        %2624 = vadd.xlane.f32.xlu0 %v2623
        %v2625 = vpop.xlane.xlu0 %2624
        %v2626 = vadd.f32 %v2576, %v2578
        %2627 = vadd.xlane.f32.xlu0 %v2626
        %v2628 = vpop.xlane.xlu0 %2627
        %v2629 = vadd.f32 %v2580, %v2582
        %2630 = vadd.xlane.f32.xlu0 %v2629
        %v2631 = vpop.xlane.xlu0 %2630
        %v2632 = vadd.f32 %v2584, %v2586
        %2633 = vadd.xlane.f32.xlu0 %v2632
        %v2634 = vpop.xlane.xlu0 %2633
        %v2635 = vrcp.pop %v2589
        %v2636 = vrcp.pop %v2592
        %v2637 = vrcp.pop %v2595
        %v2638 = vrcp.pop %v2598
        %v2639 = vrcp.pop %v2601
        %v2640 = vrcp.pop %v2604
        %v2641 = vrcp.pop %v2607
        %v2642 = vrcp.pop %v2610
        %v2643 = vrcp.pop %v2613
        %v2644 = vrcp.pop %v2616
        %v2645 = vrcp.pop %v2619
        %v2646 = vrcp.pop %v2622
        %v2647 = vrcp.pop %v2625
        %v2648 = vrcp.pop %v2628
        %v2649 = vrcp.pop %v2631
        %v2650 = vrcp.pop %v2634
        %v2651 = vmul.f32 %v2524, %v2635
        %v2652 = vmul.f32 %v2526, %v2635
        %v2653 = vmul.f32 %v2528, %v2636
        %v2654 = vmul.f32 %v2530, %v2636
        %v2655 = vmul.f32 %v2532, %v2637
        %v2656 = vmul.f32 %v2534, %v2637
        %v2657 = vmul.f32 %v2536, %v2638
        %v2658 = vmul.f32 %v2538, %v2638
        %v2659 = vmul.f32 %v2540, %v2639
        %v2660 = vmul.f32 %v2542, %v2639
        %v2661 = vmul.f32 %v2544, %v2640
        %v2662 = vmul.f32 %v2546, %v2640
        %v2663 = vmul.f32 %v2548, %v2641
        %v2664 = vmul.f32 %v2550, %v2641
        %v2665 = vmul.f32 %v2552, %v2642
        %v2666 = vmul.f32 %v2554, %v2642
        %v2667 = vmul.f32 %v2556, %v2643
        %v2668 = vmul.f32 %v2558, %v2643
        %v2669 = vmul.f32 %v2560, %v2644
        %v2670 = vmul.f32 %v2562, %v2644
        %v2671 = vmul.f32 %v2564, %v2645
        %v2672 = vmul.f32 %v2566, %v2645
        %v2673 = vmul.f32 %v2568, %v2646
        %v2674 = vmul.f32 %v2570, %v2646
        %v2675 = vmul.f32 %v2572, %v2647
        %v2676 = vmul.f32 %v2574, %v2647
        %v2677 = vmul.f32 %v2576, %v2648
        %v2678 = vmul.f32 %v2578, %v2648
        %v2679 = vmul.f32 %v2580, %v2649
        %v2680 = vmul.f32 %v2582, %v2649
        %v2681 = vmul.f32 %v2584, %v2650
        %v2682 = vmul.f32 %v2586, %v2650
        %s2683 = scalar_lea.vmem %s433, 256 [#allocation13]
        %2684 = vst [vmem:[%s2683] sm:$0xff] %v2651
        %2685 = vst [vmem:[%s2683 + $0x8] sm:$0xff] %v2652
        %2686 = vst [vmem:[%s2683 + $0x10] sm:$0xff] %v2653
        %2687 = vst [vmem:[%s2683 + $0x18] sm:$0xff] %v2654
        %2688 = vst [vmem:[%s2683 + $0x20] sm:$0xff] %v2655
        %2689 = vst [vmem:[%s2683 + $0x28] sm:$0xff] %v2656
        %2690 = vst [vmem:[%s2683 + $0x30] sm:$0xff] %v2657
        %2691 = vst [vmem:[%s2683 + $0x38] sm:$0xff] %v2658
        %2692 = vst [vmem:[%s2683 + $0x40] sm:$0xff] %v2659
        %2693 = vst [vmem:[%s2683 + $0x48] sm:$0xff] %v2660
        %2694 = vst [vmem:[%s2683 + $0x50] sm:$0xff] %v2661
        %2695 = vst [vmem:[%s2683 + $0x58] sm:$0xff] %v2662
        %2696 = vst [vmem:[%s2683 + $0x60] sm:$0xff] %v2663
        %2697 = vst [vmem:[%s2683 + $0x68] sm:$0xff] %v2664
        %2698 = vst [vmem:[%s2683 + $0x70] sm:$0xff] %v2665
        %2699 = vst [vmem:[%s2683 + $0x78] sm:$0xff] %v2666
        %2700 = vst [vmem:[%s2683 + $0x80] sm:$0xff] %v2667
        %2701 = vst [vmem:[%s2683 + $0x88] sm:$0xff] %v2668
        %2702 = vst [vmem:[%s2683 + $0x90] sm:$0xff] %v2669
        %2703 = vst [vmem:[%s2683 + $0x98] sm:$0xff] %v2670
        %2704 = vst [vmem:[%s2683 + $0xa0] sm:$0xff] %v2671
        %2705 = vst [vmem:[%s2683 + $0xa8] sm:$0xff] %v2672
        %2706 = vst [vmem:[%s2683 + $0xb0] sm:$0xff] %v2673
        %2707 = vst [vmem:[%s2683 + $0xb8] sm:$0xff] %v2674
        %2708 = vst [vmem:[%s2683 + $0xc0] sm:$0xff] %v2675
        %2709 = vst [vmem:[%s2683 + $0xc8] sm:$0xff] %v2676
        %2710 = vst [vmem:[%s2683 + $0xd0] sm:$0xff] %v2677
        %2711 = vst [vmem:[%s2683 + $0xd8] sm:$0xff] %v2678
        %2712 = vst [vmem:[%s2683 + $0xe0] sm:$0xff] %v2679
        %2713 = vst [vmem:[%s2683 + $0xe8] sm:$0xff] %v2680
        %2714 = vst [vmem:[%s2683 + $0xf0] sm:$0xff] %v2681
        %2715 = vst [vmem:[%s2683 + $0xf8] sm:$0xff] %v2682
        %2716 = vmatprep.subr.mxu0 0.0
        %2717 = vmatpush1.msra.mxu0 %v1671
        %2718 = vmatprep.subr.mxu0 0.0
        %2719 = vmatpush1.msra.mxu0 %v1669
        %2720 = vmatprep.subr.mxu0 0.0
        %2721 = vmatpush1.msra.mxu0 %v1667
        %2722 = vmatprep.subr.mxu0 0.0
        %2723 = vmatpush1.msra.mxu0 %v1665
        %2724 = vmatprep.subr.mxu0 0.0
        %2725 = vmatpush1.msra.mxu0 %v1663
        %2726 = vmatprep.subr.mxu0 0.0
        %2727 = vmatpush1.msra.mxu0 %v1661
        %2728 = vmatprep.subr.mxu0 0.0
        %2729 = vmatpush1.msra.mxu0 %v1659
        %2730 = vmatprep.subr.mxu0 0.0
        %2731 = vmatpush1.msra.mxu0 %v1657
        %2732 = vmatprep.subr.mxu0 0.0
        %2733 = vmatpush1.msra.mxu0 %v1655
        %2734 = vmatprep.subr.mxu0 0.0
        %2735 = vmatpush1.msra.mxu0 %v1653
        %2736 = vmatprep.subr.mxu0 0.0
        %2737 = vmatpush1.msra.mxu0 %v1651
        %2738 = vmatprep.subr.mxu0 0.0
        %2739 = vmatpush1.msra.mxu0 %v1649
        %2740 = vmatprep.subr.mxu0 0.0
        %2741 = vmatpush1.msra.mxu0 %v1647
        %2742 = vmatprep.subr.mxu0 0.0
        %2743 = vmatpush1.msra.mxu0 %v1645
        %2744 = vmatprep.subr.mxu0 0.0
        %2745 = vmatpush1.msra.mxu0 %v1643
        %2746 = vmatprep.subr.mxu0 0.0
        %2747 = vmatpush1.msra.mxu0 %v1641
        %2748 = vmatprep.subr.mxu0 0.0
        %2749 = vmatpush2.msra.mxu0 %v1703
        %2750 = vmatprep.subr.mxu0 0.0
        %2751 = vmatpush2.msra.mxu0 %v1701
        %2752 = vmatprep.subr.mxu0 0.0
        %2753 = vmatpush2.msra.mxu0 %v1699
        %2754 = vmatprep.subr.mxu0 0.0
        %2755 = vmatpush2.msra.mxu0 %v1697
        %2756 = vmatprep.subr.mxu0 0.0
        %2757 = vmatpush2.msra.mxu0 %v1695
        %2758 = vmatprep.subr.mxu0 0.0
        %2759 = vmatpush2.msra.mxu0 %v1693
        %2760 = vmatprep.subr.mxu0 0.0
        %2761 = vmatpush2.msra.mxu0 %v1691
        %2762 = vmatprep.subr.mxu0 0.0
        %2763 = vmatpush2.msra.mxu0 %v1689
        %2764 = vmatprep.subr.mxu0 0.0
        %2765 = vmatpush2.msra.mxu0 %v1687
        %2766 = vmatprep.subr.mxu0 0.0
        %2767 = vmatpush2.msra.mxu0 %v1685
        %2768 = vmatprep.subr.mxu0 0.0
        %2769 = vmatpush2.msra.mxu0 %v1683
        %2770 = vmatprep.subr.mxu0 0.0
        %2771 = vmatpush2.msra.mxu0 %v1681
        %2772 = vmatprep.subr.mxu0 0.0
        %2773 = vmatpush2.msra.mxu0 %v1679
        %2774 = vmatprep.subr.mxu0 0.0
        %2775 = vmatpush2.msra.mxu0 %v1677
        %2776 = vmatprep.subr.mxu0 0.0
        %2777 = vmatpush2.msra.mxu0 %v1675
        %2778 = vmatprep.subr.mxu0 0.0
        %2779 = vmatpush2.msra.mxu0 %v1673
        %2780 = vmatprep.mubr.f32.mxu0 %v2652
        %2781 = vmatmul.mubr.f32.gmra.mxu0 %v2651
        %v2782 = vpop.f32.mrf.mxu0
        %v2783 = vadd.f32 0.0, %v2782
        %v2784 = vpop.f32.mrf.mxu0
        %2785 = vmatprep.mubr.f32.mxu0 %v2654
        %2786 = vmatmul.mubr.f32.gmra.mxu0 %v2653
        %v2787 = vpop.f32.mrf.mxu0
        %v2788 = vadd.f32 0.0, %v2787
        %v2789 = vpop.f32.mrf.mxu0
        %2790 = vmatprep.mubr.f32.mxu0 %v2656
        %2791 = vmatmul.mubr.f32.gmra.mxu0 %v2655
        %v2792 = vpop.f32.mrf.mxu0
        %v2793 = vadd.f32 0.0, %v2792
        %v2794 = vpop.f32.mrf.mxu0
        %2795 = vmatprep.mubr.f32.mxu0 %v2658
        %2796 = vmatmul.mubr.f32.gmra.mxu0 %v2657
        %v2797 = vpop.f32.mrf.mxu0
        %v2798 = vadd.f32 0.0, %v2797
        %v2799 = vpop.f32.mrf.mxu0
        %2800 = vmatprep.mubr.f32.mxu0 %v2660
        %2801 = vmatmul.mubr.f32.gmra.mxu0 %v2659
        %v2802 = vpop.f32.mrf.mxu0
        %v2803 = vadd.f32 0.0, %v2802
        %v2804 = vpop.f32.mrf.mxu0
        %2805 = vmatprep.mubr.f32.mxu0 %v2662
        %2806 = vmatmul.mubr.f32.gmra.mxu0 %v2661
        %v2807 = vpop.f32.mrf.mxu0
        %v2808 = vadd.f32 0.0, %v2807
        %v2809 = vpop.f32.mrf.mxu0
        %2810 = vmatprep.mubr.f32.mxu0 %v2664
        %2811 = vmatmul.mubr.f32.gmra.mxu0 %v2663
        %v2812 = vpop.f32.mrf.mxu0
        %v2813 = vadd.f32 0.0, %v2812
        %v2814 = vpop.f32.mrf.mxu0
        %2815 = vmatprep.mubr.f32.mxu0 %v2666
        %2816 = vmatmul.mubr.f32.gmra.mxu0 %v2665
        %v2817 = vpop.f32.mrf.mxu0
        %v2818 = vadd.f32 0.0, %v2817
        %v2819 = vpop.f32.mrf.mxu0
        %2820 = vmatprep.mubr.f32.mxu0 %v2668
        %2821 = vmatmul.mubr.f32.gmra.mxu0 %v2667
        %v2822 = vpop.f32.mrf.mxu0
        %v2823 = vadd.f32 0.0, %v2822
        %v2824 = vpop.f32.mrf.mxu0
        %2825 = vmatprep.mubr.f32.mxu0 %v2670
        %2826 = vmatmul.mubr.f32.gmra.mxu0 %v2669
        %v2827 = vpop.f32.mrf.mxu0
        %v2828 = vadd.f32 0.0, %v2827
        %v2829 = vpop.f32.mrf.mxu0
        %2830 = vmatprep.mubr.f32.mxu0 %v2672
        %2831 = vmatmul.mubr.f32.gmra.mxu0 %v2671
        %v2832 = vpop.f32.mrf.mxu0
        %v2833 = vadd.f32 0.0, %v2832
        %v2834 = vpop.f32.mrf.mxu0
        %2835 = vmatprep.mubr.f32.mxu0 %v2674
        %2836 = vmatmul.mubr.f32.gmra.mxu0 %v2673
        %v2837 = vpop.f32.mrf.mxu0
        %v2838 = vadd.f32 0.0, %v2837
        %v2839 = vpop.f32.mrf.mxu0
        %2840 = vmatprep.mubr.f32.mxu0 %v2676
        %2841 = vmatmul.mubr.f32.gmra.mxu0 %v2675
        %v2842 = vpop.f32.mrf.mxu0
        %v2843 = vadd.f32 0.0, %v2842
        %v2844 = vpop.f32.mrf.mxu0
        %2845 = vmatprep.mubr.f32.mxu0 %v2678
        %2846 = vmatmul.mubr.f32.gmra.mxu0 %v2677
        %v2847 = vpop.f32.mrf.mxu0
        %v2848 = vadd.f32 0.0, %v2847
        %v2849 = vpop.f32.mrf.mxu0
        %2850 = vmatprep.mubr.f32.mxu0 %v2680
        %2851 = vmatmul.mubr.f32.gmra.mxu0 %v2679
        %v2852 = vpop.f32.mrf.mxu0
        %v2853 = vadd.f32 0.0, %v2852
        %v2854 = vpop.f32.mrf.mxu0
        %2855 = vmatprep.mubr.f32.mxu0 %v2682
        %2856 = vmatmul.mubr.f32.gmra.mxu0 %v2681
        %v2857 = vpop.f32.mrf.mxu0
        %v2858 = vadd.f32 0.0, %v2857
        %v2859 = vpop.f32.mrf.mxu0
        %2860 = vdwg.mxu0
        %2861 = vst [vmem:[%s426] sm:$0xff] %v2204
        %2862 = vst [vmem:[%s426 + $0x8] sm:$0xff] %v2783
        %2863 = vst [vmem:[%s426 + $0x10] sm:$0xff] %v2209
        %2864 = vst [vmem:[%s426 + $0x18] sm:$0xff] %v2788
        %2865 = vst [vmem:[%s426 + $0x20] sm:$0xff] %v2214
        %2866 = vst [vmem:[%s426 + $0x28] sm:$0xff] %v2793
        %2867 = vst [vmem:[%s426 + $0x30] sm:$0xff] %v2219
        %2868 = vst [vmem:[%s426 + $0x38] sm:$0xff] %v2798
        %2869 = vst [vmem:[%s426 + $0x40] sm:$0xff] %v2224
        %2870 = vst [vmem:[%s426 + $0x48] sm:$0xff] %v2803
        %2871 = vst [vmem:[%s426 + $0x50] sm:$0xff] %v2229
        %2872 = vst [vmem:[%s426 + $0x58] sm:$0xff] %v2808
        %2873 = vst [vmem:[%s426 + $0x60] sm:$0xff] %v2234
        %2874 = vst [vmem:[%s426 + $0x68] sm:$0xff] %v2813
        %2875 = vst [vmem:[%s426 + $0x70] sm:$0xff] %v2239
        %2876 = vst [vmem:[%s426 + $0x78] sm:$0xff] %v2818
        %2877 = vst [vmem:[%s426 + $0x80] sm:$0xff] %v2244
        %2878 = vst [vmem:[%s426 + $0x88] sm:$0xff] %v2823
        %2879 = vst [vmem:[%s426 + $0x90] sm:$0xff] %v2249
        %2880 = vst [vmem:[%s426 + $0x98] sm:$0xff] %v2828
        %2881 = vst [vmem:[%s426 + $0xa0] sm:$0xff] %v2254
        %2882 = vst [vmem:[%s426 + $0xa8] sm:$0xff] %v2833
        %2883 = vst [vmem:[%s426 + $0xb0] sm:$0xff] %v2259
        %2884 = vst [vmem:[%s426 + $0xb8] sm:$0xff] %v2838
        %2885 = vst [vmem:[%s426 + $0xc0] sm:$0xff] %v2264
        %2886 = vst [vmem:[%s426 + $0xc8] sm:$0xff] %v2843
        %2887 = vst [vmem:[%s426 + $0xd0] sm:$0xff] %v2269
        %2888 = vst [vmem:[%s426 + $0xd8] sm:$0xff] %v2848
        %2889 = vst [vmem:[%s426 + $0xe0] sm:$0xff] %v2274
        %2890 = vst [vmem:[%s426 + $0xe8] sm:$0xff] %v2853
        %2891 = vst [vmem:[%s426 + $0xf0] sm:$0xff] %v2279
        %2892 = vst [vmem:[%s426 + $0xf8] sm:$0xff] %v2858
        %s2893 = sand.u32 %s219, 1
        %s2894 = scalar_lea.sflag [#allocation6], %s2893
        %s2895 = sand.u32 %s219, 1
        %s2896 = smul.addr %s2895, 256
        %s2897 = scalar_lea.vmem [#allocation12], %s2896
        %s2898 = sand.u32 %s249, 1
        %s2899 = scalar_lea.sflag [#allocation14], %s2898
        %s2900 = sand.u32 %s249, 1
        %s2901 = smul.addr %s2900, 512
        %s2902 = scalar_lea.vmem [#allocation13], %s2901
        // Predicated region
        $region65: #{tpu_custom_call.1} parent=43 // pred_check
          %p2903 = pneg %p229
        $region66: #{tpu_custom_call.1} parent=43 // pred_check_branch
          %2905 = sbr.rel (%p2903) target = $region68
        $region67: #{tpu_custom_call.1} parent=43 // pred_region
          %s2906 = smul.u32 16, %s37
          %s2907 = smul.u32 2, %s36
          %s2909 = ssub.s32 4096, 4096
          %2910 = vsyncadd %s2894, %s2909
          %s2911 = smul.addr %s2906, 2
          %s2912 = sadd.s32 %s2907, %s2911
          %s2913 = smul.addr %s35, 64
          %s2914 = sadd.s32 %s2912, %s2913
          %s2915 = smul.addr %s2914, 128
          %s2916 = scalar_lea.hbm %s6, %s2915
          %s2917 = sshll.u32 %s2897, 4
          %s2918 = int_to_ptr.vmem [resolvable:$true] %s2917
          %2923 = dma.vmem_to_hbm [thread:$0]  %s2918, 4096, %s2916, %s2894, 256, 256, 16
        $region68: #{tpu_custom_call.1} parent=43 // pred_fallthru
          _
        // Predicated region
        $region69: #{tpu_custom_call.1} parent=43 // pred_check
          %p2924 = pneg %p259
        $region70: #{tpu_custom_call.1} parent=43 // pred_check_branch
          %2926 = sbr.rel (%p2924) target = $region72
        $region71: #{tpu_custom_call.1} parent=43 // pred_region
          #allocation16 [shape = 'u32[6]{0}', space=smem, size = 0x18, scoped, tag = 'DMA stride descriptor']
          %s2927 = smul.u32 2, %s36
          %s2928 = smul.u32 16, %s37
          %s2930 = ssub.s32 8192, 8192
          %2931 = vsyncadd %s2899, %s2930
          %s2932 = smul.addr %s2928, 2
          %s2933 = smul.addr %s35, 64
          %s2934 = sadd.s32 %s2932, %s2933
          %s2935 = smul.addr %s2927, 128
          %s2936 = sadd.s32 %s2934, %s2935
          %s2937 = smul.addr %s2936, 128
          %s2938 = scalar_lea.hbm %s7, %s2937
          %s2940 = sshll.u32 1, 14
          %s2941 = sxor.u32 4294967295, %s2940
          %s2944 = sshll.u32 7, 18
          %s2945 = sxor.u32 4294967295, %s2944
          %s2946 = sand.u32 0, %s2945
          %s2948 = sor.u32 %s2946, 0
          %s2949 = sshll.u32 %s2902, 4
          %s2950 = int_to_ptr.vmem [resolvable:$true] %s2949
          %2956 = sst [smem:[#allocation16]] 4096
          %s2957 = scalar_lea.smem [#allocation16], 1
          %2958 = sst [smem:[%s2957]] 16384
          %s2959 = scalar_lea.smem [#allocation16], 2
          %2960 = sst [smem:[%s2959]] 16
          %s2961 = scalar_lea.smem [#allocation16], 3
          %2962 = sst [smem:[%s2961]] 256
          %s2963 = scalar_lea.smem [#allocation16], 4
          %2964 = sst [smem:[%s2963]] 256
          %s2965 = scalar_lea.smem [#allocation16], 5
          %2966 = sst [smem:[%s2965]] 16
          %2968 = dma.general %s2950, 8192, %s2938, %s2899, 131072, [#allocation16], %s2948, 0
        $region72: #{tpu_custom_call.1} parent=43 // pred_fallthru
          _
      $region44: #{tpu_custom_call.1} parent=5 // pred_fallthru
        _
      %p2969 = scmp.le.s32.totalorder 2, %s25
      // Predicated region
      $region73: #{tpu_custom_call.1} parent=5 // pred_check
        %p2970 = pneg %p2969
      $region74: #{tpu_custom_call.1} parent=5 // pred_check_branch
        %2972 = sbr.rel (%p2970) target = $region76
      $region75: #{tpu_custom_call.1} parent=5 // pred_region
        %s2973 = ssub.s32 %s25, 2
        // Predicated region
        $region77: #{tpu_custom_call.1} parent=75 // pred_check
          %p2974 = pneg %p235
        $region78: #{tpu_custom_call.1} parent=75 // pred_check_branch
          %2976 = sbr.rel (%p2974) target = $region80
        $region79: #{tpu_custom_call.1} parent=75 // pred_region
          %s2977 = sand.u32 %s220, 1
          %s2978 = scalar_lea.sflag [#allocation6], %s2977
          %s2979 = sand.u32 %s220, 1
          %s2980 = smul.addr %s2979, 256
          %s2981 = scalar_lea.vmem [#allocation12], %s2980
          %2982 = dma.done %s2978, 4096
        $region80: #{tpu_custom_call.1} parent=75 // pred_fallthru
          _
        // Predicated region
        $region81: #{tpu_custom_call.1} parent=75 // pred_check
          %p2983 = pneg %p265
        $region82: #{tpu_custom_call.1} parent=75 // pred_check_branch
          %2985 = sbr.rel (%p2983) target = $region84
        $region83: #{tpu_custom_call.1} parent=75 // pred_region
          %s2986 = sand.u32 %s250, 1
          %s2987 = scalar_lea.sflag [#allocation14], %s2986
          %s2988 = sand.u32 %s250, 1
          %s2989 = smul.addr %s2988, 512
          %s2990 = scalar_lea.vmem [#allocation13], %s2989
          %2991 = dma.done %s2987, 8192
        $region84: #{tpu_custom_call.1} parent=75 // pred_fallthru
          _
      $region76: #{tpu_custom_call.1} parent=5 // pred_fallthru
        _
    $region6: #{tpu_custom_call.1} parent=1 // loop_footer
      %s29 = sadd.s32 1, %s25
    $region7: #{tpu_custom_call.1} parent=1 // loop_footer_branch
      %24 = sbr.rel target = $region3
    $region8: #{tpu_custom_call.1} parent=1 // loop_exit
      _
    %2992 = vsyncpa [#allocation5], 1
    %s2993 = scalar_lea.sflag [#allocation5], 1
    %2994 = vsyncpa %s2993, 1
    %2995 = vsyncpa [#allocation8], 1
    %2996 = vsyncpa [#allocation11], 1
    %2997 = vsyncpa [#allocation6], 1
    %s2998 = scalar_lea.sflag [#allocation6], 1
    %2999 = vsyncpa %s2998, 1
    %3000 = vsyncpa [#allocation14], 1
    %s3001 = scalar_lea.sflag [#allocation14], 1
    %3002 = vsyncpa %s3001, 1

// kernel: tpu_custom_call.1
$region0: #{tpu_custom_call.1}
  #allocation0 [shape = 'u32[]', space=smem, size = 0x4, offset = 0x4, fixed_abs, tag = 'smem constant byte address 0x4 - core index']
  #allocation1 [shape = 'u32[144,128]{1,0:T(1,128)}', space=vmem, size = 0x12000, scoped, tag = 'internal scratch']
  #allocation2 [shape = 'f32[256,256]{1,0:T(8,128)}', space=vmem, size = 0x40000, scoped, tag = 'scratch operand']
  #allocation3 [shape = 'f32[256,256]{1,0:T(8,128)}', space=vmem, size = 0x40000, scoped, tag = 'scratch operand']
  #allocation15 [shape = 's32[]', space=sflag, size = 0x4, offset = 0, fixed_abs, tag = 'sflag constant byte address 0x0 - dummy sync flag']
  %s0 = inlined_call_operand.hbm [shape: f32[2,256,256], index: 0, kind: input, shape index: {}]
  %s1 = inlined_call_operand.hbm [shape: f32[2,256,256], index: 1, kind: input, shape index: {}]
  %s2 = inlined_call_operand.hbm [shape: f32[1,256,256], index: 2, kind: input, shape index: {}]
  %s3 = inlined_call_operand.vmem [shape: f32[1,1,256], index: 3, kind: input, shape index: {}]
  %s4 = inlined_call_operand.hbm [shape: f32[1,256,512], index: 4, kind: input, shape index: {}]
  %s5 = inlined_call_operand.vmem [shape: f32[1,1,512], index: 5, kind: input, shape index: {}]
  %s6 = inlined_call_operand.hbm [shape: f32[2,256,256], index: 6, kind: output, shape index: {0}]
  %s7 = inlined_call_operand.hbm [shape: f32[2,2,256,256], index: 7, kind: output, shape index: {1}]
  %8 = xla_tuple %s6, %s7
  %s9 = sld [smem:[#allocation0]]
  $region85: #{tpu_custom_call.1} parent=0
    _
  %s11 = ssub.s32 1, %s9
  %s12 = scalar_select 0, %s11, %s9
  $region1: #{tpu_custom_call.1} parent=0
    #allocation4 [shape = 'u8[262144]{0}', space=vmem, size = 0x40000, scoped, tag = 'input window, operand 0']
    #allocation5 [shape = 's32[2]{0}', space=sflag, size = 0x8, scoped, tag = 'scoped memory for tpu_custom_call.1']
    #allocation6 [shape = 's32[2]{0}', space=sflag, size = 0x8, scoped, tag = 'scoped memory for tpu_custom_call.1']
    #allocation7 [shape = 'u8[524288]{0}', space=vmem, size = 0x80000, scoped, tag = 'input window, operand 1']
    #allocation8 [shape = 's32[2]{0}', space=sflag, size = 0x8, scoped, tag = 'scoped memory for tpu_custom_call.1']
    #allocation9 [shape = 'u8[262144]{0}', space=vmem, size = 0x40000, scoped, tag = 'input window, operand 2, single buffered']
    #allocation10 [shape = 'u8[524288]{0}', space=vmem, size = 0x80000, scoped, tag = 'input window, operand 4, single buffered']
    #allocation11 [shape = 's32[1]{0}', space=sflag, size = 0x4, scoped, tag = 'scoped memory for tpu_custom_call.1']
    #allocation12 [shape = 'u8[262144]{0}', space=vmem, size = 0x40000, scoped, tag = 'output window, operand 0']
    #allocation13 [shape = 'u8[524288]{0}', space=vmem, size = 0x80000, scoped, tag = 'output window, operand 1']
    #allocation14 [shape = 's32[2]{0}', space=sflag, size = 0x8, scoped, tag = 'scoped memory for tpu_custom_call.1']
    %13 = vsyncpa [#allocation5], 0
    %s14 = scalar_lea.sflag [#allocation5], 1
    %15 = vsyncpa %s14, 0
    %16 = vsyncpa [#allocation8], 0
    %s17 = scalar_lea.sflag [#allocation8], 1
    %18 = vsyncpa %s17, 0
    %19 = vsyncpa [#allocation11], 0
    %20 = vsyncpa [#allocation6], 0
    %s21 = scalar_lea.sflag [#allocation6], 1
    %22 = vsyncpa %s21, 0
    %23 = vsyncpa [#allocation14], 0
    %s24 = scalar_lea.sflag [#allocation14], 1
    %25 = vsyncpa %s24, 0
    loop: start=0, step=1, limit=6
    $region2: #{tpu_custom_call.1} parent=1 // loop_pre_header
      _
    $region3: #{tpu_custom_call.1} parent=1 // loop_header
      %s27 = sphi 0, %s31
      %p28 = scmp.ge.s32.totalorder %s27, 6
      %s34 = sphi 0, %s53
      %s35 = sphi 0, %s49
      %s36 = sphi 0, %s45
      %s37 = sphi 0, %s34
      %s38 = sphi 0, %s35
      %s39 = sphi 0, %s36
      %s40 = sphi 0, %s37
      %s41 = sphi 0, %s38
      %s42 = sphi 0, %s39
      %s58 = sphi 0, %s60
      %s61 = sphi 0, %s58
      %s62 = sphi 0, %s61
      %s78 = sphi 0, %s62
      %s84 = sphi 0, %s86
      %s87 = sphi 0, %s84
      %s88 = sphi 0, %s87
      %s104 = sphi 0, %s88
      %s110 = sphi 0, %s112
      %s113 = sphi 0, %s110
      %s114 = sphi 0, %s113
      %s130 = sphi 0, %s114
      %s136 = sphi 0, %s138
      %s139 = sphi 0, %s136
      %s140 = sphi 0, %s139
      %s156 = sphi 0, %s140
      %s162 = sphi 0, %s164
      %s165 = sphi 0, %s162
      %s166 = sphi 0, %s165
      %s182 = sphi 0, %s166
      %s188 = sphi 0, %s190
      %s191 = sphi 0, %s188
      %s192 = sphi 0, %s191
      %s208 = sphi 0, %s192
      %s218 = sphi 0, %s220
      %s221 = sphi 0, %s218
      %s222 = sphi 0, %s221
      %s238 = sphi 0, %s222
      %s248 = sphi 0, %s250
      %s251 = sphi 0, %s248
      %s252 = sphi 0, %s251
      %s268 = sphi 0, %s252
    $region4: #{tpu_custom_call.1} parent=1 // loop_header_branch
      %30 = sbr.rel (%p28) target = $region8
    $region5: #{tpu_custom_call.1} parent=1 // loop_body
      %s32 = ssub.s32 %s27, 1
      %s33 = ssub.s32 %s27, 2
      %s43 = sadd.s32 1, %s36
      %p44 = scmp.ge.s32.totalorder %s43, 2
      %s45 = scalar_select %p44, 0, %s43
      %s46 = sadd.s32 1, %s35
      %s47 = scalar_select %p44, %s46, %s35
      %p48 = scmp.ge.s32.totalorder %s47, 1
      %s49 = scalar_select %p48, 0, %s47
      %s50 = sadd.s32 1, %s34
      %s51 = scalar_select %p48, %s50, %s34
      %p52 = scmp.ge.s32.totalorder %s51, 2
      %s53 = scalar_select %p52, 0, %s51
      %s54 = ssub.s32 %s34, %s53
      %s55 = ssub.s32 %s36, %s45
      %s56 = sor.u32 %s54, %s55
      %p57 = scmp.eq.s32.totalorder %s56, 0
      %s59 = sadd.s32 %s58, 1
      %s60 = scalar_select %p57, %s58, %s59
      %p63 = pneg %p57
      %p64 = scmp.eq.s32.totalorder %s27, 3
      %p65 = por %p63, %p64
      %p66 = scmp.ne.s32.totalorder %s58, %s61
      %p67 = scmp.eq.s32.totalorder %s27, 0
      %p68 = por %p66, %p67
      %p69 = scmp.ne.s32.totalorder %s58, %s61
      %p70 = scmp.eq.s32.totalorder %s32, 3
      %p71 = por %p69, %p70
      %p72 = scmp.ne.s32.totalorder %s61, %s62
      %p73 = scmp.eq.s32.totalorder %s32, 0
      %p74 = por %p72, %p73
      %p75 = scmp.ne.s32.totalorder %s61, %s62
      %p76 = scmp.eq.s32.totalorder %s33, 3
      %p77 = por %p75, %p76
      %p79 = scmp.ne.s32.totalorder %s62, %s78
      %p80 = scmp.eq.s32.totalorder %s33, 0
      %p81 = por %p79, %p80
      %s82 = ssub.s32 %s34, %s53
      %p83 = scmp.eq.s32.totalorder %s82, 0
      %s85 = sadd.s32 %s84, 1
      %s86 = scalar_select %p83, %s84, %s85
      %p89 = pneg %p83
      %p90 = scmp.eq.s32.totalorder %s27, 3
      %p91 = por %p89, %p90
      %p92 = scmp.ne.s32.totalorder %s84, %s87
      %p93 = scmp.eq.s32.totalorder %s27, 0
      %p94 = por %p92, %p93
      %p95 = scmp.ne.s32.totalorder %s84, %s87
      %p96 = scmp.eq.s32.totalorder %s32, 3
      %p97 = por %p95, %p96
      %p98 = scmp.ne.s32.totalorder %s87, %s88
      %p99 = scmp.eq.s32.totalorder %s32, 0
      %p100 = por %p98, %p99
      %p101 = scmp.ne.s32.totalorder %s87, %s88
      %p102 = scmp.eq.s32.totalorder %s33, 3
      %p103 = por %p101, %p102
      %p105 = scmp.ne.s32.totalorder %s88, %s104
      %p106 = scmp.eq.s32.totalorder %s33, 0
      %p107 = por %p105, %p106
      %s108 = ssub.s32 %s35, %s49
      %p109 = scmp.eq.s32.totalorder %s108, 0
      %s111 = sadd.s32 %s110, 1
      %s112 = scalar_select %p109, %s110, %s111
      %p115 = pneg %p109
      %p116 = scmp.eq.s32.totalorder %s27, 3
      %p117 = por %p115, %p116
      %p118 = scmp.ne.s32.totalorder %s110, %s113
      %p119 = scmp.eq.s32.totalorder %s27, 0
      %p120 = por %p118, %p119
      %p121 = scmp.ne.s32.totalorder %s110, %s113
      %p122 = scmp.eq.s32.totalorder %s32, 3
      %p123 = por %p121, %p122
      %p124 = scmp.ne.s32.totalorder %s113, %s114
      %p125 = scmp.eq.s32.totalorder %s32, 0
      %p126 = por %p124, %p125
      %p127 = scmp.ne.s32.totalorder %s113, %s114
      %p128 = scmp.eq.s32.totalorder %s33, 3
      %p129 = por %p127, %p128
      %p131 = scmp.ne.s32.totalorder %s114, %s130
      %p132 = scmp.eq.s32.totalorder %s33, 0
      %p133 = por %p131, %p132
      %s134 = ssub.s32 %s35, %s49
      %p135 = scmp.eq.s32.totalorder %s134, 0
      %s137 = sadd.s32 %s136, 1
      %s138 = scalar_select %p135, %s136, %s137
      %p141 = pneg %p135
      %p142 = scmp.eq.s32.totalorder %s27, 3
      %p143 = por %p141, %p142
      %p144 = scmp.ne.s32.totalorder %s136, %s139
      %p145 = scmp.eq.s32.totalorder %s27, 0
      %p146 = por %p144, %p145
      %p147 = scmp.ne.s32.totalorder %s136, %s139
      %p148 = scmp.eq.s32.totalorder %s32, 3
      %p149 = por %p147, %p148
      %p150 = scmp.ne.s32.totalorder %s139, %s140
      %p151 = scmp.eq.s32.totalorder %s32, 0
      %p152 = por %p150, %p151
      %p153 = scmp.ne.s32.totalorder %s139, %s140
      %p154 = scmp.eq.s32.totalorder %s33, 3
      %p155 = por %p153, %p154
      %p157 = scmp.ne.s32.totalorder %s140, %s156
      %p158 = scmp.eq.s32.totalorder %s33, 0
      %p159 = por %p157, %p158
      %s160 = ssub.s32 %s35, %s49
      %p161 = scmp.eq.s32.totalorder %s160, 0
      %s163 = sadd.s32 %s162, 1
      %s164 = scalar_select %p161, %s162, %s163
      %p167 = pneg %p161
      %p168 = scmp.eq.s32.totalorder %s27, 3
      %p169 = por %p167, %p168
      %p170 = scmp.ne.s32.totalorder %s162, %s165
      %p171 = scmp.eq.s32.totalorder %s27, 0
      %p172 = por %p170, %p171
      %p173 = scmp.ne.s32.totalorder %s162, %s165
      %p174 = scmp.eq.s32.totalorder %s32, 3
      %p175 = por %p173, %p174
      %p176 = scmp.ne.s32.totalorder %s165, %s166
      %p177 = scmp.eq.s32.totalorder %s32, 0
      %p178 = por %p176, %p177
      %p179 = scmp.ne.s32.totalorder %s165, %s166
      %p180 = scmp.eq.s32.totalorder %s33, 3
      %p181 = por %p179, %p180
      %p183 = scmp.ne.s32.totalorder %s166, %s182
      %p184 = scmp.eq.s32.totalorder %s33, 0
      %p185 = por %p183, %p184
      %s186 = ssub.s32 %s35, %s49
      %p187 = scmp.eq.s32.totalorder %s186, 0
      %s189 = sadd.s32 %s188, 1
      %s190 = scalar_select %p187, %s188, %s189
      %p193 = pneg %p187
      %p194 = scmp.eq.s32.totalorder %s27, 3
      %p195 = por %p193, %p194
      %p196 = scmp.ne.s32.totalorder %s188, %s191
      %p197 = scmp.eq.s32.totalorder %s27, 0
      %p198 = por %p196, %p197
      %p199 = scmp.ne.s32.totalorder %s188, %s191
      %p200 = scmp.eq.s32.totalorder %s32, 3
      %p201 = por %p199, %p200
      %p202 = scmp.ne.s32.totalorder %s191, %s192
      %p203 = scmp.eq.s32.totalorder %s32, 0
      %p204 = por %p202, %p203
      %p205 = scmp.ne.s32.totalorder %s191, %s192
      %p206 = scmp.eq.s32.totalorder %s33, 3
      %p207 = por %p205, %p206
      %p209 = scmp.ne.s32.totalorder %s192, %s208
      %p210 = scmp.eq.s32.totalorder %s33, 0
      %p211 = por %p209, %p210
      %s212 = ssub.s32 %s34, %s53
      %s213 = ssub.s32 %s36, %s45
      %s214 = sor.u32 %s212, %s213
      %s215 = ssub.s32 %s35, %s49
      %s216 = sor.u32 %s214, %s215
      %p217 = scmp.eq.s32.totalorder %s216, 0
      %s219 = sadd.s32 %s218, 1
      %s220 = scalar_select %p217, %s218, %s219
      %p223 = pneg %p217
      %p224 = scmp.eq.s32.totalorder %s27, 3
      %p225 = por %p223, %p224
      %p226 = scmp.ne.s32.totalorder %s218, %s221
      %p227 = scmp.eq.s32.totalorder %s27, 0
      %p228 = por %p226, %p227
      %p229 = scmp.ne.s32.totalorder %s218, %s221
      %p230 = scmp.eq.s32.totalorder %s32, 3
      %p231 = por %p229, %p230
      %p232 = scmp.ne.s32.totalorder %s221, %s222
      %p233 = scmp.eq.s32.totalorder %s32, 0
      %p234 = por %p232, %p233
      %p235 = scmp.ne.s32.totalorder %s221, %s222
      %p236 = scmp.eq.s32.totalorder %s33, 3
      %p237 = por %p235, %p236
      %p239 = scmp.ne.s32.totalorder %s222, %s238
      %p240 = scmp.eq.s32.totalorder %s33, 0
      %p241 = por %p239, %p240
      %s242 = ssub.s32 %s35, %s49
      %s243 = ssub.s32 %s34, %s53
      %s244 = sor.u32 %s242, %s243
      %s245 = ssub.s32 %s36, %s45
      %s246 = sor.u32 %s244, %s245
      %p247 = scmp.eq.s32.totalorder %s246, 0
      %s249 = sadd.s32 %s248, 1
      %s250 = scalar_select %p247, %s248, %s249
      %p253 = pneg %p247
      %p254 = scmp.eq.s32.totalorder %s27, 3
      %p255 = por %p253, %p254
      %p256 = scmp.ne.s32.totalorder %s248, %s251
      %p257 = scmp.eq.s32.totalorder %s27, 0
      %p258 = por %p256, %p257
      %p259 = scmp.ne.s32.totalorder %s248, %s251
      %p260 = scmp.eq.s32.totalorder %s32, 3
      %p261 = por %p259, %p260
      %p262 = scmp.ne.s32.totalorder %s251, %s252
      %p263 = scmp.eq.s32.totalorder %s32, 0
      %p264 = por %p262, %p263
      %p265 = scmp.ne.s32.totalorder %s251, %s252
      %p266 = scmp.eq.s32.totalorder %s33, 3
      %p267 = por %p265, %p266
      %p269 = scmp.ne.s32.totalorder %s252, %s268
      %p270 = scmp.eq.s32.totalorder %s33, 0
      %p271 = por %p269, %p270
      %p272 = scmp.le.s32.totalorder 1, %s27
      %p273 = scmp.lt.s32.totalorder %s27, 5
      %p274 = pnand %p272, %p273
      %p275 = pneg %p274
      // Predicated region
      $region9: #{tpu_custom_call.1} parent=5 // pred_check
        _
      $region10: #{tpu_custom_call.1} parent=5 // pred_check_branch
        %277 = sbr.rel (%p274) target = $region12
      $region11: #{tpu_custom_call.1} parent=5 // pred_region
        %s278 = ssub.s32 %s27, 1
        // Predicated region
        $region13: #{tpu_custom_call.1} parent=11 // pred_check
          %p279 = pneg %p126
        $region14: #{tpu_custom_call.1} parent=11 // pred_check_branch
          %281 = sbr.rel (%p279) target = $region16
        $region15: #{tpu_custom_call.1} parent=11 // pred_region
          %s283 = ssub.s32 8192, 8192
          %284 = vsyncadd [#allocation8], %s283
          %s285 = smul.addr %s38, 64
          %s286 = smul.addr %s285, 128
          %s287 = scalar_lea.hbm %s2, %s286
          %s288 = sshll.u32 [#allocation9], 4
          %s289 = int_to_ptr.vmem [resolvable:$true] %s288
          %294 = dma.hbm_to_vmem [thread:$0]  %s287, 8192, %s289, [#allocation8], 256, 256, 16
        $region16: #{tpu_custom_call.1} parent=11 // pred_fallthru
          _
        // Predicated region
        $region17: #{tpu_custom_call.1} parent=11 // pred_check
          %p295 = pneg %p152
        $region18: #{tpu_custom_call.1} parent=11 // pred_check_branch
          %297 = sbr.rel (%p295) target = $region20
        $region19: #{tpu_custom_call.1} parent=11 // pred_region
          %p298 = scmp.lt.s32.totalorder %s38, 0
          %s299 = scalar_select %p298, %s38, 0
          %s300 = smul.addr %s299, 2
          %s301 = scalar_lea.vmem %s3, %s300
        $region20: #{tpu_custom_call.1} parent=11 // pred_fallthru
          _
        // Predicated region
        $region21: #{tpu_custom_call.1} parent=11 // pred_check
          %p302 = pneg %p178
        $region22: #{tpu_custom_call.1} parent=11 // pred_check_branch
          %304 = sbr.rel (%p302) target = $region24
        $region23: #{tpu_custom_call.1} parent=11 // pred_region
          %s306 = ssub.s32 16384, 16384
          %307 = vsyncadd [#allocation11], %s306
          %s308 = smul.addr %s38, 128
          %s309 = smul.addr %s308, 128
          %s310 = scalar_lea.hbm %s4, %s309
          %s311 = sshll.u32 [#allocation10], 4
          %s312 = int_to_ptr.vmem [resolvable:$true] %s311
          %317 = dma.hbm_to_vmem [thread:$0]  %s310, 16384, %s312, [#allocation11], 512, 512, 32
        $region24: #{tpu_custom_call.1} parent=11 // pred_fallthru
          _
        // Predicated region
        $region25: #{tpu_custom_call.1} parent=11 // pred_check
          %p318 = pneg %p204
        $region26: #{tpu_custom_call.1} parent=11 // pred_check_branch
          %320 = sbr.rel (%p318) target = $region28
        $region27: #{tpu_custom_call.1} parent=11 // pred_region
          %p321 = scmp.lt.s32.totalorder %s38, 0
          %s322 = scalar_select %p321, %s38, 0
          %s323 = smul.addr %s322, 4
          %s324 = scalar_lea.vmem %s5, %s323
        $region28: #{tpu_custom_call.1} parent=11 // pred_fallthru
          _
      $region12: #{tpu_custom_call.1} parent=5 // pred_fallthru
        _
      %p325 = scmp.lt.s32.totalorder %s27, 4
      // Predicated region
      $region29: #{tpu_custom_call.1} parent=5 // pred_check
        %p326 = pneg %p325
      $region30: #{tpu_custom_call.1} parent=5 // pred_check_branch
        %328 = sbr.rel (%p326) target = $region32
      $region31: #{tpu_custom_call.1} parent=5 // pred_region
        // Predicated region
        $region33: #{tpu_custom_call.1} parent=31 // pred_check
          %p329 = pneg %p68
        $region34: #{tpu_custom_call.1} parent=31 // pred_check_branch
          %331 = sbr.rel (%p329) target = $region36
        $region35: #{tpu_custom_call.1} parent=31 // pred_region
          %s332 = sand.u32 %s58, 1
          %s333 = scalar_lea.sflag [#allocation5], %s332
          %s334 = sand.u32 %s58, 1
          %s335 = smul.addr %s334, 256
          %s336 = scalar_lea.vmem [#allocation4], %s335
          %s337 = smul.u32 16, %s36
          %s339 = ssub.s32 4096, 4096
          %340 = vsyncadd %s333, %s339
          %s341 = smul.addr %s337, 2
          %s342 = smul.addr %s34, 64
          %s343 = sadd.s32 %s341, %s342
          %s344 = smul.addr %s343, 128
          %s345 = scalar_lea.hbm %s0, %s344
          %s346 = sshll.u32 %s336, 4
          %s347 = int_to_ptr.vmem [resolvable:$true] %s346
          %352 = dma.hbm_to_vmem [thread:$0]  %s345, 4096, %s347, %s333, 256, 256, 16
        $region36: #{tpu_custom_call.1} parent=31 // pred_fallthru
          _
        // Predicated region
        $region37: #{tpu_custom_call.1} parent=31 // pred_check
          %p353 = pneg %p94
        $region38: #{tpu_custom_call.1} parent=31 // pred_check_branch
          %355 = sbr.rel (%p353) target = $region40
        $region39: #{tpu_custom_call.1} parent=31 // pred_region
          %s356 = sand.u32 %s27, 1
          %s357 = scalar_lea.sflag [#allocation8], %s356
          %s358 = sand.u32 %s84, 1
          %s359 = smul.addr %s358, 512
          %s360 = scalar_lea.vmem [#allocation7], %s359
          %s362 = ssub.s32 8192, 8192
          %363 = vsyncadd %s357, %s362
          %s364 = smul.addr %s34, 64
          %s365 = smul.addr %s364, 128
          %s366 = scalar_lea.hbm %s1, %s365
          %s367 = sshll.u32 %s360, 4
          %s368 = int_to_ptr.vmem [resolvable:$true] %s367
          %373 = dma.hbm_to_vmem [thread:$0]  %s366, 8192, %s368, %s357, 256, 256, 16
        $region40: #{tpu_custom_call.1} parent=31 // pred_fallthru
          _
      $region32: #{tpu_custom_call.1} parent=5 // pred_fallthru
        _
      %p374 = scmp.le.s32.totalorder 1, %s27
      %p375 = scmp.lt.s32.totalorder %s27, 5
      %p376 = pnand %p374, %p375
      %p377 = pneg %p376
      // Predicated region
      $region41: #{tpu_custom_call.1} parent=5 // pred_check
        _
      $region42: #{tpu_custom_call.1} parent=5 // pred_check_branch
        %379 = sbr.rel (%p376) target = $region44
      $region43: #{tpu_custom_call.1} parent=5 // pred_region
        %s380 = ssub.s32 %s27, 1
        %s381 = sand.u32 %s61, 1
        %s382 = scalar_lea.sflag [#allocation5], %s381
        %s383 = sand.u32 %s61, 1
        %s384 = smul.addr %s383, 256
        %s385 = scalar_lea.vmem [#allocation4], %s384
        // Predicated region
        $region45: #{tpu_custom_call.1} parent=43 // pred_check
          %p386 = pneg %p74
        $region46: #{tpu_custom_call.1} parent=43 // pred_check_branch
          %388 = sbr.rel (%p386) target = $region48
        $region47: #{tpu_custom_call.1} parent=43 // pred_region
          %389 = dma.done %s382, 4096
        $region48: #{tpu_custom_call.1} parent=43 // pred_fallthru
          _
        %s390 = sand.u32 %s32, 1
        %s391 = scalar_lea.sflag [#allocation8], %s390
        %s392 = sand.u32 %s87, 1
        %s393 = smul.addr %s392, 512
        %s394 = scalar_lea.vmem [#allocation7], %s393
        // Predicated region
        $region49: #{tpu_custom_call.1} parent=43 // pred_check
          %p395 = pneg %p100
        $region50: #{tpu_custom_call.1} parent=43 // pred_check_branch
          %397 = sbr.rel (%p395) target = $region52
        $region51: #{tpu_custom_call.1} parent=43 // pred_region
          %398 = dma.done %s391, 8192
        $region52: #{tpu_custom_call.1} parent=43 // pred_fallthru
          _
        // Predicated region
        $region53: #{tpu_custom_call.1} parent=43 // pred_check
          %p399 = pneg %p126
        $region54: #{tpu_custom_call.1} parent=43 // pred_check_branch
          %401 = sbr.rel (%p399) target = $region56
        $region55: #{tpu_custom_call.1} parent=43 // pred_region
          %402 = dma.done [#allocation8], 8192
        $region56: #{tpu_custom_call.1} parent=43 // pred_fallthru
          _
        // Predicated region
        $region57: #{tpu_custom_call.1} parent=43 // pred_check
          %p403 = pneg %p178
        $region58: #{tpu_custom_call.1} parent=43 // pred_check_branch
          %405 = sbr.rel (%p403) target = $region60
        $region59: #{tpu_custom_call.1} parent=43 // pred_region
          %406 = dma.done [#allocation11], 16384
        $region60: #{tpu_custom_call.1} parent=43 // pred_fallthru
          _
        %s407 = sand.u32 %s61, 1
        %s408 = scalar_lea.sflag [#allocation5], %s407
        %s409 = sand.u32 %s61, 1
        %s410 = smul.addr %s409, 256
        %s411 = scalar_lea.vmem [#allocation4], %s410
        %p412 = pneg %p74
        %p413 = pneg %p71
        %s414 = sand.u32 %s32, 1
        %s415 = scalar_lea.sflag [#allocation8], %s414
        %s416 = sand.u32 %s87, 1
        %s417 = smul.addr %s416, 512
        %s418 = scalar_lea.vmem [#allocation7], %s417
        %p419 = pneg %p100
        %p420 = pneg %p97
        %p421 = pneg %p126
        %p422 = pneg %p123
        %p423 = scmp.lt.s32.totalorder %s38, 0
        %s424 = scalar_select %p423, %s38, 0
        %s425 = smul.addr %s424, 2
        %s426 = scalar_lea.vmem %s3, %s425
        %p427 = pneg %p152
        %p428 = pneg %p149
        %p429 = pneg %p178
        %p430 = pneg %p175
        %p431 = scmp.lt.s32.totalorder %s38, 0
        %s432 = scalar_select %p431, %s38, 0
        %s433 = smul.addr %s432, 4
        %s434 = scalar_lea.vmem %s5, %s433
        %p435 = pneg %p204
        %p436 = pneg %p201
        %p437 = pneg %p234
        %p438 = pneg %p231
        %s439 = sand.u32 %s221, 1
        %s440 = scalar_lea.sflag [#allocation6], %s439
        %s441 = sand.u32 %s221, 1
        %s442 = smul.addr %s441, 256
        %s443 = scalar_lea.vmem [#allocation12], %s442
        %p444 = pneg %p264
        %p445 = pneg %p261
        %s446 = sand.u32 %s251, 1
        %s447 = scalar_lea.sflag [#allocation14], %s446
        %s448 = sand.u32 %s251, 1
        %s449 = smul.addr %s448, 512
        %s450 = scalar_lea.vmem [#allocation13], %s449
        %s451 = smul.u32 16, %s39
        %p452 = scmp.lt.s32.totalorder %s38, 0
        %s453 = scalar_select %p452, %s38, 0
        %s454 = smul.addr %s453, 2
        %s455 = scalar_lea.vmem %s3, %s454
        %p456 = scmp.lt.s32.totalorder %s38, 0
        %s457 = scalar_select %p456, %s38, 0
        %s458 = smul.addr %s457, 4
        %s459 = scalar_lea.vmem %s5, %s458
        %s460 = smul.u32 16, %s39
        %s461 = smul.u32 2, %s38
        %s462 = smul.u32 2, %s38
        %s463 = smul.u32 16, %s39
        %p464 = scmp.eq.s32.totalorder %s39, 0
        // Predicated region
        $region61: #{tpu_custom_call.1} parent=43 // pred_check
          %p465 = pneg %p464
        $region62: #{tpu_custom_call.1} parent=43 // pred_check_branch
          %467 = sbr.rel (%p465) target = $region64
        $region63: #{tpu_custom_call.1} parent=43 // pred_region
          %v468 = vld [vmem:[%s394] sm:$0xff]
          %v469 = vld [vmem:[%s394 + $0x8] sm:$0xff]
          %v470 = vld [vmem:[%s394 + $0x10] sm:$0xff]
          %v471 = vld [vmem:[%s394 + $0x18] sm:$0xff]
          %v472 = vld [vmem:[%s394 + $0x20] sm:$0xff]
          %v473 = vld [vmem:[%s394 + $0x28] sm:$0xff]
          %v474 = vld [vmem:[%s394 + $0x30] sm:$0xff]
          %v475 = vld [vmem:[%s394 + $0x38] sm:$0xff]
          %v476 = vld [vmem:[%s394 + $0x40] sm:$0xff]
          %v477 = vld [vmem:[%s394 + $0x48] sm:$0xff]
          %v478 = vld [vmem:[%s394 + $0x50] sm:$0xff]
          %v479 = vld [vmem:[%s394 + $0x58] sm:$0xff]
          %v480 = vld [vmem:[%s394 + $0x60] sm:$0xff]
          %v481 = vld [vmem:[%s394 + $0x68] sm:$0xff]
          %v482 = vld [vmem:[%s394 + $0x70] sm:$0xff]
          %v483 = vld [vmem:[%s394 + $0x78] sm:$0xff]
          %v484 = vld [vmem:[%s394 + $0x80] sm:$0xff]
          %v485 = vld [vmem:[%s394 + $0x88] sm:$0xff]
          %v486 = vld [vmem:[%s394 + $0x90] sm:$0xff]
          %v487 = vld [vmem:[%s394 + $0x98] sm:$0xff]
          %v488 = vld [vmem:[%s394 + $0xa0] sm:$0xff]
          %v489 = vld [vmem:[%s394 + $0xa8] sm:$0xff]
          %v490 = vld [vmem:[%s394 + $0xb0] sm:$0xff]
          %v491 = vld [vmem:[%s394 + $0xb8] sm:$0xff]
          %v492 = vld [vmem:[%s394 + $0xc0] sm:$0xff]
          %v493 = vld [vmem:[%s394 + $0xc8] sm:$0xff]
          %v494 = vld [vmem:[%s394 + $0xd0] sm:$0xff]
          %v495 = vld [vmem:[%s394 + $0xd8] sm:$0xff]
          %v496 = vld [vmem:[%s394 + $0xe0] sm:$0xff]
          %v497 = vld [vmem:[%s394 + $0xe8] sm:$0xff]
          %v498 = vld [vmem:[%s394 + $0xf0] sm:$0xff]
          %v499 = vld [vmem:[%s394 + $0xf8] sm:$0xff]
          %v500 = vld [vmem:[%s394 + $0x100] sm:$0xff]
          %v501 = vld [vmem:[%s394 + $0x108] sm:$0xff]
          %v502 = vld [vmem:[%s394 + $0x110] sm:$0xff]
          %v503 = vld [vmem:[%s394 + $0x118] sm:$0xff]
          %v504 = vld [vmem:[%s394 + $0x120] sm:$0xff]
          %v505 = vld [vmem:[%s394 + $0x128] sm:$0xff]
          %v506 = vld [vmem:[%s394 + $0x130] sm:$0xff]
          %v507 = vld [vmem:[%s394 + $0x138] sm:$0xff]
          %v508 = vld [vmem:[%s394 + $0x140] sm:$0xff]
          %v509 = vld [vmem:[%s394 + $0x148] sm:$0xff]
          %v510 = vld [vmem:[%s394 + $0x150] sm:$0xff]
          %v511 = vld [vmem:[%s394 + $0x158] sm:$0xff]
          %v512 = vld [vmem:[%s394 + $0x160] sm:$0xff]
          %v513 = vld [vmem:[%s394 + $0x168] sm:$0xff]
          %v514 = vld [vmem:[%s394 + $0x170] sm:$0xff]
          %v515 = vld [vmem:[%s394 + $0x178] sm:$0xff]
          %v516 = vld [vmem:[%s394 + $0x180] sm:$0xff]
          %v517 = vld [vmem:[%s394 + $0x188] sm:$0xff]
          %v518 = vld [vmem:[%s394 + $0x190] sm:$0xff]
          %v519 = vld [vmem:[%s394 + $0x198] sm:$0xff]
          %v520 = vld [vmem:[%s394 + $0x1a0] sm:$0xff]
          %v521 = vld [vmem:[%s394 + $0x1a8] sm:$0xff]
          %v522 = vld [vmem:[%s394 + $0x1b0] sm:$0xff]
          %v523 = vld [vmem:[%s394 + $0x1b8] sm:$0xff]
          %v524 = vld [vmem:[%s394 + $0x1c0] sm:$0xff]
          %v525 = vld [vmem:[%s394 + $0x1c8] sm:$0xff]
          %v526 = vld [vmem:[%s394 + $0x1d0] sm:$0xff]
          %v527 = vld [vmem:[%s394 + $0x1d8] sm:$0xff]
          %v528 = vld [vmem:[%s394 + $0x1e0] sm:$0xff]
          %v529 = vld [vmem:[%s394 + $0x1e8] sm:$0xff]
          %v530 = vld [vmem:[%s394 + $0x1f0] sm:$0xff]
          %v531 = vld [vmem:[%s394 + $0x1f8] sm:$0xff]
          %v532 = vld [vmem:[#allocation10] sm:$0xff]
          %v533 = vld [vmem:[#allocation10 + $0x8] sm:$0xff]
          %v534 = vld [vmem:[#allocation10 + $0x10] sm:$0xff]
          %v535 = vld [vmem:[#allocation10 + $0x18] sm:$0xff]
          %v536 = vld [vmem:[#allocation10 + $0x20] sm:$0xff]
          %v537 = vld [vmem:[#allocation10 + $0x28] sm:$0xff]
          %v538 = vld [vmem:[#allocation10 + $0x30] sm:$0xff]
          %v539 = vld [vmem:[#allocation10 + $0x38] sm:$0xff]
          %v540 = vld [vmem:[#allocation10 + $0x40] sm:$0xff]
          %v541 = vld [vmem:[#allocation10 + $0x48] sm:$0xff]
          %v542 = vld [vmem:[#allocation10 + $0x50] sm:$0xff]
          %v543 = vld [vmem:[#allocation10 + $0x58] sm:$0xff]
          %v544 = vld [vmem:[#allocation10 + $0x60] sm:$0xff]
          %v545 = vld [vmem:[#allocation10 + $0x68] sm:$0xff]
          %v546 = vld [vmem:[#allocation10 + $0x70] sm:$0xff]
          %v547 = vld [vmem:[#allocation10 + $0x78] sm:$0xff]
          %v548 = vld [vmem:[#allocation10 + $0x80] sm:$0xff]
          %v549 = vld [vmem:[#allocation10 + $0x88] sm:$0xff]
          %v550 = vld [vmem:[#allocation10 + $0x90] sm:$0xff]
          %v551 = vld [vmem:[#allocation10 + $0x98] sm:$0xff]
          %v552 = vld [vmem:[#allocation10 + $0xa0] sm:$0xff]
          %v553 = vld [vmem:[#allocation10 + $0xa8] sm:$0xff]
          %v554 = vld [vmem:[#allocation10 + $0xb0] sm:$0xff]
          %v555 = vld [vmem:[#allocation10 + $0xb8] sm:$0xff]
          %v556 = vld [vmem:[#allocation10 + $0xc0] sm:$0xff]
          %v557 = vld [vmem:[#allocation10 + $0xc8] sm:$0xff]
          %v558 = vld [vmem:[#allocation10 + $0xd0] sm:$0xff]
          %v559 = vld [vmem:[#allocation10 + $0xd8] sm:$0xff]
          %v560 = vld [vmem:[#allocation10 + $0xe0] sm:$0xff]
          %v561 = vld [vmem:[#allocation10 + $0xe8] sm:$0xff]
          %v562 = vld [vmem:[#allocation10 + $0xf0] sm:$0xff]
          %v563 = vld [vmem:[#allocation10 + $0xf8] sm:$0xff]
          %v564 = vld [vmem:[#allocation10 + $0x100] sm:$0xff]
          %v565 = vld [vmem:[#allocation10 + $0x108] sm:$0xff]
          %v566 = vld [vmem:[#allocation10 + $0x110] sm:$0xff]
          %v567 = vld [vmem:[#allocation10 + $0x118] sm:$0xff]
          %v568 = vld [vmem:[#allocation10 + $0x120] sm:$0xff]
          %v569 = vld [vmem:[#allocation10 + $0x128] sm:$0xff]
          %v570 = vld [vmem:[#allocation10 + $0x130] sm:$0xff]
          %v571 = vld [vmem:[#allocation10 + $0x138] sm:$0xff]
          %v572 = vld [vmem:[#allocation10 + $0x140] sm:$0xff]
          %v573 = vld [vmem:[#allocation10 + $0x148] sm:$0xff]
          %v574 = vld [vmem:[#allocation10 + $0x150] sm:$0xff]
          %v575 = vld [vmem:[#allocation10 + $0x158] sm:$0xff]
          %v576 = vld [vmem:[#allocation10 + $0x160] sm:$0xff]
          %v577 = vld [vmem:[#allocation10 + $0x168] sm:$0xff]
          %v578 = vld [vmem:[#allocation10 + $0x170] sm:$0xff]
          %v579 = vld [vmem:[#allocation10 + $0x178] sm:$0xff]
          %v580 = vld [vmem:[#allocation10 + $0x180] sm:$0xff]
          %v581 = vld [vmem:[#allocation10 + $0x188] sm:$0xff]
          %v582 = vld [vmem:[#allocation10 + $0x190] sm:$0xff]
          %v583 = vld [vmem:[#allocation10 + $0x198] sm:$0xff]
          %v584 = vld [vmem:[#allocation10 + $0x1a0] sm:$0xff]
          %v585 = vld [vmem:[#allocation10 + $0x1a8] sm:$0xff]
          %v586 = vld [vmem:[#allocation10 + $0x1b0] sm:$0xff]
          %v587 = vld [vmem:[#allocation10 + $0x1b8] sm:$0xff]
          %v588 = vld [vmem:[#allocation10 + $0x1c0] sm:$0xff]
          %v589 = vld [vmem:[#allocation10 + $0x1c8] sm:$0xff]
          %v590 = vld [vmem:[#allocation10 + $0x1d0] sm:$0xff]
          %v591 = vld [vmem:[#allocation10 + $0x1d8] sm:$0xff]
          %v592 = vld [vmem:[#allocation10 + $0x1e0] sm:$0xff]
          %v593 = vld [vmem:[#allocation10 + $0x1e8] sm:$0xff]
          %v594 = vld [vmem:[#allocation10 + $0x1f0] sm:$0xff]
          %v595 = vld [vmem:[#allocation10 + $0x1f8] sm:$0xff]
          %v596 = vld [vmem:[#allocation10 + $0x200] sm:$0xff]
          %v597 = vld [vmem:[#allocation10 + $0x208] sm:$0xff]
          %v598 = vld [vmem:[#allocation10 + $0x210] sm:$0xff]
          %v599 = vld [vmem:[#allocation10 + $0x218] sm:$0xff]
          %v600 = vld [vmem:[#allocation10 + $0x220] sm:$0xff]
          %v601 = vld [vmem:[#allocation10 + $0x228] sm:$0xff]
          %v602 = vld [vmem:[#allocation10 + $0x230] sm:$0xff]
          %v603 = vld [vmem:[#allocation10 + $0x238] sm:$0xff]
          %v604 = vld [vmem:[#allocation10 + $0x240] sm:$0xff]
          %v605 = vld [vmem:[#allocation10 + $0x248] sm:$0xff]
          %v606 = vld [vmem:[#allocation10 + $0x250] sm:$0xff]
          %v607 = vld [vmem:[#allocation10 + $0x258] sm:$0xff]
          %v608 = vld [vmem:[#allocation10 + $0x260] sm:$0xff]
          %v609 = vld [vmem:[#allocation10 + $0x268] sm:$0xff]
          %v610 = vld [vmem:[#allocation10 + $0x270] sm:$0xff]
          %v611 = vld [vmem:[#allocation10 + $0x278] sm:$0xff]
          %v612 = vld [vmem:[#allocation10 + $0x280] sm:$0xff]
          %v613 = vld [vmem:[#allocation10 + $0x288] sm:$0xff]
          %v614 = vld [vmem:[#allocation10 + $0x290] sm:$0xff]
          %v615 = vld [vmem:[#allocation10 + $0x298] sm:$0xff]
          %v616 = vld [vmem:[#allocation10 + $0x2a0] sm:$0xff]
          %v617 = vld [vmem:[#allocation10 + $0x2a8] sm:$0xff]
          %v618 = vld [vmem:[#allocation10 + $0x2b0] sm:$0xff]
          %v619 = vld [vmem:[#allocation10 + $0x2b8] sm:$0xff]
          %v620 = vld [vmem:[#allocation10 + $0x2c0] sm:$0xff]
          %v621 = vld [vmem:[#allocation10 + $0x2c8] sm:$0xff]
          %v622 = vld [vmem:[#allocation10 + $0x2d0] sm:$0xff]
          %v623 = vld [vmem:[#allocation10 + $0x2d8] sm:$0xff]
          %v624 = vld [vmem:[#allocation10 + $0x2e0] sm:$0xff]
          %v625 = vld [vmem:[#allocation10 + $0x2e8] sm:$0xff]
          %v626 = vld [vmem:[#allocation10 + $0x2f0] sm:$0xff]
          %v627 = vld [vmem:[#allocation10 + $0x2f8] sm:$0xff]
          %v628 = vld [vmem:[#allocation10 + $0x300] sm:$0xff]
          %v629 = vld [vmem:[#allocation10 + $0x308] sm:$0xff]
          %v630 = vld [vmem:[#allocation10 + $0x310] sm:$0xff]
          %v631 = vld [vmem:[#allocation10 + $0x318] sm:$0xff]
          %v632 = vld [vmem:[#allocation10 + $0x320] sm:$0xff]
          %v633 = vld [vmem:[#allocation10 + $0x328] sm:$0xff]
          %v634 = vld [vmem:[#allocation10 + $0x330] sm:$0xff]
          %v635 = vld [vmem:[#allocation10 + $0x338] sm:$0xff]
          %v636 = vld [vmem:[#allocation10 + $0x340] sm:$0xff]
          %v637 = vld [vmem:[#allocation10 + $0x348] sm:$0xff]
          %v638 = vld [vmem:[#allocation10 + $0x350] sm:$0xff]
          %v639 = vld [vmem:[#allocation10 + $0x358] sm:$0xff]
          %v640 = vld [vmem:[#allocation10 + $0x360] sm:$0xff]
          %v641 = vld [vmem:[#allocation10 + $0x368] sm:$0xff]
          %v642 = vld [vmem:[#allocation10 + $0x370] sm:$0xff]
          %v643 = vld [vmem:[#allocation10 + $0x378] sm:$0xff]
          %v644 = vld [vmem:[#allocation10 + $0x380] sm:$0xff]
          %v645 = vld [vmem:[#allocation10 + $0x388] sm:$0xff]
          %v646 = vld [vmem:[#allocation10 + $0x390] sm:$0xff]
          %v647 = vld [vmem:[#allocation10 + $0x398] sm:$0xff]
          %v648 = vld [vmem:[#allocation10 + $0x3a0] sm:$0xff]
          %v649 = vld [vmem:[#allocation10 + $0x3a8] sm:$0xff]
          %v650 = vld [vmem:[#allocation10 + $0x3b0] sm:$0xff]
          %v651 = vld [vmem:[#allocation10 + $0x3b8] sm:$0xff]
          %v652 = vld [vmem:[#allocation10 + $0x3c0] sm:$0xff]
          %v653 = vld [vmem:[#allocation10 + $0x3c8] sm:$0xff]
          %v654 = vld [vmem:[#allocation10 + $0x3d0] sm:$0xff]
          %v655 = vld [vmem:[#allocation10 + $0x3d8] sm:$0xff]
          %v656 = vld [vmem:[#allocation10 + $0x3e0] sm:$0xff]
          %v657 = vld [vmem:[#allocation10 + $0x3e8] sm:$0xff]
          %v658 = vld [vmem:[#allocation10 + $0x3f0] sm:$0xff]
          %v659 = vld [vmem:[#allocation10 + $0x3f8] sm:$0xff]
          %v660 = vld [vmem:[%s459] sm:$0xf]
          %v662 = vlaneseq
          %v663 = vshrl.u32 %v662, 7
          %v664 = vsub.s32 0, %v663
          %v665 = vrot.slane %v660, %v664
          %v666 = vlaneseq
          %v667 = vshrl.u32 %v666, 7
          %v668 = vsub.s32 1, %v667
          %v669 = vrot.slane %v660, %v668
          %v670 = vlaneseq
          %v671 = vshrl.u32 %v670, 7
          %v672 = vsub.s32 2, %v671
          %v673 = vrot.slane %v660, %v672
          %v674 = vlaneseq
          %v675 = vshrl.u32 %v674, 7
          %v676 = vsub.s32 3, %v675
          %v677 = vrot.slane %v660, %v676
          %682 = vmatprep.subr.mxu0 %v593
          %683 = vmatpush1.msra.mxu0 %v592
          %684 = vmatprep.subr.mxu0 %v589
          %685 = vmatpush1.msra.mxu0 %v588
          %686 = vmatprep.subr.mxu0 %v585
          %687 = vmatpush1.msra.mxu0 %v584
          %688 = vmatprep.subr.mxu0 %v581
          %689 = vmatpush1.msra.mxu0 %v580
          %690 = vmatprep.subr.mxu0 %v577
          %691 = vmatpush1.msra.mxu0 %v576
          %692 = vmatprep.subr.mxu0 %v573
          %693 = vmatpush1.msra.mxu0 %v572
          %694 = vmatprep.subr.mxu0 %v569
          %695 = vmatpush1.msra.mxu0 %v568
          %696 = vmatprep.subr.mxu0 %v565
          %697 = vmatpush1.msra.mxu0 %v564
          %698 = vmatprep.subr.mxu0 %v561
          %699 = vmatpush1.msra.mxu0 %v560
          %700 = vmatprep.subr.mxu0 %v557
          %701 = vmatpush1.msra.mxu0 %v556
          %702 = vmatprep.subr.mxu0 %v553
          %703 = vmatpush1.msra.mxu0 %v552
          %704 = vmatprep.subr.mxu0 %v549
          %705 = vmatpush1.msra.mxu0 %v548
          %706 = vmatprep.subr.mxu0 %v545
          %707 = vmatpush1.msra.mxu0 %v544
          %708 = vmatprep.subr.mxu0 %v541
          %709 = vmatpush1.msra.mxu0 %v540
          %710 = vmatprep.subr.mxu0 %v537
          %711 = vmatpush1.msra.mxu0 %v536
          %712 = vmatprep.subr.mxu0 %v533
          %713 = vmatpush1.msra.mxu0 %v532
          %714 = vmatprep.subr.mxu0 %v657
          %715 = vmatpush2.msra.mxu0 %v656
          %716 = vmatprep.subr.mxu0 %v653
          %717 = vmatpush2.msra.mxu0 %v652
          %718 = vmatprep.subr.mxu0 %v649
          %719 = vmatpush2.msra.mxu0 %v648
          %720 = vmatprep.subr.mxu0 %v645
          %721 = vmatpush2.msra.mxu0 %v644
          %722 = vmatprep.subr.mxu0 %v641
          %723 = vmatpush2.msra.mxu0 %v640
          %724 = vmatprep.subr.mxu0 %v637
          %725 = vmatpush2.msra.mxu0 %v636
          %726 = vmatprep.subr.mxu0 %v633
          %727 = vmatpush2.msra.mxu0 %v632
          %728 = vmatprep.subr.mxu0 %v629
          %729 = vmatpush2.msra.mxu0 %v628
          %730 = vmatprep.subr.mxu0 %v625
          %731 = vmatpush2.msra.mxu0 %v624
          %732 = vmatprep.subr.mxu0 %v621
          %733 = vmatpush2.msra.mxu0 %v620
          %734 = vmatprep.subr.mxu0 %v617
          %735 = vmatpush2.msra.mxu0 %v616
          %736 = vmatprep.subr.mxu0 %v613
          %737 = vmatpush2.msra.mxu0 %v612
          %738 = vmatprep.subr.mxu0 %v609
          %739 = vmatpush2.msra.mxu0 %v608
          %740 = vmatprep.subr.mxu0 %v605
          %741 = vmatpush2.msra.mxu0 %v604
          %742 = vmatprep.subr.mxu0 %v601
          %743 = vmatpush2.msra.mxu0 %v600
          %744 = vmatprep.subr.mxu0 %v597
          %745 = vmatpush2.msra.mxu0 %v596
          %746 = vmatprep.mubr.f32.mxu0 %v469
          %747 = vmatmul.mubr.f32.gmra.mxu0 %v468
          %v748 = vpop.f32.mrf.mxu0
          %v749 = vadd.f32 %v665, %v748
          %v750 = vpop.f32.mrf.mxu0
          %v751 = vadd.f32 %v669, %v750
          %752 = vmatprep.mubr.f32.mxu0 %v471
          %753 = vmatmul.mubr.f32.gmra.mxu0 %v470
          %v754 = vpop.f32.mrf.mxu0
          %v755 = vadd.f32 %v665, %v754
          %v756 = vpop.f32.mrf.mxu0
          %v757 = vadd.f32 %v669, %v756
          %758 = vmatprep.mubr.f32.mxu0 %v473
          %759 = vmatmul.mubr.f32.gmra.mxu0 %v472
          %v760 = vpop.f32.mrf.mxu0
          %v761 = vadd.f32 %v665, %v760
          %v762 = vpop.f32.mrf.mxu0
          %v763 = vadd.f32 %v669, %v762
          %764 = vmatprep.mubr.f32.mxu0 %v475
          %765 = vmatmul.mubr.f32.gmra.mxu0 %v474
          %v766 = vpop.f32.mrf.mxu0
          %v767 = vadd.f32 %v665, %v766
          %v768 = vpop.f32.mrf.mxu0
          %v769 = vadd.f32 %v669, %v768
          %770 = vmatprep.mubr.f32.mxu0 %v477
          %771 = vmatmul.mubr.f32.gmra.mxu0 %v476
          %v772 = vpop.f32.mrf.mxu0
          %v773 = vadd.f32 %v665, %v772
          %v774 = vpop.f32.mrf.mxu0
          %v775 = vadd.f32 %v669, %v774
          %776 = vmatprep.mubr.f32.mxu0 %v479
          %777 = vmatmul.mubr.f32.gmra.mxu0 %v478
          %v778 = vpop.f32.mrf.mxu0
          %v779 = vadd.f32 %v665, %v778
          %v780 = vpop.f32.mrf.mxu0
          %v781 = vadd.f32 %v669, %v780
          %782 = vmatprep.mubr.f32.mxu0 %v481
          %783 = vmatmul.mubr.f32.gmra.mxu0 %v480
          %v784 = vpop.f32.mrf.mxu0
          %v785 = vadd.f32 %v665, %v784
          %v786 = vpop.f32.mrf.mxu0
          %v787 = vadd.f32 %v669, %v786
          %788 = vmatprep.mubr.f32.mxu0 %v483
          %789 = vmatmul.mubr.f32.gmra.mxu0 %v482
          %v790 = vpop.f32.mrf.mxu0
          %v791 = vadd.f32 %v665, %v790
          %v792 = vpop.f32.mrf.mxu0
          %v793 = vadd.f32 %v669, %v792
          %794 = vmatprep.mubr.f32.mxu0 %v485
          %795 = vmatmul.mubr.f32.gmra.mxu0 %v484
          %v796 = vpop.f32.mrf.mxu0
          %v797 = vadd.f32 %v665, %v796
          %v798 = vpop.f32.mrf.mxu0
          %v799 = vadd.f32 %v669, %v798
          %800 = vmatprep.mubr.f32.mxu0 %v487
          %801 = vmatmul.mubr.f32.gmra.mxu0 %v486
          %v802 = vpop.f32.mrf.mxu0
          %v803 = vadd.f32 %v665, %v802
          %v804 = vpop.f32.mrf.mxu0
          %v805 = vadd.f32 %v669, %v804
          %806 = vmatprep.mubr.f32.mxu0 %v489
          %807 = vmatmul.mubr.f32.gmra.mxu0 %v488
          %v808 = vpop.f32.mrf.mxu0
          %v809 = vadd.f32 %v665, %v808
          %v810 = vpop.f32.mrf.mxu0
          %v811 = vadd.f32 %v669, %v810
          %812 = vmatprep.mubr.f32.mxu0 %v491
          %813 = vmatmul.mubr.f32.gmra.mxu0 %v490
          %v814 = vpop.f32.mrf.mxu0
          %v815 = vadd.f32 %v665, %v814
          %v816 = vpop.f32.mrf.mxu0
          %v817 = vadd.f32 %v669, %v816
          %818 = vmatprep.mubr.f32.mxu0 %v493
          %819 = vmatmul.mubr.f32.gmra.mxu0 %v492
          %v820 = vpop.f32.mrf.mxu0
          %v821 = vadd.f32 %v665, %v820
          %v822 = vpop.f32.mrf.mxu0
          %v823 = vadd.f32 %v669, %v822
          %824 = vmatprep.mubr.f32.mxu0 %v495
          %825 = vmatmul.mubr.f32.gmra.mxu0 %v494
          %v826 = vpop.f32.mrf.mxu0
          %v827 = vadd.f32 %v665, %v826
          %v828 = vpop.f32.mrf.mxu0
          %v829 = vadd.f32 %v669, %v828
          %830 = vmatprep.mubr.f32.mxu0 %v497
          %831 = vmatmul.mubr.f32.gmra.mxu0 %v496
          %v832 = vpop.f32.mrf.mxu0
          %v833 = vadd.f32 %v665, %v832
          %v834 = vpop.f32.mrf.mxu0
          %v835 = vadd.f32 %v669, %v834
          %836 = vmatprep.mubr.f32.mxu0 %v499
          %837 = vmatmul.mubr.f32.gmra.mxu0 %v498
          %v838 = vpop.f32.mrf.mxu0
          %v839 = vadd.f32 %v665, %v838
          %v840 = vpop.f32.mrf.mxu0
          %v841 = vadd.f32 %v669, %v840
          %842 = vmatprep.mubr.f32.mxu0 %v501
          %843 = vmatmul.mubr.f32.gmra.mxu0 %v500
          %v844 = vpop.f32.mrf.mxu0
          %v845 = vadd.f32 %v665, %v844
          %v846 = vpop.f32.mrf.mxu0
          %v847 = vadd.f32 %v669, %v846
          %848 = vmatprep.mubr.f32.mxu0 %v503
          %849 = vmatmul.mubr.f32.gmra.mxu0 %v502
          %v850 = vpop.f32.mrf.mxu0
          %v851 = vadd.f32 %v665, %v850
          %v852 = vpop.f32.mrf.mxu0
          %v853 = vadd.f32 %v669, %v852
          %854 = vmatprep.mubr.f32.mxu0 %v505
          %855 = vmatmul.mubr.f32.gmra.mxu0 %v504
          %v856 = vpop.f32.mrf.mxu0
          %v857 = vadd.f32 %v665, %v856
          %v858 = vpop.f32.mrf.mxu0
          %v859 = vadd.f32 %v669, %v858
          %860 = vmatprep.mubr.f32.mxu0 %v507
          %861 = vmatmul.mubr.f32.gmra.mxu0 %v506
          %v862 = vpop.f32.mrf.mxu0
          %v863 = vadd.f32 %v665, %v862
          %v864 = vpop.f32.mrf.mxu0
          %v865 = vadd.f32 %v669, %v864
          %866 = vmatprep.mubr.f32.mxu0 %v509
          %867 = vmatmul.mubr.f32.gmra.mxu0 %v508
          %v868 = vpop.f32.mrf.mxu0
          %v869 = vadd.f32 %v665, %v868
          %v870 = vpop.f32.mrf.mxu0
          %v871 = vadd.f32 %v669, %v870
          %872 = vmatprep.mubr.f32.mxu0 %v511
          %873 = vmatmul.mubr.f32.gmra.mxu0 %v510
          %v874 = vpop.f32.mrf.mxu0
          %v875 = vadd.f32 %v665, %v874
          %v876 = vpop.f32.mrf.mxu0
          %v877 = vadd.f32 %v669, %v876
          %878 = vmatprep.mubr.f32.mxu0 %v513
          %879 = vmatmul.mubr.f32.gmra.mxu0 %v512
          %v880 = vpop.f32.mrf.mxu0
          %v881 = vadd.f32 %v665, %v880
          %v882 = vpop.f32.mrf.mxu0
          %v883 = vadd.f32 %v669, %v882
          %884 = vmatprep.mubr.f32.mxu0 %v515
          %885 = vmatmul.mubr.f32.gmra.mxu0 %v514
          %v886 = vpop.f32.mrf.mxu0
          %v887 = vadd.f32 %v665, %v886
          %v888 = vpop.f32.mrf.mxu0
          %v889 = vadd.f32 %v669, %v888
          %890 = vmatprep.mubr.f32.mxu0 %v517
          %891 = vmatmul.mubr.f32.gmra.mxu0 %v516
          %v892 = vpop.f32.mrf.mxu0
          %v893 = vadd.f32 %v665, %v892
          %v894 = vpop.f32.mrf.mxu0
          %v895 = vadd.f32 %v669, %v894
          %896 = vmatprep.mubr.f32.mxu0 %v519
          %897 = vmatmul.mubr.f32.gmra.mxu0 %v518
          %v898 = vpop.f32.mrf.mxu0
          %v899 = vadd.f32 %v665, %v898
          %v900 = vpop.f32.mrf.mxu0
          %v901 = vadd.f32 %v669, %v900
          %902 = vmatprep.mubr.f32.mxu0 %v521
          %903 = vmatmul.mubr.f32.gmra.mxu0 %v520
          %v904 = vpop.f32.mrf.mxu0
          %v905 = vadd.f32 %v665, %v904
          %v906 = vpop.f32.mrf.mxu0
          %v907 = vadd.f32 %v669, %v906
          %908 = vmatprep.mubr.f32.mxu0 %v523
          %909 = vmatmul.mubr.f32.gmra.mxu0 %v522
          %v910 = vpop.f32.mrf.mxu0
          %v911 = vadd.f32 %v665, %v910
          %v912 = vpop.f32.mrf.mxu0
          %v913 = vadd.f32 %v669, %v912
          %914 = vmatprep.mubr.f32.mxu0 %v525
          %915 = vmatmul.mubr.f32.gmra.mxu0 %v524
          %v916 = vpop.f32.mrf.mxu0
          %v917 = vadd.f32 %v665, %v916
          %v918 = vpop.f32.mrf.mxu0
          %v919 = vadd.f32 %v669, %v918
          %920 = vmatprep.mubr.f32.mxu0 %v527
          %921 = vmatmul.mubr.f32.gmra.mxu0 %v526
          %v922 = vpop.f32.mrf.mxu0
          %v923 = vadd.f32 %v665, %v922
          %v924 = vpop.f32.mrf.mxu0
          %v925 = vadd.f32 %v669, %v924
          %926 = vmatprep.mubr.f32.mxu0 %v529
          %927 = vmatmul.mubr.f32.gmra.mxu0 %v528
          %v928 = vpop.f32.mrf.mxu0
          %v929 = vadd.f32 %v665, %v928
          %v930 = vpop.f32.mrf.mxu0
          %v931 = vadd.f32 %v669, %v930
          %932 = vmatprep.mubr.f32.mxu0 %v531
          %933 = vmatmul.mubr.f32.gmra.mxu0 %v530
          %v934 = vpop.f32.mrf.mxu0
          %v935 = vadd.f32 %v665, %v934
          %v936 = vpop.f32.mrf.mxu0
          %v937 = vadd.f32 %v669, %v936
          %938 = vdwg.mxu0
          %939 = vmatprep.subr.mxu0 %v595
          %940 = vmatpush1.msra.mxu0 %v594
          %941 = vmatprep.subr.mxu0 %v591
          %942 = vmatpush1.msra.mxu0 %v590
          %943 = vmatprep.subr.mxu0 %v587
          %944 = vmatpush1.msra.mxu0 %v586
          %945 = vmatprep.subr.mxu0 %v583
          %946 = vmatpush1.msra.mxu0 %v582
          %947 = vmatprep.subr.mxu0 %v579
          %948 = vmatpush1.msra.mxu0 %v578
          %949 = vmatprep.subr.mxu0 %v575
          %950 = vmatpush1.msra.mxu0 %v574
          %951 = vmatprep.subr.mxu0 %v571
          %952 = vmatpush1.msra.mxu0 %v570
          %953 = vmatprep.subr.mxu0 %v567
          %954 = vmatpush1.msra.mxu0 %v566
          %955 = vmatprep.subr.mxu0 %v563
          %956 = vmatpush1.msra.mxu0 %v562
          %957 = vmatprep.subr.mxu0 %v559
          %958 = vmatpush1.msra.mxu0 %v558
          %959 = vmatprep.subr.mxu0 %v555
          %960 = vmatpush1.msra.mxu0 %v554
          %961 = vmatprep.subr.mxu0 %v551
          %962 = vmatpush1.msra.mxu0 %v550
          %963 = vmatprep.subr.mxu0 %v547
          %964 = vmatpush1.msra.mxu0 %v546
          %965 = vmatprep.subr.mxu0 %v543
          %966 = vmatpush1.msra.mxu0 %v542
          %967 = vmatprep.subr.mxu0 %v539
          %968 = vmatpush1.msra.mxu0 %v538
          %969 = vmatprep.subr.mxu0 %v535
          %970 = vmatpush1.msra.mxu0 %v534
          %971 = vmatprep.subr.mxu0 %v659
          %972 = vmatpush2.msra.mxu0 %v658
          %973 = vmatprep.subr.mxu0 %v655
          %974 = vmatpush2.msra.mxu0 %v654
          %975 = vmatprep.subr.mxu0 %v651
          %976 = vmatpush2.msra.mxu0 %v650
          %977 = vmatprep.subr.mxu0 %v647
          %978 = vmatpush2.msra.mxu0 %v646
          %979 = vmatprep.subr.mxu0 %v643
          %980 = vmatpush2.msra.mxu0 %v642
          %981 = vmatprep.subr.mxu0 %v639
          %982 = vmatpush2.msra.mxu0 %v638
          %983 = vmatprep.subr.mxu0 %v635
          %984 = vmatpush2.msra.mxu0 %v634
          %985 = vmatprep.subr.mxu0 %v631
          %986 = vmatpush2.msra.mxu0 %v630
          %987 = vmatprep.subr.mxu0 %v627
          %988 = vmatpush2.msra.mxu0 %v626
          %989 = vmatprep.subr.mxu0 %v623
          %990 = vmatpush2.msra.mxu0 %v622
          %991 = vmatprep.subr.mxu0 %v619
          %992 = vmatpush2.msra.mxu0 %v618
          %993 = vmatprep.subr.mxu0 %v615
          %994 = vmatpush2.msra.mxu0 %v614
          %995 = vmatprep.subr.mxu0 %v611
          %996 = vmatpush2.msra.mxu0 %v610
          %997 = vmatprep.subr.mxu0 %v607
          %998 = vmatpush2.msra.mxu0 %v606
          %999 = vmatprep.subr.mxu0 %v603
          %1000 = vmatpush2.msra.mxu0 %v602
          %1001 = vmatprep.subr.mxu0 %v599
          %1002 = vmatpush2.msra.mxu0 %v598
          %1003 = vmatprep.mubr.f32.mxu0 %v469
          %1004 = vmatmul.mubr.f32.gmra.mxu0 %v468
          %v1005 = vpop.f32.mrf.mxu0
          %v1006 = vadd.f32 %v673, %v1005
          %v1007 = vpop.f32.mrf.mxu0
          %v1008 = vadd.f32 %v677, %v1007
          %1009 = vmatprep.mubr.f32.mxu0 %v471
          %1010 = vmatmul.mubr.f32.gmra.mxu0 %v470
          %v1011 = vpop.f32.mrf.mxu0
          %v1012 = vadd.f32 %v673, %v1011
          %v1013 = vpop.f32.mrf.mxu0
          %v1014 = vadd.f32 %v677, %v1013
          %1015 = vmatprep.mubr.f32.mxu0 %v473
          %1016 = vmatmul.mubr.f32.gmra.mxu0 %v472
          %v1017 = vpop.f32.mrf.mxu0
          %v1018 = vadd.f32 %v673, %v1017
          %v1019 = vpop.f32.mrf.mxu0
          %v1020 = vadd.f32 %v677, %v1019
          %1021 = vmatprep.mubr.f32.mxu0 %v475
          %1022 = vmatmul.mubr.f32.gmra.mxu0 %v474
          %v1023 = vpop.f32.mrf.mxu0
          %v1024 = vadd.f32 %v673, %v1023
          %v1025 = vpop.f32.mrf.mxu0
          %v1026 = vadd.f32 %v677, %v1025
          %1027 = vmatprep.mubr.f32.mxu0 %v477
          %1028 = vmatmul.mubr.f32.gmra.mxu0 %v476
          %v1029 = vpop.f32.mrf.mxu0
          %v1030 = vadd.f32 %v673, %v1029
          %v1031 = vpop.f32.mrf.mxu0
          %v1032 = vadd.f32 %v677, %v1031
          %1033 = vmatprep.mubr.f32.mxu0 %v479
          %1034 = vmatmul.mubr.f32.gmra.mxu0 %v478
          %v1035 = vpop.f32.mrf.mxu0
          %v1036 = vadd.f32 %v673, %v1035
          %v1037 = vpop.f32.mrf.mxu0
          %v1038 = vadd.f32 %v677, %v1037
          %1039 = vmatprep.mubr.f32.mxu0 %v481
          %1040 = vmatmul.mubr.f32.gmra.mxu0 %v480
          %v1041 = vpop.f32.mrf.mxu0
          %v1042 = vadd.f32 %v673, %v1041
          %v1043 = vpop.f32.mrf.mxu0
          %v1044 = vadd.f32 %v677, %v1043
          %1045 = vmatprep.mubr.f32.mxu0 %v483
          %1046 = vmatmul.mubr.f32.gmra.mxu0 %v482
          %v1047 = vpop.f32.mrf.mxu0
          %v1048 = vadd.f32 %v673, %v1047
          %v1049 = vpop.f32.mrf.mxu0
          %v1050 = vadd.f32 %v677, %v1049
          %1051 = vmatprep.mubr.f32.mxu0 %v485
          %1052 = vmatmul.mubr.f32.gmra.mxu0 %v484
          %v1053 = vpop.f32.mrf.mxu0
          %v1054 = vadd.f32 %v673, %v1053
          %v1055 = vpop.f32.mrf.mxu0
          %v1056 = vadd.f32 %v677, %v1055
          %1057 = vmatprep.mubr.f32.mxu0 %v487
          %1058 = vmatmul.mubr.f32.gmra.mxu0 %v486
          %v1059 = vpop.f32.mrf.mxu0
          %v1060 = vadd.f32 %v673, %v1059
          %v1061 = vpop.f32.mrf.mxu0
          %v1062 = vadd.f32 %v677, %v1061
          %1063 = vmatprep.mubr.f32.mxu0 %v489
          %1064 = vmatmul.mubr.f32.gmra.mxu0 %v488
          %v1065 = vpop.f32.mrf.mxu0
          %v1066 = vadd.f32 %v673, %v1065
          %v1067 = vpop.f32.mrf.mxu0
          %v1068 = vadd.f32 %v677, %v1067
          %1069 = vmatprep.mubr.f32.mxu0 %v491
          %1070 = vmatmul.mubr.f32.gmra.mxu0 %v490
          %v1071 = vpop.f32.mrf.mxu0
          %v1072 = vadd.f32 %v673, %v1071
          %v1073 = vpop.f32.mrf.mxu0
          %v1074 = vadd.f32 %v677, %v1073
          %1075 = vmatprep.mubr.f32.mxu0 %v493
          %1076 = vmatmul.mubr.f32.gmra.mxu0 %v492
          %v1077 = vpop.f32.mrf.mxu0
          %v1078 = vadd.f32 %v673, %v1077
          %v1079 = vpop.f32.mrf.mxu0
          %v1080 = vadd.f32 %v677, %v1079
          %1081 = vmatprep.mubr.f32.mxu0 %v495
          %1082 = vmatmul.mubr.f32.gmra.mxu0 %v494
          %v1083 = vpop.f32.mrf.mxu0
          %v1084 = vadd.f32 %v673, %v1083
          %v1085 = vpop.f32.mrf.mxu0
          %v1086 = vadd.f32 %v677, %v1085
          %1087 = vmatprep.mubr.f32.mxu0 %v497
          %1088 = vmatmul.mubr.f32.gmra.mxu0 %v496
          %v1089 = vpop.f32.mrf.mxu0
          %v1090 = vadd.f32 %v673, %v1089
          %v1091 = vpop.f32.mrf.mxu0
          %v1092 = vadd.f32 %v677, %v1091
          %1093 = vmatprep.mubr.f32.mxu0 %v499
          %1094 = vmatmul.mubr.f32.gmra.mxu0 %v498
          %v1095 = vpop.f32.mrf.mxu0
          %v1096 = vadd.f32 %v673, %v1095
          %v1097 = vpop.f32.mrf.mxu0
          %v1098 = vadd.f32 %v677, %v1097
          %1099 = vmatprep.mubr.f32.mxu0 %v501
          %1100 = vmatmul.mubr.f32.gmra.mxu0 %v500
          %v1101 = vpop.f32.mrf.mxu0
          %v1102 = vadd.f32 %v673, %v1101
          %v1103 = vpop.f32.mrf.mxu0
          %v1104 = vadd.f32 %v677, %v1103
          %1105 = vmatprep.mubr.f32.mxu0 %v503
          %1106 = vmatmul.mubr.f32.gmra.mxu0 %v502
          %v1107 = vpop.f32.mrf.mxu0
          %v1108 = vadd.f32 %v673, %v1107
          %v1109 = vpop.f32.mrf.mxu0
          %v1110 = vadd.f32 %v677, %v1109
          %1111 = vmatprep.mubr.f32.mxu0 %v505
          %1112 = vmatmul.mubr.f32.gmra.mxu0 %v504
          %v1113 = vpop.f32.mrf.mxu0
          %v1114 = vadd.f32 %v673, %v1113
          %v1115 = vpop.f32.mrf.mxu0
          %v1116 = vadd.f32 %v677, %v1115
          %1117 = vmatprep.mubr.f32.mxu0 %v507
          %1118 = vmatmul.mubr.f32.gmra.mxu0 %v506
          %v1119 = vpop.f32.mrf.mxu0
          %v1120 = vadd.f32 %v673, %v1119
          %v1121 = vpop.f32.mrf.mxu0
          %v1122 = vadd.f32 %v677, %v1121
          %1123 = vmatprep.mubr.f32.mxu0 %v509
          %1124 = vmatmul.mubr.f32.gmra.mxu0 %v508
          %v1125 = vpop.f32.mrf.mxu0
          %v1126 = vadd.f32 %v673, %v1125
          %v1127 = vpop.f32.mrf.mxu0
          %v1128 = vadd.f32 %v677, %v1127
          %1129 = vmatprep.mubr.f32.mxu0 %v511
          %1130 = vmatmul.mubr.f32.gmra.mxu0 %v510
          %v1131 = vpop.f32.mrf.mxu0
          %v1132 = vadd.f32 %v673, %v1131
          %v1133 = vpop.f32.mrf.mxu0
          %v1134 = vadd.f32 %v677, %v1133
          %1135 = vmatprep.mubr.f32.mxu0 %v513
          %1136 = vmatmul.mubr.f32.gmra.mxu0 %v512
          %v1137 = vpop.f32.mrf.mxu0
          %v1138 = vadd.f32 %v673, %v1137
          %v1139 = vpop.f32.mrf.mxu0
          %v1140 = vadd.f32 %v677, %v1139
          %1141 = vmatprep.mubr.f32.mxu0 %v515
          %1142 = vmatmul.mubr.f32.gmra.mxu0 %v514
          %v1143 = vpop.f32.mrf.mxu0
          %v1144 = vadd.f32 %v673, %v1143
          %v1145 = vpop.f32.mrf.mxu0
          %v1146 = vadd.f32 %v677, %v1145
          %1147 = vmatprep.mubr.f32.mxu0 %v517
          %1148 = vmatmul.mubr.f32.gmra.mxu0 %v516
          %v1149 = vpop.f32.mrf.mxu0
          %v1150 = vadd.f32 %v673, %v1149
          %v1151 = vpop.f32.mrf.mxu0
          %v1152 = vadd.f32 %v677, %v1151
          %1153 = vmatprep.mubr.f32.mxu0 %v519
          %1154 = vmatmul.mubr.f32.gmra.mxu0 %v518
          %v1155 = vpop.f32.mrf.mxu0
          %v1156 = vadd.f32 %v673, %v1155
          %v1157 = vpop.f32.mrf.mxu0
          %v1158 = vadd.f32 %v677, %v1157
          %1159 = vmatprep.mubr.f32.mxu0 %v521
          %1160 = vmatmul.mubr.f32.gmra.mxu0 %v520
          %v1161 = vpop.f32.mrf.mxu0
          %v1162 = vadd.f32 %v673, %v1161
          %v1163 = vpop.f32.mrf.mxu0
          %v1164 = vadd.f32 %v677, %v1163
          %1165 = vmatprep.mubr.f32.mxu0 %v523
          %1166 = vmatmul.mubr.f32.gmra.mxu0 %v522
          %v1167 = vpop.f32.mrf.mxu0
          %v1168 = vadd.f32 %v673, %v1167
          %v1169 = vpop.f32.mrf.mxu0
          %v1170 = vadd.f32 %v677, %v1169
          %1171 = vmatprep.mubr.f32.mxu0 %v525
          %1172 = vmatmul.mubr.f32.gmra.mxu0 %v524
          %v1173 = vpop.f32.mrf.mxu0
          %v1174 = vadd.f32 %v673, %v1173
          %v1175 = vpop.f32.mrf.mxu0
          %v1176 = vadd.f32 %v677, %v1175
          %1177 = vmatprep.mubr.f32.mxu0 %v527
          %1178 = vmatmul.mubr.f32.gmra.mxu0 %v526
          %v1179 = vpop.f32.mrf.mxu0
          %v1180 = vadd.f32 %v673, %v1179
          %v1181 = vpop.f32.mrf.mxu0
          %v1182 = vadd.f32 %v677, %v1181
          %1183 = vmatprep.mubr.f32.mxu0 %v529
          %1184 = vmatmul.mubr.f32.gmra.mxu0 %v528
          %v1185 = vpop.f32.mrf.mxu0
          %v1186 = vadd.f32 %v673, %v1185
          %v1187 = vpop.f32.mrf.mxu0
          %v1188 = vadd.f32 %v677, %v1187
          %1189 = vmatprep.mubr.f32.mxu0 %v531
          %1190 = vmatmul.mubr.f32.gmra.mxu0 %v530
          %v1191 = vpop.f32.mrf.mxu0
          %v1192 = vadd.f32 %v673, %v1191
          %v1193 = vpop.f32.mrf.mxu0
          %v1194 = vadd.f32 %v677, %v1193
          %1195 = vdwg.mxu0
          %1196 = vst [vmem:[#allocation2] sm:$0xff] %v749
          %1197 = vst [vmem:[#allocation2 + $0x8] sm:$0xff] %v751
          %1198 = vst [vmem:[#allocation2 + $0x10] sm:$0xff] %v755
          %1199 = vst [vmem:[#allocation2 + $0x18] sm:$0xff] %v757
          %1200 = vst [vmem:[#allocation2 + $0x20] sm:$0xff] %v761
          %1201 = vst [vmem:[#allocation2 + $0x28] sm:$0xff] %v763
          %1202 = vst [vmem:[#allocation2 + $0x30] sm:$0xff] %v767
          %1203 = vst [vmem:[#allocation2 + $0x38] sm:$0xff] %v769
          %1204 = vst [vmem:[#allocation2 + $0x40] sm:$0xff] %v773
          %1205 = vst [vmem:[#allocation2 + $0x48] sm:$0xff] %v775
          %1206 = vst [vmem:[#allocation2 + $0x50] sm:$0xff] %v779
          %1207 = vst [vmem:[#allocation2 + $0x58] sm:$0xff] %v781
          %1208 = vst [vmem:[#allocation2 + $0x60] sm:$0xff] %v785
          %1209 = vst [vmem:[#allocation2 + $0x68] sm:$0xff] %v787
          %1210 = vst [vmem:[#allocation2 + $0x70] sm:$0xff] %v791
          %1211 = vst [vmem:[#allocation2 + $0x78] sm:$0xff] %v793
          %1212 = vst [vmem:[#allocation2 + $0x80] sm:$0xff] %v797
          %1213 = vst [vmem:[#allocation2 + $0x88] sm:$0xff] %v799
          %1214 = vst [vmem:[#allocation2 + $0x90] sm:$0xff] %v803
          %1215 = vst [vmem:[#allocation2 + $0x98] sm:$0xff] %v805
          %1216 = vst [vmem:[#allocation2 + $0xa0] sm:$0xff] %v809
          %1217 = vst [vmem:[#allocation2 + $0xa8] sm:$0xff] %v811
          %1218 = vst [vmem:[#allocation2 + $0xb0] sm:$0xff] %v815
          %1219 = vst [vmem:[#allocation2 + $0xb8] sm:$0xff] %v817
          %1220 = vst [vmem:[#allocation2 + $0xc0] sm:$0xff] %v821
          %1221 = vst [vmem:[#allocation2 + $0xc8] sm:$0xff] %v823
          %1222 = vst [vmem:[#allocation2 + $0xd0] sm:$0xff] %v827
          %1223 = vst [vmem:[#allocation2 + $0xd8] sm:$0xff] %v829
          %1224 = vst [vmem:[#allocation2 + $0xe0] sm:$0xff] %v833
          %1225 = vst [vmem:[#allocation2 + $0xe8] sm:$0xff] %v835
          %1226 = vst [vmem:[#allocation2 + $0xf0] sm:$0xff] %v839
          %1227 = vst [vmem:[#allocation2 + $0xf8] sm:$0xff] %v841
          %1228 = vst [vmem:[#allocation2 + $0x100] sm:$0xff] %v845
          %1229 = vst [vmem:[#allocation2 + $0x108] sm:$0xff] %v847
          %1230 = vst [vmem:[#allocation2 + $0x110] sm:$0xff] %v851
          %1231 = vst [vmem:[#allocation2 + $0x118] sm:$0xff] %v853
          %1232 = vst [vmem:[#allocation2 + $0x120] sm:$0xff] %v857
          %1233 = vst [vmem:[#allocation2 + $0x128] sm:$0xff] %v859
          %1234 = vst [vmem:[#allocation2 + $0x130] sm:$0xff] %v863
          %1235 = vst [vmem:[#allocation2 + $0x138] sm:$0xff] %v865
          %1236 = vst [vmem:[#allocation2 + $0x140] sm:$0xff] %v869
          %1237 = vst [vmem:[#allocation2 + $0x148] sm:$0xff] %v871
          %1238 = vst [vmem:[#allocation2 + $0x150] sm:$0xff] %v875
          %1239 = vst [vmem:[#allocation2 + $0x158] sm:$0xff] %v877
          %1240 = vst [vmem:[#allocation2 + $0x160] sm:$0xff] %v881
          %1241 = vst [vmem:[#allocation2 + $0x168] sm:$0xff] %v883
          %1242 = vst [vmem:[#allocation2 + $0x170] sm:$0xff] %v887
          %1243 = vst [vmem:[#allocation2 + $0x178] sm:$0xff] %v889
          %1244 = vst [vmem:[#allocation2 + $0x180] sm:$0xff] %v893
          %1245 = vst [vmem:[#allocation2 + $0x188] sm:$0xff] %v895
          %1246 = vst [vmem:[#allocation2 + $0x190] sm:$0xff] %v899
          %1247 = vst [vmem:[#allocation2 + $0x198] sm:$0xff] %v901
          %1248 = vst [vmem:[#allocation2 + $0x1a0] sm:$0xff] %v905
          %1249 = vst [vmem:[#allocation2 + $0x1a8] sm:$0xff] %v907
          %1250 = vst [vmem:[#allocation2 + $0x1b0] sm:$0xff] %v911
          %1251 = vst [vmem:[#allocation2 + $0x1b8] sm:$0xff] %v913
          %1252 = vst [vmem:[#allocation2 + $0x1c0] sm:$0xff] %v917
          %1253 = vst [vmem:[#allocation2 + $0x1c8] sm:$0xff] %v919
          %1254 = vst [vmem:[#allocation2 + $0x1d0] sm:$0xff] %v923
          %1255 = vst [vmem:[#allocation2 + $0x1d8] sm:$0xff] %v925
          %1256 = vst [vmem:[#allocation2 + $0x1e0] sm:$0xff] %v929
          %1257 = vst [vmem:[#allocation2 + $0x1e8] sm:$0xff] %v931
          %1258 = vst [vmem:[#allocation2 + $0x1f0] sm:$0xff] %v935
          %1259 = vst [vmem:[#allocation2 + $0x1f8] sm:$0xff] %v937
          %1260 = vst [vmem:[#allocation3] sm:$0xff] %v1006
          %1261 = vst [vmem:[#allocation3 + $0x8] sm:$0xff] %v1008
          %1262 = vst [vmem:[#allocation3 + $0x10] sm:$0xff] %v1012
          %1263 = vst [vmem:[#allocation3 + $0x18] sm:$0xff] %v1014
          %1264 = vst [vmem:[#allocation3 + $0x20] sm:$0xff] %v1018
          %1265 = vst [vmem:[#allocation3 + $0x28] sm:$0xff] %v1020
          %1266 = vst [vmem:[#allocation3 + $0x30] sm:$0xff] %v1024
          %1267 = vst [vmem:[#allocation3 + $0x38] sm:$0xff] %v1026
          %1268 = vst [vmem:[#allocation3 + $0x40] sm:$0xff] %v1030
          %1269 = vst [vmem:[#allocation3 + $0x48] sm:$0xff] %v1032
          %1270 = vst [vmem:[#allocation3 + $0x50] sm:$0xff] %v1036
          %1271 = vst [vmem:[#allocation3 + $0x58] sm:$0xff] %v1038
          %1272 = vst [vmem:[#allocation3 + $0x60] sm:$0xff] %v1042
          %1273 = vst [vmem:[#allocation3 + $0x68] sm:$0xff] %v1044
          %1274 = vst [vmem:[#allocation3 + $0x70] sm:$0xff] %v1048
          %1275 = vst [vmem:[#allocation3 + $0x78] sm:$0xff] %v1050
          %1276 = vst [vmem:[#allocation3 + $0x80] sm:$0xff] %v1054
          %1277 = vst [vmem:[#allocation3 + $0x88] sm:$0xff] %v1056
          %1278 = vst [vmem:[#allocation3 + $0x90] sm:$0xff] %v1060
          %1279 = vst [vmem:[#allocation3 + $0x98] sm:$0xff] %v1062
          %1280 = vst [vmem:[#allocation3 + $0xa0] sm:$0xff] %v1066
          %1281 = vst [vmem:[#allocation3 + $0xa8] sm:$0xff] %v1068
          %1282 = vst [vmem:[#allocation3 + $0xb0] sm:$0xff] %v1072
          %1283 = vst [vmem:[#allocation3 + $0xb8] sm:$0xff] %v1074
          %1284 = vst [vmem:[#allocation3 + $0xc0] sm:$0xff] %v1078
          %1285 = vst [vmem:[#allocation3 + $0xc8] sm:$0xff] %v1080
          %1286 = vst [vmem:[#allocation3 + $0xd0] sm:$0xff] %v1084
          %1287 = vst [vmem:[#allocation3 + $0xd8] sm:$0xff] %v1086
          %1288 = vst [vmem:[#allocation3 + $0xe0] sm:$0xff] %v1090
          %1289 = vst [vmem:[#allocation3 + $0xe8] sm:$0xff] %v1092
          %1290 = vst [vmem:[#allocation3 + $0xf0] sm:$0xff] %v1096
          %1291 = vst [vmem:[#allocation3 + $0xf8] sm:$0xff] %v1098
          %1292 = vst [vmem:[#allocation3 + $0x100] sm:$0xff] %v1102
          %1293 = vst [vmem:[#allocation3 + $0x108] sm:$0xff] %v1104
          %1294 = vst [vmem:[#allocation3 + $0x110] sm:$0xff] %v1108
          %1295 = vst [vmem:[#allocation3 + $0x118] sm:$0xff] %v1110
          %1296 = vst [vmem:[#allocation3 + $0x120] sm:$0xff] %v1114
          %1297 = vst [vmem:[#allocation3 + $0x128] sm:$0xff] %v1116
          %1298 = vst [vmem:[#allocation3 + $0x130] sm:$0xff] %v1120
          %1299 = vst [vmem:[#allocation3 + $0x138] sm:$0xff] %v1122
          %1300 = vst [vmem:[#allocation3 + $0x140] sm:$0xff] %v1126
          %1301 = vst [vmem:[#allocation3 + $0x148] sm:$0xff] %v1128
          %1302 = vst [vmem:[#allocation3 + $0x150] sm:$0xff] %v1132
          %1303 = vst [vmem:[#allocation3 + $0x158] sm:$0xff] %v1134
          %1304 = vst [vmem:[#allocation3 + $0x160] sm:$0xff] %v1138
          %1305 = vst [vmem:[#allocation3 + $0x168] sm:$0xff] %v1140
          %1306 = vst [vmem:[#allocation3 + $0x170] sm:$0xff] %v1144
          %1307 = vst [vmem:[#allocation3 + $0x178] sm:$0xff] %v1146
          %1308 = vst [vmem:[#allocation3 + $0x180] sm:$0xff] %v1150
          %1309 = vst [vmem:[#allocation3 + $0x188] sm:$0xff] %v1152
          %1310 = vst [vmem:[#allocation3 + $0x190] sm:$0xff] %v1156
          %1311 = vst [vmem:[#allocation3 + $0x198] sm:$0xff] %v1158
          %1312 = vst [vmem:[#allocation3 + $0x1a0] sm:$0xff] %v1162
          %1313 = vst [vmem:[#allocation3 + $0x1a8] sm:$0xff] %v1164
          %1314 = vst [vmem:[#allocation3 + $0x1b0] sm:$0xff] %v1168
          %1315 = vst [vmem:[#allocation3 + $0x1b8] sm:$0xff] %v1170
          %1316 = vst [vmem:[#allocation3 + $0x1c0] sm:$0xff] %v1174
          %1317 = vst [vmem:[#allocation3 + $0x1c8] sm:$0xff] %v1176
          %1318 = vst [vmem:[#allocation3 + $0x1d0] sm:$0xff] %v1180
          %1319 = vst [vmem:[#allocation3 + $0x1d8] sm:$0xff] %v1182
          %1320 = vst [vmem:[#allocation3 + $0x1e0] sm:$0xff] %v1186
          %1321 = vst [vmem:[#allocation3 + $0x1e8] sm:$0xff] %v1188
          %1322 = vst [vmem:[#allocation3 + $0x1f0] sm:$0xff] %v1192
          %1323 = vst [vmem:[#allocation3 + $0x1f8] sm:$0xff] %v1194
        $region64: #{tpu_custom_call.1} parent=43 // pred_fallthru
          _
        %v1324 = vld [vmem:[%s385] sm:$0xff]
        %v1325 = vld [vmem:[%s385 + $0x8] sm:$0xff]
        %v1326 = vld [vmem:[%s385 + $0x10] sm:$0xff]
        %v1327 = vld [vmem:[%s385 + $0x18] sm:$0xff]
        %v1328 = vld [vmem:[%s385 + $0x20] sm:$0xff]
        %v1329 = vld [vmem:[%s385 + $0x28] sm:$0xff]
        %v1330 = vld [vmem:[%s385 + $0x30] sm:$0xff]
        %v1331 = vld [vmem:[%s385 + $0x38] sm:$0xff]
        %v1332 = vld [vmem:[%s385 + $0x40] sm:$0xff]
        %v1333 = vld [vmem:[%s385 + $0x48] sm:$0xff]
        %v1334 = vld [vmem:[%s385 + $0x50] sm:$0xff]
        %v1335 = vld [vmem:[%s385 + $0x58] sm:$0xff]
        %v1336 = vld [vmem:[%s385 + $0x60] sm:$0xff]
        %v1337 = vld [vmem:[%s385 + $0x68] sm:$0xff]
        %v1338 = vld [vmem:[%s385 + $0x70] sm:$0xff]
        %v1339 = vld [vmem:[%s385 + $0x78] sm:$0xff]
        %v1340 = vld [vmem:[%s385 + $0x80] sm:$0xff]
        %v1341 = vld [vmem:[%s385 + $0x88] sm:$0xff]
        %v1342 = vld [vmem:[%s385 + $0x90] sm:$0xff]
        %v1343 = vld [vmem:[%s385 + $0x98] sm:$0xff]
        %v1344 = vld [vmem:[%s385 + $0xa0] sm:$0xff]
        %v1345 = vld [vmem:[%s385 + $0xa8] sm:$0xff]
        %v1346 = vld [vmem:[%s385 + $0xb0] sm:$0xff]
        %v1347 = vld [vmem:[%s385 + $0xb8] sm:$0xff]
        %v1348 = vld [vmem:[%s385 + $0xc0] sm:$0xff]
        %v1349 = vld [vmem:[%s385 + $0xc8] sm:$0xff]
        %v1350 = vld [vmem:[%s385 + $0xd0] sm:$0xff]
        %v1351 = vld [vmem:[%s385 + $0xd8] sm:$0xff]
        %v1352 = vld [vmem:[%s385 + $0xe0] sm:$0xff]
        %v1353 = vld [vmem:[%s385 + $0xe8] sm:$0xff]
        %v1354 = vld [vmem:[%s385 + $0xf0] sm:$0xff]
        %v1355 = vld [vmem:[%s385 + $0xf8] sm:$0xff]
        %v1356 = vld [vmem:[#allocation9] sm:$0xff]
        %v1357 = vld [vmem:[#allocation9 + $0x8] sm:$0xff]
        %v1358 = vld [vmem:[#allocation9 + $0x10] sm:$0xff]
        %v1359 = vld [vmem:[#allocation9 + $0x18] sm:$0xff]
        %v1360 = vld [vmem:[#allocation9 + $0x20] sm:$0xff]
        %v1361 = vld [vmem:[#allocation9 + $0x28] sm:$0xff]
        %v1362 = vld [vmem:[#allocation9 + $0x30] sm:$0xff]
        %v1363 = vld [vmem:[#allocation9 + $0x38] sm:$0xff]
        %v1364 = vld [vmem:[#allocation9 + $0x40] sm:$0xff]
        %v1365 = vld [vmem:[#allocation9 + $0x48] sm:$0xff]
        %v1366 = vld [vmem:[#allocation9 + $0x50] sm:$0xff]
        %v1367 = vld [vmem:[#allocation9 + $0x58] sm:$0xff]
        %v1368 = vld [vmem:[#allocation9 + $0x60] sm:$0xff]
        %v1369 = vld [vmem:[#allocation9 + $0x68] sm:$0xff]
        %v1370 = vld [vmem:[#allocation9 + $0x70] sm:$0xff]
        %v1371 = vld [vmem:[#allocation9 + $0x78] sm:$0xff]
        %v1372 = vld [vmem:[#allocation9 + $0x80] sm:$0xff]
        %v1373 = vld [vmem:[#allocation9 + $0x88] sm:$0xff]
        %v1374 = vld [vmem:[#allocation9 + $0x90] sm:$0xff]
        %v1375 = vld [vmem:[#allocation9 + $0x98] sm:$0xff]
        %v1376 = vld [vmem:[#allocation9 + $0xa0] sm:$0xff]
        %v1377 = vld [vmem:[#allocation9 + $0xa8] sm:$0xff]
        %v1378 = vld [vmem:[#allocation9 + $0xb0] sm:$0xff]
        %v1379 = vld [vmem:[#allocation9 + $0xb8] sm:$0xff]
        %v1380 = vld [vmem:[#allocation9 + $0xc0] sm:$0xff]
        %v1381 = vld [vmem:[#allocation9 + $0xc8] sm:$0xff]
        %v1382 = vld [vmem:[#allocation9 + $0xd0] sm:$0xff]
        %v1383 = vld [vmem:[#allocation9 + $0xd8] sm:$0xff]
        %v1384 = vld [vmem:[#allocation9 + $0xe0] sm:$0xff]
        %v1385 = vld [vmem:[#allocation9 + $0xe8] sm:$0xff]
        %v1386 = vld [vmem:[#allocation9 + $0xf0] sm:$0xff]
        %v1387 = vld [vmem:[#allocation9 + $0xf8] sm:$0xff]
        %v1388 = vld [vmem:[#allocation9 + $0x100] sm:$0xff]
        %v1389 = vld [vmem:[#allocation9 + $0x108] sm:$0xff]
        %v1390 = vld [vmem:[#allocation9 + $0x110] sm:$0xff]
        %v1391 = vld [vmem:[#allocation9 + $0x118] sm:$0xff]
        %v1392 = vld [vmem:[#allocation9 + $0x120] sm:$0xff]
        %v1393 = vld [vmem:[#allocation9 + $0x128] sm:$0xff]
        %v1394 = vld [vmem:[#allocation9 + $0x130] sm:$0xff]
        %v1395 = vld [vmem:[#allocation9 + $0x138] sm:$0xff]
        %v1396 = vld [vmem:[#allocation9 + $0x140] sm:$0xff]
        %v1397 = vld [vmem:[#allocation9 + $0x148] sm:$0xff]
        %v1398 = vld [vmem:[#allocation9 + $0x150] sm:$0xff]
        %v1399 = vld [vmem:[#allocation9 + $0x158] sm:$0xff]
        %v1400 = vld [vmem:[#allocation9 + $0x160] sm:$0xff]
        %v1401 = vld [vmem:[#allocation9 + $0x168] sm:$0xff]
        %v1402 = vld [vmem:[#allocation9 + $0x170] sm:$0xff]
        %v1403 = vld [vmem:[#allocation9 + $0x178] sm:$0xff]
        %v1404 = vld [vmem:[#allocation9 + $0x180] sm:$0xff]
        %v1405 = vld [vmem:[#allocation9 + $0x188] sm:$0xff]
        %v1406 = vld [vmem:[#allocation9 + $0x190] sm:$0xff]
        %v1407 = vld [vmem:[#allocation9 + $0x198] sm:$0xff]
        %v1408 = vld [vmem:[#allocation9 + $0x1a0] sm:$0xff]
        %v1409 = vld [vmem:[#allocation9 + $0x1a8] sm:$0xff]
        %v1410 = vld [vmem:[#allocation9 + $0x1b0] sm:$0xff]
        %v1411 = vld [vmem:[#allocation9 + $0x1b8] sm:$0xff]
        %v1412 = vld [vmem:[#allocation9 + $0x1c0] sm:$0xff]
        %v1413 = vld [vmem:[#allocation9 + $0x1c8] sm:$0xff]
        %v1414 = vld [vmem:[#allocation9 + $0x1d0] sm:$0xff]
        %v1415 = vld [vmem:[#allocation9 + $0x1d8] sm:$0xff]
        %v1416 = vld [vmem:[#allocation9 + $0x1e0] sm:$0xff]
        %v1417 = vld [vmem:[#allocation9 + $0x1e8] sm:$0xff]
        %v1418 = vld [vmem:[#allocation9 + $0x1f0] sm:$0xff]
        %v1419 = vld [vmem:[#allocation9 + $0x1f8] sm:$0xff]
        %v1420 = vld [vmem:[%s455] sm:$0x3]
        %v1422 = vlaneseq
        %v1423 = vshrl.u32 %v1422, 7
        %v1424 = vsub.s32 0, %v1423
        %v1425 = vrot.slane %v1420, %v1424
        %v1426 = vlaneseq
        %v1427 = vshrl.u32 %v1426, 7
        %v1428 = vsub.s32 1, %v1427
        %v1429 = vrot.slane %v1420, %v1428
        %1432 = vmatprep.subr.mxu0 %v1387
        %1433 = vmatpush1.msra.mxu0 %v1386
        %1434 = vmatprep.subr.mxu0 %v1385
        %1435 = vmatpush1.msra.mxu0 %v1384
        %1436 = vmatprep.subr.mxu0 %v1383
        %1437 = vmatpush1.msra.mxu0 %v1382
        %1438 = vmatprep.subr.mxu0 %v1381
        %1439 = vmatpush1.msra.mxu0 %v1380
        %1440 = vmatprep.subr.mxu0 %v1379
        %1441 = vmatpush1.msra.mxu0 %v1378
        %1442 = vmatprep.subr.mxu0 %v1377
        %1443 = vmatpush1.msra.mxu0 %v1376
        %1444 = vmatprep.subr.mxu0 %v1375
        %1445 = vmatpush1.msra.mxu0 %v1374
        %1446 = vmatprep.subr.mxu0 %v1373
        %1447 = vmatpush1.msra.mxu0 %v1372
        %1448 = vmatprep.subr.mxu0 %v1371
        %1449 = vmatpush1.msra.mxu0 %v1370
        %1450 = vmatprep.subr.mxu0 %v1369
        %1451 = vmatpush1.msra.mxu0 %v1368
        %1452 = vmatprep.subr.mxu0 %v1367
        %1453 = vmatpush1.msra.mxu0 %v1366
        %1454 = vmatprep.subr.mxu0 %v1365
        %1455 = vmatpush1.msra.mxu0 %v1364
        %1456 = vmatprep.subr.mxu0 %v1363
        %1457 = vmatpush1.msra.mxu0 %v1362
        %1458 = vmatprep.subr.mxu0 %v1361
        %1459 = vmatpush1.msra.mxu0 %v1360
        %1460 = vmatprep.subr.mxu0 %v1359
        %1461 = vmatpush1.msra.mxu0 %v1358
        %1462 = vmatprep.subr.mxu0 %v1357
        %1463 = vmatpush1.msra.mxu0 %v1356
        %1464 = vmatprep.subr.mxu0 %v1419
        %1465 = vmatpush2.msra.mxu0 %v1418
        %1466 = vmatprep.subr.mxu0 %v1417
        %1467 = vmatpush2.msra.mxu0 %v1416
        %1468 = vmatprep.subr.mxu0 %v1415
        %1469 = vmatpush2.msra.mxu0 %v1414
        %1470 = vmatprep.subr.mxu0 %v1413
        %1471 = vmatpush2.msra.mxu0 %v1412
        %1472 = vmatprep.subr.mxu0 %v1411
        %1473 = vmatpush2.msra.mxu0 %v1410
        %1474 = vmatprep.subr.mxu0 %v1409
        %1475 = vmatpush2.msra.mxu0 %v1408
        %1476 = vmatprep.subr.mxu0 %v1407
        %1477 = vmatpush2.msra.mxu0 %v1406
        %1478 = vmatprep.subr.mxu0 %v1405
        %1479 = vmatpush2.msra.mxu0 %v1404
        %1480 = vmatprep.subr.mxu0 %v1403
        %1481 = vmatpush2.msra.mxu0 %v1402
        %1482 = vmatprep.subr.mxu0 %v1401
        %1483 = vmatpush2.msra.mxu0 %v1400
        %1484 = vmatprep.subr.mxu0 %v1399
        %1485 = vmatpush2.msra.mxu0 %v1398
        %1486 = vmatprep.subr.mxu0 %v1397
        %1487 = vmatpush2.msra.mxu0 %v1396
        %1488 = vmatprep.subr.mxu0 %v1395
        %1489 = vmatpush2.msra.mxu0 %v1394
        %1490 = vmatprep.subr.mxu0 %v1393
        %1491 = vmatpush2.msra.mxu0 %v1392
        %1492 = vmatprep.subr.mxu0 %v1391
        %1493 = vmatpush2.msra.mxu0 %v1390
        %1494 = vmatprep.subr.mxu0 %v1389
        %1495 = vmatpush2.msra.mxu0 %v1388
        %1496 = vmatprep.mubr.f32.mxu0 %v1325
        %1497 = vmatmul.mubr.f32.gmra.mxu0 %v1324
        %v1498 = vpop.f32.mrf.mxu0
        %v1499 = vadd.f32 %v1425, %v1498
        %v1500 = vpop.f32.mrf.mxu0
        %v1501 = vadd.f32 %v1429, %v1500
        %1502 = vmatprep.mubr.f32.mxu0 %v1327
        %1503 = vmatmul.mubr.f32.gmra.mxu0 %v1326
        %v1504 = vpop.f32.mrf.mxu0
        %v1505 = vadd.f32 %v1425, %v1504
        %v1506 = vpop.f32.mrf.mxu0
        %v1507 = vadd.f32 %v1429, %v1506
        %1508 = vmatprep.mubr.f32.mxu0 %v1329
        %1509 = vmatmul.mubr.f32.gmra.mxu0 %v1328
        %v1510 = vpop.f32.mrf.mxu0
        %v1511 = vadd.f32 %v1425, %v1510
        %v1512 = vpop.f32.mrf.mxu0
        %v1513 = vadd.f32 %v1429, %v1512
        %1514 = vmatprep.mubr.f32.mxu0 %v1331
        %1515 = vmatmul.mubr.f32.gmra.mxu0 %v1330
        %v1516 = vpop.f32.mrf.mxu0
        %v1517 = vadd.f32 %v1425, %v1516
        %v1518 = vpop.f32.mrf.mxu0
        %v1519 = vadd.f32 %v1429, %v1518
        %1520 = vmatprep.mubr.f32.mxu0 %v1333
        %1521 = vmatmul.mubr.f32.gmra.mxu0 %v1332
        %v1522 = vpop.f32.mrf.mxu0
        %v1523 = vadd.f32 %v1425, %v1522
        %v1524 = vpop.f32.mrf.mxu0
        %v1525 = vadd.f32 %v1429, %v1524
        %1526 = vmatprep.mubr.f32.mxu0 %v1335
        %1527 = vmatmul.mubr.f32.gmra.mxu0 %v1334
        %v1528 = vpop.f32.mrf.mxu0
        %v1529 = vadd.f32 %v1425, %v1528
        %v1530 = vpop.f32.mrf.mxu0
        %v1531 = vadd.f32 %v1429, %v1530
        %1532 = vmatprep.mubr.f32.mxu0 %v1337
        %1533 = vmatmul.mubr.f32.gmra.mxu0 %v1336
        %v1534 = vpop.f32.mrf.mxu0
        %v1535 = vadd.f32 %v1425, %v1534
        %v1536 = vpop.f32.mrf.mxu0
        %v1537 = vadd.f32 %v1429, %v1536
        %1538 = vmatprep.mubr.f32.mxu0 %v1339
        %1539 = vmatmul.mubr.f32.gmra.mxu0 %v1338
        %v1540 = vpop.f32.mrf.mxu0
        %v1541 = vadd.f32 %v1425, %v1540
        %v1542 = vpop.f32.mrf.mxu0
        %v1543 = vadd.f32 %v1429, %v1542
        %1544 = vmatprep.mubr.f32.mxu0 %v1341
        %1545 = vmatmul.mubr.f32.gmra.mxu0 %v1340
        %v1546 = vpop.f32.mrf.mxu0
        %v1547 = vadd.f32 %v1425, %v1546
        %v1548 = vpop.f32.mrf.mxu0
        %v1549 = vadd.f32 %v1429, %v1548
        %1550 = vmatprep.mubr.f32.mxu0 %v1343
        %1551 = vmatmul.mubr.f32.gmra.mxu0 %v1342
        %v1552 = vpop.f32.mrf.mxu0
        %v1553 = vadd.f32 %v1425, %v1552
        %v1554 = vpop.f32.mrf.mxu0
        %v1555 = vadd.f32 %v1429, %v1554
        %1556 = vmatprep.mubr.f32.mxu0 %v1345
        %1557 = vmatmul.mubr.f32.gmra.mxu0 %v1344
        %v1558 = vpop.f32.mrf.mxu0
        %v1559 = vadd.f32 %v1425, %v1558
        %v1560 = vpop.f32.mrf.mxu0
        %v1561 = vadd.f32 %v1429, %v1560
        %1562 = vmatprep.mubr.f32.mxu0 %v1347
        %1563 = vmatmul.mubr.f32.gmra.mxu0 %v1346
        %v1564 = vpop.f32.mrf.mxu0
        %v1565 = vadd.f32 %v1425, %v1564
        %v1566 = vpop.f32.mrf.mxu0
        %v1567 = vadd.f32 %v1429, %v1566
        %1568 = vmatprep.mubr.f32.mxu0 %v1349
        %1569 = vmatmul.mubr.f32.gmra.mxu0 %v1348
        %v1570 = vpop.f32.mrf.mxu0
        %v1571 = vadd.f32 %v1425, %v1570
        %v1572 = vpop.f32.mrf.mxu0
        %v1573 = vadd.f32 %v1429, %v1572
        %1574 = vmatprep.mubr.f32.mxu0 %v1351
        %1575 = vmatmul.mubr.f32.gmra.mxu0 %v1350
        %v1576 = vpop.f32.mrf.mxu0
        %v1577 = vadd.f32 %v1425, %v1576
        %v1578 = vpop.f32.mrf.mxu0
        %v1579 = vadd.f32 %v1429, %v1578
        %1580 = vmatprep.mubr.f32.mxu0 %v1353
        %1581 = vmatmul.mubr.f32.gmra.mxu0 %v1352
        %v1582 = vpop.f32.mrf.mxu0
        %v1583 = vadd.f32 %v1425, %v1582
        %v1584 = vpop.f32.mrf.mxu0
        %v1585 = vadd.f32 %v1429, %v1584
        %1586 = vmatprep.mubr.f32.mxu0 %v1355
        %1587 = vmatmul.mubr.f32.gmra.mxu0 %v1354
        %v1588 = vpop.f32.mrf.mxu0
        %v1589 = vadd.f32 %v1425, %v1588
        %v1590 = vpop.f32.mrf.mxu0
        %v1591 = vadd.f32 %v1429, %v1590
        %1592 = vdwg.mxu0
        %v1593 = vld [vmem:[#allocation2] sm:$0xff]
        %v1594 = vld [vmem:[#allocation2 + $0x8] sm:$0xff]
        %v1595 = vld [vmem:[#allocation2 + $0x10] sm:$0xff]
        %v1596 = vld [vmem:[#allocation2 + $0x18] sm:$0xff]
        %v1597 = vld [vmem:[#allocation2 + $0x20] sm:$0xff]
        %v1598 = vld [vmem:[#allocation2 + $0x28] sm:$0xff]
        %v1599 = vld [vmem:[#allocation2 + $0x30] sm:$0xff]
        %v1600 = vld [vmem:[#allocation2 + $0x38] sm:$0xff]
        %v1601 = vld [vmem:[#allocation2 + $0x40] sm:$0xff]
        %v1602 = vld [vmem:[#allocation2 + $0x48] sm:$0xff]
        %v1603 = vld [vmem:[#allocation2 + $0x50] sm:$0xff]
        %v1604 = vld [vmem:[#allocation2 + $0x58] sm:$0xff]
        %v1605 = vld [vmem:[#allocation2 + $0x60] sm:$0xff]
        %v1606 = vld [vmem:[#allocation2 + $0x68] sm:$0xff]
        %v1607 = vld [vmem:[#allocation2 + $0x70] sm:$0xff]
        %v1608 = vld [vmem:[#allocation2 + $0x78] sm:$0xff]
        %v1609 = vld [vmem:[#allocation2 + $0x80] sm:$0xff]
        %v1610 = vld [vmem:[#allocation2 + $0x88] sm:$0xff]
        %v1611 = vld [vmem:[#allocation2 + $0x90] sm:$0xff]
        %v1612 = vld [vmem:[#allocation2 + $0x98] sm:$0xff]
        %v1613 = vld [vmem:[#allocation2 + $0xa0] sm:$0xff]
        %v1614 = vld [vmem:[#allocation2 + $0xa8] sm:$0xff]
        %v1615 = vld [vmem:[#allocation2 + $0xb0] sm:$0xff]
        %v1616 = vld [vmem:[#allocation2 + $0xb8] sm:$0xff]
        %v1617 = vld [vmem:[#allocation2 + $0xc0] sm:$0xff]
        %v1618 = vld [vmem:[#allocation2 + $0xc8] sm:$0xff]
        %v1619 = vld [vmem:[#allocation2 + $0xd0] sm:$0xff]
        %v1620 = vld [vmem:[#allocation2 + $0xd8] sm:$0xff]
        %v1621 = vld [vmem:[#allocation2 + $0xe0] sm:$0xff]
        %v1622 = vld [vmem:[#allocation2 + $0xe8] sm:$0xff]
        %v1623 = vld [vmem:[#allocation2 + $0xf0] sm:$0xff]
        %v1624 = vld [vmem:[#allocation2 + $0xf8] sm:$0xff]
        %v1625 = vld [vmem:[#allocation2 + $0x100] sm:$0xff]
        %v1626 = vld [vmem:[#allocation2 + $0x108] sm:$0xff]
        %v1627 = vld [vmem:[#allocation2 + $0x110] sm:$0xff]
        %v1628 = vld [vmem:[#allocation2 + $0x118] sm:$0xff]
        %v1629 = vld [vmem:[#allocation2 + $0x120] sm:$0xff]
        %v1630 = vld [vmem:[#allocation2 + $0x128] sm:$0xff]
        %v1631 = vld [vmem:[#allocation2 + $0x130] sm:$0xff]
        %v1632 = vld [vmem:[#allocation2 + $0x138] sm:$0xff]
        %v1633 = vld [vmem:[#allocation2 + $0x140] sm:$0xff]
        %v1634 = vld [vmem:[#allocation2 + $0x148] sm:$0xff]
        %v1635 = vld [vmem:[#allocation2 + $0x150] sm:$0xff]
        %v1636 = vld [vmem:[#allocation2 + $0x158] sm:$0xff]
        %v1637 = vld [vmem:[#allocation2 + $0x160] sm:$0xff]
        %v1638 = vld [vmem:[#allocation2 + $0x168] sm:$0xff]
        %v1639 = vld [vmem:[#allocation2 + $0x170] sm:$0xff]
        %v1640 = vld [vmem:[#allocation2 + $0x178] sm:$0xff]
        %v1641 = vld [vmem:[#allocation2 + $0x180] sm:$0xff]
        %v1642 = vld [vmem:[#allocation2 + $0x188] sm:$0xff]
        %v1643 = vld [vmem:[#allocation2 + $0x190] sm:$0xff]
        %v1644 = vld [vmem:[#allocation2 + $0x198] sm:$0xff]
        %v1645 = vld [vmem:[#allocation2 + $0x1a0] sm:$0xff]
        %v1646 = vld [vmem:[#allocation2 + $0x1a8] sm:$0xff]
        %v1647 = vld [vmem:[#allocation2 + $0x1b0] sm:$0xff]
        %v1648 = vld [vmem:[#allocation2 + $0x1b8] sm:$0xff]
        %v1649 = vld [vmem:[#allocation2 + $0x1c0] sm:$0xff]
        %v1650 = vld [vmem:[#allocation2 + $0x1c8] sm:$0xff]
        %v1651 = vld [vmem:[#allocation2 + $0x1d0] sm:$0xff]
        %v1652 = vld [vmem:[#allocation2 + $0x1d8] sm:$0xff]
        %v1653 = vld [vmem:[#allocation2 + $0x1e0] sm:$0xff]
        %v1654 = vld [vmem:[#allocation2 + $0x1e8] sm:$0xff]
        %v1655 = vld [vmem:[#allocation2 + $0x1f0] sm:$0xff]
        %v1656 = vld [vmem:[#allocation2 + $0x1f8] sm:$0xff]
        %v1657 = vld [vmem:[#allocation3] sm:$0xff]
        %v1658 = vld [vmem:[#allocation3 + $0x8] sm:$0xff]
        %v1659 = vld [vmem:[#allocation3 + $0x10] sm:$0xff]
        %v1660 = vld [vmem:[#allocation3 + $0x18] sm:$0xff]
        %v1661 = vld [vmem:[#allocation3 + $0x20] sm:$0xff]
        %v1662 = vld [vmem:[#allocation3 + $0x28] sm:$0xff]
        %v1663 = vld [vmem:[#allocation3 + $0x30] sm:$0xff]
        %v1664 = vld [vmem:[#allocation3 + $0x38] sm:$0xff]
        %v1665 = vld [vmem:[#allocation3 + $0x40] sm:$0xff]
        %v1666 = vld [vmem:[#allocation3 + $0x48] sm:$0xff]
        %v1667 = vld [vmem:[#allocation3 + $0x50] sm:$0xff]
        %v1668 = vld [vmem:[#allocation3 + $0x58] sm:$0xff]
        %v1669 = vld [vmem:[#allocation3 + $0x60] sm:$0xff]
        %v1670 = vld [vmem:[#allocation3 + $0x68] sm:$0xff]
        %v1671 = vld [vmem:[#allocation3 + $0x70] sm:$0xff]
        %v1672 = vld [vmem:[#allocation3 + $0x78] sm:$0xff]
        %v1673 = vld [vmem:[#allocation3 + $0x80] sm:$0xff]
        %v1674 = vld [vmem:[#allocation3 + $0x88] sm:$0xff]
        %v1675 = vld [vmem:[#allocation3 + $0x90] sm:$0xff]
        %v1676 = vld [vmem:[#allocation3 + $0x98] sm:$0xff]
        %v1677 = vld [vmem:[#allocation3 + $0xa0] sm:$0xff]
        %v1678 = vld [vmem:[#allocation3 + $0xa8] sm:$0xff]
        %v1679 = vld [vmem:[#allocation3 + $0xb0] sm:$0xff]
        %v1680 = vld [vmem:[#allocation3 + $0xb8] sm:$0xff]
        %v1681 = vld [vmem:[#allocation3 + $0xc0] sm:$0xff]
        %v1682 = vld [vmem:[#allocation3 + $0xc8] sm:$0xff]
        %v1683 = vld [vmem:[#allocation3 + $0xd0] sm:$0xff]
        %v1684 = vld [vmem:[#allocation3 + $0xd8] sm:$0xff]
        %v1685 = vld [vmem:[#allocation3 + $0xe0] sm:$0xff]
        %v1686 = vld [vmem:[#allocation3 + $0xe8] sm:$0xff]
        %v1687 = vld [vmem:[#allocation3 + $0xf0] sm:$0xff]
        %v1688 = vld [vmem:[#allocation3 + $0xf8] sm:$0xff]
        %v1689 = vld [vmem:[#allocation3 + $0x100] sm:$0xff]
        %v1690 = vld [vmem:[#allocation3 + $0x108] sm:$0xff]
        %v1691 = vld [vmem:[#allocation3 + $0x110] sm:$0xff]
        %v1692 = vld [vmem:[#allocation3 + $0x118] sm:$0xff]
        %v1693 = vld [vmem:[#allocation3 + $0x120] sm:$0xff]
        %v1694 = vld [vmem:[#allocation3 + $0x128] sm:$0xff]
        %v1695 = vld [vmem:[#allocation3 + $0x130] sm:$0xff]
        %v1696 = vld [vmem:[#allocation3 + $0x138] sm:$0xff]
        %v1697 = vld [vmem:[#allocation3 + $0x140] sm:$0xff]
        %v1698 = vld [vmem:[#allocation3 + $0x148] sm:$0xff]
        %v1699 = vld [vmem:[#allocation3 + $0x150] sm:$0xff]
        %v1700 = vld [vmem:[#allocation3 + $0x158] sm:$0xff]
        %v1701 = vld [vmem:[#allocation3 + $0x160] sm:$0xff]
        %v1702 = vld [vmem:[#allocation3 + $0x168] sm:$0xff]
        %v1703 = vld [vmem:[#allocation3 + $0x170] sm:$0xff]
        %v1704 = vld [vmem:[#allocation3 + $0x178] sm:$0xff]
        %v1705 = vld [vmem:[#allocation3 + $0x180] sm:$0xff]
        %v1706 = vld [vmem:[#allocation3 + $0x188] sm:$0xff]
        %v1707 = vld [vmem:[#allocation3 + $0x190] sm:$0xff]
        %v1708 = vld [vmem:[#allocation3 + $0x198] sm:$0xff]
        %v1709 = vld [vmem:[#allocation3 + $0x1a0] sm:$0xff]
        %v1710 = vld [vmem:[#allocation3 + $0x1a8] sm:$0xff]
        %v1711 = vld [vmem:[#allocation3 + $0x1b0] sm:$0xff]
        %v1712 = vld [vmem:[#allocation3 + $0x1b8] sm:$0xff]
        %v1713 = vld [vmem:[#allocation3 + $0x1c0] sm:$0xff]
        %v1714 = vld [vmem:[#allocation3 + $0x1c8] sm:$0xff]
        %v1715 = vld [vmem:[#allocation3 + $0x1d0] sm:$0xff]
        %v1716 = vld [vmem:[#allocation3 + $0x1d8] sm:$0xff]
        %v1717 = vld [vmem:[#allocation3 + $0x1e0] sm:$0xff]
        %v1718 = vld [vmem:[#allocation3 + $0x1e8] sm:$0xff]
        %v1719 = vld [vmem:[#allocation3 + $0x1f0] sm:$0xff]
        %v1720 = vld [vmem:[#allocation3 + $0x1f8] sm:$0xff]
        %1721 = vmatprep.subr.mxu0 0.0
        %1722 = vmatpush1.xpose.msra.mxu0 %v1623
        %1723 = vmatprep.subr.mxu0 0.0
        %1724 = vmatpush1.xpose.msra.mxu0 %v1621
        %1725 = vmatprep.subr.mxu0 0.0
        %1726 = vmatpush1.xpose.msra.mxu0 %v1619
        %1727 = vmatprep.subr.mxu0 0.0
        %1728 = vmatpush1.xpose.msra.mxu0 %v1617
        %1729 = vmatprep.subr.mxu0 0.0
        %1730 = vmatpush1.xpose.msra.mxu0 %v1615
        %1731 = vmatprep.subr.mxu0 0.0
        %1732 = vmatpush1.xpose.msra.mxu0 %v1613
        %1733 = vmatprep.subr.mxu0 0.0
        %1734 = vmatpush1.xpose.msra.mxu0 %v1611
        %1735 = vmatprep.subr.mxu0 0.0
        %1736 = vmatpush1.xpose.msra.mxu0 %v1609
        %1737 = vmatprep.subr.mxu0 0.0
        %1738 = vmatpush1.xpose.msra.mxu0 %v1607
        %1739 = vmatprep.subr.mxu0 0.0
        %1740 = vmatpush1.xpose.msra.mxu0 %v1605
        %1741 = vmatprep.subr.mxu0 0.0
        %1742 = vmatpush1.xpose.msra.mxu0 %v1603
        %1743 = vmatprep.subr.mxu0 0.0
        %1744 = vmatpush1.xpose.msra.mxu0 %v1601
        %1745 = vmatprep.subr.mxu0 0.0
        %1746 = vmatpush1.xpose.msra.mxu0 %v1599
        %1747 = vmatprep.subr.mxu0 0.0
        %1748 = vmatpush1.xpose.msra.mxu0 %v1597
        %1749 = vmatprep.subr.mxu0 0.0
        %1750 = vmatpush1.xpose.msra.mxu0 %v1595
        %1751 = vmatprep.subr.mxu0 0.0
        %1752 = vmatpush1.xpose.msra.mxu0 %v1593
        %1753 = vmatprep.subr.mxu0 0.0
        %1754 = vmatpush2.xpose.msra.mxu0 %v1655
        %1755 = vmatprep.subr.mxu0 0.0
        %1756 = vmatpush2.xpose.msra.mxu0 %v1653
        %1757 = vmatprep.subr.mxu0 0.0
        %1758 = vmatpush2.xpose.msra.mxu0 %v1651
        %1759 = vmatprep.subr.mxu0 0.0
        %1760 = vmatpush2.xpose.msra.mxu0 %v1649
        %1761 = vmatprep.subr.mxu0 0.0
        %1762 = vmatpush2.xpose.msra.mxu0 %v1647
        %1763 = vmatprep.subr.mxu0 0.0
        %1764 = vmatpush2.xpose.msra.mxu0 %v1645
        %1765 = vmatprep.subr.mxu0 0.0
        %1766 = vmatpush2.xpose.msra.mxu0 %v1643
        %1767 = vmatprep.subr.mxu0 0.0
        %1768 = vmatpush2.xpose.msra.mxu0 %v1641
        %1769 = vmatprep.subr.mxu0 0.0
        %1770 = vmatpush2.xpose.msra.mxu0 %v1639
        %1771 = vmatprep.subr.mxu0 0.0
        %1772 = vmatpush2.xpose.msra.mxu0 %v1637
        %1773 = vmatprep.subr.mxu0 0.0
        %1774 = vmatpush2.xpose.msra.mxu0 %v1635
        %1775 = vmatprep.subr.mxu0 0.0
        %1776 = vmatpush2.xpose.msra.mxu0 %v1633
        %1777 = vmatprep.subr.mxu0 0.0
        %1778 = vmatpush2.xpose.msra.mxu0 %v1631
        %1779 = vmatprep.subr.mxu0 0.0
        %1780 = vmatpush2.xpose.msra.mxu0 %v1629
        %1781 = vmatprep.subr.mxu0 0.0
        %1782 = vmatpush2.xpose.msra.mxu0 %v1627
        %1783 = vmatprep.subr.mxu0 0.0
        %1784 = vmatpush2.xpose.msra.mxu0 %v1625
        %1785 = vmatprep.mubr.f32.mxu0 0.0
        %1786 = vmatmul.mubr.f32.gmra.mxu0 %v1499
        %v1787 = vpop.f32.mrf.mxu0
        %v1788 = vadd.f32 0.0, %v1787
        %v1789 = vpop.f32.mrf.mxu0
        %v1790 = vadd.f32 0.0, %v1789
        %1791 = vmatprep.mubr.f32.mxu0 0.0
        %1792 = vmatmul.mubr.f32.gmra.mxu0 %v1505
        %v1793 = vpop.f32.mrf.mxu0
        %v1794 = vadd.f32 0.0, %v1793
        %v1795 = vpop.f32.mrf.mxu0
        %v1796 = vadd.f32 0.0, %v1795
        %1797 = vmatprep.mubr.f32.mxu0 0.0
        %1798 = vmatmul.mubr.f32.gmra.mxu0 %v1511
        %v1799 = vpop.f32.mrf.mxu0
        %v1800 = vadd.f32 0.0, %v1799
        %v1801 = vpop.f32.mrf.mxu0
        %v1802 = vadd.f32 0.0, %v1801
        %1803 = vmatprep.mubr.f32.mxu0 0.0
        %1804 = vmatmul.mubr.f32.gmra.mxu0 %v1517
        %v1805 = vpop.f32.mrf.mxu0
        %v1806 = vadd.f32 0.0, %v1805
        %v1807 = vpop.f32.mrf.mxu0
        %v1808 = vadd.f32 0.0, %v1807
        %1809 = vmatprep.mubr.f32.mxu0 0.0
        %1810 = vmatmul.mubr.f32.gmra.mxu0 %v1523
        %v1811 = vpop.f32.mrf.mxu0
        %v1812 = vadd.f32 0.0, %v1811
        %v1813 = vpop.f32.mrf.mxu0
        %v1814 = vadd.f32 0.0, %v1813
        %1815 = vmatprep.mubr.f32.mxu0 0.0
        %1816 = vmatmul.mubr.f32.gmra.mxu0 %v1529
        %v1817 = vpop.f32.mrf.mxu0
        %v1818 = vadd.f32 0.0, %v1817
        %v1819 = vpop.f32.mrf.mxu0
        %v1820 = vadd.f32 0.0, %v1819
        %1821 = vmatprep.mubr.f32.mxu0 0.0
        %1822 = vmatmul.mubr.f32.gmra.mxu0 %v1535
        %v1823 = vpop.f32.mrf.mxu0
        %v1824 = vadd.f32 0.0, %v1823
        %v1825 = vpop.f32.mrf.mxu0
        %v1826 = vadd.f32 0.0, %v1825
        %1827 = vmatprep.mubr.f32.mxu0 0.0
        %1828 = vmatmul.mubr.f32.gmra.mxu0 %v1541
        %v1829 = vpop.f32.mrf.mxu0
        %v1830 = vadd.f32 0.0, %v1829
        %v1831 = vpop.f32.mrf.mxu0
        %v1832 = vadd.f32 0.0, %v1831
        %1833 = vmatprep.mubr.f32.mxu0 0.0
        %1834 = vmatmul.mubr.f32.gmra.mxu0 %v1547
        %v1835 = vpop.f32.mrf.mxu0
        %v1836 = vadd.f32 0.0, %v1835
        %v1837 = vpop.f32.mrf.mxu0
        %v1838 = vadd.f32 0.0, %v1837
        %1839 = vmatprep.mubr.f32.mxu0 0.0
        %1840 = vmatmul.mubr.f32.gmra.mxu0 %v1553
        %v1841 = vpop.f32.mrf.mxu0
        %v1842 = vadd.f32 0.0, %v1841
        %v1843 = vpop.f32.mrf.mxu0
        %v1844 = vadd.f32 0.0, %v1843
        %1845 = vmatprep.mubr.f32.mxu0 0.0
        %1846 = vmatmul.mubr.f32.gmra.mxu0 %v1559
        %v1847 = vpop.f32.mrf.mxu0
        %v1848 = vadd.f32 0.0, %v1847
        %v1849 = vpop.f32.mrf.mxu0
        %v1850 = vadd.f32 0.0, %v1849
        %1851 = vmatprep.mubr.f32.mxu0 0.0
        %1852 = vmatmul.mubr.f32.gmra.mxu0 %v1565
        %v1853 = vpop.f32.mrf.mxu0
        %v1854 = vadd.f32 0.0, %v1853
        %v1855 = vpop.f32.mrf.mxu0
        %v1856 = vadd.f32 0.0, %v1855
        %1857 = vmatprep.mubr.f32.mxu0 0.0
        %1858 = vmatmul.mubr.f32.gmra.mxu0 %v1571
        %v1859 = vpop.f32.mrf.mxu0
        %v1860 = vadd.f32 0.0, %v1859
        %v1861 = vpop.f32.mrf.mxu0
        %v1862 = vadd.f32 0.0, %v1861
        %1863 = vmatprep.mubr.f32.mxu0 0.0
        %1864 = vmatmul.mubr.f32.gmra.mxu0 %v1577
        %v1865 = vpop.f32.mrf.mxu0
        %v1866 = vadd.f32 0.0, %v1865
        %v1867 = vpop.f32.mrf.mxu0
        %v1868 = vadd.f32 0.0, %v1867
        %1869 = vmatprep.mubr.f32.mxu0 0.0
        %1870 = vmatmul.mubr.f32.gmra.mxu0 %v1583
        %v1871 = vpop.f32.mrf.mxu0
        %v1872 = vadd.f32 0.0, %v1871
        %v1873 = vpop.f32.mrf.mxu0
        %v1874 = vadd.f32 0.0, %v1873
        %1875 = vmatprep.mubr.f32.mxu0 0.0
        %1876 = vmatmul.mubr.f32.gmra.mxu0 %v1589
        %v1877 = vpop.f32.mrf.mxu0
        %v1878 = vadd.f32 0.0, %v1877
        %v1879 = vpop.f32.mrf.mxu0
        %v1880 = vadd.f32 0.0, %v1879
        %1881 = vdwg.mxu0
        %v1882 = vmax.f32 %v1788, %v1790
        %1883 = vmax.xlane.f32.xlu0 %v1882
        %v1884 = vpop.xlane.xlu0 %1883
        %v1885 = vmax.f32 %v1794, %v1796
        %1886 = vmax.xlane.f32.xlu0 %v1885
        %v1887 = vpop.xlane.xlu0 %1886
        %v1888 = vmax.f32 %v1800, %v1802
        %1889 = vmax.xlane.f32.xlu0 %v1888
        %v1890 = vpop.xlane.xlu0 %1889
        %v1891 = vmax.f32 %v1806, %v1808
        %1892 = vmax.xlane.f32.xlu0 %v1891
        %v1893 = vpop.xlane.xlu0 %1892
        %v1894 = vmax.f32 %v1812, %v1814
        %1895 = vmax.xlane.f32.xlu0 %v1894
        %v1896 = vpop.xlane.xlu0 %1895
        %v1897 = vmax.f32 %v1818, %v1820
        %1898 = vmax.xlane.f32.xlu0 %v1897
        %v1899 = vpop.xlane.xlu0 %1898
        %v1900 = vmax.f32 %v1824, %v1826
        %1901 = vmax.xlane.f32.xlu0 %v1900
        %v1902 = vpop.xlane.xlu0 %1901
        %v1903 = vmax.f32 %v1830, %v1832
        %1904 = vmax.xlane.f32.xlu0 %v1903
        %v1905 = vpop.xlane.xlu0 %1904
        %v1906 = vmax.f32 %v1836, %v1838
        %1907 = vmax.xlane.f32.xlu0 %v1906
        %v1908 = vpop.xlane.xlu0 %1907
        %v1909 = vmax.f32 %v1842, %v1844
        %1910 = vmax.xlane.f32.xlu0 %v1909
        %v1911 = vpop.xlane.xlu0 %1910
        %v1912 = vmax.f32 %v1848, %v1850
        %1913 = vmax.xlane.f32.xlu0 %v1912
        %v1914 = vpop.xlane.xlu0 %1913
        %v1915 = vmax.f32 %v1854, %v1856
        %1916 = vmax.xlane.f32.xlu0 %v1915
        %v1917 = vpop.xlane.xlu0 %1916
        %v1918 = vmax.f32 %v1860, %v1862
        %1919 = vmax.xlane.f32.xlu0 %v1918
        %v1920 = vpop.xlane.xlu0 %1919
        %v1921 = vmax.f32 %v1866, %v1868
        %1922 = vmax.xlane.f32.xlu0 %v1921
        %v1923 = vpop.xlane.xlu0 %1922
        %v1924 = vmax.f32 %v1872, %v1874
        %1925 = vmax.xlane.f32.xlu0 %v1924
        %v1926 = vpop.xlane.xlu0 %1925
        %v1927 = vmax.f32 %v1878, %v1880
        %1928 = vmax.xlane.f32.xlu0 %v1927
        %v1929 = vpop.xlane.xlu0 %1928
        %v1930 = vsub.f32 %v1788, %v1884
        %v1931 = vsub.f32 %v1790, %v1884
        %v1932 = vsub.f32 %v1794, %v1887
        %v1933 = vsub.f32 %v1796, %v1887
        %v1934 = vsub.f32 %v1800, %v1890
        %v1935 = vsub.f32 %v1802, %v1890
        %v1936 = vsub.f32 %v1806, %v1893
        %v1937 = vsub.f32 %v1808, %v1893
        %v1938 = vsub.f32 %v1812, %v1896
        %v1939 = vsub.f32 %v1814, %v1896
        %v1940 = vsub.f32 %v1818, %v1899
        %v1941 = vsub.f32 %v1820, %v1899
        %v1942 = vsub.f32 %v1824, %v1902
        %v1943 = vsub.f32 %v1826, %v1902
        %v1944 = vsub.f32 %v1830, %v1905
        %v1945 = vsub.f32 %v1832, %v1905
        %v1946 = vsub.f32 %v1836, %v1908
        %v1947 = vsub.f32 %v1838, %v1908
        %v1948 = vsub.f32 %v1842, %v1911
        %v1949 = vsub.f32 %v1844, %v1911
        %v1950 = vsub.f32 %v1848, %v1914
        %v1951 = vsub.f32 %v1850, %v1914
        %v1952 = vsub.f32 %v1854, %v1917
        %v1953 = vsub.f32 %v1856, %v1917
        %v1954 = vsub.f32 %v1860, %v1920
        %v1955 = vsub.f32 %v1862, %v1920
        %v1956 = vsub.f32 %v1866, %v1923
        %v1957 = vsub.f32 %v1868, %v1923
        %v1958 = vsub.f32 %v1872, %v1926
        %v1959 = vsub.f32 %v1874, %v1926
        %v1960 = vsub.f32 %v1878, %v1929
        %v1961 = vsub.f32 %v1880, %v1929
        %v1962 = vmul.f32 %v1930, 1.442695
        %v1963 = vpow.pop %v1962
        %v1964 = vmul.f32 %v1931, 1.442695
        %v1965 = vpow.pop %v1964
        %v1966 = vmul.f32 %v1932, 1.442695
        %v1967 = vpow.pop %v1966
        %v1968 = vmul.f32 %v1933, 1.442695
        %v1969 = vpow.pop %v1968
        %v1970 = vmul.f32 %v1934, 1.442695
        %v1971 = vpow.pop %v1970
        %v1972 = vmul.f32 %v1935, 1.442695
        %v1973 = vpow.pop %v1972
        %v1974 = vmul.f32 %v1936, 1.442695
        %v1975 = vpow.pop %v1974
        %v1976 = vmul.f32 %v1937, 1.442695
        %v1977 = vpow.pop %v1976
        %v1978 = vmul.f32 %v1938, 1.442695
        %v1979 = vpow.pop %v1978
        %v1980 = vmul.f32 %v1939, 1.442695
        %v1981 = vpow.pop %v1980
        %v1982 = vmul.f32 %v1940, 1.442695
        %v1983 = vpow.pop %v1982
        %v1984 = vmul.f32 %v1941, 1.442695
        %v1985 = vpow.pop %v1984
        %v1986 = vmul.f32 %v1942, 1.442695
        %v1987 = vpow.pop %v1986
        %v1988 = vmul.f32 %v1943, 1.442695
        %v1989 = vpow.pop %v1988
        %v1990 = vmul.f32 %v1944, 1.442695
        %v1991 = vpow.pop %v1990
        %v1992 = vmul.f32 %v1945, 1.442695
        %v1993 = vpow.pop %v1992
        %v1994 = vmul.f32 %v1946, 1.442695
        %v1995 = vpow.pop %v1994
        %v1996 = vmul.f32 %v1947, 1.442695
        %v1997 = vpow.pop %v1996
        %v1998 = vmul.f32 %v1948, 1.442695
        %v1999 = vpow.pop %v1998
        %v2000 = vmul.f32 %v1949, 1.442695
        %v2001 = vpow.pop %v2000
        %v2002 = vmul.f32 %v1950, 1.442695
        %v2003 = vpow.pop %v2002
        %v2004 = vmul.f32 %v1951, 1.442695
        %v2005 = vpow.pop %v2004
        %v2006 = vmul.f32 %v1952, 1.442695
        %v2007 = vpow.pop %v2006
        %v2008 = vmul.f32 %v1953, 1.442695
        %v2009 = vpow.pop %v2008
        %v2010 = vmul.f32 %v1954, 1.442695
        %v2011 = vpow.pop %v2010
        %v2012 = vmul.f32 %v1955, 1.442695
        %v2013 = vpow.pop %v2012
        %v2014 = vmul.f32 %v1956, 1.442695
        %v2015 = vpow.pop %v2014
        %v2016 = vmul.f32 %v1957, 1.442695
        %v2017 = vpow.pop %v2016
        %v2018 = vmul.f32 %v1958, 1.442695
        %v2019 = vpow.pop %v2018
        %v2020 = vmul.f32 %v1959, 1.442695
        %v2021 = vpow.pop %v2020
        %v2022 = vmul.f32 %v1960, 1.442695
        %v2023 = vpow.pop %v2022
        %v2024 = vmul.f32 %v1961, 1.442695
        %v2025 = vpow.pop %v2024
        %v2026 = vadd.f32 %v1963, %v1965
        %2027 = vadd.xlane.f32.xlu0 %v2026
        %v2028 = vpop.xlane.xlu0 %2027
        %v2029 = vadd.f32 %v1967, %v1969
        %2030 = vadd.xlane.f32.xlu0 %v2029
        %v2031 = vpop.xlane.xlu0 %2030
        %v2032 = vadd.f32 %v1971, %v1973
        %2033 = vadd.xlane.f32.xlu0 %v2032
        %v2034 = vpop.xlane.xlu0 %2033
        %v2035 = vadd.f32 %v1975, %v1977
        %2036 = vadd.xlane.f32.xlu0 %v2035
        %v2037 = vpop.xlane.xlu0 %2036
        %v2038 = vadd.f32 %v1979, %v1981
        %2039 = vadd.xlane.f32.xlu0 %v2038
        %v2040 = vpop.xlane.xlu0 %2039
        %v2041 = vadd.f32 %v1983, %v1985
        %2042 = vadd.xlane.f32.xlu0 %v2041
        %v2043 = vpop.xlane.xlu0 %2042
        %v2044 = vadd.f32 %v1987, %v1989
        %2045 = vadd.xlane.f32.xlu0 %v2044
        %v2046 = vpop.xlane.xlu0 %2045
        %v2047 = vadd.f32 %v1991, %v1993
        %2048 = vadd.xlane.f32.xlu0 %v2047
        %v2049 = vpop.xlane.xlu0 %2048
        %v2050 = vadd.f32 %v1995, %v1997
        %2051 = vadd.xlane.f32.xlu0 %v2050
        %v2052 = vpop.xlane.xlu0 %2051
        %v2053 = vadd.f32 %v1999, %v2001
        %2054 = vadd.xlane.f32.xlu0 %v2053
        %v2055 = vpop.xlane.xlu0 %2054
        %v2056 = vadd.f32 %v2003, %v2005
        %2057 = vadd.xlane.f32.xlu0 %v2056
        %v2058 = vpop.xlane.xlu0 %2057
        %v2059 = vadd.f32 %v2007, %v2009
        %2060 = vadd.xlane.f32.xlu0 %v2059
        %v2061 = vpop.xlane.xlu0 %2060
        %v2062 = vadd.f32 %v2011, %v2013
        %2063 = vadd.xlane.f32.xlu0 %v2062
        %v2064 = vpop.xlane.xlu0 %2063
        %v2065 = vadd.f32 %v2015, %v2017
        %2066 = vadd.xlane.f32.xlu0 %v2065
        %v2067 = vpop.xlane.xlu0 %2066
        %v2068 = vadd.f32 %v2019, %v2021
        %2069 = vadd.xlane.f32.xlu0 %v2068
        %v2070 = vpop.xlane.xlu0 %2069
        %v2071 = vadd.f32 %v2023, %v2025
        %2072 = vadd.xlane.f32.xlu0 %v2071
        %v2073 = vpop.xlane.xlu0 %2072
        %v2074 = vrcp.pop %v2028
        %v2075 = vrcp.pop %v2031
        %v2076 = vrcp.pop %v2034
        %v2077 = vrcp.pop %v2037
        %v2078 = vrcp.pop %v2040
        %v2079 = vrcp.pop %v2043
        %v2080 = vrcp.pop %v2046
        %v2081 = vrcp.pop %v2049
        %v2082 = vrcp.pop %v2052
        %v2083 = vrcp.pop %v2055
        %v2084 = vrcp.pop %v2058
        %v2085 = vrcp.pop %v2061
        %v2086 = vrcp.pop %v2064
        %v2087 = vrcp.pop %v2067
        %v2088 = vrcp.pop %v2070
        %v2089 = vrcp.pop %v2073
        %v2090 = vmul.f32 %v1963, %v2074
        %v2091 = vmul.f32 %v1965, %v2074
        %v2092 = vmul.f32 %v1967, %v2075
        %v2093 = vmul.f32 %v1969, %v2075
        %v2094 = vmul.f32 %v1971, %v2076
        %v2095 = vmul.f32 %v1973, %v2076
        %v2096 = vmul.f32 %v1975, %v2077
        %v2097 = vmul.f32 %v1977, %v2077
        %v2098 = vmul.f32 %v1979, %v2078
        %v2099 = vmul.f32 %v1981, %v2078
        %v2100 = vmul.f32 %v1983, %v2079
        %v2101 = vmul.f32 %v1985, %v2079
        %v2102 = vmul.f32 %v1987, %v2080
        %v2103 = vmul.f32 %v1989, %v2080
        %v2104 = vmul.f32 %v1991, %v2081
        %v2105 = vmul.f32 %v1993, %v2081
        %v2106 = vmul.f32 %v1995, %v2082
        %v2107 = vmul.f32 %v1997, %v2082
        %v2108 = vmul.f32 %v1999, %v2083
        %v2109 = vmul.f32 %v2001, %v2083
        %v2110 = vmul.f32 %v2003, %v2084
        %v2111 = vmul.f32 %v2005, %v2084
        %v2112 = vmul.f32 %v2007, %v2085
        %v2113 = vmul.f32 %v2009, %v2085
        %v2114 = vmul.f32 %v2011, %v2086
        %v2115 = vmul.f32 %v2013, %v2086
        %v2116 = vmul.f32 %v2015, %v2087
        %v2117 = vmul.f32 %v2017, %v2087
        %v2118 = vmul.f32 %v2019, %v2088
        %v2119 = vmul.f32 %v2021, %v2088
        %v2120 = vmul.f32 %v2023, %v2089
        %v2121 = vmul.f32 %v2025, %v2089
        %2122 = vst [vmem:[%s450] sm:$0xff] %v2090
        %2123 = vst [vmem:[%s450 + $0x8] sm:$0xff] %v2091
        %2124 = vst [vmem:[%s450 + $0x10] sm:$0xff] %v2092
        %2125 = vst [vmem:[%s450 + $0x18] sm:$0xff] %v2093
        %2126 = vst [vmem:[%s450 + $0x20] sm:$0xff] %v2094
        %2127 = vst [vmem:[%s450 + $0x28] sm:$0xff] %v2095
        %2128 = vst [vmem:[%s450 + $0x30] sm:$0xff] %v2096
        %2129 = vst [vmem:[%s450 + $0x38] sm:$0xff] %v2097
        %2130 = vst [vmem:[%s450 + $0x40] sm:$0xff] %v2098
        %2131 = vst [vmem:[%s450 + $0x48] sm:$0xff] %v2099
        %2132 = vst [vmem:[%s450 + $0x50] sm:$0xff] %v2100
        %2133 = vst [vmem:[%s450 + $0x58] sm:$0xff] %v2101
        %2134 = vst [vmem:[%s450 + $0x60] sm:$0xff] %v2102
        %2135 = vst [vmem:[%s450 + $0x68] sm:$0xff] %v2103
        %2136 = vst [vmem:[%s450 + $0x70] sm:$0xff] %v2104
        %2137 = vst [vmem:[%s450 + $0x78] sm:$0xff] %v2105
        %2138 = vst [vmem:[%s450 + $0x80] sm:$0xff] %v2106
        %2139 = vst [vmem:[%s450 + $0x88] sm:$0xff] %v2107
        %2140 = vst [vmem:[%s450 + $0x90] sm:$0xff] %v2108
        %2141 = vst [vmem:[%s450 + $0x98] sm:$0xff] %v2109
        %2142 = vst [vmem:[%s450 + $0xa0] sm:$0xff] %v2110
        %2143 = vst [vmem:[%s450 + $0xa8] sm:$0xff] %v2111
        %2144 = vst [vmem:[%s450 + $0xb0] sm:$0xff] %v2112
        %2145 = vst [vmem:[%s450 + $0xb8] sm:$0xff] %v2113
        %2146 = vst [vmem:[%s450 + $0xc0] sm:$0xff] %v2114
        %2147 = vst [vmem:[%s450 + $0xc8] sm:$0xff] %v2115
        %2148 = vst [vmem:[%s450 + $0xd0] sm:$0xff] %v2116
        %2149 = vst [vmem:[%s450 + $0xd8] sm:$0xff] %v2117
        %2150 = vst [vmem:[%s450 + $0xe0] sm:$0xff] %v2118
        %2151 = vst [vmem:[%s450 + $0xe8] sm:$0xff] %v2119
        %2152 = vst [vmem:[%s450 + $0xf0] sm:$0xff] %v2120
        %2153 = vst [vmem:[%s450 + $0xf8] sm:$0xff] %v2121
        %2154 = vmatprep.subr.mxu0 0.0
        %2155 = vmatpush1.msra.mxu0 %v1687
        %2156 = vmatprep.subr.mxu0 0.0
        %2157 = vmatpush1.msra.mxu0 %v1685
        %2158 = vmatprep.subr.mxu0 0.0
        %2159 = vmatpush1.msra.mxu0 %v1683
        %2160 = vmatprep.subr.mxu0 0.0
        %2161 = vmatpush1.msra.mxu0 %v1681
        %2162 = vmatprep.subr.mxu0 0.0
        %2163 = vmatpush1.msra.mxu0 %v1679
        %2164 = vmatprep.subr.mxu0 0.0
        %2165 = vmatpush1.msra.mxu0 %v1677
        %2166 = vmatprep.subr.mxu0 0.0
        %2167 = vmatpush1.msra.mxu0 %v1675
        %2168 = vmatprep.subr.mxu0 0.0
        %2169 = vmatpush1.msra.mxu0 %v1673
        %2170 = vmatprep.subr.mxu0 0.0
        %2171 = vmatpush1.msra.mxu0 %v1671
        %2172 = vmatprep.subr.mxu0 0.0
        %2173 = vmatpush1.msra.mxu0 %v1669
        %2174 = vmatprep.subr.mxu0 0.0
        %2175 = vmatpush1.msra.mxu0 %v1667
        %2176 = vmatprep.subr.mxu0 0.0
        %2177 = vmatpush1.msra.mxu0 %v1665
        %2178 = vmatprep.subr.mxu0 0.0
        %2179 = vmatpush1.msra.mxu0 %v1663
        %2180 = vmatprep.subr.mxu0 0.0
        %2181 = vmatpush1.msra.mxu0 %v1661
        %2182 = vmatprep.subr.mxu0 0.0
        %2183 = vmatpush1.msra.mxu0 %v1659
        %2184 = vmatprep.subr.mxu0 0.0
        %2185 = vmatpush1.msra.mxu0 %v1657
        %2186 = vmatprep.subr.mxu0 0.0
        %2187 = vmatpush2.msra.mxu0 %v1719
        %2188 = vmatprep.subr.mxu0 0.0
        %2189 = vmatpush2.msra.mxu0 %v1717
        %2190 = vmatprep.subr.mxu0 0.0
        %2191 = vmatpush2.msra.mxu0 %v1715
        %2192 = vmatprep.subr.mxu0 0.0
        %2193 = vmatpush2.msra.mxu0 %v1713
        %2194 = vmatprep.subr.mxu0 0.0
        %2195 = vmatpush2.msra.mxu0 %v1711
        %2196 = vmatprep.subr.mxu0 0.0
        %2197 = vmatpush2.msra.mxu0 %v1709
        %2198 = vmatprep.subr.mxu0 0.0
        %2199 = vmatpush2.msra.mxu0 %v1707
        %2200 = vmatprep.subr.mxu0 0.0
        %2201 = vmatpush2.msra.mxu0 %v1705
        %2202 = vmatprep.subr.mxu0 0.0
        %2203 = vmatpush2.msra.mxu0 %v1703
        %2204 = vmatprep.subr.mxu0 0.0
        %2205 = vmatpush2.msra.mxu0 %v1701
        %2206 = vmatprep.subr.mxu0 0.0
        %2207 = vmatpush2.msra.mxu0 %v1699
        %2208 = vmatprep.subr.mxu0 0.0
        %2209 = vmatpush2.msra.mxu0 %v1697
        %2210 = vmatprep.subr.mxu0 0.0
        %2211 = vmatpush2.msra.mxu0 %v1695
        %2212 = vmatprep.subr.mxu0 0.0
        %2213 = vmatpush2.msra.mxu0 %v1693
        %2214 = vmatprep.subr.mxu0 0.0
        %2215 = vmatpush2.msra.mxu0 %v1691
        %2216 = vmatprep.subr.mxu0 0.0
        %2217 = vmatpush2.msra.mxu0 %v1689
        %2218 = vmatprep.mubr.f32.mxu0 %v2091
        %2219 = vmatmul.mubr.f32.gmra.mxu0 %v2090
        %v2220 = vpop.f32.mrf.mxu0
        %v2221 = vadd.f32 0.0, %v2220
        %v2222 = vpop.f32.mrf.mxu0
        %2223 = vmatprep.mubr.f32.mxu0 %v2093
        %2224 = vmatmul.mubr.f32.gmra.mxu0 %v2092
        %v2225 = vpop.f32.mrf.mxu0
        %v2226 = vadd.f32 0.0, %v2225
        %v2227 = vpop.f32.mrf.mxu0
        %2228 = vmatprep.mubr.f32.mxu0 %v2095
        %2229 = vmatmul.mubr.f32.gmra.mxu0 %v2094
        %v2230 = vpop.f32.mrf.mxu0
        %v2231 = vadd.f32 0.0, %v2230
        %v2232 = vpop.f32.mrf.mxu0
        %2233 = vmatprep.mubr.f32.mxu0 %v2097
        %2234 = vmatmul.mubr.f32.gmra.mxu0 %v2096
        %v2235 = vpop.f32.mrf.mxu0
        %v2236 = vadd.f32 0.0, %v2235
        %v2237 = vpop.f32.mrf.mxu0
        %2238 = vmatprep.mubr.f32.mxu0 %v2099
        %2239 = vmatmul.mubr.f32.gmra.mxu0 %v2098
        %v2240 = vpop.f32.mrf.mxu0
        %v2241 = vadd.f32 0.0, %v2240
        %v2242 = vpop.f32.mrf.mxu0
        %2243 = vmatprep.mubr.f32.mxu0 %v2101
        %2244 = vmatmul.mubr.f32.gmra.mxu0 %v2100
        %v2245 = vpop.f32.mrf.mxu0
        %v2246 = vadd.f32 0.0, %v2245
        %v2247 = vpop.f32.mrf.mxu0
        %2248 = vmatprep.mubr.f32.mxu0 %v2103
        %2249 = vmatmul.mubr.f32.gmra.mxu0 %v2102
        %v2250 = vpop.f32.mrf.mxu0
        %v2251 = vadd.f32 0.0, %v2250
        %v2252 = vpop.f32.mrf.mxu0
        %2253 = vmatprep.mubr.f32.mxu0 %v2105
        %2254 = vmatmul.mubr.f32.gmra.mxu0 %v2104
        %v2255 = vpop.f32.mrf.mxu0
        %v2256 = vadd.f32 0.0, %v2255
        %v2257 = vpop.f32.mrf.mxu0
        %2258 = vmatprep.mubr.f32.mxu0 %v2107
        %2259 = vmatmul.mubr.f32.gmra.mxu0 %v2106
        %v2260 = vpop.f32.mrf.mxu0
        %v2261 = vadd.f32 0.0, %v2260
        %v2262 = vpop.f32.mrf.mxu0
        %2263 = vmatprep.mubr.f32.mxu0 %v2109
        %2264 = vmatmul.mubr.f32.gmra.mxu0 %v2108
        %v2265 = vpop.f32.mrf.mxu0
        %v2266 = vadd.f32 0.0, %v2265
        %v2267 = vpop.f32.mrf.mxu0
        %2268 = vmatprep.mubr.f32.mxu0 %v2111
        %2269 = vmatmul.mubr.f32.gmra.mxu0 %v2110
        %v2270 = vpop.f32.mrf.mxu0
        %v2271 = vadd.f32 0.0, %v2270
        %v2272 = vpop.f32.mrf.mxu0
        %2273 = vmatprep.mubr.f32.mxu0 %v2113
        %2274 = vmatmul.mubr.f32.gmra.mxu0 %v2112
        %v2275 = vpop.f32.mrf.mxu0
        %v2276 = vadd.f32 0.0, %v2275
        %v2277 = vpop.f32.mrf.mxu0
        %2278 = vmatprep.mubr.f32.mxu0 %v2115
        %2279 = vmatmul.mubr.f32.gmra.mxu0 %v2114
        %v2280 = vpop.f32.mrf.mxu0
        %v2281 = vadd.f32 0.0, %v2280
        %v2282 = vpop.f32.mrf.mxu0
        %2283 = vmatprep.mubr.f32.mxu0 %v2117
        %2284 = vmatmul.mubr.f32.gmra.mxu0 %v2116
        %v2285 = vpop.f32.mrf.mxu0
        %v2286 = vadd.f32 0.0, %v2285
        %v2287 = vpop.f32.mrf.mxu0
        %2288 = vmatprep.mubr.f32.mxu0 %v2119
        %2289 = vmatmul.mubr.f32.gmra.mxu0 %v2118
        %v2290 = vpop.f32.mrf.mxu0
        %v2291 = vadd.f32 0.0, %v2290
        %v2292 = vpop.f32.mrf.mxu0
        %2293 = vmatprep.mubr.f32.mxu0 %v2121
        %2294 = vmatmul.mubr.f32.gmra.mxu0 %v2120
        %v2295 = vpop.f32.mrf.mxu0
        %v2296 = vadd.f32 0.0, %v2295
        %v2297 = vpop.f32.mrf.mxu0
        %2298 = vdwg.mxu0
        %2299 = vmatprep.subr.mxu0 0.0
        %2300 = vmatpush1.xpose.msra.mxu0 %v1624
        %2301 = vmatprep.subr.mxu0 0.0
        %2302 = vmatpush1.xpose.msra.mxu0 %v1622
        %2303 = vmatprep.subr.mxu0 0.0
        %2304 = vmatpush1.xpose.msra.mxu0 %v1620
        %2305 = vmatprep.subr.mxu0 0.0
        %2306 = vmatpush1.xpose.msra.mxu0 %v1618
        %2307 = vmatprep.subr.mxu0 0.0
        %2308 = vmatpush1.xpose.msra.mxu0 %v1616
        %2309 = vmatprep.subr.mxu0 0.0
        %2310 = vmatpush1.xpose.msra.mxu0 %v1614
        %2311 = vmatprep.subr.mxu0 0.0
        %2312 = vmatpush1.xpose.msra.mxu0 %v1612
        %2313 = vmatprep.subr.mxu0 0.0
        %2314 = vmatpush1.xpose.msra.mxu0 %v1610
        %2315 = vmatprep.subr.mxu0 0.0
        %2316 = vmatpush1.xpose.msra.mxu0 %v1608
        %2317 = vmatprep.subr.mxu0 0.0
        %2318 = vmatpush1.xpose.msra.mxu0 %v1606
        %2319 = vmatprep.subr.mxu0 0.0
        %2320 = vmatpush1.xpose.msra.mxu0 %v1604
        %2321 = vmatprep.subr.mxu0 0.0
        %2322 = vmatpush1.xpose.msra.mxu0 %v1602
        %2323 = vmatprep.subr.mxu0 0.0
        %2324 = vmatpush1.xpose.msra.mxu0 %v1600
        %2325 = vmatprep.subr.mxu0 0.0
        %2326 = vmatpush1.xpose.msra.mxu0 %v1598
        %2327 = vmatprep.subr.mxu0 0.0
        %2328 = vmatpush1.xpose.msra.mxu0 %v1596
        %2329 = vmatprep.subr.mxu0 0.0
        %2330 = vmatpush1.xpose.msra.mxu0 %v1594
        %2331 = vmatprep.subr.mxu0 0.0
        %2332 = vmatpush2.xpose.msra.mxu0 %v1656
        %2333 = vmatprep.subr.mxu0 0.0
        %2334 = vmatpush2.xpose.msra.mxu0 %v1654
        %2335 = vmatprep.subr.mxu0 0.0
        %2336 = vmatpush2.xpose.msra.mxu0 %v1652
        %2337 = vmatprep.subr.mxu0 0.0
        %2338 = vmatpush2.xpose.msra.mxu0 %v1650
        %2339 = vmatprep.subr.mxu0 0.0
        %2340 = vmatpush2.xpose.msra.mxu0 %v1648
        %2341 = vmatprep.subr.mxu0 0.0
        %2342 = vmatpush2.xpose.msra.mxu0 %v1646
        %2343 = vmatprep.subr.mxu0 0.0
        %2344 = vmatpush2.xpose.msra.mxu0 %v1644
        %2345 = vmatprep.subr.mxu0 0.0
        %2346 = vmatpush2.xpose.msra.mxu0 %v1642
        %2347 = vmatprep.subr.mxu0 0.0
        %2348 = vmatpush2.xpose.msra.mxu0 %v1640
        %2349 = vmatprep.subr.mxu0 0.0
        %2350 = vmatpush2.xpose.msra.mxu0 %v1638
        %2351 = vmatprep.subr.mxu0 0.0
        %2352 = vmatpush2.xpose.msra.mxu0 %v1636
        %2353 = vmatprep.subr.mxu0 0.0
        %2354 = vmatpush2.xpose.msra.mxu0 %v1634
        %2355 = vmatprep.subr.mxu0 0.0
        %2356 = vmatpush2.xpose.msra.mxu0 %v1632
        %2357 = vmatprep.subr.mxu0 0.0
        %2358 = vmatpush2.xpose.msra.mxu0 %v1630
        %2359 = vmatprep.subr.mxu0 0.0
        %2360 = vmatpush2.xpose.msra.mxu0 %v1628
        %2361 = vmatprep.subr.mxu0 0.0
        %2362 = vmatpush2.xpose.msra.mxu0 %v1626
        %2363 = vmatprep.mubr.f32.mxu0 0.0
        %2364 = vmatmul.mubr.f32.gmra.mxu0 %v1501
        %v2365 = vpop.f32.mrf.mxu0
        %v2366 = vadd.f32 0.0, %v2365
        %v2367 = vpop.f32.mrf.mxu0
        %v2368 = vadd.f32 0.0, %v2367
        %2369 = vmatprep.mubr.f32.mxu0 0.0
        %2370 = vmatmul.mubr.f32.gmra.mxu0 %v1507
        %v2371 = vpop.f32.mrf.mxu0
        %v2372 = vadd.f32 0.0, %v2371
        %v2373 = vpop.f32.mrf.mxu0
        %v2374 = vadd.f32 0.0, %v2373
        %2375 = vmatprep.mubr.f32.mxu0 0.0
        %2376 = vmatmul.mubr.f32.gmra.mxu0 %v1513
        %v2377 = vpop.f32.mrf.mxu0
        %v2378 = vadd.f32 0.0, %v2377
        %v2379 = vpop.f32.mrf.mxu0
        %v2380 = vadd.f32 0.0, %v2379
        %2381 = vmatprep.mubr.f32.mxu0 0.0
        %2382 = vmatmul.mubr.f32.gmra.mxu0 %v1519
        %v2383 = vpop.f32.mrf.mxu0
        %v2384 = vadd.f32 0.0, %v2383
        %v2385 = vpop.f32.mrf.mxu0
        %v2386 = vadd.f32 0.0, %v2385
        %2387 = vmatprep.mubr.f32.mxu0 0.0
        %2388 = vmatmul.mubr.f32.gmra.mxu0 %v1525
        %v2389 = vpop.f32.mrf.mxu0
        %v2390 = vadd.f32 0.0, %v2389
        %v2391 = vpop.f32.mrf.mxu0
        %v2392 = vadd.f32 0.0, %v2391
        %2393 = vmatprep.mubr.f32.mxu0 0.0
        %2394 = vmatmul.mubr.f32.gmra.mxu0 %v1531
        %v2395 = vpop.f32.mrf.mxu0
        %v2396 = vadd.f32 0.0, %v2395
        %v2397 = vpop.f32.mrf.mxu0
        %v2398 = vadd.f32 0.0, %v2397
        %2399 = vmatprep.mubr.f32.mxu0 0.0
        %2400 = vmatmul.mubr.f32.gmra.mxu0 %v1537
        %v2401 = vpop.f32.mrf.mxu0
        %v2402 = vadd.f32 0.0, %v2401
        %v2403 = vpop.f32.mrf.mxu0
        %v2404 = vadd.f32 0.0, %v2403
        %2405 = vmatprep.mubr.f32.mxu0 0.0
        %2406 = vmatmul.mubr.f32.gmra.mxu0 %v1543
        %v2407 = vpop.f32.mrf.mxu0
        %v2408 = vadd.f32 0.0, %v2407
        %v2409 = vpop.f32.mrf.mxu0
        %v2410 = vadd.f32 0.0, %v2409
        %2411 = vmatprep.mubr.f32.mxu0 0.0
        %2412 = vmatmul.mubr.f32.gmra.mxu0 %v1549
        %v2413 = vpop.f32.mrf.mxu0
        %v2414 = vadd.f32 0.0, %v2413
        %v2415 = vpop.f32.mrf.mxu0
        %v2416 = vadd.f32 0.0, %v2415
        %2417 = vmatprep.mubr.f32.mxu0 0.0
        %2418 = vmatmul.mubr.f32.gmra.mxu0 %v1555
        %v2419 = vpop.f32.mrf.mxu0
        %v2420 = vadd.f32 0.0, %v2419
        %v2421 = vpop.f32.mrf.mxu0
        %v2422 = vadd.f32 0.0, %v2421
        %2423 = vmatprep.mubr.f32.mxu0 0.0
        %2424 = vmatmul.mubr.f32.gmra.mxu0 %v1561
        %v2425 = vpop.f32.mrf.mxu0
        %v2426 = vadd.f32 0.0, %v2425
        %v2427 = vpop.f32.mrf.mxu0
        %v2428 = vadd.f32 0.0, %v2427
        %2429 = vmatprep.mubr.f32.mxu0 0.0
        %2430 = vmatmul.mubr.f32.gmra.mxu0 %v1567
        %v2431 = vpop.f32.mrf.mxu0
        %v2432 = vadd.f32 0.0, %v2431
        %v2433 = vpop.f32.mrf.mxu0
        %v2434 = vadd.f32 0.0, %v2433
        %2435 = vmatprep.mubr.f32.mxu0 0.0
        %2436 = vmatmul.mubr.f32.gmra.mxu0 %v1573
        %v2437 = vpop.f32.mrf.mxu0
        %v2438 = vadd.f32 0.0, %v2437
        %v2439 = vpop.f32.mrf.mxu0
        %v2440 = vadd.f32 0.0, %v2439
        %2441 = vmatprep.mubr.f32.mxu0 0.0
        %2442 = vmatmul.mubr.f32.gmra.mxu0 %v1579
        %v2443 = vpop.f32.mrf.mxu0
        %v2444 = vadd.f32 0.0, %v2443
        %v2445 = vpop.f32.mrf.mxu0
        %v2446 = vadd.f32 0.0, %v2445
        %2447 = vmatprep.mubr.f32.mxu0 0.0
        %2448 = vmatmul.mubr.f32.gmra.mxu0 %v1585
        %v2449 = vpop.f32.mrf.mxu0
        %v2450 = vadd.f32 0.0, %v2449
        %v2451 = vpop.f32.mrf.mxu0
        %v2452 = vadd.f32 0.0, %v2451
        %2453 = vmatprep.mubr.f32.mxu0 0.0
        %2454 = vmatmul.mubr.f32.gmra.mxu0 %v1591
        %v2455 = vpop.f32.mrf.mxu0
        %v2456 = vadd.f32 0.0, %v2455
        %v2457 = vpop.f32.mrf.mxu0
        %v2458 = vadd.f32 0.0, %v2457
        %2459 = vdwg.mxu0
        %v2460 = vmax.f32 %v2366, %v2368
        %2461 = vmax.xlane.f32.xlu0 %v2460
        %v2462 = vpop.xlane.xlu0 %2461
        %v2463 = vmax.f32 %v2372, %v2374
        %2464 = vmax.xlane.f32.xlu0 %v2463
        %v2465 = vpop.xlane.xlu0 %2464
        %v2466 = vmax.f32 %v2378, %v2380
        %2467 = vmax.xlane.f32.xlu0 %v2466
        %v2468 = vpop.xlane.xlu0 %2467
        %v2469 = vmax.f32 %v2384, %v2386
        %2470 = vmax.xlane.f32.xlu0 %v2469
        %v2471 = vpop.xlane.xlu0 %2470
        %v2472 = vmax.f32 %v2390, %v2392
        %2473 = vmax.xlane.f32.xlu0 %v2472
        %v2474 = vpop.xlane.xlu0 %2473
        %v2475 = vmax.f32 %v2396, %v2398
        %2476 = vmax.xlane.f32.xlu0 %v2475
        %v2477 = vpop.xlane.xlu0 %2476
        %v2478 = vmax.f32 %v2402, %v2404
        %2479 = vmax.xlane.f32.xlu0 %v2478
        %v2480 = vpop.xlane.xlu0 %2479
        %v2481 = vmax.f32 %v2408, %v2410
        %2482 = vmax.xlane.f32.xlu0 %v2481
        %v2483 = vpop.xlane.xlu0 %2482
        %v2484 = vmax.f32 %v2414, %v2416
        %2485 = vmax.xlane.f32.xlu0 %v2484
        %v2486 = vpop.xlane.xlu0 %2485
        %v2487 = vmax.f32 %v2420, %v2422
        %2488 = vmax.xlane.f32.xlu0 %v2487
        %v2489 = vpop.xlane.xlu0 %2488
        %v2490 = vmax.f32 %v2426, %v2428
        %2491 = vmax.xlane.f32.xlu0 %v2490
        %v2492 = vpop.xlane.xlu0 %2491
        %v2493 = vmax.f32 %v2432, %v2434
        %2494 = vmax.xlane.f32.xlu0 %v2493
        %v2495 = vpop.xlane.xlu0 %2494
        %v2496 = vmax.f32 %v2438, %v2440
        %2497 = vmax.xlane.f32.xlu0 %v2496
        %v2498 = vpop.xlane.xlu0 %2497
        %v2499 = vmax.f32 %v2444, %v2446
        %2500 = vmax.xlane.f32.xlu0 %v2499
        %v2501 = vpop.xlane.xlu0 %2500
        %v2502 = vmax.f32 %v2450, %v2452
        %2503 = vmax.xlane.f32.xlu0 %v2502
        %v2504 = vpop.xlane.xlu0 %2503
        %v2505 = vmax.f32 %v2456, %v2458
        %2506 = vmax.xlane.f32.xlu0 %v2505
        %v2507 = vpop.xlane.xlu0 %2506
        %v2508 = vsub.f32 %v2366, %v2462
        %v2509 = vsub.f32 %v2368, %v2462
        %v2510 = vsub.f32 %v2372, %v2465
        %v2511 = vsub.f32 %v2374, %v2465
        %v2512 = vsub.f32 %v2378, %v2468
        %v2513 = vsub.f32 %v2380, %v2468
        %v2514 = vsub.f32 %v2384, %v2471
        %v2515 = vsub.f32 %v2386, %v2471
        %v2516 = vsub.f32 %v2390, %v2474
        %v2517 = vsub.f32 %v2392, %v2474
        %v2518 = vsub.f32 %v2396, %v2477
        %v2519 = vsub.f32 %v2398, %v2477
        %v2520 = vsub.f32 %v2402, %v2480
        %v2521 = vsub.f32 %v2404, %v2480
        %v2522 = vsub.f32 %v2408, %v2483
        %v2523 = vsub.f32 %v2410, %v2483
        %v2524 = vsub.f32 %v2414, %v2486
        %v2525 = vsub.f32 %v2416, %v2486
        %v2526 = vsub.f32 %v2420, %v2489
        %v2527 = vsub.f32 %v2422, %v2489
        %v2528 = vsub.f32 %v2426, %v2492
        %v2529 = vsub.f32 %v2428, %v2492
        %v2530 = vsub.f32 %v2432, %v2495
        %v2531 = vsub.f32 %v2434, %v2495
        %v2532 = vsub.f32 %v2438, %v2498
        %v2533 = vsub.f32 %v2440, %v2498
        %v2534 = vsub.f32 %v2444, %v2501
        %v2535 = vsub.f32 %v2446, %v2501
        %v2536 = vsub.f32 %v2450, %v2504
        %v2537 = vsub.f32 %v2452, %v2504
        %v2538 = vsub.f32 %v2456, %v2507
        %v2539 = vsub.f32 %v2458, %v2507
        %v2540 = vmul.f32 %v2508, 1.442695
        %v2541 = vpow.pop %v2540
        %v2542 = vmul.f32 %v2509, 1.442695
        %v2543 = vpow.pop %v2542
        %v2544 = vmul.f32 %v2510, 1.442695
        %v2545 = vpow.pop %v2544
        %v2546 = vmul.f32 %v2511, 1.442695
        %v2547 = vpow.pop %v2546
        %v2548 = vmul.f32 %v2512, 1.442695
        %v2549 = vpow.pop %v2548
        %v2550 = vmul.f32 %v2513, 1.442695
        %v2551 = vpow.pop %v2550
        %v2552 = vmul.f32 %v2514, 1.442695
        %v2553 = vpow.pop %v2552
        %v2554 = vmul.f32 %v2515, 1.442695
        %v2555 = vpow.pop %v2554
        %v2556 = vmul.f32 %v2516, 1.442695
        %v2557 = vpow.pop %v2556
        %v2558 = vmul.f32 %v2517, 1.442695
        %v2559 = vpow.pop %v2558
        %v2560 = vmul.f32 %v2518, 1.442695
        %v2561 = vpow.pop %v2560
        %v2562 = vmul.f32 %v2519, 1.442695
        %v2563 = vpow.pop %v2562
        %v2564 = vmul.f32 %v2520, 1.442695
        %v2565 = vpow.pop %v2564
        %v2566 = vmul.f32 %v2521, 1.442695
        %v2567 = vpow.pop %v2566
        %v2568 = vmul.f32 %v2522, 1.442695
        %v2569 = vpow.pop %v2568
        %v2570 = vmul.f32 %v2523, 1.442695
        %v2571 = vpow.pop %v2570
        %v2572 = vmul.f32 %v2524, 1.442695
        %v2573 = vpow.pop %v2572
        %v2574 = vmul.f32 %v2525, 1.442695
        %v2575 = vpow.pop %v2574
        %v2576 = vmul.f32 %v2526, 1.442695
        %v2577 = vpow.pop %v2576
        %v2578 = vmul.f32 %v2527, 1.442695
        %v2579 = vpow.pop %v2578
        %v2580 = vmul.f32 %v2528, 1.442695
        %v2581 = vpow.pop %v2580
        %v2582 = vmul.f32 %v2529, 1.442695
        %v2583 = vpow.pop %v2582
        %v2584 = vmul.f32 %v2530, 1.442695
        %v2585 = vpow.pop %v2584
        %v2586 = vmul.f32 %v2531, 1.442695
        %v2587 = vpow.pop %v2586
        %v2588 = vmul.f32 %v2532, 1.442695
        %v2589 = vpow.pop %v2588
        %v2590 = vmul.f32 %v2533, 1.442695
        %v2591 = vpow.pop %v2590
        %v2592 = vmul.f32 %v2534, 1.442695
        %v2593 = vpow.pop %v2592
        %v2594 = vmul.f32 %v2535, 1.442695
        %v2595 = vpow.pop %v2594
        %v2596 = vmul.f32 %v2536, 1.442695
        %v2597 = vpow.pop %v2596
        %v2598 = vmul.f32 %v2537, 1.442695
        %v2599 = vpow.pop %v2598
        %v2600 = vmul.f32 %v2538, 1.442695
        %v2601 = vpow.pop %v2600
        %v2602 = vmul.f32 %v2539, 1.442695
        %v2603 = vpow.pop %v2602
        %v2604 = vadd.f32 %v2541, %v2543
        %2605 = vadd.xlane.f32.xlu0 %v2604
        %v2606 = vpop.xlane.xlu0 %2605
        %v2607 = vadd.f32 %v2545, %v2547
        %2608 = vadd.xlane.f32.xlu0 %v2607
        %v2609 = vpop.xlane.xlu0 %2608
        %v2610 = vadd.f32 %v2549, %v2551
        %2611 = vadd.xlane.f32.xlu0 %v2610
        %v2612 = vpop.xlane.xlu0 %2611
        %v2613 = vadd.f32 %v2553, %v2555
        %2614 = vadd.xlane.f32.xlu0 %v2613
        %v2615 = vpop.xlane.xlu0 %2614
        %v2616 = vadd.f32 %v2557, %v2559
        %2617 = vadd.xlane.f32.xlu0 %v2616
        %v2618 = vpop.xlane.xlu0 %2617
        %v2619 = vadd.f32 %v2561, %v2563
        %2620 = vadd.xlane.f32.xlu0 %v2619
        %v2621 = vpop.xlane.xlu0 %2620
        %v2622 = vadd.f32 %v2565, %v2567
        %2623 = vadd.xlane.f32.xlu0 %v2622
        %v2624 = vpop.xlane.xlu0 %2623
        %v2625 = vadd.f32 %v2569, %v2571
        %2626 = vadd.xlane.f32.xlu0 %v2625
        %v2627 = vpop.xlane.xlu0 %2626
        %v2628 = vadd.f32 %v2573, %v2575
        %2629 = vadd.xlane.f32.xlu0 %v2628
        %v2630 = vpop.xlane.xlu0 %2629
        %v2631 = vadd.f32 %v2577, %v2579
        %2632 = vadd.xlane.f32.xlu0 %v2631
        %v2633 = vpop.xlane.xlu0 %2632
        %v2634 = vadd.f32 %v2581, %v2583
        %2635 = vadd.xlane.f32.xlu0 %v2634
        %v2636 = vpop.xlane.xlu0 %2635
        %v2637 = vadd.f32 %v2585, %v2587
        %2638 = vadd.xlane.f32.xlu0 %v2637
        %v2639 = vpop.xlane.xlu0 %2638
        %v2640 = vadd.f32 %v2589, %v2591
        %2641 = vadd.xlane.f32.xlu0 %v2640
        %v2642 = vpop.xlane.xlu0 %2641
        %v2643 = vadd.f32 %v2593, %v2595
        %2644 = vadd.xlane.f32.xlu0 %v2643
        %v2645 = vpop.xlane.xlu0 %2644
        %v2646 = vadd.f32 %v2597, %v2599
        %2647 = vadd.xlane.f32.xlu0 %v2646
        %v2648 = vpop.xlane.xlu0 %2647
        %v2649 = vadd.f32 %v2601, %v2603
        %2650 = vadd.xlane.f32.xlu0 %v2649
        %v2651 = vpop.xlane.xlu0 %2650
        %v2652 = vrcp.pop %v2606
        %v2653 = vrcp.pop %v2609
        %v2654 = vrcp.pop %v2612
        %v2655 = vrcp.pop %v2615
        %v2656 = vrcp.pop %v2618
        %v2657 = vrcp.pop %v2621
        %v2658 = vrcp.pop %v2624
        %v2659 = vrcp.pop %v2627
        %v2660 = vrcp.pop %v2630
        %v2661 = vrcp.pop %v2633
        %v2662 = vrcp.pop %v2636
        %v2663 = vrcp.pop %v2639
        %v2664 = vrcp.pop %v2642
        %v2665 = vrcp.pop %v2645
        %v2666 = vrcp.pop %v2648
        %v2667 = vrcp.pop %v2651
        %v2668 = vmul.f32 %v2541, %v2652
        %v2669 = vmul.f32 %v2543, %v2652
        %v2670 = vmul.f32 %v2545, %v2653
        %v2671 = vmul.f32 %v2547, %v2653
        %v2672 = vmul.f32 %v2549, %v2654
        %v2673 = vmul.f32 %v2551, %v2654
        %v2674 = vmul.f32 %v2553, %v2655
        %v2675 = vmul.f32 %v2555, %v2655
        %v2676 = vmul.f32 %v2557, %v2656
        %v2677 = vmul.f32 %v2559, %v2656
        %v2678 = vmul.f32 %v2561, %v2657
        %v2679 = vmul.f32 %v2563, %v2657
        %v2680 = vmul.f32 %v2565, %v2658
        %v2681 = vmul.f32 %v2567, %v2658
        %v2682 = vmul.f32 %v2569, %v2659
        %v2683 = vmul.f32 %v2571, %v2659
        %v2684 = vmul.f32 %v2573, %v2660
        %v2685 = vmul.f32 %v2575, %v2660
        %v2686 = vmul.f32 %v2577, %v2661
        %v2687 = vmul.f32 %v2579, %v2661
        %v2688 = vmul.f32 %v2581, %v2662
        %v2689 = vmul.f32 %v2583, %v2662
        %v2690 = vmul.f32 %v2585, %v2663
        %v2691 = vmul.f32 %v2587, %v2663
        %v2692 = vmul.f32 %v2589, %v2664
        %v2693 = vmul.f32 %v2591, %v2664
        %v2694 = vmul.f32 %v2593, %v2665
        %v2695 = vmul.f32 %v2595, %v2665
        %v2696 = vmul.f32 %v2597, %v2666
        %v2697 = vmul.f32 %v2599, %v2666
        %v2698 = vmul.f32 %v2601, %v2667
        %v2699 = vmul.f32 %v2603, %v2667
        %s2700 = scalar_lea.vmem %s450, 256 [#allocation13]
        %2701 = vst [vmem:[%s2700] sm:$0xff] %v2668
        %2702 = vst [vmem:[%s2700 + $0x8] sm:$0xff] %v2669
        %2703 = vst [vmem:[%s2700 + $0x10] sm:$0xff] %v2670
        %2704 = vst [vmem:[%s2700 + $0x18] sm:$0xff] %v2671
        %2705 = vst [vmem:[%s2700 + $0x20] sm:$0xff] %v2672
        %2706 = vst [vmem:[%s2700 + $0x28] sm:$0xff] %v2673
        %2707 = vst [vmem:[%s2700 + $0x30] sm:$0xff] %v2674
        %2708 = vst [vmem:[%s2700 + $0x38] sm:$0xff] %v2675
        %2709 = vst [vmem:[%s2700 + $0x40] sm:$0xff] %v2676
        %2710 = vst [vmem:[%s2700 + $0x48] sm:$0xff] %v2677
        %2711 = vst [vmem:[%s2700 + $0x50] sm:$0xff] %v2678
        %2712 = vst [vmem:[%s2700 + $0x58] sm:$0xff] %v2679
        %2713 = vst [vmem:[%s2700 + $0x60] sm:$0xff] %v2680
        %2714 = vst [vmem:[%s2700 + $0x68] sm:$0xff] %v2681
        %2715 = vst [vmem:[%s2700 + $0x70] sm:$0xff] %v2682
        %2716 = vst [vmem:[%s2700 + $0x78] sm:$0xff] %v2683
        %2717 = vst [vmem:[%s2700 + $0x80] sm:$0xff] %v2684
        %2718 = vst [vmem:[%s2700 + $0x88] sm:$0xff] %v2685
        %2719 = vst [vmem:[%s2700 + $0x90] sm:$0xff] %v2686
        %2720 = vst [vmem:[%s2700 + $0x98] sm:$0xff] %v2687
        %2721 = vst [vmem:[%s2700 + $0xa0] sm:$0xff] %v2688
        %2722 = vst [vmem:[%s2700 + $0xa8] sm:$0xff] %v2689
        %2723 = vst [vmem:[%s2700 + $0xb0] sm:$0xff] %v2690
        %2724 = vst [vmem:[%s2700 + $0xb8] sm:$0xff] %v2691
        %2725 = vst [vmem:[%s2700 + $0xc0] sm:$0xff] %v2692
        %2726 = vst [vmem:[%s2700 + $0xc8] sm:$0xff] %v2693
        %2727 = vst [vmem:[%s2700 + $0xd0] sm:$0xff] %v2694
        %2728 = vst [vmem:[%s2700 + $0xd8] sm:$0xff] %v2695
        %2729 = vst [vmem:[%s2700 + $0xe0] sm:$0xff] %v2696
        %2730 = vst [vmem:[%s2700 + $0xe8] sm:$0xff] %v2697
        %2731 = vst [vmem:[%s2700 + $0xf0] sm:$0xff] %v2698
        %2732 = vst [vmem:[%s2700 + $0xf8] sm:$0xff] %v2699
        %2733 = vmatprep.subr.mxu0 0.0
        %2734 = vmatpush1.msra.mxu0 %v1688
        %2735 = vmatprep.subr.mxu0 0.0
        %2736 = vmatpush1.msra.mxu0 %v1686
        %2737 = vmatprep.subr.mxu0 0.0
        %2738 = vmatpush1.msra.mxu0 %v1684
        %2739 = vmatprep.subr.mxu0 0.0
        %2740 = vmatpush1.msra.mxu0 %v1682
        %2741 = vmatprep.subr.mxu0 0.0
        %2742 = vmatpush1.msra.mxu0 %v1680
        %2743 = vmatprep.subr.mxu0 0.0
        %2744 = vmatpush1.msra.mxu0 %v1678
        %2745 = vmatprep.subr.mxu0 0.0
        %2746 = vmatpush1.msra.mxu0 %v1676
        %2747 = vmatprep.subr.mxu0 0.0
        %2748 = vmatpush1.msra.mxu0 %v1674
        %2749 = vmatprep.subr.mxu0 0.0
        %2750 = vmatpush1.msra.mxu0 %v1672
        %2751 = vmatprep.subr.mxu0 0.0
        %2752 = vmatpush1.msra.mxu0 %v1670
        %2753 = vmatprep.subr.mxu0 0.0
        %2754 = vmatpush1.msra.mxu0 %v1668
        %2755 = vmatprep.subr.mxu0 0.0
        %2756 = vmatpush1.msra.mxu0 %v1666
        %2757 = vmatprep.subr.mxu0 0.0
        %2758 = vmatpush1.msra.mxu0 %v1664
        %2759 = vmatprep.subr.mxu0 0.0
        %2760 = vmatpush1.msra.mxu0 %v1662
        %2761 = vmatprep.subr.mxu0 0.0
        %2762 = vmatpush1.msra.mxu0 %v1660
        %2763 = vmatprep.subr.mxu0 0.0
        %2764 = vmatpush1.msra.mxu0 %v1658
        %2765 = vmatprep.subr.mxu0 0.0
        %2766 = vmatpush2.msra.mxu0 %v1720
        %2767 = vmatprep.subr.mxu0 0.0
        %2768 = vmatpush2.msra.mxu0 %v1718
        %2769 = vmatprep.subr.mxu0 0.0
        %2770 = vmatpush2.msra.mxu0 %v1716
        %2771 = vmatprep.subr.mxu0 0.0
        %2772 = vmatpush2.msra.mxu0 %v1714
        %2773 = vmatprep.subr.mxu0 0.0
        %2774 = vmatpush2.msra.mxu0 %v1712
        %2775 = vmatprep.subr.mxu0 0.0
        %2776 = vmatpush2.msra.mxu0 %v1710
        %2777 = vmatprep.subr.mxu0 0.0
        %2778 = vmatpush2.msra.mxu0 %v1708
        %2779 = vmatprep.subr.mxu0 0.0
        %2780 = vmatpush2.msra.mxu0 %v1706
        %2781 = vmatprep.subr.mxu0 0.0
        %2782 = vmatpush2.msra.mxu0 %v1704
        %2783 = vmatprep.subr.mxu0 0.0
        %2784 = vmatpush2.msra.mxu0 %v1702
        %2785 = vmatprep.subr.mxu0 0.0
        %2786 = vmatpush2.msra.mxu0 %v1700
        %2787 = vmatprep.subr.mxu0 0.0
        %2788 = vmatpush2.msra.mxu0 %v1698
        %2789 = vmatprep.subr.mxu0 0.0
        %2790 = vmatpush2.msra.mxu0 %v1696
        %2791 = vmatprep.subr.mxu0 0.0
        %2792 = vmatpush2.msra.mxu0 %v1694
        %2793 = vmatprep.subr.mxu0 0.0
        %2794 = vmatpush2.msra.mxu0 %v1692
        %2795 = vmatprep.subr.mxu0 0.0
        %2796 = vmatpush2.msra.mxu0 %v1690
        %2797 = vmatprep.mubr.f32.mxu0 %v2669
        %2798 = vmatmul.mubr.f32.gmra.mxu0 %v2668
        %v2799 = vpop.f32.mrf.mxu0
        %v2800 = vadd.f32 0.0, %v2799
        %v2801 = vpop.f32.mrf.mxu0
        %2802 = vmatprep.mubr.f32.mxu0 %v2671
        %2803 = vmatmul.mubr.f32.gmra.mxu0 %v2670
        %v2804 = vpop.f32.mrf.mxu0
        %v2805 = vadd.f32 0.0, %v2804
        %v2806 = vpop.f32.mrf.mxu0
        %2807 = vmatprep.mubr.f32.mxu0 %v2673
        %2808 = vmatmul.mubr.f32.gmra.mxu0 %v2672
        %v2809 = vpop.f32.mrf.mxu0
        %v2810 = vadd.f32 0.0, %v2809
        %v2811 = vpop.f32.mrf.mxu0
        %2812 = vmatprep.mubr.f32.mxu0 %v2675
        %2813 = vmatmul.mubr.f32.gmra.mxu0 %v2674
        %v2814 = vpop.f32.mrf.mxu0
        %v2815 = vadd.f32 0.0, %v2814
        %v2816 = vpop.f32.mrf.mxu0
        %2817 = vmatprep.mubr.f32.mxu0 %v2677
        %2818 = vmatmul.mubr.f32.gmra.mxu0 %v2676
        %v2819 = vpop.f32.mrf.mxu0
        %v2820 = vadd.f32 0.0, %v2819
        %v2821 = vpop.f32.mrf.mxu0
        %2822 = vmatprep.mubr.f32.mxu0 %v2679
        %2823 = vmatmul.mubr.f32.gmra.mxu0 %v2678
        %v2824 = vpop.f32.mrf.mxu0
        %v2825 = vadd.f32 0.0, %v2824
        %v2826 = vpop.f32.mrf.mxu0
        %2827 = vmatprep.mubr.f32.mxu0 %v2681
        %2828 = vmatmul.mubr.f32.gmra.mxu0 %v2680
        %v2829 = vpop.f32.mrf.mxu0
        %v2830 = vadd.f32 0.0, %v2829
        %v2831 = vpop.f32.mrf.mxu0
        %2832 = vmatprep.mubr.f32.mxu0 %v2683
        %2833 = vmatmul.mubr.f32.gmra.mxu0 %v2682
        %v2834 = vpop.f32.mrf.mxu0
        %v2835 = vadd.f32 0.0, %v2834
        %v2836 = vpop.f32.mrf.mxu0
        %2837 = vmatprep.mubr.f32.mxu0 %v2685
        %2838 = vmatmul.mubr.f32.gmra.mxu0 %v2684
        %v2839 = vpop.f32.mrf.mxu0
        %v2840 = vadd.f32 0.0, %v2839
        %v2841 = vpop.f32.mrf.mxu0
        %2842 = vmatprep.mubr.f32.mxu0 %v2687
        %2843 = vmatmul.mubr.f32.gmra.mxu0 %v2686
        %v2844 = vpop.f32.mrf.mxu0
        %v2845 = vadd.f32 0.0, %v2844
        %v2846 = vpop.f32.mrf.mxu0
        %2847 = vmatprep.mubr.f32.mxu0 %v2689
        %2848 = vmatmul.mubr.f32.gmra.mxu0 %v2688
        %v2849 = vpop.f32.mrf.mxu0
        %v2850 = vadd.f32 0.0, %v2849
        %v2851 = vpop.f32.mrf.mxu0
        %2852 = vmatprep.mubr.f32.mxu0 %v2691
        %2853 = vmatmul.mubr.f32.gmra.mxu0 %v2690
        %v2854 = vpop.f32.mrf.mxu0
        %v2855 = vadd.f32 0.0, %v2854
        %v2856 = vpop.f32.mrf.mxu0
        %2857 = vmatprep.mubr.f32.mxu0 %v2693
        %2858 = vmatmul.mubr.f32.gmra.mxu0 %v2692
        %v2859 = vpop.f32.mrf.mxu0
        %v2860 = vadd.f32 0.0, %v2859
        %v2861 = vpop.f32.mrf.mxu0
        %2862 = vmatprep.mubr.f32.mxu0 %v2695
        %2863 = vmatmul.mubr.f32.gmra.mxu0 %v2694
        %v2864 = vpop.f32.mrf.mxu0
        %v2865 = vadd.f32 0.0, %v2864
        %v2866 = vpop.f32.mrf.mxu0
        %2867 = vmatprep.mubr.f32.mxu0 %v2697
        %2868 = vmatmul.mubr.f32.gmra.mxu0 %v2696
        %v2869 = vpop.f32.mrf.mxu0
        %v2870 = vadd.f32 0.0, %v2869
        %v2871 = vpop.f32.mrf.mxu0
        %2872 = vmatprep.mubr.f32.mxu0 %v2699
        %2873 = vmatmul.mubr.f32.gmra.mxu0 %v2698
        %v2874 = vpop.f32.mrf.mxu0
        %v2875 = vadd.f32 0.0, %v2874
        %v2876 = vpop.f32.mrf.mxu0
        %2877 = vdwg.mxu0
        %2878 = vst [vmem:[%s443] sm:$0xff] %v2221
        %2879 = vst [vmem:[%s443 + $0x8] sm:$0xff] %v2800
        %2880 = vst [vmem:[%s443 + $0x10] sm:$0xff] %v2226
        %2881 = vst [vmem:[%s443 + $0x18] sm:$0xff] %v2805
        %2882 = vst [vmem:[%s443 + $0x20] sm:$0xff] %v2231
        %2883 = vst [vmem:[%s443 + $0x28] sm:$0xff] %v2810
        %2884 = vst [vmem:[%s443 + $0x30] sm:$0xff] %v2236
        %2885 = vst [vmem:[%s443 + $0x38] sm:$0xff] %v2815
        %2886 = vst [vmem:[%s443 + $0x40] sm:$0xff] %v2241
        %2887 = vst [vmem:[%s443 + $0x48] sm:$0xff] %v2820
        %2888 = vst [vmem:[%s443 + $0x50] sm:$0xff] %v2246
        %2889 = vst [vmem:[%s443 + $0x58] sm:$0xff] %v2825
        %2890 = vst [vmem:[%s443 + $0x60] sm:$0xff] %v2251
        %2891 = vst [vmem:[%s443 + $0x68] sm:$0xff] %v2830
        %2892 = vst [vmem:[%s443 + $0x70] sm:$0xff] %v2256
        %2893 = vst [vmem:[%s443 + $0x78] sm:$0xff] %v2835
        %2894 = vst [vmem:[%s443 + $0x80] sm:$0xff] %v2261
        %2895 = vst [vmem:[%s443 + $0x88] sm:$0xff] %v2840
        %2896 = vst [vmem:[%s443 + $0x90] sm:$0xff] %v2266
        %2897 = vst [vmem:[%s443 + $0x98] sm:$0xff] %v2845
        %2898 = vst [vmem:[%s443 + $0xa0] sm:$0xff] %v2271
        %2899 = vst [vmem:[%s443 + $0xa8] sm:$0xff] %v2850
        %2900 = vst [vmem:[%s443 + $0xb0] sm:$0xff] %v2276
        %2901 = vst [vmem:[%s443 + $0xb8] sm:$0xff] %v2855
        %2902 = vst [vmem:[%s443 + $0xc0] sm:$0xff] %v2281
        %2903 = vst [vmem:[%s443 + $0xc8] sm:$0xff] %v2860
        %2904 = vst [vmem:[%s443 + $0xd0] sm:$0xff] %v2286
        %2905 = vst [vmem:[%s443 + $0xd8] sm:$0xff] %v2865
        %2906 = vst [vmem:[%s443 + $0xe0] sm:$0xff] %v2291
        %2907 = vst [vmem:[%s443 + $0xe8] sm:$0xff] %v2870
        %2908 = vst [vmem:[%s443 + $0xf0] sm:$0xff] %v2296
        %2909 = vst [vmem:[%s443 + $0xf8] sm:$0xff] %v2875
        %s2910 = sand.u32 %s221, 1
        %s2911 = scalar_lea.sflag [#allocation6], %s2910
        %s2912 = sand.u32 %s221, 1
        %s2913 = smul.addr %s2912, 256
        %s2914 = scalar_lea.vmem [#allocation12], %s2913
        %s2915 = sand.u32 %s251, 1
        %s2916 = scalar_lea.sflag [#allocation14], %s2915
        %s2917 = sand.u32 %s251, 1
        %s2918 = smul.addr %s2917, 512
        %s2919 = scalar_lea.vmem [#allocation13], %s2918
        // Predicated region
        $region65: #{tpu_custom_call.1} parent=43 // pred_check
          %p2920 = pneg %p231
        $region66: #{tpu_custom_call.1} parent=43 // pred_check_branch
          %2922 = sbr.rel (%p2920) target = $region68
        $region67: #{tpu_custom_call.1} parent=43 // pred_region
          %s2923 = smul.u32 16, %s39
          %s2924 = smul.u32 2, %s38
          %s2926 = ssub.s32 4096, 4096
          %2927 = vsyncadd %s2911, %s2926
          %s2928 = smul.addr %s2923, 2
          %s2929 = sadd.s32 %s2924, %s2928
          %s2930 = smul.addr %s37, 64
          %s2931 = sadd.s32 %s2929, %s2930
          %s2932 = smul.addr %s2931, 128
          %s2933 = scalar_lea.hbm %s6, %s2932
          %s2934 = sshll.u32 %s2914, 4
          %s2935 = int_to_ptr.vmem [resolvable:$true] %s2934
          %2940 = dma.vmem_to_hbm [thread:$0]  %s2935, 4096, %s2933, %s2911, 256, 256, 16
        $region68: #{tpu_custom_call.1} parent=43 // pred_fallthru
          _
        // Predicated region
        $region69: #{tpu_custom_call.1} parent=43 // pred_check
          %p2941 = pneg %p261
        $region70: #{tpu_custom_call.1} parent=43 // pred_check_branch
          %2943 = sbr.rel (%p2941) target = $region72
        $region71: #{tpu_custom_call.1} parent=43 // pred_region
          #allocation16 [shape = 'u32[6]{0}', space=smem, size = 0x18, scoped, tag = 'DMA stride descriptor']
          %s2944 = smul.u32 2, %s38
          %s2945 = smul.u32 16, %s39
          %s2947 = ssub.s32 8192, 8192
          %2948 = vsyncadd %s2916, %s2947
          %s2949 = smul.addr %s2945, 2
          %s2950 = smul.addr %s37, 64
          %s2951 = sadd.s32 %s2949, %s2950
          %s2952 = smul.addr %s2944, 128
          %s2953 = sadd.s32 %s2951, %s2952
          %s2954 = smul.addr %s2953, 128
          %s2955 = scalar_lea.hbm %s7, %s2954
          %s2957 = sshll.u32 1, 14
          %s2958 = sxor.u32 4294967295, %s2957
          %s2961 = sshll.u32 7, 18
          %s2962 = sxor.u32 4294967295, %s2961
          %s2963 = sand.u32 0, %s2962
          %s2965 = sor.u32 %s2963, 0
          %s2966 = sshll.u32 %s2919, 4
          %s2967 = int_to_ptr.vmem [resolvable:$true] %s2966
          %2973 = sst [smem:[#allocation16]] 4096
          %s2974 = scalar_lea.smem [#allocation16], 1
          %2975 = sst [smem:[%s2974]] 16384
          %s2976 = scalar_lea.smem [#allocation16], 2
          %2977 = sst [smem:[%s2976]] 16
          %s2978 = scalar_lea.smem [#allocation16], 3
          %2979 = sst [smem:[%s2978]] 256
          %s2980 = scalar_lea.smem [#allocation16], 4
          %2981 = sst [smem:[%s2980]] 256
          %s2982 = scalar_lea.smem [#allocation16], 5
          %2983 = sst [smem:[%s2982]] 16
          %2985 = dma.general %s2967, 8192, %s2955, %s2916, 131072, [#allocation16], %s2965, 0
        $region72: #{tpu_custom_call.1} parent=43 // pred_fallthru
          _
      $region44: #{tpu_custom_call.1} parent=5 // pred_fallthru
        _
      %p2986 = scmp.le.s32.totalorder 2, %s27
      // Predicated region
      $region73: #{tpu_custom_call.1} parent=5 // pred_check
        %p2987 = pneg %p2986
      $region74: #{tpu_custom_call.1} parent=5 // pred_check_branch
        %2989 = sbr.rel (%p2987) target = $region76
      $region75: #{tpu_custom_call.1} parent=5 // pred_region
        %s2990 = ssub.s32 %s27, 2
        // Predicated region
        $region77: #{tpu_custom_call.1} parent=75 // pred_check
          %p2991 = pneg %p237
        $region78: #{tpu_custom_call.1} parent=75 // pred_check_branch
          %2993 = sbr.rel (%p2991) target = $region80
        $region79: #{tpu_custom_call.1} parent=75 // pred_region
          %s2994 = sand.u32 %s222, 1
          %s2995 = scalar_lea.sflag [#allocation6], %s2994
          %s2996 = sand.u32 %s222, 1
          %s2997 = smul.addr %s2996, 256
          %s2998 = scalar_lea.vmem [#allocation12], %s2997
          %2999 = dma.done %s2995, 4096
        $region80: #{tpu_custom_call.1} parent=75 // pred_fallthru
          _
        // Predicated region
        $region81: #{tpu_custom_call.1} parent=75 // pred_check
          %p3000 = pneg %p267
        $region82: #{tpu_custom_call.1} parent=75 // pred_check_branch
          %3002 = sbr.rel (%p3000) target = $region84
        $region83: #{tpu_custom_call.1} parent=75 // pred_region
          %s3003 = sand.u32 %s252, 1
          %s3004 = scalar_lea.sflag [#allocation14], %s3003
          %s3005 = sand.u32 %s252, 1
          %s3006 = smul.addr %s3005, 512
          %s3007 = scalar_lea.vmem [#allocation13], %s3006
          %3008 = dma.done %s3004, 8192
        $region84: #{tpu_custom_call.1} parent=75 // pred_fallthru
          _
      $region76: #{tpu_custom_call.1} parent=5 // pred_fallthru
        _
    $region6: #{tpu_custom_call.1} parent=1 // loop_footer
      %s31 = sadd.s32 1, %s27
    $region7: #{tpu_custom_call.1} parent=1 // loop_footer_branch
      %26 = sbr.rel target = $region3
    $region8: #{tpu_custom_call.1} parent=1 // loop_exit
      _
    %3009 = vsyncpa [#allocation5], 1
    %s3010 = scalar_lea.sflag [#allocation5], 1
    %3011 = vsyncpa %s3010, 1
    %3012 = vsyncpa [#allocation8], 1
    %s3013 = scalar_lea.sflag [#allocation8], 1
    %3014 = vsyncpa %s3013, 1
    %3015 = vsyncpa [#allocation11], 1
    %3016 = vsyncpa [#allocation6], 1
    %s3017 = scalar_lea.sflag [#allocation6], 1
    %3018 = vsyncpa %s3017, 1
    %3019 = vsyncpa [#allocation14], 1
    %s3020 = scalar_lea.sflag [#allocation14], 1
    %3021 = vsyncpa %s3020, 1

</llo_original>
